<compile_context>
chip_gen: v7x
topology: tpu7x:2x2x1
jax: 0.10.0
libtpu: 0.0.40
codegen_flags: <defaults>
</compile_context>

<pallas_src>
import functools

import jax
import jax.numpy as jnp
from jax.experimental import pallas as pl
from jax.experimental.pallas import tpu as pltpu

_PADL = 8  # physical column where image data starts inside the halo scratch
           # (8-aligned so the interior store never needs a sublane rotation;
           #  the logical 1-pixel halo sits at columns _PADL-1 and _PADL+W).


# ---------------------------------------------------------------------------
# In-kernel helpers (operate on values + VMEM scratch refs)
# ---------------------------------------------------------------------------

def _fill_halo(pad_ref, img, fill, H, W):
    """Write img (H, W, C) bf16 into the halo scratch with a 1-pixel border of `fill`."""
    C = img.shape[-1]
    pad_ref[...] = jnp.full(pad_ref.shape, fill, pad_ref.dtype)
    pad_ref[1:H + 1, _PADL:_PADL + W, :C] = img          # aligned interior store


def _conv3x3_bias_relu(pad_ref, col_ref, img, w, b, *, H, W):
    """3x3 conv (stride 1, pad 1) + bias + ReLU as ONE MXU dot with K = 9*C.

    img: (H, W, C) bf16; w: (9*C, Cout) bf16 with rows ordered (kh, kw, cin);
    b: (1, Cout) f32 (BN scale already folded into w, BN shift folded into b).
    Returns (H*W, Cout) f32.
    """
    C = img.shape[-1]
    _fill_halo(pad_ref, img, 0.0, H, W)
    # Assemble the (H*W, 9*C) im2col tile in VMEM: one sublane-shifted load per kw
    # column; the three kh row-slices per column walk the untiled axis (free).
    for kw in range(3):
        off = _PADL - 1 + kw
        shifted = pad_ref[:, off:off + W, :C]            # (H+2, W, C)
        for kh in range(3):
            t = kh * 3 + kw
            col_ref[:, t * C:(t + 1) * C] = shifted[kh:kh + H].reshape(H * W, C)
    z = jnp.dot(col_ref[:, :9 * C], w, preferred_element_type=jnp.float32)
    return jnp.maximum(z + b, 0.0)


def _maxpool3x3(pad_ref, img, *, H, W):
    """MaxPool2d(3, stride=1, padding=1) of img (H, W, C) bf16 -> (H*W, C) bf16."""
    C = img.shape[-1]
    neg = float(jnp.finfo(jnp.bfloat16).min)             # -inf surrogate for max-pool pad
    _fill_halo(pad_ref, img, neg, H, W)
    m = None
    for kw in range(3):
        off = _PADL - 1 + kw
        shifted = pad_ref[:, off:off + W, :C]            # (H+2, W, C)
        for kh in range(3):
            tap = shifted[kh:kh + H]
            m = tap if m is None else jnp.maximum(m, tap)
    return m.reshape(H * W, C)


# ---------------------------------------------------------------------------
# The single fused Inception kernel
# ---------------------------------------------------------------------------

def _inception_kernel(x_ref, w1_ref, b1_ref, w2_ref, b2_ref, w3b_ref, b3b_ref,
                      w3c_ref, b3c_ref, w4_ref, b4_ref, o_ref, pad_ref, col_ref,
                      *, H, W, Cin, o1, r2, c2, r3, c3, c4):
    bf16 = jnp.bfloat16
    x2d = x_ref[...].reshape(H * W, Cin)                 # (H*W, Cin) bf16

    # Branch1 + branch2-reduce + branch3-reduce share the input: one wide 1x1 GEMM.
    yf = jnp.dot(x2d, w1_ref[...], preferred_element_type=jnp.float32)
    yf = jnp.maximum(yf + b1_ref[...], 0.0)
    o_ref[:, :, :, :o1] = yf[:, :o1].reshape(1, H, W, o1).astype(o_ref.dtype)

    # Branch 2: (1x1 reduce above) -> 3x3 conv.
    y2 = _conv3x3_bias_relu(pad_ref, col_ref,
                            yf[:, o1:o1 + r2].astype(bf16).reshape(H, W, r2),
                            w2_ref[...], b2_ref[...], H=H, W=W)
    o_ref[:, :, :, o1:o1 + c2] = y2.reshape(1, H, W, c2).astype(o_ref.dtype)

    # Branch 3: (1x1 reduce above) -> 3x3 -> 3x3.
    y3 = _conv3x3_bias_relu(pad_ref, col_ref,
                            yf[:, o1 + r2:o1 + r2 + r3].astype(bf16).reshape(H, W, r3),
                            w3b_ref[...], b3b_ref[...], H=H, W=W)
    y3 = _conv3x3_bias_relu(pad_ref, col_ref, y3.astype(bf16).reshape(H, W, c3),
                            w3c_ref[...], b3c_ref[...], H=H, W=W)
    o_ref[:, :, :, o1 + c2:o1 + c2 + c3] = y3.reshape(1, H, W, c3).astype(o_ref.dtype)

    # Branch 4: maxpool(3, s1, p1) fused with its 1x1 conv; pooled tensor stays in VMEM.
    pooled = _maxpool3x3(pad_ref, x_ref[...].reshape(H, W, Cin), H=H, W=W)
    y4 = jnp.dot(pooled, w4_ref[...], preferred_element_type=jnp.float32)
    y4 = jnp.maximum(y4 + b4_ref[...], 0.0)
    o_ref[:, :, :, o1 + c2 + c3:] = y4.reshape(1, H, W, c4).astype(o_ref.dtype)


def inception_block_nhwc(params, x):
    """x: (B, H, W, Cin) bf16 NHWC -> (B, H, W, o1+c2+c3+c4) bf16 NHWC, one pallas_call."""
    B, H, W, Cin = x.shape
    r2, c2 = params["b2b"]["w"].shape[0] // 9, params["b2b"]["w"].shape[1]
    r3, c3 = params["b3b"]["w"].shape[0] // 9, params["b3b"]["w"].shape[1]
    c4 = params["b4"]["w"].shape[1]
    o1 = params["fused1x1"]["w"].shape[1] - r2 - r3
    ctot = o1 + c2 + c3 + c4
    cpad = max(Cin, r2, r3, c3)                 # halo scratch channel width
    ccol = 9 * max(r2, r3, c3)                  # im2col scratch width (largest K)

    kernel = functools.partial(_inception_kernel, H=H, W=W, Cin=Cin, o1=o1,
                               r2=r2, c2=c2, r3=r3, c3=c3, c4=c4)
    full2d = lambda b: (0, 0)
    return pl.pallas_call(
        kernel,
        out_shape=jax.ShapeDtypeStruct((B, H, W, ctot), jnp.bfloat16),
        grid_spec=pltpu.PrefetchScalarGridSpec(
            num_scalar_prefetch=0,
            grid=(B,),
            in_specs=[
                pl.BlockSpec((1, H, W, Cin), lambda b: (b, 0, 0, 0)),
                pl.BlockSpec(params["fused1x1"]["w"].shape, full2d),
                pl.BlockSpec(params["fused1x1"]["b"].shape, full2d),
                pl.BlockSpec(params["b2b"]["w"].shape, full2d),
                pl.BlockSpec(params["b2b"]["b"].shape, full2d),
                pl.BlockSpec(params["b3b"]["w"].shape, full2d),
                pl.BlockSpec(params["b3b"]["b"].shape, full2d),
                pl.BlockSpec(params["b3c"]["w"].shape, full2d),
                pl.BlockSpec(params["b3c"]["b"].shape, full2d),
                pl.BlockSpec(params["b4"]["w"].shape, full2d),
                pl.BlockSpec(params["b4"]["b"].shape, full2d),
            ],
            out_specs=pl.BlockSpec((1, H, W, ctot), lambda b: (b, 0, 0, 0)),
            scratch_shapes=[
                pltpu.VMEM((H + 2, W + _PADL + 1, cpad), jnp.bfloat16),  # halo scratch
                pltpu.VMEM((H * W, ccol), jnp.bfloat16),                 # im2col scratch
            ],
        ),
        compiler_params=pltpu.CompilerParams(
            # B >= 2 gives >= 2 "parallel" programs for v7x's two TensorCores; on
            # v5e/v6e the 2-step serial grid only costs ~0.35 us per extra step.
            dimension_semantics=("parallel",),
        ),
    )(x,
      params["fused1x1"]["w"], params["fused1x1"]["b"],
      params["b2b"]["w"], params["b2b"]["b"],
      params["b3b"]["w"], params["b3b"]["b"],
      params["b3c"]["w"], params["b3c"]["b"],
      params["b4"]["w"], params["b4"]["b"])


def inception_forward(params, x_nchw):
    """PyTorch-layout entry point: NCHW f32 in -> NCHW f32 out (torch.cat over dim=1)."""
    x = jnp.transpose(x_nchw, (0, 2, 3, 1)).astype(jnp.bfloat16)   # one entry transpose+cast
    out = inception_block_nhwc(params, x)                           # single fused kernel
    return jnp.transpose(out, (0, 3, 1, 2)).astype(jnp.float32)     # one exit transpose+cast


# ---------------------------------------------------------------------------
# Parameter init (deterministic, synthetic); BN folded into weights + bias
# ---------------------------------------------------------------------------

def _fold_bn(key, cout):
    kb, kg, kbt, km, kv = jax.random.split(key, 5)
    conv_b = 0.01 * jax.random.normal(kb, (cout,), jnp.float32)
    gamma = 1.0 + 0.1 * jax.random.normal(kg, (cout,), jnp.float32)
    beta = 0.1 * jax.random.normal(kbt, (cout,), jnp.float32)
    rmean = 0.1 * jax.random.normal(km, (cout,), jnp.float32)
    rvar = 1.0 + 0.1 * jax.random.uniform(kv, (cout,), jnp.float32)
    eps = 1e-5
    scale = gamma / jnp.sqrt(rvar + eps)                 # inference-mode BN fold
    bias = beta + (conv_b - rmean) * scale
    return scale, bias


def _init_conv1x1_bn(key, cin, cout):
    kw, kbn = jax.random.split(key)
    w = jax.random.normal(kw, (cin, cout), jnp.float32) / jnp.sqrt(float(cin))
    scale, bias = _fold_bn(kbn, cout)
    # BN scale folded into the weight (f32 fold, then bf16 cast) -> only bias in-kernel.
    return {"w": (w * scale[None, :]).astype(jnp.bfloat16), "b": bias.reshape(1, cout)}


def _init_conv3x3_bn(key, cin, cout):
    kw, kbn = jax.random.split(key)
    w = jax.random.normal(kw, (9, cin, cout), jnp.float32) / jnp.sqrt(float(9 * cin))
    scale, bias = _fold_bn(kbn, cout)
    w = (w * scale[None, None, :]).reshape(9 * cin, cout)   # rows ordered (kh, kw, cin)
    return {"w": w.astype(jnp.bfloat16), "b": bias.reshape(1, cout)}


def init_inception_params(key, inchannel, outchannel1, out1, outchannel2,
                          out2, outchannel3, outchannel4):
    k = jax.random.split(key, 7)
    b1 = _init_conv1x1_bn(k[0], inchannel, outchannel1)
    b2a = _init_conv1x1_bn(k[1], inchannel, out1)
    b3a = _init_conv1x1_bn(k[2], inchannel, out2)
    # The three parallel 1x1 convs reading the same input become one wide GEMM.
    fused = {"w": jnp.concatenate([b1["w"], b2a["w"], b3a["w"]], axis=1),
             "b": jnp.concatenate([b1["b"], b2a["b"], b3a["b"]], axis=1)}
    return {
        "fused1x1": fused,
        "b2b": _init_conv3x3_bn(k[3], out1, outchannel2),
        "b3b": _init_conv3x3_bn(k[4], out2, outchannel3),
        "b3c": _init_conv3x3_bn(k[5], outchannel3, outchannel3),
        "b4": _init_conv1x1_bn(k[6], inchannel, outchannel4),
    }


if __name__ == "__main__":
    key = jax.random.PRNGKey(0)
    pkey, xkey = jax.random.split(key)
    cfg = dict(inchannel=32, outchannel1=64, out1=48, outchannel2=64,
               out2=16, outchannel3=32, outchannel4=32)
    params = init_inception_params(pkey, **cfg)
    B, H, W = 2, 16, 16
    x = jax.random.normal(xkey, (B, cfg["inchannel"], H, W), jnp.float32)
    fwd = jax.jit(inception_forward)
    out = jax.block_until_ready(fwd(params, x))
    cout = cfg["outchannel1"] + cfg["outchannel2"] + cfg["outchannel3"] + cfg["outchannel4"]
    assert out.shape == (B, cout, H, W), out.shape
    assert bool(jnp.isfinite(out).all())
    print("KERNEL_OK")
</pallas_src>

<mosaic_0001>
module attributes {stable_mosaic.version = 11 : i64} {
  func.func @_inception_kernel(%arg0: i32, %arg1: memref<1x16x16x32xbf16, #tpu.memory_space<vmem>>, %arg2: memref<32x128xbf16, #tpu.memory_space<vmem>>, %arg3: memref<1x128xf32, #tpu.memory_space<vmem>>, %arg4: memref<432x64xbf16, #tpu.memory_space<vmem>>, %arg5: memref<1x64xf32, #tpu.memory_space<vmem>>, %arg6: memref<144x32xbf16, #tpu.memory_space<vmem>>, %arg7: memref<1x32xf32, #tpu.memory_space<vmem>>, %arg8: memref<288x32xbf16, #tpu.memory_space<vmem>>, %arg9: memref<1x32xf32, #tpu.memory_space<vmem>>, %arg10: memref<32x32xbf16, #tpu.memory_space<vmem>>, %arg11: memref<1x32xf32, #tpu.memory_space<vmem>>, %arg12: memref<1x16x16x192xbf16, #tpu.memory_space<vmem>>, %arg13: memref<18x25x48xbf16, #tpu.memory_space<vmem>>, %arg14: memref<256x432xbf16, #tpu.memory_space<vmem>>) attributes {dimension_semantics = [#tpu.dimension_semantics<parallel>], iteration_bounds = array<i64: 2>, scalar_prefetch = 0 : i64, scratch_operands = 2 : i64, tpu.core_type = #tpu.core_type<tc>, window_params = [{transform_indices = @transform_0, window_bounds = array<i64: 1, 16, 16, 32>}, {pipeline_mode = #tpu.pipeline_mode<synchronous>, transform_indices = @transform_1, window_bounds = array<i64: 32, 128>}, {pipeline_mode = #tpu.pipeline_mode<synchronous>, transform_indices = @transform_2, window_bounds = array<i64: 1, 128>}, {pipeline_mode = #tpu.pipeline_mode<synchronous>, transform_indices = @transform_3, window_bounds = array<i64: 432, 64>}, {pipeline_mode = #tpu.pipeline_mode<synchronous>, transform_indices = @transform_4, window_bounds = array<i64: 1, 64>}, {pipeline_mode = #tpu.pipeline_mode<synchronous>, transform_indices = @transform_5, window_bounds = array<i64: 144, 32>}, {pipeline_mode = #tpu.pipeline_mode<synchronous>, transform_indices = @transform_6, window_bounds = array<i64: 1, 32>}, {pipeline_mode = #tpu.pipeline_mode<synchronous>, transform_indices = @transform_7, window_bounds = array<i64: 288, 32>}, {pipeline_mode = #tpu.pipeline_mode<synchronous>, transform_indices = @transform_8, window_bounds = array<i64: 1, 32>}, {pipeline_mode = #tpu.pipeline_mode<synchronous>, transform_indices = @transform_9, window_bounds = array<i64: 32, 32>}, {pipeline_mode = #tpu.pipeline_mode<synchronous>, transform_indices = @transform_10, window_bounds = array<i64: 1, 32>}, {transform_indices = @transform_11, window_bounds = array<i64: 1, 16, 16, 192>}]} {
    %c0 = arith.constant 0 : index
    %c0_0 = arith.constant 0 : index
    %c0_1 = arith.constant 0 : index
    %c0_2 = arith.constant 0 : index
    %0 = vector.load %arg1[%c0, %c0_0, %c0_1, %c0_2] : memref<1x16x16x32xbf16, #tpu.memory_space<vmem>>, vector<1x16x16x32xbf16>
    %1 = vector.shape_cast %0 : vector<1x16x16x32xbf16> to vector<256x32xbf16>
    %c0_3 = arith.constant 0 : index
    %c0_4 = arith.constant 0 : index
    %2 = vector.load %arg2[%c0_3, %c0_4] : memref<32x128xbf16, #tpu.memory_space<vmem>>, vector<32x128xbf16>
    %cst = arith.constant dense<0.000000e+00> : vector<256x128xf32>
    %3 = tpu.matmul %1, %2, %cst {dimension_numbers = #tpu.dot_dimension_numbers<[1], [0], [0], [1], [0, 0, 1, 1], [], []>} : vector<256x32xbf16>, vector<32x128xbf16>, vector<256x128xf32> -> vector<256x128xf32>
    %c0_5 = arith.constant 0 : index
    %c0_6 = arith.constant 0 : index
    %4 = vector.load %arg3[%c0_5, %c0_6] : memref<1x128xf32, #tpu.memory_space<vmem>>, vector<1x128xf32>
    %5 = vector.broadcast %4 : vector<1x128xf32> to vector<256x128xf32>
    %6 = arith.addf %3, %5 : vector<256x128xf32>
    %cst_7 = arith.constant 0.000000e+00 : f32
    %7 = vector.broadcast %cst_7 : f32 to vector<256x128xf32>
    %8 = arith.maximumf %6, %7 : vector<256x128xf32>
    %9 = vector.extract_strided_slice %8 {offsets = [0, 0], sizes = [256, 64], strides = [1, 1]} : vector<256x128xf32> to vector<256x64xf32>
    %10 = vector.shape_cast %9 : vector<256x64xf32> to vector<1x16x16x64xf32>
    %11 = arith.truncf %10 : vector<1x16x16x64xf32> to vector<1x16x16x64xbf16>
    %c0_8 = arith.constant 0 : index
    %c0_9 = arith.constant 0 : index
    %c0_10 = arith.constant 0 : index
    %c0_11 = arith.constant 0 : index
    %12 = vector.load %arg12[%c0_8, %c0_9, %c0_10, %c0_11] : memref<1x16x16x192xbf16, #tpu.memory_space<vmem>>, vector<1x16x16x64xbf16>
    tpu.vector_store %arg12[%c0_8, %c0_9, %c0_10, %c0_11], %11 {strides = array<i32>} : memref<1x16x16x192xbf16, #tpu.memory_space<vmem>>, vector<1x16x16x64xbf16>,
    %13 = vector.extract_strided_slice %8 {offsets = [0, 64], sizes = [256, 48], strides = [1, 1]} : vector<256x128xf32> to vector<256x48xf32>
    %14 = arith.truncf %13 : vector<256x48xf32> to vector<256x48xbf16>
    %15 = vector.shape_cast %14 : vector<256x48xbf16> to vector<16x16x48xbf16>
    %c0_12 = arith.constant 0 : index
    %c0_13 = arith.constant 0 : index
    %16 = vector.load %arg4[%c0_12, %c0_13] : memref<432x64xbf16, #tpu.memory_space<vmem>>, vector<432x64xbf16>
    %c0_14 = arith.constant 0 : index
    %c0_15 = arith.constant 0 : index
    %17 = vector.load %arg5[%c0_14, %c0_15] : memref<1x64xf32, #tpu.memory_space<vmem>>, vector<1x64xf32>
    %cst_16 = arith.constant 0.000000e+00 : bf16
    %18 = vector.broadcast %cst_16 : bf16 to vector<18x25x48xbf16>
    %c0_17 = arith.constant 0 : index
    %c0_18 = arith.constant 0 : index
    %c0_19 = arith.constant 0 : index
    %19 = vector.load %arg13[%c0_17, %c0_18, %c0_19] : memref<18x25x48xbf16, #tpu.memory_space<vmem>>, vector<18x25x48xbf16>
    tpu.vector_store %arg13[%c0_17, %c0_18, %c0_19], %18 {strides = array<i32>} : memref<18x25x48xbf16, #tpu.memory_space<vmem>>, vector<18x25x48xbf16>,
    %c1 = arith.constant 1 : index
    %c8 = arith.constant 8 : index
    %c0_20 = arith.constant 0 : index
    %20 = vector.load %arg13[%c1, %c8, %c0_20] : memref<18x25x48xbf16, #tpu.memory_space<vmem>>, vector<16x16x48xbf16>
    tpu.vector_store %arg13[%c1, %c8, %c0_20], %15 {strides = array<i32>} : memref<18x25x48xbf16, #tpu.memory_space<vmem>>, vector<16x16x48xbf16>,
    %c0_21 = arith.constant 0 : index
    %c7 = arith.constant 7 : index
    %c0_22 = arith.constant 0 : index
    %21 = vector.load %arg13[%c0_21, %c7, %c0_22] : memref<18x25x48xbf16, #tpu.memory_space<vmem>>, vector<18x16x48xbf16>
    %22 = vector.extract_strided_slice %21 {offsets = [0, 0, 0], sizes = [16, 16, 48], strides = [1, 1, 1]} : vector<18x16x48xbf16> to vector<16x16x48xbf16>
    %23 = vector.shape_cast %22 : vector<16x16x48xbf16> to vector<256x48xbf16>
    %c0_23 = arith.constant 0 : index
    %c0_24 = arith.constant 0 : index
    %24 = vector.load %arg14[%c0_23, %c0_24] : memref<256x432xbf16, #tpu.memory_space<vmem>>, vector<256x48xbf16>
    tpu.vector_store %arg14[%c0_23, %c0_24], %23 {strides = array<i32>} : memref<256x432xbf16, #tpu.memory_space<vmem>>, vector<256x48xbf16>,
    %25 = vector.extract_strided_slice %21 {offsets = [1, 0, 0], sizes = [16, 16, 48], strides = [1, 1, 1]} : vector<18x16x48xbf16> to vector<16x16x48xbf16>
    %26 = vector.shape_cast %25 : vector<16x16x48xbf16> to vector<256x48xbf16>
    %c0_25 = arith.constant 0 : index
    %c144 = arith.constant 144 : index
    %27 = vector.load %arg14[%c0_25, %c144] : memref<256x432xbf16, #tpu.memory_space<vmem>>, vector<256x48xbf16>
    tpu.vector_store %arg14[%c0_25, %c144], %26 {strides = array<i32>} : memref<256x432xbf16, #tpu.memory_space<vmem>>, vector<256x48xbf16>,
    %28 = vector.extract_strided_slice %21 {offsets = [2, 0, 0], sizes = [16, 16, 48], strides = [1, 1, 1]} : vector<18x16x48xbf16> to vector<16x16x48xbf16>
    %29 = vector.shape_cast %28 : vector<16x16x48xbf16> to vector<256x48xbf16>
    %c0_26 = arith.constant 0 : index
    %c288 = arith.constant 288 : index
    %30 = vector.load %arg14[%c0_26, %c288] : memref<256x432xbf16, #tpu.memory_space<vmem>>, vector<256x48xbf16>
    tpu.vector_store %arg14[%c0_26, %c288], %29 {strides = array<i32>} : memref<256x432xbf16, #tpu.memory_space<vmem>>, vector<256x48xbf16>,
    %c0_27 = arith.constant 0 : index
    %c8_28 = arith.constant 8 : index
    %c0_29 = arith.constant 0 : index
    %31 = vector.load %arg13[%c0_27, %c8_28, %c0_29] : memref<18x25x48xbf16, #tpu.memory_space<vmem>>, vector<18x16x48xbf16>
    %32 = vector.extract_strided_slice %31 {offsets = [0, 0, 0], sizes = [16, 16, 48], strides = [1, 1, 1]} : vector<18x16x48xbf16> to vector<16x16x48xbf16>
    %33 = vector.shape_cast %32 : vector<16x16x48xbf16> to vector<256x48xbf16>
    %c0_30 = arith.constant 0 : index
    %c48 = arith.constant 48 : index
    %34 = vector.load %arg14[%c0_30, %c48] : memref<256x432xbf16, #tpu.memory_space<vmem>>, vector<256x48xbf16>
    tpu.vector_store %arg14[%c0_30, %c48], %33 {strides = array<i32>} : memref<256x432xbf16, #tpu.memory_space<vmem>>, vector<256x48xbf16>,
    %35 = vector.extract_strided_slice %31 {offsets = [1, 0, 0], sizes = [16, 16, 48], strides = [1, 1, 1]} : vector<18x16x48xbf16> to vector<16x16x48xbf16>
    %36 = vector.shape_cast %35 : vector<16x16x48xbf16> to vector<256x48xbf16>
    %c0_31 = arith.constant 0 : index
    %c192 = arith.constant 192 : index
    %37 = vector.load %arg14[%c0_31, %c192] : memref<256x432xbf16, #tpu.memory_space<vmem>>, vector<256x48xbf16>
    tpu.vector_store %arg14[%c0_31, %c192], %36 {strides = array<i32>} : memref<256x432xbf16, #tpu.memory_space<vmem>>, vector<256x48xbf16>,
    %38 = vector.extract_strided_slice %31 {offsets = [2, 0, 0], sizes = [16, 16, 48], strides = [1, 1, 1]} : vector<18x16x48xbf16> to vector<16x16x48xbf16>
    %39 = vector.shape_cast %38 : vector<16x16x48xbf16> to vector<256x48xbf16>
    %c0_32 = arith.constant 0 : index
    %c336 = arith.constant 336 : index
    %40 = vector.load %arg14[%c0_32, %c336] : memref<256x432xbf16, #tpu.memory_space<vmem>>, vector<256x48xbf16>
    tpu.vector_store %arg14[%c0_32, %c336], %39 {strides = array<i32>} : memref<256x432xbf16, #tpu.memory_space<vmem>>, vector<256x48xbf16>,
    %c0_33 = arith.constant 0 : index
    %c9 = arith.constant 9 : index
    %c0_34 = arith.constant 0 : index
    %41 = vector.load %arg13[%c0_33, %c9, %c0_34] : memref<18x25x48xbf16, #tpu.memory_space<vmem>>, vector<18x16x48xbf16>
    %42 = vector.extract_strided_slice %41 {offsets = [0, 0, 0], sizes = [16, 16, 48], strides = [1, 1, 1]} : vector<18x16x48xbf16> to vector<16x16x48xbf16>
    %43 = vector.shape_cast %42 : vector<16x16x48xbf16> to vector<256x48xbf16>
    %c0_35 = arith.constant 0 : index
    %c96 = arith.constant 96 : index
    %44 = vector.load %arg14[%c0_35, %c96] : memref<256x432xbf16, #tpu.memory_space<vmem>>, vector<256x48xbf16>
    tpu.vector_store %arg14[%c0_35, %c96], %43 {strides = array<i32>} : memref<256x432xbf16, #tpu.memory_space<vmem>>, vector<256x48xbf16>,
    %45 = vector.extract_strided_slice %41 {offsets = [1, 0, 0], sizes = [16, 16, 48], strides = [1, 1, 1]} : vector<18x16x48xbf16> to vector<16x16x48xbf16>
    %46 = vector.shape_cast %45 : vector<16x16x48xbf16> to vector<256x48xbf16>
    %c0_36 = arith.constant 0 : index
    %c240 = arith.constant 240 : index
    %47 = vector.load %arg14[%c0_36, %c240] : memref<256x432xbf16, #tpu.memory_space<vmem>>, vector<256x48xbf16>
    tpu.vector_store %arg14[%c0_36, %c240], %46 {strides = array<i32>} : memref<256x432xbf16, #tpu.memory_space<vmem>>, vector<256x48xbf16>,
    %48 = vector.extract_strided_slice %41 {offsets = [2, 0, 0], sizes = [16, 16, 48], strides = [1, 1, 1]} : vector<18x16x48xbf16> to vector<16x16x48xbf16>
    %49 = vector.shape_cast %48 : vector<16x16x48xbf16> to vector<256x48xbf16>
    %c0_37 = arith.constant 0 : index
    %c384 = arith.constant 384 : index
    %50 = vector.load %arg14[%c0_37, %c384] : memref<256x432xbf16, #tpu.memory_space<vmem>>, vector<256x48xbf16>
    tpu.vector_store %arg14[%c0_37, %c384], %49 {strides = array<i32>} : memref<256x432xbf16, #tpu.memory_space<vmem>>, vector<256x48xbf16>,
    %c0_38 = arith.constant 0 : index
    %c0_39 = arith.constant 0 : index
    %51 = vector.load %arg14[%c0_38, %c0_39] : memref<256x432xbf16, #tpu.memory_space<vmem>>, vector<256x432xbf16>
    %cst_40 = arith.constant dense<0.000000e+00> : vector<256x64xf32>
    %52 = tpu.matmul %51, %16, %cst_40 {dimension_numbers = #tpu.dot_dimension_numbers<[1], [0], [0], [1], [0, 0, 1, 1], [], []>} : vector<256x432xbf16>, vector<432x64xbf16>, vector<256x64xf32> -> vector<256x64xf32>
    %53 = vector.broadcast %17 : vector<1x64xf32> to vector<256x64xf32>
    %54 = arith.addf %52, %53 : vector<256x64xf32>
    %cst_41 = arith.constant 0.000000e+00 : f32
    %55 = vector.broadcast %cst_41 : f32 to vector<256x64xf32>
    %56 = arith.maximumf %54, %55 : vector<256x64xf32>
    %57 = vector.shape_cast %56 : vector<256x64xf32> to vector<1x16x16x64xf32>
    %58 = arith.truncf %57 : vector<1x16x16x64xf32> to vector<1x16x16x64xbf16>
    %c0_42 = arith.constant 0 : index
    %c0_43 = arith.constant 0 : index
    %c0_44 = arith.constant 0 : index
    %c64 = arith.constant 64 : index
    %59 = vector.load %arg12[%c0_42, %c0_43, %c0_44, %c64] : memref<1x16x16x192xbf16, #tpu.memory_space<vmem>>, vector<1x16x16x64xbf16>
    tpu.vector_store %arg12[%c0_42, %c0_43, %c0_44, %c64], %58 {strides = array<i32>} : memref<1x16x16x192xbf16, #tpu.memory_space<vmem>>, vector<1x16x16x64xbf16>,
    %60 = vector.extract_strided_slice %8 {offsets = [0, 112], sizes = [256, 16], strides = [1, 1]} : vector<256x128xf32> to vector<256x16xf32>
    %61 = arith.truncf %60 : vector<256x16xf32> to vector<256x16xbf16>
    %62 = vector.shape_cast %61 : vector<256x16xbf16> to vector<16x16x16xbf16>
    %c0_45 = arith.constant 0 : index
    %c0_46 = arith.constant 0 : index
    %63 = vector.load %arg6[%c0_45, %c0_46] : memref<144x32xbf16, #tpu.memory_space<vmem>>, vector<144x32xbf16>
    %c0_47 = arith.constant 0 : index
    %c0_48 = arith.constant 0 : index
    %64 = vector.load %arg7[%c0_47, %c0_48] : memref<1x32xf32, #tpu.memory_space<vmem>>, vector<1x32xf32>
    %cst_49 = arith.constant 0.000000e+00 : bf16
    %65 = vector.broadcast %cst_49 : bf16 to vector<18x25x48xbf16>
    %c0_50 = arith.constant 0 : index
    %c0_51 = arith.constant 0 : index
    %c0_52 = arith.constant 0 : index
    %66 = vector.load %arg13[%c0_50, %c0_51, %c0_52] : memref<18x25x48xbf16, #tpu.memory_space<vmem>>, vector<18x25x48xbf16>
    tpu.vector_store %arg13[%c0_50, %c0_51, %c0_52], %65 {strides = array<i32>} : memref<18x25x48xbf16, #tpu.memory_space<vmem>>, vector<18x25x48xbf16>,
    %c1_53 = arith.constant 1 : index
    %c8_54 = arith.constant 8 : index
    %c0_55 = arith.constant 0 : index
    %67 = vector.load %arg13[%c1_53, %c8_54, %c0_55] : memref<18x25x48xbf16, #tpu.memory_space<vmem>>, vector<16x16x16xbf16>
    tpu.vector_store %arg13[%c1_53, %c8_54, %c0_55], %62 {strides = array<i32>} : memref<18x25x48xbf16, #tpu.memory_space<vmem>>, vector<16x16x16xbf16>,
    %c0_56 = arith.constant 0 : index
    %c7_57 = arith.constant 7 : index
    %c0_58 = arith.constant 0 : index
    %68 = vector.load %arg13[%c0_56, %c7_57, %c0_58] : memref<18x25x48xbf16, #tpu.memory_space<vmem>>, vector<18x16x16xbf16>
    %69 = vector.extract_strided_slice %68 {offsets = [0, 0, 0], sizes = [16, 16, 16], strides = [1, 1, 1]} : vector<18x16x16xbf16> to vector<16x16x16xbf16>
    %70 = vector.shape_cast %69 : vector<16x16x16xbf16> to vector<256x16xbf16>
    %c0_59 = arith.constant 0 : index
    %c0_60 = arith.constant 0 : index
    %71 = vector.load %arg14[%c0_59, %c0_60] : memref<256x432xbf16, #tpu.memory_space<vmem>>, vector<256x16xbf16>
    tpu.vector_store %arg14[%c0_59, %c0_60], %70 {strides = array<i32>} : memref<256x432xbf16, #tpu.memory_space<vmem>>, vector<256x16xbf16>,
    %72 = vector.extract_strided_slice %68 {offsets = [1, 0, 0], sizes = [16, 16, 16], strides = [1, 1, 1]} : vector<18x16x16xbf16> to vector<16x16x16xbf16>
    %73 = vector.shape_cast %72 : vector<16x16x16xbf16> to vector<256x16xbf16>
    %c0_61 = arith.constant 0 : index
    %c48_62 = arith.constant 48 : index
    %74 = vector.load %arg14[%c0_61, %c48_62] : memref<256x432xbf16, #tpu.memory_space<vmem>>, vector<256x16xbf16>
    tpu.vector_store %arg14[%c0_61, %c48_62], %73 {strides = array<i32>} : memref<256x432xbf16, #tpu.memory_space<vmem>>, vector<256x16xbf16>,
    %75 = vector.extract_strided_slice %68 {offsets = [2, 0, 0], sizes = [16, 16, 16], strides = [1, 1, 1]} : vector<18x16x16xbf16> to vector<16x16x16xbf16>
    %76 = vector.shape_cast %75 : vector<16x16x16xbf16> to vector<256x16xbf16>
    %c0_63 = arith.constant 0 : index
    %c96_64 = arith.constant 96 : index
    %77 = vector.load %arg14[%c0_63, %c96_64] : memref<256x432xbf16, #tpu.memory_space<vmem>>, vector<256x16xbf16>
    tpu.vector_store %arg14[%c0_63, %c96_64], %76 {strides = array<i32>} : memref<256x432xbf16, #tpu.memory_space<vmem>>, vector<256x16xbf16>,
    %c0_65 = arith.constant 0 : index
    %c8_66 = arith.constant 8 : index
    %c0_67 = arith.constant 0 : index
    %78 = vector.load %arg13[%c0_65, %c8_66, %c0_67] : memref<18x25x48xbf16, #tpu.memory_space<vmem>>, vector<18x16x16xbf16>
    %79 = vector.extract_strided_slice %78 {offsets = [0, 0, 0], sizes = [16, 16, 16], strides = [1, 1, 1]} : vector<18x16x16xbf16> to vector<16x16x16xbf16>
    %80 = vector.shape_cast %79 : vector<16x16x16xbf16> to vector<256x16xbf16>
    %c0_68 = arith.constant 0 : index
    %c16 = arith.constant 16 : index
    %81 = vector.load %arg14[%c0_68, %c16] : memref<256x432xbf16, #tpu.memory_space<vmem>>, vector<256x16xbf16>
    tpu.vector_store %arg14[%c0_68, %c16], %80 {strides = array<i32>} : memref<256x432xbf16, #tpu.memory_space<vmem>>, vector<256x16xbf16>,
    %82 = vector.extract_strided_slice %78 {offsets = [1, 0, 0], sizes = [16, 16, 16], strides = [1, 1, 1]} : vector<18x16x16xbf16> to vector<16x16x16xbf16>
    %83 = vector.shape_cast %82 : vector<16x16x16xbf16> to vector<256x16xbf16>
    %c0_69 = arith.constant 0 : index
    %c64_70 = arith.constant 64 : index
    %84 = vector.load %arg14[%c0_69, %c64_70] : memref<256x432xbf16, #tpu.memory_space<vmem>>, vector<256x16xbf16>
    tpu.vector_store %arg14[%c0_69, %c64_70], %83 {strides = array<i32>} : memref<256x432xbf16, #tpu.memory_space<vmem>>, vector<256x16xbf16>,
    %85 = vector.extract_strided_slice %78 {offsets = [2, 0, 0], sizes = [16, 16, 16], strides = [1, 1, 1]} : vector<18x16x16xbf16> to vector<16x16x16xbf16>
    %86 = vector.shape_cast %85 : vector<16x16x16xbf16> to vector<256x16xbf16>
    %c0_71 = arith.constant 0 : index
    %c112 = arith.constant 112 : index
    %87 = vector.load %arg14[%c0_71, %c112] : memref<256x432xbf16, #tpu.memory_space<vmem>>, vector<256x16xbf16>
    tpu.vector_store %arg14[%c0_71, %c112], %86 {strides = array<i32>} : memref<256x432xbf16, #tpu.memory_space<vmem>>, vector<256x16xbf16>,
    %c0_72 = arith.constant 0 : index
    %c9_73 = arith.constant 9 : index
    %c0_74 = arith.constant 0 : index
    %88 = vector.load %arg13[%c0_72, %c9_73, %c0_74] : memref<18x25x48xbf16, #tpu.memory_space<vmem>>, vector<18x16x16xbf16>
    %89 = vector.extract_strided_slice %88 {offsets = [0, 0, 0], sizes = [16, 16, 16], strides = [1, 1, 1]} : vector<18x16x16xbf16> to vector<16x16x16xbf16>
    %90 = vector.shape_cast %89 : vector<16x16x16xbf16> to vector<256x16xbf16>
    %c0_75 = arith.constant 0 : index
    %c32 = arith.constant 32 : index
    %91 = vector.load %arg14[%c0_75, %c32] : memref<256x432xbf16, #tpu.memory_space<vmem>>, vector<256x16xbf16>
    tpu.vector_store %arg14[%c0_75, %c32], %90 {strides = array<i32>} : memref<256x432xbf16, #tpu.memory_space<vmem>>, vector<256x16xbf16>,
    %92 = vector.extract_strided_slice %88 {offsets = [1, 0, 0], sizes = [16, 16, 16], strides = [1, 1, 1]} : vector<18x16x16xbf16> to vector<16x16x16xbf16>
    %93 = vector.shape_cast %92 : vector<16x16x16xbf16> to vector<256x16xbf16>
    %c0_76 = arith.constant 0 : index
    %c80 = arith.constant 80 : index
    %94 = vector.load %arg14[%c0_76, %c80] : memref<256x432xbf16, #tpu.memory_space<vmem>>, vector<256x16xbf16>
    tpu.vector_store %arg14[%c0_76, %c80], %93 {strides = array<i32>} : memref<256x432xbf16, #tpu.memory_space<vmem>>, vector<256x16xbf16>,
    %95 = vector.extract_strided_slice %88 {offsets = [2, 0, 0], sizes = [16, 16, 16], strides = [1, 1, 1]} : vector<18x16x16xbf16> to vector<16x16x16xbf16>
    %96 = vector.shape_cast %95 : vector<16x16x16xbf16> to vector<256x16xbf16>
    %c0_77 = arith.constant 0 : index
    %c128 = arith.constant 128 : index
    %97 = vector.load %arg14[%c0_77, %c128] : memref<256x432xbf16, #tpu.memory_space<vmem>>, vector<256x16xbf16>
    tpu.vector_store %arg14[%c0_77, %c128], %96 {strides = array<i32>} : memref<256x432xbf16, #tpu.memory_space<vmem>>, vector<256x16xbf16>,
    %c0_78 = arith.constant 0 : index
    %c0_79 = arith.constant 0 : index
    %98 = vector.load %arg14[%c0_78, %c0_79] : memref<256x432xbf16, #tpu.memory_space<vmem>>, vector<256x144xbf16>
    %cst_80 = arith.constant dense<0.000000e+00> : vector<256x32xf32>
    %99 = tpu.matmul %98, %63, %cst_80 {dimension_numbers = #tpu.dot_dimension_numbers<[1], [0], [0], [1], [0, 0, 1, 1], [], []>} : vector<256x144xbf16>, vector<144x32xbf16>, vector<256x32xf32> -> vector<256x32xf32>
    %100 = vector.broadcast %64 : vector<1x32xf32> to vector<256x32xf32>
    %101 = arith.addf %99, %100 : vector<256x32xf32>
    %cst_81 = arith.constant 0.000000e+00 : f32
    %102 = vector.broadcast %cst_81 : f32 to vector<256x32xf32>
    %103 = arith.maximumf %101, %102 : vector<256x32xf32>
    %104 = arith.truncf %103 : vector<256x32xf32> to vector<256x32xbf16>
    %105 = vector.shape_cast %104 : vector<256x32xbf16> to vector<16x16x32xbf16>
    %c0_82 = arith.constant 0 : index
    %c0_83 = arith.constant 0 : index
    %106 = vector.load %arg8[%c0_82, %c0_83] : memref<288x32xbf16, #tpu.memory_space<vmem>>, vector<288x32xbf16>
    %c0_84 = arith.constant 0 : index
    %c0_85 = arith.constant 0 : index
    %107 = vector.load %arg9[%c0_84, %c0_85] : memref<1x32xf32, #tpu.memory_space<vmem>>, vector<1x32xf32>
    %cst_86 = arith.constant 0.000000e+00 : bf16
    %108 = vector.broadcast %cst_86 : bf16 to vector<18x25x48xbf16>
    %c0_87 = arith.constant 0 : index
    %c0_88 = arith.constant 0 : index
    %c0_89 = arith.constant 0 : index
    %109 = vector.load %arg13[%c0_87, %c0_88, %c0_89] : memref<18x25x48xbf16, #tpu.memory_space<vmem>>, vector<18x25x48xbf16>
    tpu.vector_store %arg13[%c0_87, %c0_88, %c0_89], %108 {strides = array<i32>} : memref<18x25x48xbf16, #tpu.memory_space<vmem>>, vector<18x25x48xbf16>,
    %c1_90 = arith.constant 1 : index
    %c8_91 = arith.constant 8 : index
    %c0_92 = arith.constant 0 : index
    %110 = vector.load %arg13[%c1_90, %c8_91, %c0_92] : memref<18x25x48xbf16, #tpu.memory_space<vmem>>, vector<16x16x32xbf16>
    tpu.vector_store %arg13[%c1_90, %c8_91, %c0_92], %105 {strides = array<i32>} : memref<18x25x48xbf16, #tpu.memory_space<vmem>>, vector<16x16x32xbf16>,
    %c0_93 = arith.constant 0 : index
    %c7_94 = arith.constant 7 : index
    %c0_95 = arith.constant 0 : index
    %111 = vector.load %arg13[%c0_93, %c7_94, %c0_95] : memref<18x25x48xbf16, #tpu.memory_space<vmem>>, vector<18x16x32xbf16>
    %112 = vector.extract_strided_slice %111 {offsets = [0, 0, 0], sizes = [16, 16, 32], strides = [1, 1, 1]} : vector<18x16x32xbf16> to vector<16x16x32xbf16>
    %113 = vector.shape_cast %112 : vector<16x16x32xbf16> to vector<256x32xbf16>
    %c0_96 = arith.constant 0 : index
    %c0_97 = arith.constant 0 : index
    %114 = vector.load %arg14[%c0_96, %c0_97] : memref<256x432xbf16, #tpu.memory_space<vmem>>, vector<256x32xbf16>
    tpu.vector_store %arg14[%c0_96, %c0_97], %113 {strides = array<i32>} : memref<256x432xbf16, #tpu.memory_space<vmem>>, vector<256x32xbf16>,
    %115 = vector.extract_strided_slice %111 {offsets = [1, 0, 0], sizes = [16, 16, 32], strides = [1, 1, 1]} : vector<18x16x32xbf16> to vector<16x16x32xbf16>
    %116 = vector.shape_cast %115 : vector<16x16x32xbf16> to vector<256x32xbf16>
    %c0_98 = arith.constant 0 : index
    %c96_99 = arith.constant 96 : index
    %117 = vector.load %arg14[%c0_98, %c96_99] : memref<256x432xbf16, #tpu.memory_space<vmem>>, vector<256x32xbf16>
    tpu.vector_store %arg14[%c0_98, %c96_99], %116 {strides = array<i32>} : memref<256x432xbf16, #tpu.memory_space<vmem>>, vector<256x32xbf16>,
    %118 = vector.extract_strided_slice %111 {offsets = [2, 0, 0], sizes = [16, 16, 32], strides = [1, 1, 1]} : vector<18x16x32xbf16> to vector<16x16x32xbf16>
    %119 = vector.shape_cast %118 : vector<16x16x32xbf16> to vector<256x32xbf16>
    %c0_100 = arith.constant 0 : index
    %c192_101 = arith.constant 192 : index
    %120 = vector.load %arg14[%c0_100, %c192_101] : memref<256x432xbf16, #tpu.memory_space<vmem>>, vector<256x32xbf16>
    tpu.vector_store %arg14[%c0_100, %c192_101], %119 {strides = array<i32>} : memref<256x432xbf16, #tpu.memory_space<vmem>>, vector<256x32xbf16>,
    %c0_102 = arith.constant 0 : index
    %c8_103 = arith.constant 8 : index
    %c0_104 = arith.constant 0 : index
    %121 = vector.load %arg13[%c0_102, %c8_103, %c0_104] : memref<18x25x48xbf16, #tpu.memory_space<vmem>>, vector<18x16x32xbf16>
    %122 = vector.extract_strided_slice %121 {offsets = [0, 0, 0], sizes = [16, 16, 32], strides = [1, 1, 1]} : vector<18x16x32xbf16> to vector<16x16x32xbf16>
    %123 = vector.shape_cast %122 : vector<16x16x32xbf16> to vector<256x32xbf16>
    %c0_105 = arith.constant 0 : index
    %c32_106 = arith.constant 32 : index
    %124 = vector.load %arg14[%c0_105, %c32_106] : memref<256x432xbf16, #tpu.memory_space<vmem>>, vector<256x32xbf16>
    tpu.vector_store %arg14[%c0_105, %c32_106], %123 {strides = array<i32>} : memref<256x432xbf16, #tpu.memory_space<vmem>>, vector<256x32xbf16>,
    %125 = vector.extract_strided_slice %121 {offsets = [1, 0, 0], sizes = [16, 16, 32], strides = [1, 1, 1]} : vector<18x16x32xbf16> to vector<16x16x32xbf16>
    %126 = vector.shape_cast %125 : vector<16x16x32xbf16> to vector<256x32xbf16>
    %c0_107 = arith.constant 0 : index
    %c128_108 = arith.constant 128 : index
    %127 = vector.load %arg14[%c0_107, %c128_108] : memref<256x432xbf16, #tpu.memory_space<vmem>>, vector<256x32xbf16>
    tpu.vector_store %arg14[%c0_107, %c128_108], %126 {strides = array<i32>} : memref<256x432xbf16, #tpu.memory_space<vmem>>, vector<256x32xbf16>,
    %128 = vector.extract_strided_slice %121 {offsets = [2, 0, 0], sizes = [16, 16, 32], strides = [1, 1, 1]} : vector<18x16x32xbf16> to vector<16x16x32xbf16>
    %129 = vector.shape_cast %128 : vector<16x16x32xbf16> to vector<256x32xbf16>
    %c0_109 = arith.constant 0 : index
    %c224 = arith.constant 224 : index
    %130 = vector.load %arg14[%c0_109, %c224] : memref<256x432xbf16, #tpu.memory_space<vmem>>, vector<256x32xbf16>
    tpu.vector_store %arg14[%c0_109, %c224], %129 {strides = array<i32>} : memref<256x432xbf16, #tpu.memory_space<vmem>>, vector<256x32xbf16>,
    %c0_110 = arith.constant 0 : index
    %c9_111 = arith.constant 9 : index
    %c0_112 = arith.constant 0 : index
    %131 = vector.load %arg13[%c0_110, %c9_111, %c0_112] : memref<18x25x48xbf16, #tpu.memory_space<vmem>>, vector<18x16x32xbf16>
    %132 = vector.extract_strided_slice %131 {offsets = [0, 0, 0], sizes = [16, 16, 32], strides = [1, 1, 1]} : vector<18x16x32xbf16> to vector<16x16x32xbf16>
    %133 = vector.shape_cast %132 : vector<16x16x32xbf16> to vector<256x32xbf16>
    %c0_113 = arith.constant 0 : index
    %c64_114 = arith.constant 64 : index
    %134 = vector.load %arg14[%c0_113, %c64_114] : memref<256x432xbf16, #tpu.memory_space<vmem>>, vector<256x32xbf16>
    tpu.vector_store %arg14[%c0_113, %c64_114], %133 {strides = array<i32>} : memref<256x432xbf16, #tpu.memory_space<vmem>>, vector<256x32xbf16>,
    %135 = vector.extract_strided_slice %131 {offsets = [1, 0, 0], sizes = [16, 16, 32], strides = [1, 1, 1]} : vector<18x16x32xbf16> to vector<16x16x32xbf16>
    %136 = vector.shape_cast %135 : vector<16x16x32xbf16> to vector<256x32xbf16>
    %c0_115 = arith.constant 0 : index
    %c160 = arith.constant 160 : index
    %137 = vector.load %arg14[%c0_115, %c160] : memref<256x432xbf16, #tpu.memory_space<vmem>>, vector<256x32xbf16>
    tpu.vector_store %arg14[%c0_115, %c160], %136 {strides = array<i32>} : memref<256x432xbf16, #tpu.memory_space<vmem>>, vector<256x32xbf16>,
    %138 = vector.extract_strided_slice %131 {offsets = [2, 0, 0], sizes = [16, 16, 32], strides = [1, 1, 1]} : vector<18x16x32xbf16> to vector<16x16x32xbf16>
    %139 = vector.shape_cast %138 : vector<16x16x32xbf16> to vector<256x32xbf16>
    %c0_116 = arith.constant 0 : index
    %c256 = arith.constant 256 : index
    %140 = vector.load %arg14[%c0_116, %c256] : memref<256x432xbf16, #tpu.memory_space<vmem>>, vector<256x32xbf16>
    tpu.vector_store %arg14[%c0_116, %c256], %139 {strides = array<i32>} : memref<256x432xbf16, #tpu.memory_space<vmem>>, vector<256x32xbf16>,
    %c0_117 = arith.constant 0 : index
    %c0_118 = arith.constant 0 : index
    %141 = vector.load %arg14[%c0_117, %c0_118] : memref<256x432xbf16, #tpu.memory_space<vmem>>, vector<256x288xbf16>
    %cst_119 = arith.constant dense<0.000000e+00> : vector<256x32xf32>
    %142 = tpu.matmul %141, %106, %cst_119 {dimension_numbers = #tpu.dot_dimension_numbers<[1], [0], [0], [1], [0, 0, 1, 1], [], []>} : vector<256x288xbf16>, vector<288x32xbf16>, vector<256x32xf32> -> vector<256x32xf32>
    %143 = vector.broadcast %107 : vector<1x32xf32> to vector<256x32xf32>
    %144 = arith.addf %142, %143 : vector<256x32xf32>
    %cst_120 = arith.constant 0.000000e+00 : f32
    %145 = vector.broadcast %cst_120 : f32 to vector<256x32xf32>
    %146 = arith.maximumf %144, %145 : vector<256x32xf32>
    %147 = vector.shape_cast %146 : vector<256x32xf32> to vector<1x16x16x32xf32>
    %148 = arith.truncf %147 : vector<1x16x16x32xf32> to vector<1x16x16x32xbf16>
    %c0_121 = arith.constant 0 : index
    %c0_122 = arith.constant 0 : index
    %c0_123 = arith.constant 0 : index
    %c128_124 = arith.constant 128 : index
    %149 = vector.load %arg12[%c0_121, %c0_122, %c0_123, %c128_124] : memref<1x16x16x192xbf16, #tpu.memory_space<vmem>>, vector<1x16x16x32xbf16>
    tpu.vector_store %arg12[%c0_121, %c0_122, %c0_123, %c128_124], %148 {strides = array<i32>} : memref<1x16x16x192xbf16, #tpu.memory_space<vmem>>, vector<1x16x16x32xbf16>,
    %c0_125 = arith.constant 0 : index
    %c0_126 = arith.constant 0 : index
    %c0_127 = arith.constant 0 : index
    %c0_128 = arith.constant 0 : index
    %150 = vector.load %arg1[%c0_125, %c0_126, %c0_127, %c0_128] : memref<1x16x16x32xbf16, #tpu.memory_space<vmem>>, vector<1x16x16x32xbf16>
    %151 = vector.shape_cast %150 : vector<1x16x16x32xbf16> to vector<16x16x32xbf16>
    %cst_129 = arith.constant -3.389530e+38 : bf16
    %152 = vector.broadcast %cst_129 : bf16 to vector<18x25x48xbf16>
    %c0_130 = arith.constant 0 : index
    %c0_131 = arith.constant 0 : index
    %c0_132 = arith.constant 0 : index
    %153 = vector.load %arg13[%c0_130, %c0_131, %c0_132] : memref<18x25x48xbf16, #tpu.memory_space<vmem>>, vector<18x25x48xbf16>
    tpu.vector_store %arg13[%c0_130, %c0_131, %c0_132], %152 {strides = array<i32>} : memref<18x25x48xbf16, #tpu.memory_space<vmem>>, vector<18x25x48xbf16>,
    %c1_133 = arith.constant 1 : index
    %c8_134 = arith.constant 8 : index
    %c0_135 = arith.constant 0 : index
    %154 = vector.load %arg13[%c1_133, %c8_134, %c0_135] : memref<18x25x48xbf16, #tpu.memory_space<vmem>>, vector<16x16x32xbf16>
    tpu.vector_store %arg13[%c1_133, %c8_134, %c0_135], %151 {strides = array<i32>} : memref<18x25x48xbf16, #tpu.memory_space<vmem>>, vector<16x16x32xbf16>,
    %c0_136 = arith.constant 0 : index
    %c7_137 = arith.constant 7 : index
    %c0_138 = arith.constant 0 : index
    %155 = vector.load %arg13[%c0_136, %c7_137, %c0_138] : memref<18x25x48xbf16, #tpu.memory_space<vmem>>, vector<18x16x32xbf16>
    %156 = vector.extract_strided_slice %155 {offsets = [0, 0, 0], sizes = [16, 16, 32], strides = [1, 1, 1]} : vector<18x16x32xbf16> to vector<16x16x32xbf16>
    %157 = vector.extract_strided_slice %155 {offsets = [1, 0, 0], sizes = [16, 16, 32], strides = [1, 1, 1]} : vector<18x16x32xbf16> to vector<16x16x32xbf16>
    %158 = arith.maximumf %156, %157 : vector<16x16x32xbf16>
    %159 = vector.extract_strided_slice %155 {offsets = [2, 0, 0], sizes = [16, 16, 32], strides = [1, 1, 1]} : vector<18x16x32xbf16> to vector<16x16x32xbf16>
    %160 = arith.maximumf %158, %159 : vector<16x16x32xbf16>
    %c0_139 = arith.constant 0 : index
    %c8_140 = arith.constant 8 : index
    %c0_141 = arith.constant 0 : index
    %161 = vector.load %arg13[%c0_139, %c8_140, %c0_141] : memref<18x25x48xbf16, #tpu.memory_space<vmem>>, vector<18x16x32xbf16>
    %162 = vector.extract_strided_slice %161 {offsets = [0, 0, 0], sizes = [16, 16, 32], strides = [1, 1, 1]} : vector<18x16x32xbf16> to vector<16x16x32xbf16>
    %163 = arith.maximumf %160, %162 : vector<16x16x32xbf16>
    %164 = vector.extract_strided_slice %161 {offsets = [1, 0, 0], sizes = [16, 16, 32], strides = [1, 1, 1]} : vector<18x16x32xbf16> to vector<16x16x32xbf16>
    %165 = arith.maximumf %163, %164 : vector<16x16x32xbf16>
    %166 = vector.extract_strided_slice %161 {offsets = [2, 0, 0], sizes = [16, 16, 32], strides = [1, 1, 1]} : vector<18x16x32xbf16> to vector<16x16x32xbf16>
    %167 = arith.maximumf %165, %166 : vector<16x16x32xbf16>
    %c0_142 = arith.constant 0 : index
    %c9_143 = arith.constant 9 : index
    %c0_144 = arith.constant 0 : index
    %168 = vector.load %arg13[%c0_142, %c9_143, %c0_144] : memref<18x25x48xbf16, #tpu.memory_space<vmem>>, vector<18x16x32xbf16>
    %169 = vector.extract_strided_slice %168 {offsets = [0, 0, 0], sizes = [16, 16, 32], strides = [1, 1, 1]} : vector<18x16x32xbf16> to vector<16x16x32xbf16>
    %170 = arith.maximumf %167, %169 : vector<16x16x32xbf16>
    %171 = vector.extract_strided_slice %168 {offsets = [1, 0, 0], sizes = [16, 16, 32], strides = [1, 1, 1]} : vector<18x16x32xbf16> to vector<16x16x32xbf16>
    %172 = arith.maximumf %170, %171 : vector<16x16x32xbf16>
    %173 = vector.extract_strided_slice %168 {offsets = [2, 0, 0], sizes = [16, 16, 32], strides = [1, 1, 1]} : vector<18x16x32xbf16> to vector<16x16x32xbf16>
    %174 = arith.maximumf %172, %173 : vector<16x16x32xbf16>
    %175 = vector.shape_cast %174 : vector<16x16x32xbf16> to vector<256x32xbf16>
    %c0_145 = arith.constant 0 : index
    %c0_146 = arith.constant 0 : index
    %176 = vector.load %arg10[%c0_145, %c0_146] : memref<32x32xbf16, #tpu.memory_space<vmem>>, vector<32x32xbf16>
    %cst_147 = arith.constant dense<0.000000e+00> : vector<256x32xf32>
    %177 = tpu.matmul %175, %176, %cst_147 {dimension_numbers = #tpu.dot_dimension_numbers<[1], [0], [0], [1], [0, 0, 1, 1], [], []>} : vector<256x32xbf16>, vector<32x32xbf16>, vector<256x32xf32> -> vector<256x32xf32>
    %c0_148 = arith.constant 0 : index
    %c0_149 = arith.constant 0 : index
    %178 = vector.load %arg11[%c0_148, %c0_149] : memref<1x32xf32, #tpu.memory_space<vmem>>, vector<1x32xf32>
    %179 = vector.broadcast %178 : vector<1x32xf32> to vector<256x32xf32>
    %180 = arith.addf %177, %179 : vector<256x32xf32>
    %cst_150 = arith.constant 0.000000e+00 : f32
    %181 = vector.broadcast %cst_150 : f32 to vector<256x32xf32>
    %182 = arith.maximumf %180, %181 : vector<256x32xf32>
    %183 = vector.shape_cast %182 : vector<256x32xf32> to vector<1x16x16x32xf32>
    %184 = arith.truncf %183 : vector<1x16x16x32xf32> to vector<1x16x16x32xbf16>
    %c0_151 = arith.constant 0 : index
    %c0_152 = arith.constant 0 : index
    %c0_153 = arith.constant 0 : index
    %c160_154 = arith.constant 160 : index
    %185 = vector.load %arg12[%c0_151, %c0_152, %c0_153, %c160_154] : memref<1x16x16x192xbf16, #tpu.memory_space<vmem>>, vector<1x16x16x32xbf16>
    tpu.vector_store %arg12[%c0_151, %c0_152, %c0_153, %c160_154], %184 {strides = array<i32>} : memref<1x16x16x192xbf16, #tpu.memory_space<vmem>>, vector<1x16x16x32xbf16>,
    return
  }
  func.func @transform_0(%arg0: i32) -> (i32, i32, i32, i32) {
    %c0_i32 = arith.constant 0 : i32
    %c0_i32_0 = arith.constant 0 : i32
    %c0_i32_1 = arith.constant 0 : i32
    %c0_i32_2 = arith.constant 0 : i32
    return %arg0, %c0_i32, %c0_i32_0, %c0_i32_1 : i32, i32, i32, i32
  }
  func.func @transform_1(%arg0: i32) -> (i32, i32) {
    %c0_i32 = arith.constant 0 : i32
    %c0_i32_0 = arith.constant 0 : i32
    %c0_i32_1 = arith.constant 0 : i32
    return %c0_i32, %c0_i32_0 : i32, i32
  }
  func.func @transform_2(%arg0: i32) -> (i32, i32) {
    %c0_i32 = arith.constant 0 : i32
    %c0_i32_0 = arith.constant 0 : i32
    %c0_i32_1 = arith.constant 0 : i32
    return %c0_i32, %c0_i32_0 : i32, i32
  }
  func.func @transform_3(%arg0: i32) -> (i32, i32) {
    %c0_i32 = arith.constant 0 : i32
    %c0_i32_0 = arith.constant 0 : i32
    %c0_i32_1 = arith.constant 0 : i32
    return %c0_i32, %c0_i32_0 : i32, i32
  }
  func.func @transform_4(%arg0: i32) -> (i32, i32) {
    %c0_i32 = arith.constant 0 : i32
    %c0_i32_0 = arith.constant 0 : i32
    %c0_i32_1 = arith.constant 0 : i32
    return %c0_i32, %c0_i32_0 : i32, i32
  }
  func.func @transform_5(%arg0: i32) -> (i32, i32) {
    %c0_i32 = arith.constant 0 : i32
    %c0_i32_0 = arith.constant 0 : i32
    %c0_i32_1 = arith.constant 0 : i32
    return %c0_i32, %c0_i32_0 : i32, i32
  }
  func.func @transform_6(%arg0: i32) -> (i32, i32) {
    %c0_i32 = arith.constant 0 : i32
    %c0_i32_0 = arith.constant 0 : i32
    %c0_i32_1 = arith.constant 0 : i32
    return %c0_i32, %c0_i32_0 : i32, i32
  }
  func.func @transform_7(%arg0: i32) -> (i32, i32) {
    %c0_i32 = arith.constant 0 : i32
    %c0_i32_0 = arith.constant 0 : i32
    %c0_i32_1 = arith.constant 0 : i32
    return %c0_i32, %c0_i32_0 : i32, i32
  }
  func.func @transform_8(%arg0: i32) -> (i32, i32) {
    %c0_i32 = arith.constant 0 : i32
    %c0_i32_0 = arith.constant 0 : i32
    %c0_i32_1 = arith.constant 0 : i32
    return %c0_i32, %c0_i32_0 : i32, i32
  }
  func.func @transform_9(%arg0: i32) -> (i32, i32) {
    %c0_i32 = arith.constant 0 : i32
    %c0_i32_0 = arith.constant 0 : i32
    %c0_i32_1 = arith.constant 0 : i32
    return %c0_i32, %c0_i32_0 : i32, i32
  }
  func.func @transform_10(%arg0: i32) -> (i32, i32) {
    %c0_i32 = arith.constant 0 : i32
    %c0_i32_0 = arith.constant 0 : i32
    %c0_i32_1 = arith.constant 0 : i32
    return %c0_i32, %c0_i32_0 : i32, i32
  }
  func.func @transform_11(%arg0: i32) -> (i32, i32, i32, i32) {
    %c0_i32 = arith.constant 0 : i32
    %c0_i32_0 = arith.constant 0 : i32
    %c0_i32_1 = arith.constant 0 : i32
    %c0_i32_2 = arith.constant 0 : i32
    return %arg0, %c0_i32, %c0_i32_0, %c0_i32_1 : i32, i32, i32, i32
  }
}

</mosaic_0001>

<llo_original>
// kernel: inception_forward.1
$region0: #{inception_forward.1}
  #allocation0 [shape = 'u32[]', space=smem, size = 0x4, offset = 0x4, fixed_abs, tag = 'smem constant byte address 0x4 - core index']
  #allocation1 [shape = 'u32[144,128]{1,0:T(1,128)}', space=vmem, size = 0x12000, scoped, tag = 'internal scratch']
  #allocation2 [shape = 'bf16[18,25,48]{2,1,0:T(8,128)(2,1)}', space=vmem, size = 0x24000, scoped, tag = 'scratch operand']
  #allocation3 [shape = 'bf16[256,432]{1,0:T(16,128)(2,1)}', space=vmem, size = 0x40000, scoped, tag = 'scratch operand']
  %s0 = inlined_call_operand.vmem [shape: bf16[2,16,16,32], index: 0, kind: input, shape index: {}]
  %s1 = inlined_call_operand.vmem [shape: bf16[32,128], index: 1, kind: input, shape index: {}]
  %s2 = inlined_call_operand.vmem [shape: f32[1,128], index: 2, kind: input, shape index: {}]
  %s3 = inlined_call_operand.vmem [shape: bf16[432,64], index: 3, kind: input, shape index: {}]
  %s4 = inlined_call_operand.vmem [shape: f32[1,64], index: 4, kind: input, shape index: {}]
  %s5 = inlined_call_operand.vmem [shape: bf16[144,32], index: 5, kind: input, shape index: {}]
  %s6 = inlined_call_operand.vmem [shape: f32[1,32], index: 6, kind: input, shape index: {}]
  %s7 = inlined_call_operand.vmem [shape: bf16[288,32], index: 7, kind: input, shape index: {}]
  %s8 = inlined_call_operand.vmem [shape: f32[1,32], index: 8, kind: input, shape index: {}]
  %s9 = inlined_call_operand.vmem [shape: bf16[32,32], index: 9, kind: input, shape index: {}]
  %s10 = inlined_call_operand.vmem [shape: f32[1,32], index: 10, kind: input, shape index: {}]
  %s11 = inlined_call_operand.vmem [shape: bf16[2,16,16,192], index: 11, kind: output, shape index: {}]
  %s12 = sld [smem:[#allocation0]]
  $region77: #{inception_forward.1} parent=0
    _
  %s14 = ssub.s32 1, %s12
  %s15 = scalar_select 0, %s14, %s12
  loop: start=0, step=1, limit=4
  $region2: #{inception_forward.1} parent=0 // loop_pre_header
    _
  $region3: #{inception_forward.1} parent=0 // loop_header
    %s17 = sphi 0, %s21
    %p18 = scmp.ge.s32.totalorder %s17, 4
    %s27 = sphi 0, %s29
    %s30 = sphi 0, %s27
    %s31 = sphi 0, %s30
    %s47 = sphi 0, %s31
    %s51 = sphi 0, %s51
    %s53 = sphi 0, %s51
    %s54 = sphi 0, %s53
    %s68 = sphi 0, %s54
    %s72 = sphi 0, %s72
    %s74 = sphi 0, %s72
    %s75 = sphi 0, %s74
    %s89 = sphi 0, %s75
    %s93 = sphi 0, %s93
    %s95 = sphi 0, %s93
    %s96 = sphi 0, %s95
    %s110 = sphi 0, %s96
    %s114 = sphi 0, %s114
    %s116 = sphi 0, %s114
    %s117 = sphi 0, %s116
    %s131 = sphi 0, %s117
    %s135 = sphi 0, %s135
    %s137 = sphi 0, %s135
    %s138 = sphi 0, %s137
    %s152 = sphi 0, %s138
    %s156 = sphi 0, %s156
    %s158 = sphi 0, %s156
    %s159 = sphi 0, %s158
    %s173 = sphi 0, %s159
    %s177 = sphi 0, %s177
    %s179 = sphi 0, %s177
    %s180 = sphi 0, %s179
    %s194 = sphi 0, %s180
    %s198 = sphi 0, %s198
    %s200 = sphi 0, %s198
    %s201 = sphi 0, %s200
    %s215 = sphi 0, %s201
    %s219 = sphi 0, %s219
    %s221 = sphi 0, %s219
    %s222 = sphi 0, %s221
    %s236 = sphi 0, %s222
    %s240 = sphi 0, %s240
    %s242 = sphi 0, %s240
    %s243 = sphi 0, %s242
    %s257 = sphi 0, %s243
    %s263 = sphi 0, %s265
    %s266 = sphi 0, %s263
    %s267 = sphi 0, %s266
    %s283 = sphi 0, %s267
  $region4: #{inception_forward.1} parent=0 // loop_header_branch
    %20 = sbr.rel (%p18) target = $region8
  $region5: #{inception_forward.1} parent=0 // loop_body
    %s22 = ssub.s32 %s17, 1
    %s23 = ssub.s32 %s17, 2
    %s24 = sadd.s32 %s17, 1
    %s25 = ssub.s32 %s17, %s24
    %p26 = scmp.eq.s32.totalorder %s25, 0
    %s28 = sadd.s32 %s27, 1
    %s29 = scalar_select %p26, %s27, %s28
    %p32 = pneg %p26
    %p33 = scmp.eq.s32.totalorder %s17, 1
    %p34 = por %p32, %p33
    %p35 = scmp.ne.s32.totalorder %s27, %s30
    %p36 = scmp.eq.s32.totalorder %s17, 0
    %p37 = por %p35, %p36
    %p38 = scmp.ne.s32.totalorder %s27, %s30
    %p39 = scmp.eq.s32.totalorder %s22, 1
    %p40 = por %p38, %p39
    %p41 = scmp.ne.s32.totalorder %s30, %s31
    %p42 = scmp.eq.s32.totalorder %s22, 0
    %p43 = por %p41, %p42
    %p44 = scmp.ne.s32.totalorder %s30, %s31
    %p45 = scmp.eq.s32.totalorder %s23, 1
    %p46 = por %p44, %p45
    %p48 = scmp.ne.s32.totalorder %s31, %s47
    %p49 = scmp.eq.s32.totalorder %s23, 0
    %p50 = por %p48, %p49
    %s52 = sadd.s32 %s51, 1
    %p55 = scmp.eq.s32.totalorder %s17, 1
    %p56 = scmp.ne.s32.totalorder %s51, %s53
    %p57 = scmp.eq.s32.totalorder %s17, 0
    %p58 = por %p56, %p57
    %p59 = scmp.ne.s32.totalorder %s51, %s53
    %p60 = scmp.eq.s32.totalorder %s22, 1
    %p61 = por %p59, %p60
    %p62 = scmp.ne.s32.totalorder %s53, %s54
    %p63 = scmp.eq.s32.totalorder %s22, 0
    %p64 = por %p62, %p63
    %p65 = scmp.ne.s32.totalorder %s53, %s54
    %p66 = scmp.eq.s32.totalorder %s23, 1
    %p67 = por %p65, %p66
    %p69 = scmp.ne.s32.totalorder %s54, %s68
    %p70 = scmp.eq.s32.totalorder %s23, 0
    %p71 = por %p69, %p70
    %s73 = sadd.s32 %s72, 1
    %p76 = scmp.eq.s32.totalorder %s17, 1
    %p77 = scmp.ne.s32.totalorder %s72, %s74
    %p78 = scmp.eq.s32.totalorder %s17, 0
    %p79 = por %p77, %p78
    %p80 = scmp.ne.s32.totalorder %s72, %s74
    %p81 = scmp.eq.s32.totalorder %s22, 1
    %p82 = por %p80, %p81
    %p83 = scmp.ne.s32.totalorder %s74, %s75
    %p84 = scmp.eq.s32.totalorder %s22, 0
    %p85 = por %p83, %p84
    %p86 = scmp.ne.s32.totalorder %s74, %s75
    %p87 = scmp.eq.s32.totalorder %s23, 1
    %p88 = por %p86, %p87
    %p90 = scmp.ne.s32.totalorder %s75, %s89
    %p91 = scmp.eq.s32.totalorder %s23, 0
    %p92 = por %p90, %p91
    %s94 = sadd.s32 %s93, 1
    %p97 = scmp.eq.s32.totalorder %s17, 1
    %p98 = scmp.ne.s32.totalorder %s93, %s95
    %p99 = scmp.eq.s32.totalorder %s17, 0
    %p100 = por %p98, %p99
    %p101 = scmp.ne.s32.totalorder %s93, %s95
    %p102 = scmp.eq.s32.totalorder %s22, 1
    %p103 = por %p101, %p102
    %p104 = scmp.ne.s32.totalorder %s95, %s96
    %p105 = scmp.eq.s32.totalorder %s22, 0
    %p106 = por %p104, %p105
    %p107 = scmp.ne.s32.totalorder %s95, %s96
    %p108 = scmp.eq.s32.totalorder %s23, 1
    %p109 = por %p107, %p108
    %p111 = scmp.ne.s32.totalorder %s96, %s110
    %p112 = scmp.eq.s32.totalorder %s23, 0
    %p113 = por %p111, %p112
    %s115 = sadd.s32 %s114, 1
    %p118 = scmp.eq.s32.totalorder %s17, 1
    %p119 = scmp.ne.s32.totalorder %s114, %s116
    %p120 = scmp.eq.s32.totalorder %s17, 0
    %p121 = por %p119, %p120
    %p122 = scmp.ne.s32.totalorder %s114, %s116
    %p123 = scmp.eq.s32.totalorder %s22, 1
    %p124 = por %p122, %p123
    %p125 = scmp.ne.s32.totalorder %s116, %s117
    %p126 = scmp.eq.s32.totalorder %s22, 0
    %p127 = por %p125, %p126
    %p128 = scmp.ne.s32.totalorder %s116, %s117
    %p129 = scmp.eq.s32.totalorder %s23, 1
    %p130 = por %p128, %p129
    %p132 = scmp.ne.s32.totalorder %s117, %s131
    %p133 = scmp.eq.s32.totalorder %s23, 0
    %p134 = por %p132, %p133
    %s136 = sadd.s32 %s135, 1
    %p139 = scmp.eq.s32.totalorder %s17, 1
    %p140 = scmp.ne.s32.totalorder %s135, %s137
    %p141 = scmp.eq.s32.totalorder %s17, 0
    %p142 = por %p140, %p141
    %p143 = scmp.ne.s32.totalorder %s135, %s137
    %p144 = scmp.eq.s32.totalorder %s22, 1
    %p145 = por %p143, %p144
    %p146 = scmp.ne.s32.totalorder %s137, %s138
    %p147 = scmp.eq.s32.totalorder %s22, 0
    %p148 = por %p146, %p147
    %p149 = scmp.ne.s32.totalorder %s137, %s138
    %p150 = scmp.eq.s32.totalorder %s23, 1
    %p151 = por %p149, %p150
    %p153 = scmp.ne.s32.totalorder %s138, %s152
    %p154 = scmp.eq.s32.totalorder %s23, 0
    %p155 = por %p153, %p154
    %s157 = sadd.s32 %s156, 1
    %p160 = scmp.eq.s32.totalorder %s17, 1
    %p161 = scmp.ne.s32.totalorder %s156, %s158
    %p162 = scmp.eq.s32.totalorder %s17, 0
    %p163 = por %p161, %p162
    %p164 = scmp.ne.s32.totalorder %s156, %s158
    %p165 = scmp.eq.s32.totalorder %s22, 1
    %p166 = por %p164, %p165
    %p167 = scmp.ne.s32.totalorder %s158, %s159
    %p168 = scmp.eq.s32.totalorder %s22, 0
    %p169 = por %p167, %p168
    %p170 = scmp.ne.s32.totalorder %s158, %s159
    %p171 = scmp.eq.s32.totalorder %s23, 1
    %p172 = por %p170, %p171
    %p174 = scmp.ne.s32.totalorder %s159, %s173
    %p175 = scmp.eq.s32.totalorder %s23, 0
    %p176 = por %p174, %p175
    %s178 = sadd.s32 %s177, 1
    %p181 = scmp.eq.s32.totalorder %s17, 1
    %p182 = scmp.ne.s32.totalorder %s177, %s179
    %p183 = scmp.eq.s32.totalorder %s17, 0
    %p184 = por %p182, %p183
    %p185 = scmp.ne.s32.totalorder %s177, %s179
    %p186 = scmp.eq.s32.totalorder %s22, 1
    %p187 = por %p185, %p186
    %p188 = scmp.ne.s32.totalorder %s179, %s180
    %p189 = scmp.eq.s32.totalorder %s22, 0
    %p190 = por %p188, %p189
    %p191 = scmp.ne.s32.totalorder %s179, %s180
    %p192 = scmp.eq.s32.totalorder %s23, 1
    %p193 = por %p191, %p192
    %p195 = scmp.ne.s32.totalorder %s180, %s194
    %p196 = scmp.eq.s32.totalorder %s23, 0
    %p197 = por %p195, %p196
    %s199 = sadd.s32 %s198, 1
    %p202 = scmp.eq.s32.totalorder %s17, 1
    %p203 = scmp.ne.s32.totalorder %s198, %s200
    %p204 = scmp.eq.s32.totalorder %s17, 0
    %p205 = por %p203, %p204
    %p206 = scmp.ne.s32.totalorder %s198, %s200
    %p207 = scmp.eq.s32.totalorder %s22, 1
    %p208 = por %p206, %p207
    %p209 = scmp.ne.s32.totalorder %s200, %s201
    %p210 = scmp.eq.s32.totalorder %s22, 0
    %p211 = por %p209, %p210
    %p212 = scmp.ne.s32.totalorder %s200, %s201
    %p213 = scmp.eq.s32.totalorder %s23, 1
    %p214 = por %p212, %p213
    %p216 = scmp.ne.s32.totalorder %s201, %s215
    %p217 = scmp.eq.s32.totalorder %s23, 0
    %p218 = por %p216, %p217
    %s220 = sadd.s32 %s219, 1
    %p223 = scmp.eq.s32.totalorder %s17, 1
    %p224 = scmp.ne.s32.totalorder %s219, %s221
    %p225 = scmp.eq.s32.totalorder %s17, 0
    %p226 = por %p224, %p225
    %p227 = scmp.ne.s32.totalorder %s219, %s221
    %p228 = scmp.eq.s32.totalorder %s22, 1
    %p229 = por %p227, %p228
    %p230 = scmp.ne.s32.totalorder %s221, %s222
    %p231 = scmp.eq.s32.totalorder %s22, 0
    %p232 = por %p230, %p231
    %p233 = scmp.ne.s32.totalorder %s221, %s222
    %p234 = scmp.eq.s32.totalorder %s23, 1
    %p235 = por %p233, %p234
    %p237 = scmp.ne.s32.totalorder %s222, %s236
    %p238 = scmp.eq.s32.totalorder %s23, 0
    %p239 = por %p237, %p238
    %s241 = sadd.s32 %s240, 1
    %p244 = scmp.eq.s32.totalorder %s17, 1
    %p245 = scmp.ne.s32.totalorder %s240, %s242
    %p246 = scmp.eq.s32.totalorder %s17, 0
    %p247 = por %p245, %p246
    %p248 = scmp.ne.s32.totalorder %s240, %s242
    %p249 = scmp.eq.s32.totalorder %s22, 1
    %p250 = por %p248, %p249
    %p251 = scmp.ne.s32.totalorder %s242, %s243
    %p252 = scmp.eq.s32.totalorder %s22, 0
    %p253 = por %p251, %p252
    %p254 = scmp.ne.s32.totalorder %s242, %s243
    %p255 = scmp.eq.s32.totalorder %s23, 1
    %p256 = por %p254, %p255
    %p258 = scmp.ne.s32.totalorder %s243, %s257
    %p259 = scmp.eq.s32.totalorder %s23, 0
    %p260 = por %p258, %p259
    %s261 = ssub.s32 %s17, %s24
    %p262 = scmp.eq.s32.totalorder %s261, 0
    %s264 = sadd.s32 %s263, 1
    %s265 = scalar_select %p262, %s263, %s264
    %p268 = pneg %p262
    %p269 = scmp.eq.s32.totalorder %s17, 1
    %p270 = por %p268, %p269
    %p271 = scmp.ne.s32.totalorder %s263, %s266
    %p272 = scmp.eq.s32.totalorder %s17, 0
    %p273 = por %p271, %p272
    %p274 = scmp.ne.s32.totalorder %s263, %s266
    %p275 = scmp.eq.s32.totalorder %s22, 1
    %p276 = por %p274, %p275
    %p277 = scmp.ne.s32.totalorder %s266, %s267
    %p278 = scmp.eq.s32.totalorder %s22, 0
    %p279 = por %p277, %p278
    %p280 = scmp.ne.s32.totalorder %s266, %s267
    %p281 = scmp.eq.s32.totalorder %s23, 1
    %p282 = por %p280, %p281
    %p284 = scmp.ne.s32.totalorder %s267, %s283
    %p285 = scmp.eq.s32.totalorder %s23, 0
    %p286 = por %p284, %p285
    %p287 = scmp.le.s32.totalorder 1, %s17
    %p288 = scmp.lt.s32.totalorder %s17, 3
    %p289 = pnand %p287, %p288
    %p290 = pneg %p289
    // Predicated region
    $region9: #{inception_forward.1} parent=5 // pred_check
      _
    $region10: #{inception_forward.1} parent=5 // pred_check_branch
      %292 = sbr.rel (%p289) target = $region12
    $region11: #{inception_forward.1} parent=5 // pred_region
      %s293 = ssub.s32 %s17, 1
      // Predicated region
      $region13: #{inception_forward.1} parent=11 // pred_check
        %p294 = pneg %p64
      $region14: #{inception_forward.1} parent=11 // pred_check_branch
        %296 = sbr.rel (%p294) target = $region16
      $region15: #{inception_forward.1} parent=11 // pred_region
        _
      $region16: #{inception_forward.1} parent=11 // pred_fallthru
        _
      // Predicated region
      $region17: #{inception_forward.1} parent=11 // pred_check
        %p297 = pneg %p85
      $region18: #{inception_forward.1} parent=11 // pred_check_branch
        %299 = sbr.rel (%p297) target = $region20
      $region19: #{inception_forward.1} parent=11 // pred_region
        _
      $region20: #{inception_forward.1} parent=11 // pred_fallthru
        _
      // Predicated region
      $region21: #{inception_forward.1} parent=11 // pred_check
        %p300 = pneg %p106
      $region22: #{inception_forward.1} parent=11 // pred_check_branch
        %302 = sbr.rel (%p300) target = $region24
      $region23: #{inception_forward.1} parent=11 // pred_region
        _
      $region24: #{inception_forward.1} parent=11 // pred_fallthru
        _
      // Predicated region
      $region25: #{inception_forward.1} parent=11 // pred_check
        %p303 = pneg %p127
      $region26: #{inception_forward.1} parent=11 // pred_check_branch
        %305 = sbr.rel (%p303) target = $region28
      $region27: #{inception_forward.1} parent=11 // pred_region
        _
      $region28: #{inception_forward.1} parent=11 // pred_fallthru
        _
      // Predicated region
      $region29: #{inception_forward.1} parent=11 // pred_check
        %p306 = pneg %p148
      $region30: #{inception_forward.1} parent=11 // pred_check_branch
        %308 = sbr.rel (%p306) target = $region32
      $region31: #{inception_forward.1} parent=11 // pred_region
        _
      $region32: #{inception_forward.1} parent=11 // pred_fallthru
        _
      // Predicated region
      $region33: #{inception_forward.1} parent=11 // pred_check
        %p309 = pneg %p169
      $region34: #{inception_forward.1} parent=11 // pred_check_branch
        %311 = sbr.rel (%p309) target = $region36
      $region35: #{inception_forward.1} parent=11 // pred_region
        _
      $region36: #{inception_forward.1} parent=11 // pred_fallthru
        _
      // Predicated region
      $region37: #{inception_forward.1} parent=11 // pred_check
        %p312 = pneg %p190
      $region38: #{inception_forward.1} parent=11 // pred_check_branch
        %314 = sbr.rel (%p312) target = $region40
      $region39: #{inception_forward.1} parent=11 // pred_region
        _
      $region40: #{inception_forward.1} parent=11 // pred_fallthru
        _
      // Predicated region
      $region41: #{inception_forward.1} parent=11 // pred_check
        %p315 = pneg %p211
      $region42: #{inception_forward.1} parent=11 // pred_check_branch
        %317 = sbr.rel (%p315) target = $region44
      $region43: #{inception_forward.1} parent=11 // pred_region
        _
      $region44: #{inception_forward.1} parent=11 // pred_fallthru
        _
      // Predicated region
      $region45: #{inception_forward.1} parent=11 // pred_check
        %p318 = pneg %p232
      $region46: #{inception_forward.1} parent=11 // pred_check_branch
        %320 = sbr.rel (%p318) target = $region48
      $region47: #{inception_forward.1} parent=11 // pred_region
        _
      $region48: #{inception_forward.1} parent=11 // pred_fallthru
        _
      // Predicated region
      $region49: #{inception_forward.1} parent=11 // pred_check
        %p321 = pneg %p253
      $region50: #{inception_forward.1} parent=11 // pred_check_branch
        %323 = sbr.rel (%p321) target = $region52
      $region51: #{inception_forward.1} parent=11 // pred_region
        _
      $region52: #{inception_forward.1} parent=11 // pred_fallthru
        _
    $region12: #{inception_forward.1} parent=5 // pred_fallthru
      _
    %p324 = scmp.lt.s32.totalorder %s17, 2
    // Predicated region
    $region53: #{inception_forward.1} parent=5 // pred_check
      %p325 = pneg %p324
    $region54: #{inception_forward.1} parent=5 // pred_check_branch
      %327 = sbr.rel (%p325) target = $region56
    $region55: #{inception_forward.1} parent=5 // pred_region
      // Predicated region
      $region57: #{inception_forward.1} parent=55 // pred_check
        %p328 = pneg %p37
      $region58: #{inception_forward.1} parent=55 // pred_check_branch
        %330 = sbr.rel (%p328) target = $region60
      $region59: #{inception_forward.1} parent=55 // pred_region
        %p331 = scmp.lt.s32.totalorder %s17, 1
        %s332 = scalar_select %p331, %s17, 1
        %s333 = smul.addr %s332, 32
        %s334 = smul.addr %s333, 4
        %s335 = scalar_lea.vmem %s0, %s334
      $region60: #{inception_forward.1} parent=55 // pred_fallthru
        _
    $region56: #{inception_forward.1} parent=5 // pred_fallthru
      _
    %p336 = scmp.le.s32.totalorder 1, %s17
    %p337 = scmp.lt.s32.totalorder %s17, 3
    %p338 = pnand %p336, %p337
    %p339 = pneg %p338
    // Predicated region
    $region61: #{inception_forward.1} parent=5 // pred_check
      _
    $region62: #{inception_forward.1} parent=5 // pred_check_branch
      %341 = sbr.rel (%p338) target = $region64
    $region63: #{inception_forward.1} parent=5 // pred_region
      %s342 = ssub.s32 %s17, 1
      %p343 = scmp.lt.s32.totalorder %s22, 1
      %s344 = scalar_select %p343, %s22, 1
      %s345 = smul.addr %s344, 32
      %s346 = smul.addr %s345, 4
      %s347 = scalar_lea.vmem %s0, %s346
      %p348 = pneg %p43
      %p349 = pneg %p40
      %p350 = pneg %p64
      %p351 = pneg %p61
      %p352 = pneg %p85
      %p353 = pneg %p82
      %p354 = pneg %p106
      %p355 = pneg %p103
      %p356 = pneg %p127
      %p357 = pneg %p124
      %p358 = pneg %p148
      %p359 = pneg %p145
      %p360 = pneg %p169
      %p361 = pneg %p166
      %p362 = pneg %p190
      %p363 = pneg %p187
      %p364 = pneg %p211
      %p365 = pneg %p208
      %p366 = pneg %p232
      %p367 = pneg %p229
      %p368 = pneg %p253
      %p369 = pneg %p250
      %p370 = pneg %p279
      %p371 = pneg %p276
      %p372 = scmp.lt.s32.totalorder %s22, 1
      %s373 = scalar_select %p372, %s22, 1
      %s374 = smul.addr %s373, 64
      %s375 = smul.addr %s374, 4
      %s376 = scalar_lea.vmem %s11, %s375
      %p377 = scmp.lt.s32.totalorder %s22, 1
      %s378 = scalar_select %p377, %s22, 1
      %s379 = smul.addr %s378, 32
      %s380 = smul.addr %s379, 4
      %s381 = scalar_lea.vmem %s0, %s380
      %p382 = scmp.lt.s32.totalorder %s22, 1
      %s383 = scalar_select %p382, %s22, 1
      %s384 = smul.addr %s383, 64
      %s385 = smul.addr %s384, 4
      %s386 = scalar_lea.vmem %s11, %s385
      %v389 = vld [vmem:[%s381] sm:$0xf]
      %v390 = vld [vmem:[%s381 + $0x4] sm:$0xf]
      %v391 = vld [vmem:[%s381 + $0x8] sm:$0xf]
      %v392 = vld [vmem:[%s381 + $0xc] sm:$0xf]
      %v393 = vld [vmem:[%s381 + $0x10] sm:$0xf]
      %v394 = vld [vmem:[%s381 + $0x14] sm:$0xf]
      %v395 = vld [vmem:[%s381 + $0x18] sm:$0xf]
      %v396 = vld [vmem:[%s381 + $0x1c] sm:$0xf]
      %v397 = vld [vmem:[%s381 + $0x20] sm:$0xf]
      %v398 = vld [vmem:[%s381 + $0x24] sm:$0xf]
      %v399 = vld [vmem:[%s381 + $0x28] sm:$0xf]
      %v400 = vld [vmem:[%s381 + $0x2c] sm:$0xf]
      %v401 = vld [vmem:[%s381 + $0x30] sm:$0xf]
      %v402 = vld [vmem:[%s381 + $0x34] sm:$0xf]
      %v403 = vld [vmem:[%s381 + $0x38] sm:$0xf]
      %v404 = vld [vmem:[%s381 + $0x3c] sm:$0xf]
      %v405 = vld [vmem:[%s381 + $0x40] sm:$0xf]
      %v406 = vld [vmem:[%s381 + $0x44] sm:$0xf]
      %v407 = vld [vmem:[%s381 + $0x48] sm:$0xf]
      %v408 = vld [vmem:[%s381 + $0x4c] sm:$0xf]
      %v409 = vld [vmem:[%s381 + $0x50] sm:$0xf]
      %v410 = vld [vmem:[%s381 + $0x54] sm:$0xf]
      %v411 = vld [vmem:[%s381 + $0x58] sm:$0xf]
      %v412 = vld [vmem:[%s381 + $0x5c] sm:$0xf]
      %v413 = vld [vmem:[%s381 + $0x60] sm:$0xf]
      %v414 = vld [vmem:[%s381 + $0x64] sm:$0xf]
      %v415 = vld [vmem:[%s381 + $0x68] sm:$0xf]
      %v416 = vld [vmem:[%s381 + $0x6c] sm:$0xf]
      %v417 = vld [vmem:[%s381 + $0x70] sm:$0xf]
      %v418 = vld [vmem:[%s381 + $0x74] sm:$0xf]
      %v419 = vld [vmem:[%s381 + $0x78] sm:$0xf]
      %v420 = vld [vmem:[%s381 + $0x7c] sm:$0xf]
      %v421 = vld [vmem:[%s1] sm:$0xf]
      %v422 = vld [vmem:[%s1 + $0x4] sm:$0xf]
      %v423 = vld [vmem:[%s1 + $0x8] sm:$0xf]
      %v424 = vld [vmem:[%s1 + $0xc] sm:$0xf]
      %v425 = vld [vmem:[%s2] sm:$0x1]
      %v427 = vlaneseq
      %v428 = vshrl.u32 %v427, 7
      %v429 = vsub.s32 0, %v428
      %v430 = vrot.slane %v425, %v429
      %v464 = vunpack.c.l.b16 %v389
      %v465 = vunpack.c.l.b16 %v390
      %v466 = vunpack.c.l.b16 %v391
      %v467 = vunpack.c.l.b16 %v392
      %v468 = vunpack.c.l.b16 %v393
      %v469 = vunpack.c.l.b16 %v394
      %v470 = vunpack.c.l.b16 %v395
      %v471 = vunpack.c.l.b16 %v396
      %v472 = vunpack.c.l.b16 %v397
      %v473 = vunpack.c.l.b16 %v398
      %v474 = vunpack.c.l.b16 %v399
      %v475 = vunpack.c.l.b16 %v400
      %v476 = vunpack.c.l.b16 %v401
      %v477 = vunpack.c.l.b16 %v402
      %v478 = vunpack.c.l.b16 %v403
      %v479 = vunpack.c.l.b16 %v404
      %v480 = vunpack.c.l.b16 %v405
      %v481 = vunpack.c.l.b16 %v406
      %v482 = vunpack.c.l.b16 %v407
      %v483 = vunpack.c.l.b16 %v408
      %v484 = vunpack.c.l.b16 %v409
      %v485 = vunpack.c.l.b16 %v410
      %v486 = vunpack.c.l.b16 %v411
      %v487 = vunpack.c.l.b16 %v412
      %v488 = vunpack.c.l.b16 %v413
      %v489 = vunpack.c.l.b16 %v414
      %v490 = vunpack.c.l.b16 %v415
      %v491 = vunpack.c.l.b16 %v416
      %v492 = vunpack.c.l.b16 %v417
      %v493 = vunpack.c.l.b16 %v418
      %v494 = vunpack.c.l.b16 %v419
      %v495 = vunpack.c.l.b16 %v420
      %v496 = vpack.c.b16 %v465, %v464
      %v497 = vpack.c.b16 %v467, %v466
      %v498 = vpack.c.b16 %v469, %v468
      %v499 = vpack.c.b16 %v471, %v470
      %v500 = vpack.c.b16 %v473, %v472
      %v501 = vpack.c.b16 %v475, %v474
      %v502 = vpack.c.b16 %v477, %v476
      %v503 = vpack.c.b16 %v479, %v478
      %v504 = vpack.c.b16 %v481, %v480
      %v505 = vpack.c.b16 %v483, %v482
      %v506 = vpack.c.b16 %v485, %v484
      %v507 = vpack.c.b16 %v487, %v486
      %v508 = vpack.c.b16 %v489, %v488
      %v509 = vpack.c.b16 %v491, %v490
      %v510 = vpack.c.b16 %v493, %v492
      %v511 = vpack.c.b16 %v495, %v494
      %v516 = vunpack.c.l.b16 %v421
      %v517 = vunpack.c.l.b16 %v422
      %v518 = vunpack.c.l.b16 %v423
      %v519 = vunpack.c.l.b16 %v424
      %v520 = vpack.c.b16 %v517, %v516
      %v521 = vpack.c.b16 %v519, %v518
      %vm524 = vcmask 261120
      %v526 = vsel %vm524, %v496, 0
      %v529 = vsel %vm524, %v497, 0
      %v532 = vsel %vm524, %v498, 0
      %v535 = vsel %vm524, %v499, 0
      %v538 = vsel %vm524, %v500, 0
      %v541 = vsel %vm524, %v501, 0
      %v544 = vsel %vm524, %v502, 0
      %v547 = vsel %vm524, %v503, 0
      %v550 = vsel %vm524, %v504, 0
      %v553 = vsel %vm524, %v505, 0
      %v556 = vsel %vm524, %v506, 0
      %v559 = vsel %vm524, %v507, 0
      %v562 = vsel %vm524, %v508, 0
      %v565 = vsel %vm524, %v509, 0
      %v568 = vsel %vm524, %v510, 0
      %v571 = vsel %vm524, %v511, 0
      %573 = vmatprep.subr.bf16.mxu0 0
      %574 = vmatpush1.bf16.msra.mxu0 %v520
      %575 = vmatprep.subr.bf16.mxu0 0
      %576 = vmatpush1.bf16.msra.mxu0 %v521
      %577 = vmatprep.subr.bf16.mxu0 0
      %578 = vmatpush1.bf16.msra.mxu0 0
      %579 = vmatprep.subr.bf16.mxu0 0
      %580 = vmatpush1.bf16.msra.mxu0 0
      %581 = vmatprep.subr.bf16.mxu0 0
      %582 = vmatpush1.bf16.msra.mxu0 0
      %583 = vmatprep.subr.bf16.mxu0 0
      %584 = vmatpush1.bf16.msra.mxu0 0
      %585 = vmatprep.subr.bf16.mxu0 0
      %586 = vmatpush1.bf16.msra.mxu0 0
      %587 = vmatprep.subr.bf16.mxu0 0
      %588 = vmatpush1.bf16.msra.mxu0 0
      %589 = vmatprep.subr.bf16.mxu0 0
      %590 = vmatpush1.bf16.msra.mxu0 0
      %591 = vmatprep.subr.bf16.mxu0 0
      %592 = vmatpush1.bf16.msra.mxu0 0
      %593 = vmatprep.subr.bf16.mxu0 0
      %594 = vmatpush1.bf16.msra.mxu0 0
      %595 = vmatprep.subr.bf16.mxu0 0
      %596 = vmatpush1.bf16.msra.mxu0 0
      %597 = vmatprep.subr.bf16.mxu0 0
      %598 = vmatpush1.bf16.msra.mxu0 0
      %599 = vmatprep.subr.bf16.mxu0 0
      %600 = vmatpush1.bf16.msra.mxu0 0
      %601 = vmatprep.subr.bf16.mxu0 0
      %602 = vmatpush1.bf16.msra.mxu0 0
      %603 = vmatprep.subr.bf16.mxu0 0
      %604 = vmatpush1.bf16.msra.mxu0 0
      %605 = vmatprep.mubr.bf16.mxu0 0
      %606 = vmatmul.mubr.bf16.gmra.mrb[0].mxu0 %v526
      %v607 = vpop.f32.mrb[0].mxu0
      %v608 = vadd.f32 %v430, %v607
      %v609 = vpop.f32.mrb[0].mxu0
      %v610 = vpop.f32.mrb[0].mxu0
      %v611 = vadd.f32 %v430, %v610
      %v612 = vpop.f32.mrb[0].mxu0
      %613 = vmatprep.mubr.bf16.mxu0 0
      %614 = vmatmul.mubr.bf16.gmra.mrb[0].mxu0 %v529
      %v615 = vpop.f32.mrb[0].mxu0
      %v616 = vadd.f32 %v430, %v615
      %v617 = vpop.f32.mrb[0].mxu0
      %v618 = vpop.f32.mrb[0].mxu0
      %v619 = vadd.f32 %v430, %v618
      %v620 = vpop.f32.mrb[0].mxu0
      %621 = vmatprep.mubr.bf16.mxu0 0
      %622 = vmatmul.mubr.bf16.gmra.mrb[0].mxu0 %v532
      %v623 = vpop.f32.mrb[0].mxu0
      %v624 = vadd.f32 %v430, %v623
      %v625 = vpop.f32.mrb[0].mxu0
      %v626 = vpop.f32.mrb[0].mxu0
      %v627 = vadd.f32 %v430, %v626
      %v628 = vpop.f32.mrb[0].mxu0
      %629 = vmatprep.mubr.bf16.mxu0 0
      %630 = vmatmul.mubr.bf16.gmra.mrb[0].mxu0 %v535
      %v631 = vpop.f32.mrb[0].mxu0
      %v632 = vadd.f32 %v430, %v631
      %v633 = vpop.f32.mrb[0].mxu0
      %v634 = vpop.f32.mrb[0].mxu0
      %v635 = vadd.f32 %v430, %v634
      %v636 = vpop.f32.mrb[0].mxu0
      %637 = vmatprep.mubr.bf16.mxu0 0
      %638 = vmatmul.mubr.bf16.gmra.mrb[0].mxu0 %v538
      %v639 = vpop.f32.mrb[0].mxu0
      %v640 = vadd.f32 %v430, %v639
      %v641 = vpop.f32.mrb[0].mxu0
      %v642 = vpop.f32.mrb[0].mxu0
      %v643 = vadd.f32 %v430, %v642
      %v644 = vpop.f32.mrb[0].mxu0
      %645 = vmatprep.mubr.bf16.mxu0 0
      %646 = vmatmul.mubr.bf16.gmra.mrb[0].mxu0 %v541
      %v647 = vpop.f32.mrb[0].mxu0
      %v648 = vadd.f32 %v430, %v647
      %v649 = vpop.f32.mrb[0].mxu0
      %v650 = vpop.f32.mrb[0].mxu0
      %v651 = vadd.f32 %v430, %v650
      %v652 = vpop.f32.mrb[0].mxu0
      %653 = vmatprep.mubr.bf16.mxu0 0
      %654 = vmatmul.mubr.bf16.gmra.mrb[0].mxu0 %v544
      %v655 = vpop.f32.mrb[0].mxu0
      %v656 = vadd.f32 %v430, %v655
      %v657 = vpop.f32.mrb[0].mxu0
      %v658 = vpop.f32.mrb[0].mxu0
      %v659 = vadd.f32 %v430, %v658
      %v660 = vpop.f32.mrb[0].mxu0
      %661 = vmatprep.mubr.bf16.mxu0 0
      %662 = vmatmul.mubr.bf16.gmra.mrb[0].mxu0 %v547
      %v663 = vpop.f32.mrb[0].mxu0
      %v664 = vadd.f32 %v430, %v663
      %v665 = vpop.f32.mrb[0].mxu0
      %v666 = vpop.f32.mrb[0].mxu0
      %v667 = vadd.f32 %v430, %v666
      %v668 = vpop.f32.mrb[0].mxu0
      %669 = vmatprep.mubr.bf16.mxu0 0
      %670 = vmatmul.mubr.bf16.gmra.mrb[0].mxu0 %v550
      %v671 = vpop.f32.mrb[0].mxu0
      %v672 = vadd.f32 %v430, %v671
      %v673 = vpop.f32.mrb[0].mxu0
      %v674 = vpop.f32.mrb[0].mxu0
      %v675 = vadd.f32 %v430, %v674
      %v676 = vpop.f32.mrb[0].mxu0
      %677 = vmatprep.mubr.bf16.mxu0 0
      %678 = vmatmul.mubr.bf16.gmra.mrb[0].mxu0 %v553
      %v679 = vpop.f32.mrb[0].mxu0
      %v680 = vadd.f32 %v430, %v679
      %v681 = vpop.f32.mrb[0].mxu0
      %v682 = vpop.f32.mrb[0].mxu0
      %v683 = vadd.f32 %v430, %v682
      %v684 = vpop.f32.mrb[0].mxu0
      %685 = vmatprep.mubr.bf16.mxu0 0
      %686 = vmatmul.mubr.bf16.gmra.mrb[0].mxu0 %v556
      %v687 = vpop.f32.mrb[0].mxu0
      %v688 = vadd.f32 %v430, %v687
      %v689 = vpop.f32.mrb[0].mxu0
      %v690 = vpop.f32.mrb[0].mxu0
      %v691 = vadd.f32 %v430, %v690
      %v692 = vpop.f32.mrb[0].mxu0
      %693 = vmatprep.mubr.bf16.mxu0 0
      %694 = vmatmul.mubr.bf16.gmra.mrb[0].mxu0 %v559
      %v695 = vpop.f32.mrb[0].mxu0
      %v696 = vadd.f32 %v430, %v695
      %v697 = vpop.f32.mrb[0].mxu0
      %v698 = vpop.f32.mrb[0].mxu0
      %v699 = vadd.f32 %v430, %v698
      %v700 = vpop.f32.mrb[0].mxu0
      %701 = vmatprep.mubr.bf16.mxu0 0
      %702 = vmatmul.mubr.bf16.gmra.mrb[0].mxu0 %v562
      %v703 = vpop.f32.mrb[0].mxu0
      %v704 = vadd.f32 %v430, %v703
      %v705 = vpop.f32.mrb[0].mxu0
      %v706 = vpop.f32.mrb[0].mxu0
      %v707 = vadd.f32 %v430, %v706
      %v708 = vpop.f32.mrb[0].mxu0
      %709 = vmatprep.mubr.bf16.mxu0 0
      %710 = vmatmul.mubr.bf16.gmra.mrb[0].mxu0 %v565
      %v711 = vpop.f32.mrb[0].mxu0
      %v712 = vadd.f32 %v430, %v711
      %v713 = vpop.f32.mrb[0].mxu0
      %v714 = vpop.f32.mrb[0].mxu0
      %v715 = vadd.f32 %v430, %v714
      %v716 = vpop.f32.mrb[0].mxu0
      %717 = vmatprep.mubr.bf16.mxu0 0
      %718 = vmatmul.mubr.bf16.gmra.mrb[0].mxu0 %v568
      %v719 = vpop.f32.mrb[0].mxu0
      %v720 = vadd.f32 %v430, %v719
      %v721 = vpop.f32.mrb[0].mxu0
      %v722 = vpop.f32.mrb[0].mxu0
      %v723 = vadd.f32 %v430, %v722
      %v724 = vpop.f32.mrb[0].mxu0
      %725 = vmatprep.mubr.bf16.mxu0 0
      %726 = vmatmul.mubr.bf16.gmra.mrb[0].mxu0 %v571
      %v727 = vpop.f32.mrb[0].mxu0
      %v728 = vadd.f32 %v430, %v727
      %v729 = vpop.f32.mrb[0].mxu0
      %v730 = vpop.f32.mrb[0].mxu0
      %v731 = vadd.f32 %v430, %v730
      %v732 = vpop.f32.mrb[0].mxu0
      %733 = vdwg.mxu0
      %v734 = vmax.f32 %v608, 0.0
      %v735 = vmax.f32 %v611, 0.0
      %v736 = vmax.f32 %v616, 0.0
      %v737 = vmax.f32 %v619, 0.0
      %v738 = vmax.f32 %v624, 0.0
      %v739 = vmax.f32 %v627, 0.0
      %v740 = vmax.f32 %v632, 0.0
      %v741 = vmax.f32 %v635, 0.0
      %v742 = vmax.f32 %v640, 0.0
      %v743 = vmax.f32 %v643, 0.0
      %v744 = vmax.f32 %v648, 0.0
      %v745 = vmax.f32 %v651, 0.0
      %v746 = vmax.f32 %v656, 0.0
      %v747 = vmax.f32 %v659, 0.0
      %v748 = vmax.f32 %v664, 0.0
      %v749 = vmax.f32 %v667, 0.0
      %v750 = vmax.f32 %v672, 0.0
      %v751 = vmax.f32 %v675, 0.0
      %v752 = vmax.f32 %v680, 0.0
      %v753 = vmax.f32 %v683, 0.0
      %v754 = vmax.f32 %v688, 0.0
      %v755 = vmax.f32 %v691, 0.0
      %v756 = vmax.f32 %v696, 0.0
      %v757 = vmax.f32 %v699, 0.0
      %v758 = vmax.f32 %v704, 0.0
      %v759 = vmax.f32 %v707, 0.0
      %v760 = vmax.f32 %v712, 0.0
      %v761 = vmax.f32 %v715, 0.0
      %v762 = vmax.f32 %v720, 0.0
      %v763 = vmax.f32 %v723, 0.0
      %v764 = vmax.f32 %v728, 0.0
      %v765 = vmax.f32 %v731, 0.0
      %v766 = vpack.c.bf16 %v735, %v734
      %v767 = vpack.c.bf16 %v737, %v736
      %v768 = vpack.c.bf16 %v739, %v738
      %v769 = vpack.c.bf16 %v741, %v740
      %v770 = vpack.c.bf16 %v743, %v742
      %v771 = vpack.c.bf16 %v745, %v744
      %v772 = vpack.c.bf16 %v747, %v746
      %v773 = vpack.c.bf16 %v749, %v748
      %v774 = vpack.c.bf16 %v751, %v750
      %v775 = vpack.c.bf16 %v753, %v752
      %v776 = vpack.c.bf16 %v755, %v754
      %v777 = vpack.c.bf16 %v757, %v756
      %v778 = vpack.c.bf16 %v759, %v758
      %v779 = vpack.c.bf16 %v761, %v760
      %v780 = vpack.c.bf16 %v763, %v762
      %v781 = vpack.c.bf16 %v765, %v764
      %v798 = vunpack.c.l.b16 %v766
      %v799 = vunpack.c.h.b16 %v766
      %v800 = vunpack.c.l.b16 %v767
      %v801 = vunpack.c.h.b16 %v767
      %v802 = vunpack.c.l.b16 %v768
      %v803 = vunpack.c.h.b16 %v768
      %v804 = vunpack.c.l.b16 %v769
      %v805 = vunpack.c.h.b16 %v769
      %v806 = vunpack.c.l.b16 %v770
      %v807 = vunpack.c.h.b16 %v770
      %v808 = vunpack.c.l.b16 %v771
      %v809 = vunpack.c.h.b16 %v771
      %v810 = vunpack.c.l.b16 %v772
      %v811 = vunpack.c.h.b16 %v772
      %v812 = vunpack.c.l.b16 %v773
      %v813 = vunpack.c.h.b16 %v773
      %v814 = vunpack.c.l.b16 %v774
      %v815 = vunpack.c.h.b16 %v774
      %v816 = vunpack.c.l.b16 %v775
      %v817 = vunpack.c.h.b16 %v775
      %v818 = vunpack.c.l.b16 %v776
      %v819 = vunpack.c.h.b16 %v776
      %v820 = vunpack.c.l.b16 %v777
      %v821 = vunpack.c.h.b16 %v777
      %v822 = vunpack.c.l.b16 %v778
      %v823 = vunpack.c.h.b16 %v778
      %v824 = vunpack.c.l.b16 %v779
      %v825 = vunpack.c.h.b16 %v779
      %v826 = vunpack.c.l.b16 %v780
      %v827 = vunpack.c.h.b16 %v780
      %v828 = vunpack.c.l.b16 %v781
      %v829 = vunpack.c.h.b16 %v781
      %v830 = vpack.c.b16 %v798, %v798
      %v831 = vpack.c.b16 %v799, %v799
      %v832 = vpack.c.b16 %v800, %v800
      %v833 = vpack.c.b16 %v801, %v801
      %v834 = vpack.c.b16 %v802, %v802
      %v835 = vpack.c.b16 %v803, %v803
      %v836 = vpack.c.b16 %v804, %v804
      %v837 = vpack.c.b16 %v805, %v805
      %v838 = vpack.c.b16 %v806, %v806
      %v839 = vpack.c.b16 %v807, %v807
      %v840 = vpack.c.b16 %v808, %v808
      %v841 = vpack.c.b16 %v809, %v809
      %v842 = vpack.c.b16 %v810, %v810
      %v843 = vpack.c.b16 %v811, %v811
      %v844 = vpack.c.b16 %v812, %v812
      %v845 = vpack.c.b16 %v813, %v813
      %v846 = vpack.c.b16 %v814, %v814
      %v847 = vpack.c.b16 %v815, %v815
      %v848 = vpack.c.b16 %v816, %v816
      %v849 = vpack.c.b16 %v817, %v817
      %v850 = vpack.c.b16 %v818, %v818
      %v851 = vpack.c.b16 %v819, %v819
      %v852 = vpack.c.b16 %v820, %v820
      %v853 = vpack.c.b16 %v821, %v821
      %v854 = vpack.c.b16 %v822, %v822
      %v855 = vpack.c.b16 %v823, %v823
      %v856 = vpack.c.b16 %v824, %v824
      %v857 = vpack.c.b16 %v825, %v825
      %v858 = vpack.c.b16 %v826, %v826
      %v859 = vpack.c.b16 %v827, %v827
      %v860 = vpack.c.b16 %v828, %v828
      %v861 = vpack.c.b16 %v829, %v829
      %vm894 = vcmask 519168
      %895 = vst.msk [vmem:[%s386] sm:$0xf] %vm894, %v830
      %896 = vst.msk [vmem:[%s386 + $0x8] sm:$0xf] %vm894, %v831
      %897 = vst.msk [vmem:[%s386 + $0x10] sm:$0xf] %vm894, %v832
      %898 = vst.msk [vmem:[%s386 + $0x18] sm:$0xf] %vm894, %v833
      %899 = vst.msk [vmem:[%s386 + $0x20] sm:$0xf] %vm894, %v834
      %900 = vst.msk [vmem:[%s386 + $0x28] sm:$0xf] %vm894, %v835
      %901 = vst.msk [vmem:[%s386 + $0x30] sm:$0xf] %vm894, %v836
      %902 = vst.msk [vmem:[%s386 + $0x38] sm:$0xf] %vm894, %v837
      %903 = vst.msk [vmem:[%s386 + $0x40] sm:$0xf] %vm894, %v838
      %904 = vst.msk [vmem:[%s386 + $0x48] sm:$0xf] %vm894, %v839
      %905 = vst.msk [vmem:[%s386 + $0x50] sm:$0xf] %vm894, %v840
      %906 = vst.msk [vmem:[%s386 + $0x58] sm:$0xf] %vm894, %v841
      %907 = vst.msk [vmem:[%s386 + $0x60] sm:$0xf] %vm894, %v842
      %908 = vst.msk [vmem:[%s386 + $0x68] sm:$0xf] %vm894, %v843
      %909 = vst.msk [vmem:[%s386 + $0x70] sm:$0xf] %vm894, %v844
      %910 = vst.msk [vmem:[%s386 + $0x78] sm:$0xf] %vm894, %v845
      %911 = vst.msk [vmem:[%s386 + $0x80] sm:$0xf] %vm894, %v846
      %912 = vst.msk [vmem:[%s386 + $0x88] sm:$0xf] %vm894, %v847
      %913 = vst.msk [vmem:[%s386 + $0x90] sm:$0xf] %vm894, %v848
      %914 = vst.msk [vmem:[%s386 + $0x98] sm:$0xf] %vm894, %v849
      %915 = vst.msk [vmem:[%s386 + $0xa0] sm:$0xf] %vm894, %v850
      %916 = vst.msk [vmem:[%s386 + $0xa8] sm:$0xf] %vm894, %v851
      %917 = vst.msk [vmem:[%s386 + $0xb0] sm:$0xf] %vm894, %v852
      %918 = vst.msk [vmem:[%s386 + $0xb8] sm:$0xf] %vm894, %v853
      %919 = vst.msk [vmem:[%s386 + $0xc0] sm:$0xf] %vm894, %v854
      %920 = vst.msk [vmem:[%s386 + $0xc8] sm:$0xf] %vm894, %v855
      %921 = vst.msk [vmem:[%s386 + $0xd0] sm:$0xf] %vm894, %v856
      %922 = vst.msk [vmem:[%s386 + $0xd8] sm:$0xf] %vm894, %v857
      %923 = vst.msk [vmem:[%s386 + $0xe0] sm:$0xf] %vm894, %v858
      %924 = vst.msk [vmem:[%s386 + $0xe8] sm:$0xf] %vm894, %v859
      %925 = vst.msk [vmem:[%s386 + $0xf0] sm:$0xf] %vm894, %v860
      %926 = vst.msk [vmem:[%s386 + $0xf8] sm:$0xf] %vm894, %v861
      %v927 = vld [vmem:[%s3] sm:$0xf]
      %v928 = vld [vmem:[%s3 + $0x4] sm:$0xf]
      %v929 = vld [vmem:[%s3 + $0x8] sm:$0xf]
      %v930 = vld [vmem:[%s3 + $0xc] sm:$0xf]
      %v931 = vld [vmem:[%s3 + $0x10] sm:$0xf]
      %v932 = vld [vmem:[%s3 + $0x14] sm:$0xf]
      %v933 = vld [vmem:[%s3 + $0x18] sm:$0xf]
      %v934 = vld [vmem:[%s3 + $0x1c] sm:$0xf]
      %v935 = vld [vmem:[%s3 + $0x20] sm:$0xf]
      %v936 = vld [vmem:[%s3 + $0x24] sm:$0xf]
      %v937 = vld [vmem:[%s3 + $0x28] sm:$0xf]
      %v938 = vld [vmem:[%s3 + $0x2c] sm:$0xf]
      %v939 = vld [vmem:[%s3 + $0x30] sm:$0xf]
      %v940 = vld [vmem:[%s3 + $0x34] sm:$0xf]
      %v941 = vld [vmem:[%s3 + $0x38] sm:$0xf]
      %v942 = vld [vmem:[%s3 + $0x3c] sm:$0xf]
      %v943 = vld [vmem:[%s3 + $0x40] sm:$0xf]
      %v944 = vld [vmem:[%s3 + $0x44] sm:$0xf]
      %v945 = vld [vmem:[%s3 + $0x48] sm:$0xf]
      %v946 = vld [vmem:[%s3 + $0x4c] sm:$0xf]
      %v947 = vld [vmem:[%s3 + $0x50] sm:$0xf]
      %v948 = vld [vmem:[%s3 + $0x54] sm:$0xf]
      %v949 = vld [vmem:[%s3 + $0x58] sm:$0xf]
      %v950 = vld [vmem:[%s3 + $0x5c] sm:$0xf]
      %v951 = vld [vmem:[%s3 + $0x60] sm:$0xf]
      %v952 = vld [vmem:[%s3 + $0x64] sm:$0xf]
      %v953 = vld [vmem:[%s3 + $0x68] sm:$0xf]
      %v954 = vld [vmem:[%s3 + $0x6c] sm:$0xf]
      %v955 = vld [vmem:[%s3 + $0x70] sm:$0xf]
      %v956 = vld [vmem:[%s3 + $0x74] sm:$0xf]
      %v957 = vld [vmem:[%s3 + $0x78] sm:$0xf]
      %v958 = vld [vmem:[%s3 + $0x7c] sm:$0xf]
      %v959 = vld [vmem:[%s3 + $0x80] sm:$0xf]
      %v960 = vld [vmem:[%s3 + $0x84] sm:$0xf]
      %v961 = vld [vmem:[%s3 + $0x88] sm:$0xf]
      %v962 = vld [vmem:[%s3 + $0x8c] sm:$0xf]
      %v963 = vld [vmem:[%s3 + $0x90] sm:$0xf]
      %v964 = vld [vmem:[%s3 + $0x94] sm:$0xf]
      %v965 = vld [vmem:[%s3 + $0x98] sm:$0xf]
      %v966 = vld [vmem:[%s3 + $0x9c] sm:$0xf]
      %v967 = vld [vmem:[%s3 + $0xa0] sm:$0xf]
      %v968 = vld [vmem:[%s3 + $0xa4] sm:$0xf]
      %v969 = vld [vmem:[%s3 + $0xa8] sm:$0xf]
      %v970 = vld [vmem:[%s3 + $0xac] sm:$0xf]
      %v971 = vld [vmem:[%s3 + $0xb0] sm:$0xf]
      %v972 = vld [vmem:[%s3 + $0xb4] sm:$0xf]
      %v973 = vld [vmem:[%s3 + $0xb8] sm:$0xf]
      %v974 = vld [vmem:[%s3 + $0xbc] sm:$0xf]
      %v975 = vld [vmem:[%s3 + $0xc0] sm:$0xf]
      %v976 = vld [vmem:[%s3 + $0xc4] sm:$0xf]
      %v977 = vld [vmem:[%s3 + $0xc8] sm:$0xf]
      %v978 = vld [vmem:[%s3 + $0xcc] sm:$0xf]
      %v979 = vld [vmem:[%s3 + $0xd0] sm:$0xf]
      %v980 = vld [vmem:[%s3 + $0xd4] sm:$0xf]
      %v981 = vld [vmem:[%s4] sm:$0x1]
      %vm982 = vcmask 388096
      %983 = vst.msk [vmem:[#allocation2] sm:$0xf] %vm982, 0
      %984 = vst.msk [vmem:[#allocation2 + $0x4] sm:$0xf] %vm982, 0
      %985 = vst.msk [vmem:[#allocation2 + $0x8] sm:$0xf] %vm982, 0
      %vm986 = vcmask 385024
      %vm987 = vsmask.f32 256
      %vm988 = vmand %vm986, %vm987
      %v989 = vld [vmem:[#allocation2 + $0xc] sm:$0x1]
      %v990 = vsel %vm988, 0, %v989
      %991 = vst [vmem:[#allocation2 + $0xc] sm:$0x1] %v990
      %992 = vst.msk [vmem:[#allocation2 + $0x10] sm:$0xf] %vm982, 0
      %993 = vst.msk [vmem:[#allocation2 + $0x14] sm:$0xf] %vm982, 0
      %994 = vst.msk [vmem:[#allocation2 + $0x18] sm:$0xf] %vm982, 0
      %v995 = vld [vmem:[#allocation2 + $0x1c] sm:$0x1]
      %v996 = vsel %vm988, 0, %v995
      %997 = vst [vmem:[#allocation2 + $0x1c] sm:$0x1] %v996
      %998 = vst.msk [vmem:[#allocation2 + $0x20] sm:$0xf] %vm982, 0
      %999 = vst.msk [vmem:[#allocation2 + $0x24] sm:$0xf] %vm982, 0
      %1000 = vst.msk [vmem:[#allocation2 + $0x28] sm:$0xf] %vm982, 0
      %v1001 = vld [vmem:[#allocation2 + $0x2c] sm:$0x1]
      %v1002 = vsel %vm988, 0, %v1001
      %1003 = vst [vmem:[#allocation2 + $0x2c] sm:$0x1] %v1002
      %1004 = vst.msk [vmem:[#allocation2 + $0x30] sm:$0xf] %vm982, 0
      %1005 = vst.msk [vmem:[#allocation2 + $0x34] sm:$0xf] %vm982, 0
      %1006 = vst.msk [vmem:[#allocation2 + $0x38] sm:$0xf] %vm982, 0
      %v1007 = vld [vmem:[#allocation2 + $0x3c] sm:$0x1]
      %v1008 = vsel %vm988, 0, %v1007
      %1009 = vst [vmem:[#allocation2 + $0x3c] sm:$0x1] %v1008
      %1010 = vst.msk [vmem:[#allocation2 + $0x40] sm:$0xf] %vm982, 0
      %1011 = vst.msk [vmem:[#allocation2 + $0x44] sm:$0xf] %vm982, 0
      %1012 = vst.msk [vmem:[#allocation2 + $0x48] sm:$0xf] %vm982, 0
      %v1013 = vld [vmem:[#allocation2 + $0x4c] sm:$0x1]
      %v1014 = vsel %vm988, 0, %v1013
      %1015 = vst [vmem:[#allocation2 + $0x4c] sm:$0x1] %v1014
      %1016 = vst.msk [vmem:[#allocation2 + $0x50] sm:$0xf] %vm982, 0
      %1017 = vst.msk [vmem:[#allocation2 + $0x54] sm:$0xf] %vm982, 0
      %1018 = vst.msk [vmem:[#allocation2 + $0x58] sm:$0xf] %vm982, 0
      %v1019 = vld [vmem:[#allocation2 + $0x5c] sm:$0x1]
      %v1020 = vsel %vm988, 0, %v1019
      %1021 = vst [vmem:[#allocation2 + $0x5c] sm:$0x1] %v1020
      %1022 = vst.msk [vmem:[#allocation2 + $0x60] sm:$0xf] %vm982, 0
      %1023 = vst.msk [vmem:[#allocation2 + $0x64] sm:$0xf] %vm982, 0
      %1024 = vst.msk [vmem:[#allocation2 + $0x68] sm:$0xf] %vm982, 0
      %v1025 = vld [vmem:[#allocation2 + $0x6c] sm:$0x1]
      %v1026 = vsel %vm988, 0, %v1025
      %1027 = vst [vmem:[#allocation2 + $0x6c] sm:$0x1] %v1026
      %1028 = vst.msk [vmem:[#allocation2 + $0x70] sm:$0xf] %vm982, 0
      %1029 = vst.msk [vmem:[#allocation2 + $0x74] sm:$0xf] %vm982, 0
      %1030 = vst.msk [vmem:[#allocation2 + $0x78] sm:$0xf] %vm982, 0
      %v1031 = vld [vmem:[#allocation2 + $0x7c] sm:$0x1]
      %v1032 = vsel %vm988, 0, %v1031
      %1033 = vst [vmem:[#allocation2 + $0x7c] sm:$0x1] %v1032
      %1034 = vst.msk [vmem:[#allocation2 + $0x80] sm:$0xf] %vm982, 0
      %1035 = vst.msk [vmem:[#allocation2 + $0x84] sm:$0xf] %vm982, 0
      %1036 = vst.msk [vmem:[#allocation2 + $0x88] sm:$0xf] %vm982, 0
      %v1037 = vld [vmem:[#allocation2 + $0x8c] sm:$0x1]
      %v1038 = vsel %vm988, 0, %v1037
      %1039 = vst [vmem:[#allocation2 + $0x8c] sm:$0x1] %v1038
      %1040 = vst.msk [vmem:[#allocation2 + $0x90] sm:$0xf] %vm982, 0
      %1041 = vst.msk [vmem:[#allocation2 + $0x94] sm:$0xf] %vm982, 0
      %1042 = vst.msk [vmem:[#allocation2 + $0x98] sm:$0xf] %vm982, 0
      %v1043 = vld [vmem:[#allocation2 + $0x9c] sm:$0x1]
      %v1044 = vsel %vm988, 0, %v1043
      %1045 = vst [vmem:[#allocation2 + $0x9c] sm:$0x1] %v1044
      %1046 = vst.msk [vmem:[#allocation2 + $0xa0] sm:$0xf] %vm982, 0
      %1047 = vst.msk [vmem:[#allocation2 + $0xa4] sm:$0xf] %vm982, 0
      %1048 = vst.msk [vmem:[#allocation2 + $0xa8] sm:$0xf] %vm982, 0
      %v1049 = vld [vmem:[#allocation2 + $0xac] sm:$0x1]
      %v1050 = vsel %vm988, 0, %v1049
      %1051 = vst [vmem:[#allocation2 + $0xac] sm:$0x1] %v1050
      %1052 = vst.msk [vmem:[#allocation2 + $0xb0] sm:$0xf] %vm982, 0
      %1053 = vst.msk [vmem:[#allocation2 + $0xb4] sm:$0xf] %vm982, 0
      %1054 = vst.msk [vmem:[#allocation2 + $0xb8] sm:$0xf] %vm982, 0
      %v1055 = vld [vmem:[#allocation2 + $0xbc] sm:$0x1]
      %v1056 = vsel %vm988, 0, %v1055
      %1057 = vst [vmem:[#allocation2 + $0xbc] sm:$0x1] %v1056
      %1058 = vst.msk [vmem:[#allocation2 + $0xc0] sm:$0xf] %vm982, 0
      %1059 = vst.msk [vmem:[#allocation2 + $0xc4] sm:$0xf] %vm982, 0
      %1060 = vst.msk [vmem:[#allocation2 + $0xc8] sm:$0xf] %vm982, 0
      %v1061 = vld [vmem:[#allocation2 + $0xcc] sm:$0x1]
      %v1062 = vsel %vm988, 0, %v1061
      %1063 = vst [vmem:[#allocation2 + $0xcc] sm:$0x1] %v1062
      %1064 = vst.msk [vmem:[#allocation2 + $0xd0] sm:$0xf] %vm982, 0
      %1065 = vst.msk [vmem:[#allocation2 + $0xd4] sm:$0xf] %vm982, 0
      %1066 = vst.msk [vmem:[#allocation2 + $0xd8] sm:$0xf] %vm982, 0
      %v1067 = vld [vmem:[#allocation2 + $0xdc] sm:$0x1]
      %v1068 = vsel %vm988, 0, %v1067
      %1069 = vst [vmem:[#allocation2 + $0xdc] sm:$0x1] %v1068
      %1070 = vst.msk [vmem:[#allocation2 + $0xe0] sm:$0xf] %vm982, 0
      %1071 = vst.msk [vmem:[#allocation2 + $0xe4] sm:$0xf] %vm982, 0
      %1072 = vst.msk [vmem:[#allocation2 + $0xe8] sm:$0xf] %vm982, 0
      %v1073 = vld [vmem:[#allocation2 + $0xec] sm:$0x1]
      %v1074 = vsel %vm988, 0, %v1073
      %1075 = vst [vmem:[#allocation2 + $0xec] sm:$0x1] %v1074
      %1076 = vst.msk [vmem:[#allocation2 + $0xf0] sm:$0xf] %vm982, 0
      %1077 = vst.msk [vmem:[#allocation2 + $0xf4] sm:$0xf] %vm982, 0
      %1078 = vst.msk [vmem:[#allocation2 + $0xf8] sm:$0xf] %vm982, 0
      %v1079 = vld [vmem:[#allocation2 + $0xfc] sm:$0x1]
      %v1080 = vsel %vm988, 0, %v1079
      %1081 = vst [vmem:[#allocation2 + $0xfc] sm:$0x1] %v1080
      %1082 = vst.msk [vmem:[#allocation2 + $0x100] sm:$0xf] %vm982, 0
      %1083 = vst.msk [vmem:[#allocation2 + $0x104] sm:$0xf] %vm982, 0
      %1084 = vst.msk [vmem:[#allocation2 + $0x108] sm:$0xf] %vm982, 0
      %v1085 = vld [vmem:[#allocation2 + $0x10c] sm:$0x1]
      %v1086 = vsel %vm988, 0, %v1085
      %1087 = vst [vmem:[#allocation2 + $0x10c] sm:$0x1] %v1086
      %1088 = vst.msk [vmem:[#allocation2 + $0x110] sm:$0xf] %vm982, 0
      %1089 = vst.msk [vmem:[#allocation2 + $0x114] sm:$0xf] %vm982, 0
      %1090 = vst.msk [vmem:[#allocation2 + $0x118] sm:$0xf] %vm982, 0
      %v1091 = vld [vmem:[#allocation2 + $0x11c] sm:$0x1]
      %v1092 = vsel %vm988, 0, %v1091
      %1093 = vst [vmem:[#allocation2 + $0x11c] sm:$0x1] %v1092
      %1094 = vrot.lane.b32.xlu0 %v830, 64
      %v1095 = vpop.permute.xlu0 %1094
      %1096 = vrot.lane.b32.xlu0 %v831, 64
      %v1097 = vpop.permute.xlu0 %1096
      %1098 = vrot.lane.b32.xlu0 %v832, 64
      %v1099 = vpop.permute.xlu0 %1098
      %1100 = vrot.lane.b32.xlu0 %v833, 64
      %v1101 = vpop.permute.xlu0 %1100
      %1102 = vrot.lane.b32.xlu0 %v834, 64
      %v1103 = vpop.permute.xlu0 %1102
      %1104 = vrot.lane.b32.xlu0 %v835, 64
      %v1105 = vpop.permute.xlu0 %1104
      %1106 = vrot.lane.b32.xlu0 %v836, 64
      %v1107 = vpop.permute.xlu0 %1106
      %1108 = vrot.lane.b32.xlu0 %v837, 64
      %v1109 = vpop.permute.xlu0 %1108
      %1110 = vrot.lane.b32.xlu0 %v838, 64
      %v1111 = vpop.permute.xlu0 %1110
      %1112 = vrot.lane.b32.xlu0 %v839, 64
      %v1113 = vpop.permute.xlu0 %1112
      %1114 = vrot.lane.b32.xlu0 %v840, 64
      %v1115 = vpop.permute.xlu0 %1114
      %1116 = vrot.lane.b32.xlu0 %v841, 64
      %v1117 = vpop.permute.xlu0 %1116
      %1118 = vrot.lane.b32.xlu0 %v842, 64
      %v1119 = vpop.permute.xlu0 %1118
      %1120 = vrot.lane.b32.xlu0 %v843, 64
      %v1121 = vpop.permute.xlu0 %1120
      %1122 = vrot.lane.b32.xlu0 %v844, 64
      %v1123 = vpop.permute.xlu0 %1122
      %1124 = vrot.lane.b32.xlu0 %v845, 64
      %v1125 = vpop.permute.xlu0 %1124
      %1126 = vrot.lane.b32.xlu0 %v846, 64
      %v1127 = vpop.permute.xlu0 %1126
      %1128 = vrot.lane.b32.xlu0 %v847, 64
      %v1129 = vpop.permute.xlu0 %1128
      %1130 = vrot.lane.b32.xlu0 %v848, 64
      %v1131 = vpop.permute.xlu0 %1130
      %1132 = vrot.lane.b32.xlu0 %v849, 64
      %v1133 = vpop.permute.xlu0 %1132
      %1134 = vrot.lane.b32.xlu0 %v850, 64
      %v1135 = vpop.permute.xlu0 %1134
      %1136 = vrot.lane.b32.xlu0 %v851, 64
      %v1137 = vpop.permute.xlu0 %1136
      %1138 = vrot.lane.b32.xlu0 %v852, 64
      %v1139 = vpop.permute.xlu0 %1138
      %1140 = vrot.lane.b32.xlu0 %v853, 64
      %v1141 = vpop.permute.xlu0 %1140
      %1142 = vrot.lane.b32.xlu0 %v854, 64
      %v1143 = vpop.permute.xlu0 %1142
      %1144 = vrot.lane.b32.xlu0 %v855, 64
      %v1145 = vpop.permute.xlu0 %1144
      %1146 = vrot.lane.b32.xlu0 %v856, 64
      %v1147 = vpop.permute.xlu0 %1146
      %1148 = vrot.lane.b32.xlu0 %v857, 64
      %v1149 = vpop.permute.xlu0 %1148
      %1150 = vrot.lane.b32.xlu0 %v858, 64
      %v1151 = vpop.permute.xlu0 %1150
      %1152 = vrot.lane.b32.xlu0 %v859, 64
      %v1153 = vpop.permute.xlu0 %1152
      %1154 = vrot.lane.b32.xlu0 %v860, 64
      %v1155 = vpop.permute.xlu0 %1154
      %1156 = vrot.lane.b32.xlu0 %v861, 64
      %v1157 = vpop.permute.xlu0 %1156
      %s1190 = scalar_lea.vmem [#allocation2], 16
      %1191 = vst.msk [vmem:[%s1190 + $0x4] sm:$0xf] %vm982, %v1095
      %1192 = vst.msk [vmem:[%s1190 + $0x8] sm:$0xf] %vm982, %v1097
      %1193 = vst.msk [vmem:[%s1190 + $0x14] sm:$0xf] %vm982, %v1099
      %1194 = vst.msk [vmem:[%s1190 + $0x18] sm:$0xf] %vm982, %v1101
      %1195 = vst.msk [vmem:[%s1190 + $0x24] sm:$0xf] %vm982, %v1103
      %1196 = vst.msk [vmem:[%s1190 + $0x28] sm:$0xf] %vm982, %v1105
      %1197 = vst.msk [vmem:[%s1190 + $0x34] sm:$0xf] %vm982, %v1107
      %1198 = vst.msk [vmem:[%s1190 + $0x38] sm:$0xf] %vm982, %v1109
      %1199 = vst.msk [vmem:[%s1190 + $0x44] sm:$0xf] %vm982, %v1111
      %1200 = vst.msk [vmem:[%s1190 + $0x48] sm:$0xf] %vm982, %v1113
      %1201 = vst.msk [vmem:[%s1190 + $0x54] sm:$0xf] %vm982, %v1115
      %1202 = vst.msk [vmem:[%s1190 + $0x58] sm:$0xf] %vm982, %v1117
      %1203 = vst.msk [vmem:[%s1190 + $0x64] sm:$0xf] %vm982, %v1119
      %1204 = vst.msk [vmem:[%s1190 + $0x68] sm:$0xf] %vm982, %v1121
      %1205 = vst.msk [vmem:[%s1190 + $0x74] sm:$0xf] %vm982, %v1123
      %1206 = vst.msk [vmem:[%s1190 + $0x78] sm:$0xf] %vm982, %v1125
      %1207 = vst.msk [vmem:[%s1190 + $0x84] sm:$0xf] %vm982, %v1127
      %1208 = vst.msk [vmem:[%s1190 + $0x88] sm:$0xf] %vm982, %v1129
      %1209 = vst.msk [vmem:[%s1190 + $0x94] sm:$0xf] %vm982, %v1131
      %1210 = vst.msk [vmem:[%s1190 + $0x98] sm:$0xf] %vm982, %v1133
      %1211 = vst.msk [vmem:[%s1190 + $0xa4] sm:$0xf] %vm982, %v1135
      %1212 = vst.msk [vmem:[%s1190 + $0xa8] sm:$0xf] %vm982, %v1137
      %1213 = vst.msk [vmem:[%s1190 + $0xb4] sm:$0xf] %vm982, %v1139
      %1214 = vst.msk [vmem:[%s1190 + $0xb8] sm:$0xf] %vm982, %v1141
      %1215 = vst.msk [vmem:[%s1190 + $0xc4] sm:$0xf] %vm982, %v1143
      %1216 = vst.msk [vmem:[%s1190 + $0xc8] sm:$0xf] %vm982, %v1145
      %1217 = vst.msk [vmem:[%s1190 + $0xd4] sm:$0xf] %vm982, %v1147
      %1218 = vst.msk [vmem:[%s1190 + $0xd8] sm:$0xf] %vm982, %v1149
      %1219 = vst.msk [vmem:[%s1190 + $0xe4] sm:$0xf] %vm982, %v1151
      %1220 = vst.msk [vmem:[%s1190 + $0xe8] sm:$0xf] %vm982, %v1153
      %1221 = vst.msk [vmem:[%s1190 + $0xf4] sm:$0xf] %vm982, %v1155
      %1222 = vst.msk [vmem:[%s1190 + $0xf8] sm:$0xf] %vm982, %v1157
      %v1223 = vld [vmem:[#allocation2] sm:$0x8]
      %v1224 = vld [vmem:[#allocation2 + $0x4] sm:$0xf]
      %v1225 = vld [vmem:[#allocation2 + $0x8] sm:$0xf]
      %v1226 = vld [vmem:[#allocation2 + $0x10] sm:$0x8]
      %v1227 = vld [vmem:[#allocation2 + $0x14] sm:$0xf]
      %v1228 = vld [vmem:[#allocation2 + $0x18] sm:$0xf]
      %v1229 = vld [vmem:[#allocation2 + $0x20] sm:$0x8]
      %v1230 = vld [vmem:[#allocation2 + $0x24] sm:$0xf]
      %v1231 = vld [vmem:[#allocation2 + $0x28] sm:$0xf]
      %v1232 = vld [vmem:[#allocation2 + $0x30] sm:$0x8]
      %v1233 = vld [vmem:[#allocation2 + $0x34] sm:$0xf]
      %v1234 = vld [vmem:[#allocation2 + $0x38] sm:$0xf]
      %v1235 = vld [vmem:[#allocation2 + $0x40] sm:$0x8]
      %v1236 = vld [vmem:[#allocation2 + $0x44] sm:$0xf]
      %v1237 = vld [vmem:[#allocation2 + $0x48] sm:$0xf]
      %v1238 = vld [vmem:[#allocation2 + $0x50] sm:$0x8]
      %v1239 = vld [vmem:[#allocation2 + $0x54] sm:$0xf]
      %v1240 = vld [vmem:[#allocation2 + $0x58] sm:$0xf]
      %v1241 = vld [vmem:[#allocation2 + $0x60] sm:$0x8]
      %v1242 = vld [vmem:[#allocation2 + $0x64] sm:$0xf]
      %v1243 = vld [vmem:[#allocation2 + $0x68] sm:$0xf]
      %v1244 = vld [vmem:[#allocation2 + $0x70] sm:$0x8]
      %v1245 = vld [vmem:[#allocation2 + $0x74] sm:$0xf]
      %v1246 = vld [vmem:[#allocation2 + $0x78] sm:$0xf]
      %v1247 = vld [vmem:[#allocation2 + $0x80] sm:$0x8]
      %v1248 = vld [vmem:[#allocation2 + $0x84] sm:$0xf]
      %v1249 = vld [vmem:[#allocation2 + $0x88] sm:$0xf]
      %v1250 = vld [vmem:[#allocation2 + $0x90] sm:$0x8]
      %v1251 = vld [vmem:[#allocation2 + $0x94] sm:$0xf]
      %v1252 = vld [vmem:[#allocation2 + $0x98] sm:$0xf]
      %v1253 = vld [vmem:[#allocation2 + $0xa0] sm:$0x8]
      %v1254 = vld [vmem:[#allocation2 + $0xa4] sm:$0xf]
      %v1255 = vld [vmem:[#allocation2 + $0xa8] sm:$0xf]
      %v1256 = vld [vmem:[#allocation2 + $0xb0] sm:$0x8]
      %v1257 = vld [vmem:[#allocation2 + $0xb4] sm:$0xf]
      %v1258 = vld [vmem:[#allocation2 + $0xb8] sm:$0xf]
      %v1259 = vld [vmem:[#allocation2 + $0xc0] sm:$0x8]
      %v1260 = vld [vmem:[#allocation2 + $0xc4] sm:$0xf]
      %v1261 = vld [vmem:[#allocation2 + $0xc8] sm:$0xf]
      %v1262 = vld [vmem:[#allocation2 + $0xd0] sm:$0x8]
      %v1263 = vld [vmem:[#allocation2 + $0xd4] sm:$0xf]
      %v1264 = vld [vmem:[#allocation2 + $0xd8] sm:$0xf]
      %v1265 = vld [vmem:[#allocation2 + $0xe0] sm:$0x8]
      %v1266 = vld [vmem:[#allocation2 + $0xe4] sm:$0xf]
      %v1267 = vld [vmem:[#allocation2 + $0xe8] sm:$0xf]
      %v1268 = vld [vmem:[#allocation2 + $0xf0] sm:$0x8]
      %v1269 = vld [vmem:[#allocation2 + $0xf4] sm:$0xf]
      %v1270 = vld [vmem:[#allocation2 + $0xf8] sm:$0xf]
      %v1271 = vld [vmem:[#allocation2 + $0x100] sm:$0x8]
      %v1272 = vld [vmem:[#allocation2 + $0x104] sm:$0xf]
      %v1273 = vld [vmem:[#allocation2 + $0x108] sm:$0xf]
      %v1274 = vld [vmem:[#allocation2 + $0x110] sm:$0x8]
      %v1275 = vld [vmem:[#allocation2 + $0x114] sm:$0xf]
      %v1276 = vld [vmem:[#allocation2 + $0x118] sm:$0xf]
      %vm1277 = vsmask.f32 4368
      %vm1278 = vmor %vm987, %vm1277
      %v1280 = vshrl.u32 %v1223, 16
      %v1282 = vrot.slane %v1280, 7
      %v1283 = vrot.slane %v1282, 4
      %v1285 = vshrl.u32 %v1224, 16
      %v1287 = vrot.slane %v1285, 7
      %v1288 = vshll.u32 %v1224, 16
      %v1290 = vor.u32 %v1287, %v1288
      %v1291 = vsel %vm1278, %v1283, %v1290
      %v1292 = vrot.slane %v1287, 4
      %v1294 = vshrl.u32 %v1225, 16
      %v1296 = vrot.slane %v1294, 7
      %v1297 = vshll.u32 %v1225, 16
      %v1299 = vor.u32 %v1296, %v1297
      %v1300 = vsel %vm1278, %v1292, %v1299
      %v1302 = vshrl.u32 %v1226, 16
      %v1304 = vrot.slane %v1302, 7
      %v1305 = vrot.slane %v1304, 4
      %v1307 = vshrl.u32 %v1227, 16
      %v1309 = vrot.slane %v1307, 7
      %v1310 = vshll.u32 %v1227, 16
      %v1312 = vor.u32 %v1309, %v1310
      %v1313 = vsel %vm1278, %v1305, %v1312
      %v1314 = vrot.slane %v1309, 4
      %v1316 = vshrl.u32 %v1228, 16
      %v1318 = vrot.slane %v1316, 7
      %v1319 = vshll.u32 %v1228, 16
      %v1321 = vor.u32 %v1318, %v1319
      %v1322 = vsel %vm1278, %v1314, %v1321
      %v1324 = vshrl.u32 %v1229, 16
      %v1326 = vrot.slane %v1324, 7
      %v1327 = vrot.slane %v1326, 4
      %v1329 = vshrl.u32 %v1230, 16
      %v1331 = vrot.slane %v1329, 7
      %v1332 = vshll.u32 %v1230, 16
      %v1334 = vor.u32 %v1331, %v1332
      %v1335 = vsel %vm1278, %v1327, %v1334
      %v1336 = vrot.slane %v1331, 4
      %v1338 = vshrl.u32 %v1231, 16
      %v1340 = vrot.slane %v1338, 7
      %v1341 = vshll.u32 %v1231, 16
      %v1343 = vor.u32 %v1340, %v1341
      %v1344 = vsel %vm1278, %v1336, %v1343
      %v1346 = vshrl.u32 %v1232, 16
      %v1348 = vrot.slane %v1346, 7
      %v1349 = vrot.slane %v1348, 4
      %v1351 = vshrl.u32 %v1233, 16
      %v1353 = vrot.slane %v1351, 7
      %v1354 = vshll.u32 %v1233, 16
      %v1356 = vor.u32 %v1353, %v1354
      %v1357 = vsel %vm1278, %v1349, %v1356
      %v1358 = vrot.slane %v1353, 4
      %v1360 = vshrl.u32 %v1234, 16
      %v1362 = vrot.slane %v1360, 7
      %v1363 = vshll.u32 %v1234, 16
      %v1365 = vor.u32 %v1362, %v1363
      %v1366 = vsel %vm1278, %v1358, %v1365
      %v1368 = vshrl.u32 %v1235, 16
      %v1370 = vrot.slane %v1368, 7
      %v1371 = vrot.slane %v1370, 4
      %v1373 = vshrl.u32 %v1236, 16
      %v1375 = vrot.slane %v1373, 7
      %v1376 = vshll.u32 %v1236, 16
      %v1378 = vor.u32 %v1375, %v1376
      %v1379 = vsel %vm1278, %v1371, %v1378
      %v1380 = vrot.slane %v1375, 4
      %v1382 = vshrl.u32 %v1237, 16
      %v1384 = vrot.slane %v1382, 7
      %v1385 = vshll.u32 %v1237, 16
      %v1387 = vor.u32 %v1384, %v1385
      %v1388 = vsel %vm1278, %v1380, %v1387
      %v1390 = vshrl.u32 %v1238, 16
      %v1392 = vrot.slane %v1390, 7
      %v1393 = vrot.slane %v1392, 4
      %v1395 = vshrl.u32 %v1239, 16
      %v1397 = vrot.slane %v1395, 7
      %v1398 = vshll.u32 %v1239, 16
      %v1400 = vor.u32 %v1397, %v1398
      %v1401 = vsel %vm1278, %v1393, %v1400
      %v1402 = vrot.slane %v1397, 4
      %v1404 = vshrl.u32 %v1240, 16
      %v1406 = vrot.slane %v1404, 7
      %v1407 = vshll.u32 %v1240, 16
      %v1409 = vor.u32 %v1406, %v1407
      %v1410 = vsel %vm1278, %v1402, %v1409
      %v1412 = vshrl.u32 %v1241, 16
      %v1414 = vrot.slane %v1412, 7
      %v1415 = vrot.slane %v1414, 4
      %v1417 = vshrl.u32 %v1242, 16
      %v1419 = vrot.slane %v1417, 7
      %v1420 = vshll.u32 %v1242, 16
      %v1422 = vor.u32 %v1419, %v1420
      %v1423 = vsel %vm1278, %v1415, %v1422
      %v1424 = vrot.slane %v1419, 4
      %v1426 = vshrl.u32 %v1243, 16
      %v1428 = vrot.slane %v1426, 7
      %v1429 = vshll.u32 %v1243, 16
      %v1431 = vor.u32 %v1428, %v1429
      %v1432 = vsel %vm1278, %v1424, %v1431
      %v1434 = vshrl.u32 %v1244, 16
      %v1436 = vrot.slane %v1434, 7
      %v1437 = vrot.slane %v1436, 4
      %v1439 = vshrl.u32 %v1245, 16
      %v1441 = vrot.slane %v1439, 7
      %v1442 = vshll.u32 %v1245, 16
      %v1444 = vor.u32 %v1441, %v1442
      %v1445 = vsel %vm1278, %v1437, %v1444
      %v1446 = vrot.slane %v1441, 4
      %v1448 = vshrl.u32 %v1246, 16
      %v1450 = vrot.slane %v1448, 7
      %v1451 = vshll.u32 %v1246, 16
      %v1453 = vor.u32 %v1450, %v1451
      %v1454 = vsel %vm1278, %v1446, %v1453
      %v1456 = vshrl.u32 %v1247, 16
      %v1458 = vrot.slane %v1456, 7
      %v1459 = vrot.slane %v1458, 4
      %v1461 = vshrl.u32 %v1248, 16
      %v1463 = vrot.slane %v1461, 7
      %v1464 = vshll.u32 %v1248, 16
      %v1466 = vor.u32 %v1463, %v1464
      %v1467 = vsel %vm1278, %v1459, %v1466
      %v1468 = vrot.slane %v1463, 4
      %v1470 = vshrl.u32 %v1249, 16
      %v1472 = vrot.slane %v1470, 7
      %v1473 = vshll.u32 %v1249, 16
      %v1475 = vor.u32 %v1472, %v1473
      %v1476 = vsel %vm1278, %v1468, %v1475
      %v1478 = vshrl.u32 %v1250, 16
      %v1480 = vrot.slane %v1478, 7
      %v1481 = vrot.slane %v1480, 4
      %v1483 = vshrl.u32 %v1251, 16
      %v1485 = vrot.slane %v1483, 7
      %v1486 = vshll.u32 %v1251, 16
      %v1488 = vor.u32 %v1485, %v1486
      %v1489 = vsel %vm1278, %v1481, %v1488
      %v1490 = vrot.slane %v1485, 4
      %v1492 = vshrl.u32 %v1252, 16
      %v1494 = vrot.slane %v1492, 7
      %v1495 = vshll.u32 %v1252, 16
      %v1497 = vor.u32 %v1494, %v1495
      %v1498 = vsel %vm1278, %v1490, %v1497
      %v1500 = vshrl.u32 %v1253, 16
      %v1502 = vrot.slane %v1500, 7
      %v1503 = vrot.slane %v1502, 4
      %v1505 = vshrl.u32 %v1254, 16
      %v1507 = vrot.slane %v1505, 7
      %v1508 = vshll.u32 %v1254, 16
      %v1510 = vor.u32 %v1507, %v1508
      %v1511 = vsel %vm1278, %v1503, %v1510
      %v1512 = vrot.slane %v1507, 4
      %v1514 = vshrl.u32 %v1255, 16
      %v1516 = vrot.slane %v1514, 7
      %v1517 = vshll.u32 %v1255, 16
      %v1519 = vor.u32 %v1516, %v1517
      %v1520 = vsel %vm1278, %v1512, %v1519
      %v1522 = vshrl.u32 %v1256, 16
      %v1524 = vrot.slane %v1522, 7
      %v1525 = vrot.slane %v1524, 4
      %v1527 = vshrl.u32 %v1257, 16
      %v1529 = vrot.slane %v1527, 7
      %v1530 = vshll.u32 %v1257, 16
      %v1532 = vor.u32 %v1529, %v1530
      %v1533 = vsel %vm1278, %v1525, %v1532
      %v1534 = vrot.slane %v1529, 4
      %v1536 = vshrl.u32 %v1258, 16
      %v1538 = vrot.slane %v1536, 7
      %v1539 = vshll.u32 %v1258, 16
      %v1541 = vor.u32 %v1538, %v1539
      %v1542 = vsel %vm1278, %v1534, %v1541
      %v1544 = vshrl.u32 %v1259, 16
      %v1546 = vrot.slane %v1544, 7
      %v1547 = vrot.slane %v1546, 4
      %v1549 = vshrl.u32 %v1260, 16
      %v1551 = vrot.slane %v1549, 7
      %v1552 = vshll.u32 %v1260, 16
      %v1554 = vor.u32 %v1551, %v1552
      %v1555 = vsel %vm1278, %v1547, %v1554
      %v1556 = vrot.slane %v1551, 4
      %v1558 = vshrl.u32 %v1261, 16
      %v1560 = vrot.slane %v1558, 7
      %v1561 = vshll.u32 %v1261, 16
      %v1563 = vor.u32 %v1560, %v1561
      %v1564 = vsel %vm1278, %v1556, %v1563
      %v1566 = vshrl.u32 %v1262, 16
      %v1568 = vrot.slane %v1566, 7
      %v1569 = vrot.slane %v1568, 4
      %v1571 = vshrl.u32 %v1263, 16
      %v1573 = vrot.slane %v1571, 7
      %v1574 = vshll.u32 %v1263, 16
      %v1576 = vor.u32 %v1573, %v1574
      %v1577 = vsel %vm1278, %v1569, %v1576
      %v1578 = vrot.slane %v1573, 4
      %v1580 = vshrl.u32 %v1264, 16
      %v1582 = vrot.slane %v1580, 7
      %v1583 = vshll.u32 %v1264, 16
      %v1585 = vor.u32 %v1582, %v1583
      %v1586 = vsel %vm1278, %v1578, %v1585
      %v1588 = vshrl.u32 %v1265, 16
      %v1590 = vrot.slane %v1588, 7
      %v1591 = vrot.slane %v1590, 4
      %v1593 = vshrl.u32 %v1266, 16
      %v1595 = vrot.slane %v1593, 7
      %v1596 = vshll.u32 %v1266, 16
      %v1598 = vor.u32 %v1595, %v1596
      %v1599 = vsel %vm1278, %v1591, %v1598
      %v1600 = vrot.slane %v1595, 4
      %v1602 = vshrl.u32 %v1267, 16
      %v1604 = vrot.slane %v1602, 7
      %v1605 = vshll.u32 %v1267, 16
      %v1607 = vor.u32 %v1604, %v1605
      %v1608 = vsel %vm1278, %v1600, %v1607
      %v1610 = vshrl.u32 %v1268, 16
      %v1612 = vrot.slane %v1610, 7
      %v1613 = vrot.slane %v1612, 4
      %v1615 = vshrl.u32 %v1269, 16
      %v1617 = vrot.slane %v1615, 7
      %v1618 = vshll.u32 %v1269, 16
      %v1620 = vor.u32 %v1617, %v1618
      %v1621 = vsel %vm1278, %v1613, %v1620
      %v1622 = vrot.slane %v1617, 4
      %v1624 = vshrl.u32 %v1270, 16
      %v1626 = vrot.slane %v1624, 7
      %v1627 = vshll.u32 %v1270, 16
      %v1629 = vor.u32 %v1626, %v1627
      %v1630 = vsel %vm1278, %v1622, %v1629
      %v1631 = vunpack.c.l.b16 %v1291
      %v1632 = vunpack.c.l.b16 %v1300
      %v1633 = vunpack.c.l.b16 %v1313
      %v1634 = vunpack.c.l.b16 %v1322
      %v1635 = vunpack.c.l.b16 %v1335
      %v1636 = vunpack.c.l.b16 %v1344
      %v1637 = vunpack.c.l.b16 %v1357
      %v1638 = vunpack.c.l.b16 %v1366
      %v1639 = vunpack.c.l.b16 %v1379
      %v1640 = vunpack.c.l.b16 %v1388
      %v1641 = vunpack.c.l.b16 %v1401
      %v1642 = vunpack.c.l.b16 %v1410
      %v1643 = vunpack.c.l.b16 %v1423
      %v1644 = vunpack.c.l.b16 %v1432
      %v1645 = vunpack.c.l.b16 %v1445
      %v1646 = vunpack.c.l.b16 %v1454
      %v1647 = vunpack.c.l.b16 %v1467
      %v1648 = vunpack.c.l.b16 %v1476
      %v1649 = vunpack.c.l.b16 %v1489
      %v1650 = vunpack.c.l.b16 %v1498
      %v1651 = vunpack.c.l.b16 %v1511
      %v1652 = vunpack.c.l.b16 %v1520
      %v1653 = vunpack.c.l.b16 %v1533
      %v1654 = vunpack.c.l.b16 %v1542
      %v1655 = vunpack.c.l.b16 %v1555
      %v1656 = vunpack.c.l.b16 %v1564
      %v1657 = vunpack.c.l.b16 %v1577
      %v1658 = vunpack.c.l.b16 %v1586
      %v1659 = vunpack.c.l.b16 %v1599
      %v1660 = vunpack.c.l.b16 %v1608
      %v1661 = vunpack.c.l.b16 %v1621
      %v1662 = vunpack.c.l.b16 %v1630
      %v1663 = vpack.c.b16 %v1632, %v1631
      %v1664 = vpack.c.b16 %v1634, %v1633
      %v1665 = vpack.c.b16 %v1636, %v1635
      %v1666 = vpack.c.b16 %v1638, %v1637
      %v1667 = vpack.c.b16 %v1640, %v1639
      %v1668 = vpack.c.b16 %v1642, %v1641
      %v1669 = vpack.c.b16 %v1644, %v1643
      %v1670 = vpack.c.b16 %v1646, %v1645
      %v1671 = vpack.c.b16 %v1648, %v1647
      %v1672 = vpack.c.b16 %v1650, %v1649
      %v1673 = vpack.c.b16 %v1652, %v1651
      %v1674 = vpack.c.b16 %v1654, %v1653
      %v1675 = vpack.c.b16 %v1656, %v1655
      %v1676 = vpack.c.b16 %v1658, %v1657
      %v1677 = vpack.c.b16 %v1660, %v1659
      %v1678 = vpack.c.b16 %v1662, %v1661
      %vm1695 = vcmask 392192
      %1696 = vst.msk [vmem:[#allocation3] sm:$0xff] %vm1695, %v1663
      %1697 = vst.msk [vmem:[#allocation3 + $0x20] sm:$0xff] %vm1695, %v1664
      %1698 = vst.msk [vmem:[#allocation3 + $0x40] sm:$0xff] %vm1695, %v1665
      %1699 = vst.msk [vmem:[#allocation3 + $0x60] sm:$0xff] %vm1695, %v1666
      %1700 = vst.msk [vmem:[#allocation3 + $0x80] sm:$0xff] %vm1695, %v1667
      %1701 = vst.msk [vmem:[#allocation3 + $0xa0] sm:$0xff] %vm1695, %v1668
      %1702 = vst.msk [vmem:[#allocation3 + $0xc0] sm:$0xff] %vm1695, %v1669
      %1703 = vst.msk [vmem:[#allocation3 + $0xe0] sm:$0xff] %vm1695, %v1670
      %1704 = vst.msk [vmem:[#allocation3 + $0x100] sm:$0xff] %vm1695, %v1671
      %1705 = vst.msk [vmem:[#allocation3 + $0x120] sm:$0xff] %vm1695, %v1672
      %1706 = vst.msk [vmem:[#allocation3 + $0x140] sm:$0xff] %vm1695, %v1673
      %1707 = vst.msk [vmem:[#allocation3 + $0x160] sm:$0xff] %vm1695, %v1674
      %1708 = vst.msk [vmem:[#allocation3 + $0x180] sm:$0xff] %vm1695, %v1675
      %1709 = vst.msk [vmem:[#allocation3 + $0x1a0] sm:$0xff] %vm1695, %v1676
      %1710 = vst.msk [vmem:[#allocation3 + $0x1c0] sm:$0xff] %vm1695, %v1677
      %1711 = vst.msk [vmem:[#allocation3 + $0x1e0] sm:$0xff] %vm1695, %v1678
      %v1713 = vshrl.u32 %v1271, 16
      %v1715 = vrot.slane %v1713, 7
      %v1716 = vrot.slane %v1715, 4
      %v1718 = vshrl.u32 %v1272, 16
      %v1720 = vrot.slane %v1718, 7
      %v1721 = vshll.u32 %v1272, 16
      %v1723 = vor.u32 %v1720, %v1721
      %v1724 = vsel %vm1278, %v1716, %v1723
      %v1725 = vrot.slane %v1720, 4
      %v1727 = vshrl.u32 %v1273, 16
      %v1729 = vrot.slane %v1727, 7
      %v1730 = vshll.u32 %v1273, 16
      %v1732 = vor.u32 %v1729, %v1730
      %v1733 = vsel %vm1278, %v1725, %v1732
      %v1734 = vunpack.c.l.b16 %v1724
      %v1735 = vunpack.c.l.b16 %v1733
      %v1736 = vpack.c.b16 %v1735, %v1734
      %1737 = vrot.lane.b32.xlu0 %v1664, 16
      %v1738 = vpop.permute.xlu0 %1737
      %1739 = vrot.lane.b32.xlu0 %v1665, 16
      %v1740 = vpop.permute.xlu0 %1739
      %1741 = vrot.lane.b32.xlu0 %v1666, 16
      %v1742 = vpop.permute.xlu0 %1741
      %1743 = vrot.lane.b32.xlu0 %v1667, 16
      %v1744 = vpop.permute.xlu0 %1743
      %1745 = vrot.lane.b32.xlu0 %v1668, 16
      %v1746 = vpop.permute.xlu0 %1745
      %1747 = vrot.lane.b32.xlu0 %v1669, 16
      %v1748 = vpop.permute.xlu0 %1747
      %1749 = vrot.lane.b32.xlu0 %v1670, 16
      %v1750 = vpop.permute.xlu0 %1749
      %1751 = vrot.lane.b32.xlu0 %v1671, 16
      %v1752 = vpop.permute.xlu0 %1751
      %1753 = vrot.lane.b32.xlu0 %v1672, 16
      %v1754 = vpop.permute.xlu0 %1753
      %1755 = vrot.lane.b32.xlu0 %v1673, 16
      %v1756 = vpop.permute.xlu0 %1755
      %1757 = vrot.lane.b32.xlu0 %v1674, 16
      %v1758 = vpop.permute.xlu0 %1757
      %1759 = vrot.lane.b32.xlu0 %v1675, 16
      %v1760 = vpop.permute.xlu0 %1759
      %1761 = vrot.lane.b32.xlu0 %v1676, 16
      %v1762 = vpop.permute.xlu0 %1761
      %1763 = vrot.lane.b32.xlu0 %v1677, 16
      %v1764 = vpop.permute.xlu0 %1763
      %1765 = vrot.lane.b32.xlu0 %v1678, 16
      %v1766 = vpop.permute.xlu0 %1765
      %1767 = vrot.lane.b32.xlu0 %v1736, 16
      %v1768 = vpop.permute.xlu0 %1767
      %vm1785 = vcmask 523392
      %1786 = vst.msk [vmem:[#allocation3 + $0x8] sm:$0xff] %vm1785, %v1738
      %1787 = vst.msk [vmem:[#allocation3 + $0x28] sm:$0xff] %vm1785, %v1740
      %1788 = vst.msk [vmem:[#allocation3 + $0x48] sm:$0xff] %vm1785, %v1742
      %1789 = vst.msk [vmem:[#allocation3 + $0x68] sm:$0xff] %vm1785, %v1744
      %1790 = vst.msk [vmem:[#allocation3 + $0x88] sm:$0xff] %vm1785, %v1746
      %1791 = vst.msk [vmem:[#allocation3 + $0xa8] sm:$0xff] %vm1785, %v1748
      %1792 = vst.msk [vmem:[#allocation3 + $0xc8] sm:$0xff] %vm1785, %v1750
      %1793 = vst.msk [vmem:[#allocation3 + $0xe8] sm:$0xff] %vm1785, %v1752
      %1794 = vst.msk [vmem:[#allocation3 + $0x108] sm:$0xff] %vm1785, %v1754
      %1795 = vst.msk [vmem:[#allocation3 + $0x128] sm:$0xff] %vm1785, %v1756
      %1796 = vst.msk [vmem:[#allocation3 + $0x148] sm:$0xff] %vm1785, %v1758
      %1797 = vst.msk [vmem:[#allocation3 + $0x168] sm:$0xff] %vm1785, %v1760
      %1798 = vst.msk [vmem:[#allocation3 + $0x188] sm:$0xff] %vm1785, %v1762
      %1799 = vst.msk [vmem:[#allocation3 + $0x1a8] sm:$0xff] %vm1785, %v1764
      %1800 = vst.msk [vmem:[#allocation3 + $0x1c8] sm:$0xff] %vm1785, %v1766
      %1801 = vst.msk [vmem:[#allocation3 + $0x1e8] sm:$0xff] %vm1785, %v1768
      %v1803 = vshrl.u32 %v1274, 16
      %v1805 = vrot.slane %v1803, 7
      %v1806 = vrot.slane %v1805, 4
      %v1808 = vshrl.u32 %v1275, 16
      %v1810 = vrot.slane %v1808, 7
      %v1811 = vshll.u32 %v1275, 16
      %v1813 = vor.u32 %v1810, %v1811
      %v1814 = vsel %vm1278, %v1806, %v1813
      %v1815 = vrot.slane %v1810, 4
      %v1817 = vshrl.u32 %v1276, 16
      %v1819 = vrot.slane %v1817, 7
      %v1820 = vshll.u32 %v1276, 16
      %v1822 = vor.u32 %v1819, %v1820
      %v1823 = vsel %vm1278, %v1815, %v1822
      %v1824 = vunpack.c.l.b16 %v1814
      %v1825 = vunpack.c.l.b16 %v1823
      %v1826 = vpack.c.b16 %v1825, %v1824
      %1827 = vrot.lane.b32.xlu0 %v1665, 32
      %v1828 = vpop.permute.xlu0 %1827
      %1829 = vrot.lane.b32.xlu0 %v1666, 32
      %v1830 = vpop.permute.xlu0 %1829
      %1831 = vrot.lane.b32.xlu0 %v1667, 32
      %v1832 = vpop.permute.xlu0 %1831
      %1833 = vrot.lane.b32.xlu0 %v1668, 32
      %v1834 = vpop.permute.xlu0 %1833
      %1835 = vrot.lane.b32.xlu0 %v1669, 32
      %v1836 = vpop.permute.xlu0 %1835
      %1837 = vrot.lane.b32.xlu0 %v1670, 32
      %v1838 = vpop.permute.xlu0 %1837
      %1839 = vrot.lane.b32.xlu0 %v1671, 32
      %v1840 = vpop.permute.xlu0 %1839
      %1841 = vrot.lane.b32.xlu0 %v1672, 32
      %v1842 = vpop.permute.xlu0 %1841
      %1843 = vrot.lane.b32.xlu0 %v1673, 32
      %v1844 = vpop.permute.xlu0 %1843
      %1845 = vrot.lane.b32.xlu0 %v1674, 32
      %v1846 = vpop.permute.xlu0 %1845
      %1847 = vrot.lane.b32.xlu0 %v1675, 32
      %v1848 = vpop.permute.xlu0 %1847
      %1849 = vrot.lane.b32.xlu0 %v1676, 32
      %v1850 = vpop.permute.xlu0 %1849
      %1851 = vrot.lane.b32.xlu0 %v1677, 32
      %v1852 = vpop.permute.xlu0 %1851
      %1853 = vrot.lane.b32.xlu0 %v1678, 32
      %v1854 = vpop.permute.xlu0 %1853
      %1855 = vrot.lane.b32.xlu0 %v1736, 32
      %v1856 = vpop.permute.xlu0 %1855
      %1857 = vrot.lane.b32.xlu0 %v1826, 32
      %v1858 = vpop.permute.xlu0 %1857
      %vm1875 = vcmask 654592
      %1876 = vst.msk [vmem:[#allocation3 + $0x10] sm:$0xff] %vm1875, %v1828
      %1877 = vst.msk [vmem:[#allocation3 + $0x30] sm:$0xff] %vm1875, %v1830
      %1878 = vst.msk [vmem:[#allocation3 + $0x50] sm:$0xff] %vm1875, %v1832
      %1879 = vst.msk [vmem:[#allocation3 + $0x70] sm:$0xff] %vm1875, %v1834
      %1880 = vst.msk [vmem:[#allocation3 + $0x90] sm:$0xff] %vm1875, %v1836
      %1881 = vst.msk [vmem:[#allocation3 + $0xb0] sm:$0xff] %vm1875, %v1838
      %1882 = vst.msk [vmem:[#allocation3 + $0xd0] sm:$0xff] %vm1875, %v1840
      %1883 = vst.msk [vmem:[#allocation3 + $0xf0] sm:$0xff] %vm1875, %v1842
      %1884 = vst.msk [vmem:[#allocation3 + $0x110] sm:$0xff] %vm1875, %v1844
      %1885 = vst.msk [vmem:[#allocation3 + $0x130] sm:$0xff] %vm1875, %v1846
      %1886 = vst.msk [vmem:[#allocation3 + $0x150] sm:$0xff] %vm1875, %v1848
      %1887 = vst.msk [vmem:[#allocation3 + $0x170] sm:$0xff] %vm1875, %v1850
      %1888 = vst.msk [vmem:[#allocation3 + $0x190] sm:$0xff] %vm1875, %v1852
      %1889 = vst.msk [vmem:[#allocation3 + $0x1b0] sm:$0xff] %vm1875, %v1854
      %1890 = vst.msk [vmem:[#allocation3 + $0x1d0] sm:$0xff] %vm1875, %v1856
      %1891 = vst.msk [vmem:[#allocation3 + $0x1f0] sm:$0xff] %vm1875, %v1858
      %v1892 = vld [vmem:[#allocation2 + $0x4] sm:$0xf]
      %v1893 = vld [vmem:[#allocation2 + $0x8] sm:$0xf]
      %v1894 = vld [vmem:[#allocation2 + $0x14] sm:$0xf]
      %v1895 = vld [vmem:[#allocation2 + $0x18] sm:$0xf]
      %v1896 = vld [vmem:[#allocation2 + $0x24] sm:$0xf]
      %v1897 = vld [vmem:[#allocation2 + $0x28] sm:$0xf]
      %v1898 = vld [vmem:[#allocation2 + $0x34] sm:$0xf]
      %v1899 = vld [vmem:[#allocation2 + $0x38] sm:$0xf]
      %v1900 = vld [vmem:[#allocation2 + $0x44] sm:$0xf]
      %v1901 = vld [vmem:[#allocation2 + $0x48] sm:$0xf]
      %v1902 = vld [vmem:[#allocation2 + $0x54] sm:$0xf]
      %v1903 = vld [vmem:[#allocation2 + $0x58] sm:$0xf]
      %v1904 = vld [vmem:[#allocation2 + $0x64] sm:$0xf]
      %v1905 = vld [vmem:[#allocation2 + $0x68] sm:$0xf]
      %v1906 = vld [vmem:[#allocation2 + $0x74] sm:$0xf]
      %v1907 = vld [vmem:[#allocation2 + $0x78] sm:$0xf]
      %v1908 = vld [vmem:[#allocation2 + $0x84] sm:$0xf]
      %v1909 = vld [vmem:[#allocation2 + $0x88] sm:$0xf]
      %v1910 = vld [vmem:[#allocation2 + $0x94] sm:$0xf]
      %v1911 = vld [vmem:[#allocation2 + $0x98] sm:$0xf]
      %v1912 = vld [vmem:[#allocation2 + $0xa4] sm:$0xf]
      %v1913 = vld [vmem:[#allocation2 + $0xa8] sm:$0xf]
      %v1914 = vld [vmem:[#allocation2 + $0xb4] sm:$0xf]
      %v1915 = vld [vmem:[#allocation2 + $0xb8] sm:$0xf]
      %v1916 = vld [vmem:[#allocation2 + $0xc4] sm:$0xf]
      %v1917 = vld [vmem:[#allocation2 + $0xc8] sm:$0xf]
      %v1918 = vld [vmem:[#allocation2 + $0xd4] sm:$0xf]
      %v1919 = vld [vmem:[#allocation2 + $0xd8] sm:$0xf]
      %v1920 = vld [vmem:[#allocation2 + $0xe4] sm:$0xf]
      %v1921 = vld [vmem:[#allocation2 + $0xe8] sm:$0xf]
      %v1922 = vld [vmem:[#allocation2 + $0xf4] sm:$0xf]
      %v1923 = vld [vmem:[#allocation2 + $0xf8] sm:$0xf]
      %v1924 = vld [vmem:[#allocation2 + $0x104] sm:$0xf]
      %v1925 = vld [vmem:[#allocation2 + $0x108] sm:$0xf]
      %v1926 = vld [vmem:[#allocation2 + $0x114] sm:$0xf]
      %v1927 = vld [vmem:[#allocation2 + $0x118] sm:$0xf]
      %v1960 = vunpack.c.l.b16 %v1892
      %v1961 = vunpack.c.l.b16 %v1893
      %v1962 = vunpack.c.l.b16 %v1894
      %v1963 = vunpack.c.l.b16 %v1895
      %v1964 = vunpack.c.l.b16 %v1896
      %v1965 = vunpack.c.l.b16 %v1897
      %v1966 = vunpack.c.l.b16 %v1898
      %v1967 = vunpack.c.l.b16 %v1899
      %v1968 = vunpack.c.l.b16 %v1900
      %v1969 = vunpack.c.l.b16 %v1901
      %v1970 = vunpack.c.l.b16 %v1902
      %v1971 = vunpack.c.l.b16 %v1903
      %v1972 = vunpack.c.l.b16 %v1904
      %v1973 = vunpack.c.l.b16 %v1905
      %v1974 = vunpack.c.l.b16 %v1906
      %v1975 = vunpack.c.l.b16 %v1907
      %v1976 = vunpack.c.l.b16 %v1908
      %v1977 = vunpack.c.l.b16 %v1909
      %v1978 = vunpack.c.l.b16 %v1910
      %v1979 = vunpack.c.l.b16 %v1911
      %v1980 = vunpack.c.l.b16 %v1912
      %v1981 = vunpack.c.l.b16 %v1913
      %v1982 = vunpack.c.l.b16 %v1914
      %v1983 = vunpack.c.l.b16 %v1915
      %v1984 = vunpack.c.l.b16 %v1916
      %v1985 = vunpack.c.l.b16 %v1917
      %v1986 = vunpack.c.l.b16 %v1918
      %v1987 = vunpack.c.l.b16 %v1919
      %v1988 = vunpack.c.l.b16 %v1920
      %v1989 = vunpack.c.l.b16 %v1921
      %v1990 = vunpack.c.l.b16 %v1922
      %v1991 = vunpack.c.l.b16 %v1923
      %v1992 = vpack.c.b16 %v1961, %v1960
      %v1993 = vpack.c.b16 %v1963, %v1962
      %v1994 = vpack.c.b16 %v1965, %v1964
      %v1995 = vpack.c.b16 %v1967, %v1966
      %v1996 = vpack.c.b16 %v1969, %v1968
      %v1997 = vpack.c.b16 %v1971, %v1970
      %v1998 = vpack.c.b16 %v1973, %v1972
      %v1999 = vpack.c.b16 %v1975, %v1974
      %v2000 = vpack.c.b16 %v1977, %v1976
      %v2001 = vpack.c.b16 %v1979, %v1978
      %v2002 = vpack.c.b16 %v1981, %v1980
      %v2003 = vpack.c.b16 %v1983, %v1982
      %v2004 = vpack.c.b16 %v1985, %v1984
      %v2005 = vpack.c.b16 %v1987, %v1986
      %v2006 = vpack.c.b16 %v1989, %v1988
      %v2007 = vpack.c.b16 %v1991, %v1990
      %2008 = vrot.lane.b32.xlu0 %v1992, 48
      %v2009 = vpop.permute.xlu0 %2008
      %2010 = vrot.lane.b32.xlu0 %v1993, 48
      %v2011 = vpop.permute.xlu0 %2010
      %2012 = vrot.lane.b32.xlu0 %v1994, 48
      %v2013 = vpop.permute.xlu0 %2012
      %2014 = vrot.lane.b32.xlu0 %v1995, 48
      %v2015 = vpop.permute.xlu0 %2014
      %2016 = vrot.lane.b32.xlu0 %v1996, 48
      %v2017 = vpop.permute.xlu0 %2016
      %2018 = vrot.lane.b32.xlu0 %v1997, 48
      %v2019 = vpop.permute.xlu0 %2018
      %2020 = vrot.lane.b32.xlu0 %v1998, 48
      %v2021 = vpop.permute.xlu0 %2020
      %2022 = vrot.lane.b32.xlu0 %v1999, 48
      %v2023 = vpop.permute.xlu0 %2022
      %2024 = vrot.lane.b32.xlu0 %v2000, 48
      %v2025 = vpop.permute.xlu0 %2024
      %2026 = vrot.lane.b32.xlu0 %v2001, 48
      %v2027 = vpop.permute.xlu0 %2026
      %2028 = vrot.lane.b32.xlu0 %v2002, 48
      %v2029 = vpop.permute.xlu0 %2028
      %2030 = vrot.lane.b32.xlu0 %v2003, 48
      %v2031 = vpop.permute.xlu0 %2030
      %2032 = vrot.lane.b32.xlu0 %v2004, 48
      %v2033 = vpop.permute.xlu0 %2032
      %2034 = vrot.lane.b32.xlu0 %v2005, 48
      %v2035 = vpop.permute.xlu0 %2034
      %2036 = vrot.lane.b32.xlu0 %v2006, 48
      %v2037 = vpop.permute.xlu0 %2036
      %2038 = vrot.lane.b32.xlu0 %v2007, 48
      %v2039 = vpop.permute.xlu0 %2038
      %vm2056 = vcmask 785792
      %2057 = vst.msk [vmem:[#allocation3] sm:$0xff] %vm2056, %v2009
      %2058 = vst.msk [vmem:[#allocation3 + $0x20] sm:$0xff] %vm2056, %v2011
      %2059 = vst.msk [vmem:[#allocation3 + $0x40] sm:$0xff] %vm2056, %v2013
      %2060 = vst.msk [vmem:[#allocation3 + $0x60] sm:$0xff] %vm2056, %v2015
      %2061 = vst.msk [vmem:[#allocation3 + $0x80] sm:$0xff] %vm2056, %v2017
      %2062 = vst.msk [vmem:[#allocation3 + $0xa0] sm:$0xff] %vm2056, %v2019
      %2063 = vst.msk [vmem:[#allocation3 + $0xc0] sm:$0xff] %vm2056, %v2021
      %2064 = vst.msk [vmem:[#allocation3 + $0xe0] sm:$0xff] %vm2056, %v2023
      %2065 = vst.msk [vmem:[#allocation3 + $0x100] sm:$0xff] %vm2056, %v2025
      %2066 = vst.msk [vmem:[#allocation3 + $0x120] sm:$0xff] %vm2056, %v2027
      %2067 = vst.msk [vmem:[#allocation3 + $0x140] sm:$0xff] %vm2056, %v2029
      %2068 = vst.msk [vmem:[#allocation3 + $0x160] sm:$0xff] %vm2056, %v2031
      %2069 = vst.msk [vmem:[#allocation3 + $0x180] sm:$0xff] %vm2056, %v2033
      %2070 = vst.msk [vmem:[#allocation3 + $0x1a0] sm:$0xff] %vm2056, %v2035
      %2071 = vst.msk [vmem:[#allocation3 + $0x1c0] sm:$0xff] %vm2056, %v2037
      %2072 = vst.msk [vmem:[#allocation3 + $0x1e0] sm:$0xff] %vm2056, %v2039
      %v2075 = vunpack.c.l.b16 %v1924
      %v2076 = vunpack.c.l.b16 %v1925
      %v2077 = vpack.c.b16 %v2076, %v2075
      %2078 = vrot.lane.b32.xlu0 %v1993, 64
      %v2079 = vpop.permute.xlu0 %2078
      %2080 = vrot.lane.b32.xlu0 %v1994, 64
      %v2081 = vpop.permute.xlu0 %2080
      %2082 = vrot.lane.b32.xlu0 %v1995, 64
      %v2083 = vpop.permute.xlu0 %2082
      %2084 = vrot.lane.b32.xlu0 %v1996, 64
      %v2085 = vpop.permute.xlu0 %2084
      %2086 = vrot.lane.b32.xlu0 %v1997, 64
      %v2087 = vpop.permute.xlu0 %2086
      %2088 = vrot.lane.b32.xlu0 %v1998, 64
      %v2089 = vpop.permute.xlu0 %2088
      %2090 = vrot.lane.b32.xlu0 %v1999, 64
      %v2091 = vpop.permute.xlu0 %2090
      %2092 = vrot.lane.b32.xlu0 %v2000, 64
      %v2093 = vpop.permute.xlu0 %2092
      %2094 = vrot.lane.b32.xlu0 %v2001, 64
      %v2095 = vpop.permute.xlu0 %2094
      %2096 = vrot.lane.b32.xlu0 %v2002, 64
      %v2097 = vpop.permute.xlu0 %2096
      %2098 = vrot.lane.b32.xlu0 %v2003, 64
      %v2099 = vpop.permute.xlu0 %2098
      %2100 = vrot.lane.b32.xlu0 %v2004, 64
      %v2101 = vpop.permute.xlu0 %2100
      %2102 = vrot.lane.b32.xlu0 %v2005, 64
      %v2103 = vpop.permute.xlu0 %2102
      %2104 = vrot.lane.b32.xlu0 %v2006, 64
      %v2105 = vpop.permute.xlu0 %2104
      %2106 = vrot.lane.b32.xlu0 %v2007, 64
      %v2107 = vpop.permute.xlu0 %2106
      %2108 = vrot.lane.b32.xlu0 %v2077, 64
      %v2109 = vpop.permute.xlu0 %2108
      %vm2126 = vcmask 916992
      %2127 = vst.msk [vmem:[#allocation3 + $0x8] sm:$0xff] %vm2126, %v2079
      %2128 = vst.msk [vmem:[#allocation3 + $0x28] sm:$0xff] %vm2126, %v2081
      %2129 = vst.msk [vmem:[#allocation3 + $0x48] sm:$0xff] %vm2126, %v2083
      %2130 = vst.msk [vmem:[#allocation3 + $0x68] sm:$0xff] %vm2126, %v2085
      %2131 = vst.msk [vmem:[#allocation3 + $0x88] sm:$0xff] %vm2126, %v2087
      %2132 = vst.msk [vmem:[#allocation3 + $0xa8] sm:$0xff] %vm2126, %v2089
      %2133 = vst.msk [vmem:[#allocation3 + $0xc8] sm:$0xff] %vm2126, %v2091
      %2134 = vst.msk [vmem:[#allocation3 + $0xe8] sm:$0xff] %vm2126, %v2093
      %2135 = vst.msk [vmem:[#allocation3 + $0x108] sm:$0xff] %vm2126, %v2095
      %2136 = vst.msk [vmem:[#allocation3 + $0x128] sm:$0xff] %vm2126, %v2097
      %2137 = vst.msk [vmem:[#allocation3 + $0x148] sm:$0xff] %vm2126, %v2099
      %2138 = vst.msk [vmem:[#allocation3 + $0x168] sm:$0xff] %vm2126, %v2101
      %2139 = vst.msk [vmem:[#allocation3 + $0x188] sm:$0xff] %vm2126, %v2103
      %2140 = vst.msk [vmem:[#allocation3 + $0x1a8] sm:$0xff] %vm2126, %v2105
      %2141 = vst.msk [vmem:[#allocation3 + $0x1c8] sm:$0xff] %vm2126, %v2107
      %2142 = vst.msk [vmem:[#allocation3 + $0x1e8] sm:$0xff] %vm2126, %v2109
      %v2145 = vunpack.c.l.b16 %v1926
      %v2146 = vunpack.c.l.b16 %v1927
      %v2147 = vpack.c.b16 %v2146, %v2145
      %2148 = vrot.lane.b32.xlu0 %v1994, 80
      %v2149 = vpop.permute.xlu0 %2148
      %2150 = vrot.lane.b32.xlu0 %v1995, 80
      %v2151 = vpop.permute.xlu0 %2150
      %2152 = vrot.lane.b32.xlu0 %v1996, 80
      %v2153 = vpop.permute.xlu0 %2152
      %2154 = vrot.lane.b32.xlu0 %v1997, 80
      %v2155 = vpop.permute.xlu0 %2154
      %2156 = vrot.lane.b32.xlu0 %v1998, 80
      %v2157 = vpop.permute.xlu0 %2156
      %2158 = vrot.lane.b32.xlu0 %v1999, 80
      %v2159 = vpop.permute.xlu0 %2158
      %2160 = vrot.lane.b32.xlu0 %v2000, 80
      %v2161 = vpop.permute.xlu0 %2160
      %2162 = vrot.lane.b32.xlu0 %v2001, 80
      %v2163 = vpop.permute.xlu0 %2162
      %2164 = vrot.lane.b32.xlu0 %v2002, 80
      %v2165 = vpop.permute.xlu0 %2164
      %2166 = vrot.lane.b32.xlu0 %v2003, 80
      %v2167 = vpop.permute.xlu0 %2166
      %2168 = vrot.lane.b32.xlu0 %v2004, 80
      %v2169 = vpop.permute.xlu0 %2168
      %2170 = vrot.lane.b32.xlu0 %v2005, 80
      %v2171 = vpop.permute.xlu0 %2170
      %2172 = vrot.lane.b32.xlu0 %v2006, 80
      %v2173 = vpop.permute.xlu0 %2172
      %2174 = vrot.lane.b32.xlu0 %v2007, 80
      %v2175 = vpop.permute.xlu0 %2174
      %2176 = vrot.lane.b32.xlu0 %v2077, 80
      %v2177 = vpop.permute.xlu0 %2176
      %2178 = vrot.lane.b32.xlu0 %v2147, 80
      %v2179 = vpop.permute.xlu0 %2178
      %vm2196 = vcmask 1048192
      %2197 = vst.msk [vmem:[#allocation3 + $0x10] sm:$0xff] %vm2196, %v2149
      %2198 = vst.msk [vmem:[#allocation3 + $0x30] sm:$0xff] %vm2196, %v2151
      %2199 = vst.msk [vmem:[#allocation3 + $0x50] sm:$0xff] %vm2196, %v2153
      %2200 = vst.msk [vmem:[#allocation3 + $0x70] sm:$0xff] %vm2196, %v2155
      %2201 = vst.msk [vmem:[#allocation3 + $0x90] sm:$0xff] %vm2196, %v2157
      %2202 = vst.msk [vmem:[#allocation3 + $0xb0] sm:$0xff] %vm2196, %v2159
      %2203 = vst.msk [vmem:[#allocation3 + $0xd0] sm:$0xff] %vm2196, %v2161
      %2204 = vst.msk [vmem:[#allocation3 + $0xf0] sm:$0xff] %vm2196, %v2163
      %2205 = vst.msk [vmem:[#allocation3 + $0x110] sm:$0xff] %vm2196, %v2165
      %2206 = vst.msk [vmem:[#allocation3 + $0x130] sm:$0xff] %vm2196, %v2167
      %2207 = vst.msk [vmem:[#allocation3 + $0x150] sm:$0xff] %vm2196, %v2169
      %2208 = vst.msk [vmem:[#allocation3 + $0x170] sm:$0xff] %vm2196, %v2171
      %2209 = vst.msk [vmem:[#allocation3 + $0x190] sm:$0xff] %vm2196, %v2173
      %2210 = vst.msk [vmem:[#allocation3 + $0x1b0] sm:$0xff] %vm2196, %v2175
      %2211 = vst.msk [vmem:[#allocation3 + $0x1d0] sm:$0xff] %vm2196, %v2177
      %2212 = vst.msk [vmem:[#allocation3 + $0x1f0] sm:$0xff] %vm2196, %v2179
      %v2213 = vld [vmem:[#allocation2 + $0x4] sm:$0xf]
      %v2214 = vld [vmem:[#allocation2 + $0x8] sm:$0xf]
      %v2215 = vld [vmem:[#allocation2 + $0xc] sm:$0x1]
      %v2216 = vld [vmem:[#allocation2 + $0x14] sm:$0xf]
      %v2217 = vld [vmem:[#allocation2 + $0x18] sm:$0xf]
      %v2218 = vld [vmem:[#allocation2 + $0x1c] sm:$0x1]
      %v2219 = vld [vmem:[#allocation2 + $0x24] sm:$0xf]
      %v2220 = vld [vmem:[#allocation2 + $0x28] sm:$0xf]
      %v2221 = vld [vmem:[#allocation2 + $0x2c] sm:$0x1]
      %v2222 = vld [vmem:[#allocation2 + $0x34] sm:$0xf]
      %v2223 = vld [vmem:[#allocation2 + $0x38] sm:$0xf]
      %v2224 = vld [vmem:[#allocation2 + $0x3c] sm:$0x1]
      %v2225 = vld [vmem:[#allocation2 + $0x44] sm:$0xf]
      %v2226 = vld [vmem:[#allocation2 + $0x48] sm:$0xf]
      %v2227 = vld [vmem:[#allocation2 + $0x4c] sm:$0x1]
      %v2228 = vld [vmem:[#allocation2 + $0x54] sm:$0xf]
      %v2229 = vld [vmem:[#allocation2 + $0x58] sm:$0xf]
      %v2230 = vld [vmem:[#allocation2 + $0x5c] sm:$0x1]
      %v2231 = vld [vmem:[#allocation2 + $0x64] sm:$0xf]
      %v2232 = vld [vmem:[#allocation2 + $0x68] sm:$0xf]
      %v2233 = vld [vmem:[#allocation2 + $0x6c] sm:$0x1]
      %v2234 = vld [vmem:[#allocation2 + $0x74] sm:$0xf]
      %v2235 = vld [vmem:[#allocation2 + $0x78] sm:$0xf]
      %v2236 = vld [vmem:[#allocation2 + $0x7c] sm:$0x1]
      %v2237 = vld [vmem:[#allocation2 + $0x84] sm:$0xf]
      %v2238 = vld [vmem:[#allocation2 + $0x88] sm:$0xf]
      %v2239 = vld [vmem:[#allocation2 + $0x8c] sm:$0x1]
      %v2240 = vld [vmem:[#allocation2 + $0x94] sm:$0xf]
      %v2241 = vld [vmem:[#allocation2 + $0x98] sm:$0xf]
      %v2242 = vld [vmem:[#allocation2 + $0x9c] sm:$0x1]
      %v2243 = vld [vmem:[#allocation2 + $0xa4] sm:$0xf]
      %v2244 = vld [vmem:[#allocation2 + $0xa8] sm:$0xf]
      %v2245 = vld [vmem:[#allocation2 + $0xac] sm:$0x1]
      %v2246 = vld [vmem:[#allocation2 + $0xb4] sm:$0xf]
      %v2247 = vld [vmem:[#allocation2 + $0xb8] sm:$0xf]
      %v2248 = vld [vmem:[#allocation2 + $0xbc] sm:$0x1]
      %v2249 = vld [vmem:[#allocation2 + $0xc4] sm:$0xf]
      %v2250 = vld [vmem:[#allocation2 + $0xc8] sm:$0xf]
      %v2251 = vld [vmem:[#allocation2 + $0xcc] sm:$0x1]
      %v2252 = vld [vmem:[#allocation2 + $0xd4] sm:$0xf]
      %v2253 = vld [vmem:[#allocation2 + $0xd8] sm:$0xf]
      %v2254 = vld [vmem:[#allocation2 + $0xdc] sm:$0x1]
      %v2255 = vld [vmem:[#allocation2 + $0xe4] sm:$0xf]
      %v2256 = vld [vmem:[#allocation2 + $0xe8] sm:$0xf]
      %v2257 = vld [vmem:[#allocation2 + $0xec] sm:$0x1]
      %v2258 = vld [vmem:[#allocation2 + $0xf4] sm:$0xf]
      %v2259 = vld [vmem:[#allocation2 + $0xf8] sm:$0xf]
      %v2260 = vld [vmem:[#allocation2 + $0xfc] sm:$0x1]
      %v2261 = vld [vmem:[#allocation2 + $0x104] sm:$0xf]
      %v2262 = vld [vmem:[#allocation2 + $0x108] sm:$0xf]
      %v2263 = vld [vmem:[#allocation2 + $0x10c] sm:$0x1]
      %v2264 = vld [vmem:[#allocation2 + $0x114] sm:$0xf]
      %v2265 = vld [vmem:[#allocation2 + $0x118] sm:$0xf]
      %v2266 = vld [vmem:[#allocation2 + $0x11c] sm:$0x1]
      %vm2267 = vsmask.f32 3328
      %vm2268 = vsmask.f32 7440
      %vm2269 = vmor %vm2267, %vm2268
      %v2271 = vshrl.u32 %v2213, 16
      %v2273 = vrot.slane %v2271, 4
      %v2274 = vshll.u32 %v2213, 16
      %v2276 = vrot.slane %v2274, 5
      %v2277 = vor.u32 %v2273, %v2276
      %v2278 = vrot.slane %v2277, 4
      %v2280 = vshll.u32 %v2214, 16
      %v2282 = vrot.slane %v2280, 5
      %v2283 = vsel %vm2269, %v2278, %v2282
      %v2284 = vshrl.u32 %v2214, 16
      %v2286 = vrot.slane %v2284, 4
      %v2287 = vor.u32 %v2286, %v2282
      %v2288 = vrot.slane %v2287, 4
      %v2290 = vshll.u32 %v2215, 16
      %v2292 = vrot.slane %v2290, 5
      %v2293 = vsel %vm2269, %v2288, %v2292
      %v2295 = vshrl.u32 %v2216, 16
      %v2297 = vrot.slane %v2295, 4
      %v2298 = vshll.u32 %v2216, 16
      %v2300 = vrot.slane %v2298, 5
      %v2301 = vor.u32 %v2297, %v2300
      %v2302 = vrot.slane %v2301, 4
      %v2304 = vshll.u32 %v2217, 16
      %v2306 = vrot.slane %v2304, 5
      %v2307 = vsel %vm2269, %v2302, %v2306
      %v2308 = vshrl.u32 %v2217, 16
      %v2310 = vrot.slane %v2308, 4
      %v2311 = vor.u32 %v2310, %v2306
      %v2312 = vrot.slane %v2311, 4
      %v2314 = vshll.u32 %v2218, 16
      %v2316 = vrot.slane %v2314, 5
      %v2317 = vsel %vm2269, %v2312, %v2316
      %v2319 = vshrl.u32 %v2219, 16
      %v2321 = vrot.slane %v2319, 4
      %v2322 = vshll.u32 %v2219, 16
      %v2324 = vrot.slane %v2322, 5
      %v2325 = vor.u32 %v2321, %v2324
      %v2326 = vrot.slane %v2325, 4
      %v2328 = vshll.u32 %v2220, 16
      %v2330 = vrot.slane %v2328, 5
      %v2331 = vsel %vm2269, %v2326, %v2330
      %v2332 = vshrl.u32 %v2220, 16
      %v2334 = vrot.slane %v2332, 4
      %v2335 = vor.u32 %v2334, %v2330
      %v2336 = vrot.slane %v2335, 4
      %v2338 = vshll.u32 %v2221, 16
      %v2340 = vrot.slane %v2338, 5
      %v2341 = vsel %vm2269, %v2336, %v2340
      %v2343 = vshrl.u32 %v2222, 16
      %v2345 = vrot.slane %v2343, 4
      %v2346 = vshll.u32 %v2222, 16
      %v2348 = vrot.slane %v2346, 5
      %v2349 = vor.u32 %v2345, %v2348
      %v2350 = vrot.slane %v2349, 4
      %v2352 = vshll.u32 %v2223, 16
      %v2354 = vrot.slane %v2352, 5
      %v2355 = vsel %vm2269, %v2350, %v2354
      %v2356 = vshrl.u32 %v2223, 16
      %v2358 = vrot.slane %v2356, 4
      %v2359 = vor.u32 %v2358, %v2354
      %v2360 = vrot.slane %v2359, 4
      %v2362 = vshll.u32 %v2224, 16
      %v2364 = vrot.slane %v2362, 5
      %v2365 = vsel %vm2269, %v2360, %v2364
      %v2367 = vshrl.u32 %v2225, 16
      %v2369 = vrot.slane %v2367, 4
      %v2370 = vshll.u32 %v2225, 16
      %v2372 = vrot.slane %v2370, 5
      %v2373 = vor.u32 %v2369, %v2372
      %v2374 = vrot.slane %v2373, 4
      %v2376 = vshll.u32 %v2226, 16
      %v2378 = vrot.slane %v2376, 5
      %v2379 = vsel %vm2269, %v2374, %v2378
      %v2380 = vshrl.u32 %v2226, 16
      %v2382 = vrot.slane %v2380, 4
      %v2383 = vor.u32 %v2382, %v2378
      %v2384 = vrot.slane %v2383, 4
      %v2386 = vshll.u32 %v2227, 16
      %v2388 = vrot.slane %v2386, 5
      %v2389 = vsel %vm2269, %v2384, %v2388
      %v2391 = vshrl.u32 %v2228, 16
      %v2393 = vrot.slane %v2391, 4
      %v2394 = vshll.u32 %v2228, 16
      %v2396 = vrot.slane %v2394, 5
      %v2397 = vor.u32 %v2393, %v2396
      %v2398 = vrot.slane %v2397, 4
      %v2400 = vshll.u32 %v2229, 16
      %v2402 = vrot.slane %v2400, 5
      %v2403 = vsel %vm2269, %v2398, %v2402
      %v2404 = vshrl.u32 %v2229, 16
      %v2406 = vrot.slane %v2404, 4
      %v2407 = vor.u32 %v2406, %v2402
      %v2408 = vrot.slane %v2407, 4
      %v2410 = vshll.u32 %v2230, 16
      %v2412 = vrot.slane %v2410, 5
      %v2413 = vsel %vm2269, %v2408, %v2412
      %v2415 = vshrl.u32 %v2231, 16
      %v2417 = vrot.slane %v2415, 4
      %v2418 = vshll.u32 %v2231, 16
      %v2420 = vrot.slane %v2418, 5
      %v2421 = vor.u32 %v2417, %v2420
      %v2422 = vrot.slane %v2421, 4
      %v2424 = vshll.u32 %v2232, 16
      %v2426 = vrot.slane %v2424, 5
      %v2427 = vsel %vm2269, %v2422, %v2426
      %v2428 = vshrl.u32 %v2232, 16
      %v2430 = vrot.slane %v2428, 4
      %v2431 = vor.u32 %v2430, %v2426
      %v2432 = vrot.slane %v2431, 4
      %v2434 = vshll.u32 %v2233, 16
      %v2436 = vrot.slane %v2434, 5
      %v2437 = vsel %vm2269, %v2432, %v2436
      %v2439 = vshrl.u32 %v2234, 16
      %v2441 = vrot.slane %v2439, 4
      %v2442 = vshll.u32 %v2234, 16
      %v2444 = vrot.slane %v2442, 5
      %v2445 = vor.u32 %v2441, %v2444
      %v2446 = vrot.slane %v2445, 4
      %v2448 = vshll.u32 %v2235, 16
      %v2450 = vrot.slane %v2448, 5
      %v2451 = vsel %vm2269, %v2446, %v2450
      %v2452 = vshrl.u32 %v2235, 16
      %v2454 = vrot.slane %v2452, 4
      %v2455 = vor.u32 %v2454, %v2450
      %v2456 = vrot.slane %v2455, 4
      %v2458 = vshll.u32 %v2236, 16
      %v2460 = vrot.slane %v2458, 5
      %v2461 = vsel %vm2269, %v2456, %v2460
      %v2463 = vshrl.u32 %v2237, 16
      %v2465 = vrot.slane %v2463, 4
      %v2466 = vshll.u32 %v2237, 16
      %v2468 = vrot.slane %v2466, 5
      %v2469 = vor.u32 %v2465, %v2468
      %v2470 = vrot.slane %v2469, 4
      %v2472 = vshll.u32 %v2238, 16
      %v2474 = vrot.slane %v2472, 5
      %v2475 = vsel %vm2269, %v2470, %v2474
      %v2476 = vshrl.u32 %v2238, 16
      %v2478 = vrot.slane %v2476, 4
      %v2479 = vor.u32 %v2478, %v2474
      %v2480 = vrot.slane %v2479, 4
      %v2482 = vshll.u32 %v2239, 16
      %v2484 = vrot.slane %v2482, 5
      %v2485 = vsel %vm2269, %v2480, %v2484
      %v2487 = vshrl.u32 %v2240, 16
      %v2489 = vrot.slane %v2487, 4
      %v2490 = vshll.u32 %v2240, 16
      %v2492 = vrot.slane %v2490, 5
      %v2493 = vor.u32 %v2489, %v2492
      %v2494 = vrot.slane %v2493, 4
      %v2496 = vshll.u32 %v2241, 16
      %v2498 = vrot.slane %v2496, 5
      %v2499 = vsel %vm2269, %v2494, %v2498
      %v2500 = vshrl.u32 %v2241, 16
      %v2502 = vrot.slane %v2500, 4
      %v2503 = vor.u32 %v2502, %v2498
      %v2504 = vrot.slane %v2503, 4
      %v2506 = vshll.u32 %v2242, 16
      %v2508 = vrot.slane %v2506, 5
      %v2509 = vsel %vm2269, %v2504, %v2508
      %v2511 = vshrl.u32 %v2243, 16
      %v2513 = vrot.slane %v2511, 4
      %v2514 = vshll.u32 %v2243, 16
      %v2516 = vrot.slane %v2514, 5
      %v2517 = vor.u32 %v2513, %v2516
      %v2518 = vrot.slane %v2517, 4
      %v2520 = vshll.u32 %v2244, 16
      %v2522 = vrot.slane %v2520, 5
      %v2523 = vsel %vm2269, %v2518, %v2522
      %v2524 = vshrl.u32 %v2244, 16
      %v2526 = vrot.slane %v2524, 4
      %v2527 = vor.u32 %v2526, %v2522
      %v2528 = vrot.slane %v2527, 4
      %v2530 = vshll.u32 %v2245, 16
      %v2532 = vrot.slane %v2530, 5
      %v2533 = vsel %vm2269, %v2528, %v2532
      %v2535 = vshrl.u32 %v2246, 16
      %v2537 = vrot.slane %v2535, 4
      %v2538 = vshll.u32 %v2246, 16
      %v2540 = vrot.slane %v2538, 5
      %v2541 = vor.u32 %v2537, %v2540
      %v2542 = vrot.slane %v2541, 4
      %v2544 = vshll.u32 %v2247, 16
      %v2546 = vrot.slane %v2544, 5
      %v2547 = vsel %vm2269, %v2542, %v2546
      %v2548 = vshrl.u32 %v2247, 16
      %v2550 = vrot.slane %v2548, 4
      %v2551 = vor.u32 %v2550, %v2546
      %v2552 = vrot.slane %v2551, 4
      %v2554 = vshll.u32 %v2248, 16
      %v2556 = vrot.slane %v2554, 5
      %v2557 = vsel %vm2269, %v2552, %v2556
      %v2559 = vshrl.u32 %v2249, 16
      %v2561 = vrot.slane %v2559, 4
      %v2562 = vshll.u32 %v2249, 16
      %v2564 = vrot.slane %v2562, 5
      %v2565 = vor.u32 %v2561, %v2564
      %v2566 = vrot.slane %v2565, 4
      %v2568 = vshll.u32 %v2250, 16
      %v2570 = vrot.slane %v2568, 5
      %v2571 = vsel %vm2269, %v2566, %v2570
      %v2572 = vshrl.u32 %v2250, 16
      %v2574 = vrot.slane %v2572, 4
      %v2575 = vor.u32 %v2574, %v2570
      %v2576 = vrot.slane %v2575, 4
      %v2578 = vshll.u32 %v2251, 16
      %v2580 = vrot.slane %v2578, 5
      %v2581 = vsel %vm2269, %v2576, %v2580
      %v2583 = vshrl.u32 %v2252, 16
      %v2585 = vrot.slane %v2583, 4
      %v2586 = vshll.u32 %v2252, 16
      %v2588 = vrot.slane %v2586, 5
      %v2589 = vor.u32 %v2585, %v2588
      %v2590 = vrot.slane %v2589, 4
      %v2592 = vshll.u32 %v2253, 16
      %v2594 = vrot.slane %v2592, 5
      %v2595 = vsel %vm2269, %v2590, %v2594
      %v2596 = vshrl.u32 %v2253, 16
      %v2598 = vrot.slane %v2596, 4
      %v2599 = vor.u32 %v2598, %v2594
      %v2600 = vrot.slane %v2599, 4
      %v2602 = vshll.u32 %v2254, 16
      %v2604 = vrot.slane %v2602, 5
      %v2605 = vsel %vm2269, %v2600, %v2604
      %v2607 = vshrl.u32 %v2255, 16
      %v2609 = vrot.slane %v2607, 4
      %v2610 = vshll.u32 %v2255, 16
      %v2612 = vrot.slane %v2610, 5
      %v2613 = vor.u32 %v2609, %v2612
      %v2614 = vrot.slane %v2613, 4
      %v2616 = vshll.u32 %v2256, 16
      %v2618 = vrot.slane %v2616, 5
      %v2619 = vsel %vm2269, %v2614, %v2618
      %v2620 = vshrl.u32 %v2256, 16
      %v2622 = vrot.slane %v2620, 4
      %v2623 = vor.u32 %v2622, %v2618
      %v2624 = vrot.slane %v2623, 4
      %v2626 = vshll.u32 %v2257, 16
      %v2628 = vrot.slane %v2626, 5
      %v2629 = vsel %vm2269, %v2624, %v2628
      %v2631 = vshrl.u32 %v2258, 16
      %v2633 = vrot.slane %v2631, 4
      %v2634 = vshll.u32 %v2258, 16
      %v2636 = vrot.slane %v2634, 5
      %v2637 = vor.u32 %v2633, %v2636
      %v2638 = vrot.slane %v2637, 4
      %v2640 = vshll.u32 %v2259, 16
      %v2642 = vrot.slane %v2640, 5
      %v2643 = vsel %vm2269, %v2638, %v2642
      %v2644 = vshrl.u32 %v2259, 16
      %v2646 = vrot.slane %v2644, 4
      %v2647 = vor.u32 %v2646, %v2642
      %v2648 = vrot.slane %v2647, 4
      %v2650 = vshll.u32 %v2260, 16
      %v2652 = vrot.slane %v2650, 5
      %v2653 = vsel %vm2269, %v2648, %v2652
      %v2654 = vunpack.c.l.b16 %v2283
      %v2655 = vunpack.c.l.b16 %v2293
      %v2656 = vunpack.c.l.b16 %v2307
      %v2657 = vunpack.c.l.b16 %v2317
      %v2658 = vunpack.c.l.b16 %v2331
      %v2659 = vunpack.c.l.b16 %v2341
      %v2660 = vunpack.c.l.b16 %v2355
      %v2661 = vunpack.c.l.b16 %v2365
      %v2662 = vunpack.c.l.b16 %v2379
      %v2663 = vunpack.c.l.b16 %v2389
      %v2664 = vunpack.c.l.b16 %v2403
      %v2665 = vunpack.c.l.b16 %v2413
      %v2666 = vunpack.c.l.b16 %v2427
      %v2667 = vunpack.c.l.b16 %v2437
      %v2668 = vunpack.c.l.b16 %v2451
      %v2669 = vunpack.c.l.b16 %v2461
      %v2670 = vunpack.c.l.b16 %v2475
      %v2671 = vunpack.c.l.b16 %v2485
      %v2672 = vunpack.c.l.b16 %v2499
      %v2673 = vunpack.c.l.b16 %v2509
      %v2674 = vunpack.c.l.b16 %v2523
      %v2675 = vunpack.c.l.b16 %v2533
      %v2676 = vunpack.c.l.b16 %v2547
      %v2677 = vunpack.c.l.b16 %v2557
      %v2678 = vunpack.c.l.b16 %v2571
      %v2679 = vunpack.c.l.b16 %v2581
      %v2680 = vunpack.c.l.b16 %v2595
      %v2681 = vunpack.c.l.b16 %v2605
      %v2682 = vunpack.c.l.b16 %v2619
      %v2683 = vunpack.c.l.b16 %v2629
      %v2684 = vunpack.c.l.b16 %v2643
      %v2685 = vunpack.c.l.b16 %v2653
      %v2686 = vpack.c.b16 %v2655, %v2654
      %v2687 = vpack.c.b16 %v2657, %v2656
      %v2688 = vpack.c.b16 %v2659, %v2658
      %v2689 = vpack.c.b16 %v2661, %v2660
      %v2690 = vpack.c.b16 %v2663, %v2662
      %v2691 = vpack.c.b16 %v2665, %v2664
      %v2692 = vpack.c.b16 %v2667, %v2666
      %v2693 = vpack.c.b16 %v2669, %v2668
      %v2694 = vpack.c.b16 %v2671, %v2670
      %v2695 = vpack.c.b16 %v2673, %v2672
      %v2696 = vpack.c.b16 %v2675, %v2674
      %v2697 = vpack.c.b16 %v2677, %v2676
      %v2698 = vpack.c.b16 %v2679, %v2678
      %v2699 = vpack.c.b16 %v2681, %v2680
      %v2700 = vpack.c.b16 %v2683, %v2682
      %v2701 = vpack.c.b16 %v2685, %v2684
      %2702 = vrot.lane.b32.xlu0 %v2686, 96
      %v2703 = vpop.permute.xlu0 %2702
      %2704 = vrot.lane.b32.xlu0 %v2687, 96
      %v2705 = vpop.permute.xlu0 %2704
      %2706 = vrot.lane.b32.xlu0 %v2688, 96
      %v2707 = vpop.permute.xlu0 %2706
      %2708 = vrot.lane.b32.xlu0 %v2689, 96
      %v2709 = vpop.permute.xlu0 %2708
      %2710 = vrot.lane.b32.xlu0 %v2690, 96
      %v2711 = vpop.permute.xlu0 %2710
      %2712 = vrot.lane.b32.xlu0 %v2691, 96
      %v2713 = vpop.permute.xlu0 %2712
      %2714 = vrot.lane.b32.xlu0 %v2692, 96
      %v2715 = vpop.permute.xlu0 %2714
      %2716 = vrot.lane.b32.xlu0 %v2693, 96
      %v2717 = vpop.permute.xlu0 %2716
      %2718 = vrot.lane.b32.xlu0 %v2694, 96
      %v2719 = vpop.permute.xlu0 %2718
      %2720 = vrot.lane.b32.xlu0 %v2695, 96
      %v2721 = vpop.permute.xlu0 %2720
      %2722 = vrot.lane.b32.xlu0 %v2696, 96
      %v2723 = vpop.permute.xlu0 %2722
      %2724 = vrot.lane.b32.xlu0 %v2697, 96
      %v2725 = vpop.permute.xlu0 %2724
      %2726 = vrot.lane.b32.xlu0 %v2698, 96
      %v2727 = vpop.permute.xlu0 %2726
      %2728 = vrot.lane.b32.xlu0 %v2699, 96
      %v2729 = vpop.permute.xlu0 %2728
      %2730 = vrot.lane.b32.xlu0 %v2700, 96
      %v2731 = vpop.permute.xlu0 %2730
      %2732 = vrot.lane.b32.xlu0 %v2701, 96
      %v2733 = vpop.permute.xlu0 %2732
      %vm2750 = vcmask 1048320
      %2751 = vst.msk [vmem:[#allocation3] sm:$0xff] %vm2750, %v2703
      %vm2752 = vcmask 130048
      %2753 = vst.msk [vmem:[#allocation3 + $0x8] sm:$0xff] %vm2752, %v2703
      %2754 = vst.msk [vmem:[#allocation3 + $0x20] sm:$0xff] %vm2750, %v2705
      %2755 = vst.msk [vmem:[#allocation3 + $0x28] sm:$0xff] %vm2752, %v2705
      %2756 = vst.msk [vmem:[#allocation3 + $0x40] sm:$0xff] %vm2750, %v2707
      %2757 = vst.msk [vmem:[#allocation3 + $0x48] sm:$0xff] %vm2752, %v2707
      %2758 = vst.msk [vmem:[#allocation3 + $0x60] sm:$0xff] %vm2750, %v2709
      %2759 = vst.msk [vmem:[#allocation3 + $0x68] sm:$0xff] %vm2752, %v2709
      %2760 = vst.msk [vmem:[#allocation3 + $0x80] sm:$0xff] %vm2750, %v2711
      %2761 = vst.msk [vmem:[#allocation3 + $0x88] sm:$0xff] %vm2752, %v2711
      %2762 = vst.msk [vmem:[#allocation3 + $0xa0] sm:$0xff] %vm2750, %v2713
      %2763 = vst.msk [vmem:[#allocation3 + $0xa8] sm:$0xff] %vm2752, %v2713
      %2764 = vst.msk [vmem:[#allocation3 + $0xc0] sm:$0xff] %vm2750, %v2715
      %2765 = vst.msk [vmem:[#allocation3 + $0xc8] sm:$0xff] %vm2752, %v2715
      %2766 = vst.msk [vmem:[#allocation3 + $0xe0] sm:$0xff] %vm2750, %v2717
      %2767 = vst.msk [vmem:[#allocation3 + $0xe8] sm:$0xff] %vm2752, %v2717
      %2768 = vst.msk [vmem:[#allocation3 + $0x100] sm:$0xff] %vm2750, %v2719
      %2769 = vst.msk [vmem:[#allocation3 + $0x108] sm:$0xff] %vm2752, %v2719
      %2770 = vst.msk [vmem:[#allocation3 + $0x120] sm:$0xff] %vm2750, %v2721
      %2771 = vst.msk [vmem:[#allocation3 + $0x128] sm:$0xff] %vm2752, %v2721
      %2772 = vst.msk [vmem:[#allocation3 + $0x140] sm:$0xff] %vm2750, %v2723
      %2773 = vst.msk [vmem:[#allocation3 + $0x148] sm:$0xff] %vm2752, %v2723
      %2774 = vst.msk [vmem:[#allocation3 + $0x160] sm:$0xff] %vm2750, %v2725
      %2775 = vst.msk [vmem:[#allocation3 + $0x168] sm:$0xff] %vm2752, %v2725
      %2776 = vst.msk [vmem:[#allocation3 + $0x180] sm:$0xff] %vm2750, %v2727
      %2777 = vst.msk [vmem:[#allocation3 + $0x188] sm:$0xff] %vm2752, %v2727
      %2778 = vst.msk [vmem:[#allocation3 + $0x1a0] sm:$0xff] %vm2750, %v2729
      %2779 = vst.msk [vmem:[#allocation3 + $0x1a8] sm:$0xff] %vm2752, %v2729
      %2780 = vst.msk [vmem:[#allocation3 + $0x1c0] sm:$0xff] %vm2750, %v2731
      %2781 = vst.msk [vmem:[#allocation3 + $0x1c8] sm:$0xff] %vm2752, %v2731
      %2782 = vst.msk [vmem:[#allocation3 + $0x1e0] sm:$0xff] %vm2750, %v2733
      %2783 = vst.msk [vmem:[#allocation3 + $0x1e8] sm:$0xff] %vm2752, %v2733
      %v2785 = vshrl.u32 %v2261, 16
      %v2787 = vrot.slane %v2785, 4
      %v2788 = vshll.u32 %v2261, 16
      %v2790 = vrot.slane %v2788, 5
      %v2791 = vor.u32 %v2787, %v2790
      %v2792 = vrot.slane %v2791, 4
      %v2794 = vshll.u32 %v2262, 16
      %v2796 = vrot.slane %v2794, 5
      %v2797 = vsel %vm2269, %v2792, %v2796
      %v2798 = vshrl.u32 %v2262, 16
      %v2800 = vrot.slane %v2798, 4
      %v2801 = vor.u32 %v2800, %v2796
      %v2802 = vrot.slane %v2801, 4
      %v2804 = vshll.u32 %v2263, 16
      %v2806 = vrot.slane %v2804, 5
      %v2807 = vsel %vm2269, %v2802, %v2806
      %v2808 = vunpack.c.l.b16 %v2797
      %v2809 = vunpack.c.l.b16 %v2807
      %v2810 = vpack.c.b16 %v2809, %v2808
      %2811 = vrot.lane.b32.xlu0 %v2687, 112
      %v2812 = vpop.permute.xlu0 %2811
      %2813 = vrot.lane.b32.xlu0 %v2688, 112
      %v2814 = vpop.permute.xlu0 %2813
      %2815 = vrot.lane.b32.xlu0 %v2689, 112
      %v2816 = vpop.permute.xlu0 %2815
      %2817 = vrot.lane.b32.xlu0 %v2690, 112
      %v2818 = vpop.permute.xlu0 %2817
      %2819 = vrot.lane.b32.xlu0 %v2691, 112
      %v2820 = vpop.permute.xlu0 %2819
      %2821 = vrot.lane.b32.xlu0 %v2692, 112
      %v2822 = vpop.permute.xlu0 %2821
      %2823 = vrot.lane.b32.xlu0 %v2693, 112
      %v2824 = vpop.permute.xlu0 %2823
      %2825 = vrot.lane.b32.xlu0 %v2694, 112
      %v2826 = vpop.permute.xlu0 %2825
      %2827 = vrot.lane.b32.xlu0 %v2695, 112
      %v2828 = vpop.permute.xlu0 %2827
      %2829 = vrot.lane.b32.xlu0 %v2696, 112
      %v2830 = vpop.permute.xlu0 %2829
      %2831 = vrot.lane.b32.xlu0 %v2697, 112
      %v2832 = vpop.permute.xlu0 %2831
      %2833 = vrot.lane.b32.xlu0 %v2698, 112
      %v2834 = vpop.permute.xlu0 %2833
      %2835 = vrot.lane.b32.xlu0 %v2699, 112
      %v2836 = vpop.permute.xlu0 %2835
      %2837 = vrot.lane.b32.xlu0 %v2700, 112
      %v2838 = vpop.permute.xlu0 %2837
      %2839 = vrot.lane.b32.xlu0 %v2701, 112
      %v2840 = vpop.permute.xlu0 %2839
      %2841 = vrot.lane.b32.xlu0 %v2810, 112
      %v2842 = vpop.permute.xlu0 %2841
      %vm2859 = vcmask 1048448
      %2860 = vst.msk [vmem:[#allocation3 + $0x8] sm:$0xff] %vm2859, %v2812
      %2861 = vst.msk [vmem:[#allocation3 + $0x10] sm:$0xff] %vm524, %v2812
      %2862 = vst.msk [vmem:[#allocation3 + $0x28] sm:$0xff] %vm2859, %v2814
      %2863 = vst.msk [vmem:[#allocation3 + $0x30] sm:$0xff] %vm524, %v2814
      %2864 = vst.msk [vmem:[#allocation3 + $0x48] sm:$0xff] %vm2859, %v2816
      %2865 = vst.msk [vmem:[#allocation3 + $0x50] sm:$0xff] %vm524, %v2816
      %2866 = vst.msk [vmem:[#allocation3 + $0x68] sm:$0xff] %vm2859, %v2818
      %2867 = vst.msk [vmem:[#allocation3 + $0x70] sm:$0xff] %vm524, %v2818
      %2868 = vst.msk [vmem:[#allocation3 + $0x88] sm:$0xff] %vm2859, %v2820
      %2869 = vst.msk [vmem:[#allocation3 + $0x90] sm:$0xff] %vm524, %v2820
      %2870 = vst.msk [vmem:[#allocation3 + $0xa8] sm:$0xff] %vm2859, %v2822
      %2871 = vst.msk [vmem:[#allocation3 + $0xb0] sm:$0xff] %vm524, %v2822
      %2872 = vst.msk [vmem:[#allocation3 + $0xc8] sm:$0xff] %vm2859, %v2824
      %2873 = vst.msk [vmem:[#allocation3 + $0xd0] sm:$0xff] %vm524, %v2824
      %2874 = vst.msk [vmem:[#allocation3 + $0xe8] sm:$0xff] %vm2859, %v2826
      %2875 = vst.msk [vmem:[#allocation3 + $0xf0] sm:$0xff] %vm524, %v2826
      %2876 = vst.msk [vmem:[#allocation3 + $0x108] sm:$0xff] %vm2859, %v2828
      %2877 = vst.msk [vmem:[#allocation3 + $0x110] sm:$0xff] %vm524, %v2828
      %2878 = vst.msk [vmem:[#allocation3 + $0x128] sm:$0xff] %vm2859, %v2830
      %2879 = vst.msk [vmem:[#allocation3 + $0x130] sm:$0xff] %vm524, %v2830
      %2880 = vst.msk [vmem:[#allocation3 + $0x148] sm:$0xff] %vm2859, %v2832
      %2881 = vst.msk [vmem:[#allocation3 + $0x150] sm:$0xff] %vm524, %v2832
      %2882 = vst.msk [vmem:[#allocation3 + $0x168] sm:$0xff] %vm2859, %v2834
      %2883 = vst.msk [vmem:[#allocation3 + $0x170] sm:$0xff] %vm524, %v2834
      %2884 = vst.msk [vmem:[#allocation3 + $0x188] sm:$0xff] %vm2859, %v2836
      %2885 = vst.msk [vmem:[#allocation3 + $0x190] sm:$0xff] %vm524, %v2836
      %2886 = vst.msk [vmem:[#allocation3 + $0x1a8] sm:$0xff] %vm2859, %v2838
      %2887 = vst.msk [vmem:[#allocation3 + $0x1b0] sm:$0xff] %vm524, %v2838
      %2888 = vst.msk [vmem:[#allocation3 + $0x1c8] sm:$0xff] %vm2859, %v2840
      %2889 = vst.msk [vmem:[#allocation3 + $0x1d0] sm:$0xff] %vm524, %v2840
      %2890 = vst.msk [vmem:[#allocation3 + $0x1e8] sm:$0xff] %vm2859, %v2842
      %2891 = vst.msk [vmem:[#allocation3 + $0x1f0] sm:$0xff] %vm524, %v2842
      %v2893 = vshrl.u32 %v2264, 16
      %v2895 = vrot.slane %v2893, 4
      %v2896 = vshll.u32 %v2264, 16
      %v2898 = vrot.slane %v2896, 5
      %v2899 = vor.u32 %v2895, %v2898
      %v2900 = vrot.slane %v2899, 4
      %v2902 = vshll.u32 %v2265, 16
      %v2904 = vrot.slane %v2902, 5
      %v2905 = vsel %vm2269, %v2900, %v2904
      %v2906 = vshrl.u32 %v2265, 16
      %v2908 = vrot.slane %v2906, 4
      %v2909 = vor.u32 %v2908, %v2904
      %v2910 = vrot.slane %v2909, 4
      %v2912 = vshll.u32 %v2266, 16
      %v2914 = vrot.slane %v2912, 5
      %v2915 = vsel %vm2269, %v2910, %v2914
      %v2916 = vunpack.c.l.b16 %v2905
      %v2917 = vunpack.c.l.b16 %v2915
      %v2918 = vpack.c.b16 %v2917, %v2916
      %2935 = vst.msk [vmem:[#allocation3 + $0x18] sm:$0xff] %vm1695, %v2688
      %2936 = vst.msk [vmem:[#allocation3 + $0x38] sm:$0xff] %vm1695, %v2689
      %2937 = vst.msk [vmem:[#allocation3 + $0x58] sm:$0xff] %vm1695, %v2690
      %2938 = vst.msk [vmem:[#allocation3 + $0x78] sm:$0xff] %vm1695, %v2691
      %2939 = vst.msk [vmem:[#allocation3 + $0x98] sm:$0xff] %vm1695, %v2692
      %2940 = vst.msk [vmem:[#allocation3 + $0xb8] sm:$0xff] %vm1695, %v2693
      %2941 = vst.msk [vmem:[#allocation3 + $0xd8] sm:$0xff] %vm1695, %v2694
      %2942 = vst.msk [vmem:[#allocation3 + $0xf8] sm:$0xff] %vm1695, %v2695
      %2943 = vst.msk [vmem:[#allocation3 + $0x118] sm:$0xff] %vm1695, %v2696
      %2944 = vst.msk [vmem:[#allocation3 + $0x138] sm:$0xff] %vm1695, %v2697
      %2945 = vst.msk [vmem:[#allocation3 + $0x158] sm:$0xff] %vm1695, %v2698
      %2946 = vst.msk [vmem:[#allocation3 + $0x178] sm:$0xff] %vm1695, %v2699
      %2947 = vst.msk [vmem:[#allocation3 + $0x198] sm:$0xff] %vm1695, %v2700
      %2948 = vst.msk [vmem:[#allocation3 + $0x1b8] sm:$0xff] %vm1695, %v2701
      %2949 = vst.msk [vmem:[#allocation3 + $0x1d8] sm:$0xff] %vm1695, %v2810
      %2950 = vst.msk [vmem:[#allocation3 + $0x1f8] sm:$0xff] %vm1695, %v2918
      %v2951 = vld [vmem:[#allocation3] sm:$0xff]
      %v2952 = vld [vmem:[#allocation3 + $0x8] sm:$0xff]
      %v2953 = vld [vmem:[#allocation3 + $0x10] sm:$0xff]
      %v2954 = vld [vmem:[#allocation3 + $0x18] sm:$0xff]
      %v2955 = vld [vmem:[#allocation3 + $0x20] sm:$0xff]
      %v2956 = vld [vmem:[#allocation3 + $0x28] sm:$0xff]
      %v2957 = vld [vmem:[#allocation3 + $0x30] sm:$0xff]
      %v2958 = vld [vmem:[#allocation3 + $0x38] sm:$0xff]
      %v2959 = vld [vmem:[#allocation3 + $0x40] sm:$0xff]
      %v2960 = vld [vmem:[#allocation3 + $0x48] sm:$0xff]
      %v2961 = vld [vmem:[#allocation3 + $0x50] sm:$0xff]
      %v2962 = vld [vmem:[#allocation3 + $0x58] sm:$0xff]
      %v2963 = vld [vmem:[#allocation3 + $0x60] sm:$0xff]
      %v2964 = vld [vmem:[#allocation3 + $0x68] sm:$0xff]
      %v2965 = vld [vmem:[#allocation3 + $0x70] sm:$0xff]
      %v2966 = vld [vmem:[#allocation3 + $0x78] sm:$0xff]
      %v2967 = vld [vmem:[#allocation3 + $0x80] sm:$0xff]
      %v2968 = vld [vmem:[#allocation3 + $0x88] sm:$0xff]
      %v2969 = vld [vmem:[#allocation3 + $0x90] sm:$0xff]
      %v2970 = vld [vmem:[#allocation3 + $0x98] sm:$0xff]
      %v2971 = vld [vmem:[#allocation3 + $0xa0] sm:$0xff]
      %v2972 = vld [vmem:[#allocation3 + $0xa8] sm:$0xff]
      %v2973 = vld [vmem:[#allocation3 + $0xb0] sm:$0xff]
      %v2974 = vld [vmem:[#allocation3 + $0xb8] sm:$0xff]
      %v2975 = vld [vmem:[#allocation3 + $0xc0] sm:$0xff]
      %v2976 = vld [vmem:[#allocation3 + $0xc8] sm:$0xff]
      %v2977 = vld [vmem:[#allocation3 + $0xd0] sm:$0xff]
      %v2978 = vld [vmem:[#allocation3 + $0xd8] sm:$0xff]
      %v2979 = vld [vmem:[#allocation3 + $0xe0] sm:$0xff]
      %v2980 = vld [vmem:[#allocation3 + $0xe8] sm:$0xff]
      %v2981 = vld [vmem:[#allocation3 + $0xf0] sm:$0xff]
      %v2982 = vld [vmem:[#allocation3 + $0xf8] sm:$0xff]
      %v2983 = vld [vmem:[#allocation3 + $0x100] sm:$0xff]
      %v2984 = vld [vmem:[#allocation3 + $0x108] sm:$0xff]
      %v2985 = vld [vmem:[#allocation3 + $0x110] sm:$0xff]
      %v2986 = vld [vmem:[#allocation3 + $0x118] sm:$0xff]
      %v2987 = vld [vmem:[#allocation3 + $0x120] sm:$0xff]
      %v2988 = vld [vmem:[#allocation3 + $0x128] sm:$0xff]
      %v2989 = vld [vmem:[#allocation3 + $0x130] sm:$0xff]
      %v2990 = vld [vmem:[#allocation3 + $0x138] sm:$0xff]
      %v2991 = vld [vmem:[#allocation3 + $0x140] sm:$0xff]
      %v2992 = vld [vmem:[#allocation3 + $0x148] sm:$0xff]
      %v2993 = vld [vmem:[#allocation3 + $0x150] sm:$0xff]
      %v2994 = vld [vmem:[#allocation3 + $0x158] sm:$0xff]
      %v2995 = vld [vmem:[#allocation3 + $0x160] sm:$0xff]
      %v2996 = vld [vmem:[#allocation3 + $0x168] sm:$0xff]
      %v2997 = vld [vmem:[#allocation3 + $0x170] sm:$0xff]
      %v2998 = vld [vmem:[#allocation3 + $0x178] sm:$0xff]
      %v2999 = vld [vmem:[#allocation3 + $0x180] sm:$0xff]
      %v3000 = vld [vmem:[#allocation3 + $0x188] sm:$0xff]
      %v3001 = vld [vmem:[#allocation3 + $0x190] sm:$0xff]
      %v3002 = vld [vmem:[#allocation3 + $0x198] sm:$0xff]
      %v3003 = vld [vmem:[#allocation3 + $0x1a0] sm:$0xff]
      %v3004 = vld [vmem:[#allocation3 + $0x1a8] sm:$0xff]
      %v3005 = vld [vmem:[#allocation3 + $0x1b0] sm:$0xff]
      %v3006 = vld [vmem:[#allocation3 + $0x1b8] sm:$0xff]
      %v3007 = vld [vmem:[#allocation3 + $0x1c0] sm:$0xff]
      %v3008 = vld [vmem:[#allocation3 + $0x1c8] sm:$0xff]
      %v3009 = vld [vmem:[#allocation3 + $0x1d0] sm:$0xff]
      %v3010 = vld [vmem:[#allocation3 + $0x1d8] sm:$0xff]
      %v3011 = vld [vmem:[#allocation3 + $0x1e0] sm:$0xff]
      %v3012 = vld [vmem:[#allocation3 + $0x1e8] sm:$0xff]
      %v3013 = vld [vmem:[#allocation3 + $0x1f0] sm:$0xff]
      %v3014 = vld [vmem:[#allocation3 + $0x1f8] sm:$0xff]
      %v3016 = vlaneseq
      %v3017 = vshrl.u32 %v3016, 7
      %v3018 = vsub.s32 0, %v3017
      %v3019 = vrot.slane %v981, %v3018
      %v3075 = vunpack.c.l.b16 %v927
      %v3076 = vunpack.c.l.b16 %v928
      %v3077 = vunpack.c.l.b16 %v929
      %v3078 = vunpack.c.l.b16 %v930
      %v3079 = vunpack.c.l.b16 %v931
      %v3080 = vunpack.c.l.b16 %v932
      %v3081 = vunpack.c.l.b16 %v933
      %v3082 = vunpack.c.l.b16 %v934
      %v3083 = vunpack.c.l.b16 %v935
      %v3084 = vunpack.c.l.b16 %v936
      %v3085 = vunpack.c.l.b16 %v937
      %v3086 = vunpack.c.l.b16 %v938
      %v3087 = vunpack.c.l.b16 %v939
      %v3088 = vunpack.c.l.b16 %v940
      %v3089 = vunpack.c.l.b16 %v941
      %v3090 = vunpack.c.l.b16 %v942
      %v3091 = vunpack.c.l.b16 %v943
      %v3092 = vunpack.c.l.b16 %v944
      %v3093 = vunpack.c.l.b16 %v945
      %v3094 = vunpack.c.l.b16 %v946
      %v3095 = vunpack.c.l.b16 %v947
      %v3096 = vunpack.c.l.b16 %v948
      %v3097 = vunpack.c.l.b16 %v949
      %v3098 = vunpack.c.l.b16 %v950
      %v3099 = vunpack.c.l.b16 %v951
      %v3100 = vunpack.c.l.b16 %v952
      %v3101 = vunpack.c.l.b16 %v953
      %v3102 = vunpack.c.l.b16 %v954
      %v3103 = vunpack.c.l.b16 %v955
      %v3104 = vunpack.c.l.b16 %v956
      %v3105 = vunpack.c.l.b16 %v957
      %v3106 = vunpack.c.l.b16 %v958
      %v3107 = vunpack.c.l.b16 %v959
      %v3108 = vunpack.c.l.b16 %v960
      %v3109 = vunpack.c.l.b16 %v961
      %v3110 = vunpack.c.l.b16 %v962
      %v3111 = vunpack.c.l.b16 %v963
      %v3112 = vunpack.c.l.b16 %v964
      %v3113 = vunpack.c.l.b16 %v965
      %v3114 = vunpack.c.l.b16 %v966
      %v3115 = vunpack.c.l.b16 %v967
      %v3116 = vunpack.c.l.b16 %v968
      %v3117 = vunpack.c.l.b16 %v969
      %v3118 = vunpack.c.l.b16 %v970
      %v3119 = vunpack.c.l.b16 %v971
      %v3120 = vunpack.c.l.b16 %v972
      %v3121 = vunpack.c.l.b16 %v973
      %v3122 = vunpack.c.l.b16 %v974
      %v3123 = vunpack.c.l.b16 %v975
      %v3124 = vunpack.c.l.b16 %v976
      %v3125 = vunpack.c.l.b16 %v977
      %v3126 = vunpack.c.l.b16 %v978
      %v3127 = vunpack.c.l.b16 %v979
      %v3128 = vunpack.c.l.b16 %v980
      %v3129 = vpack.c.b16 %v3076, %v3075
      %v3130 = vpack.c.b16 %v3078, %v3077
      %v3131 = vpack.c.b16 %v3080, %v3079
      %v3132 = vpack.c.b16 %v3082, %v3081
      %v3133 = vpack.c.b16 %v3084, %v3083
      %v3134 = vpack.c.b16 %v3086, %v3085
      %v3135 = vpack.c.b16 %v3088, %v3087
      %v3136 = vpack.c.b16 %v3090, %v3089
      %v3137 = vpack.c.b16 %v3092, %v3091
      %v3138 = vpack.c.b16 %v3094, %v3093
      %v3139 = vpack.c.b16 %v3096, %v3095
      %v3140 = vpack.c.b16 %v3098, %v3097
      %v3141 = vpack.c.b16 %v3100, %v3099
      %v3142 = vpack.c.b16 %v3102, %v3101
      %v3143 = vpack.c.b16 %v3104, %v3103
      %v3144 = vpack.c.b16 %v3106, %v3105
      %v3145 = vpack.c.b16 %v3108, %v3107
      %v3146 = vpack.c.b16 %v3110, %v3109
      %v3147 = vpack.c.b16 %v3112, %v3111
      %v3148 = vpack.c.b16 %v3114, %v3113
      %v3149 = vpack.c.b16 %v3116, %v3115
      %v3150 = vpack.c.b16 %v3118, %v3117
      %v3151 = vpack.c.b16 %v3120, %v3119
      %v3152 = vpack.c.b16 %v3122, %v3121
      %v3153 = vpack.c.b16 %v3124, %v3123
      %v3154 = vpack.c.b16 %v3126, %v3125
      %v3155 = vpack.c.b16 %v3128, %v3127
      %v3184 = vsel %vm1695, %v2954, 0
      %v3187 = vsel %vm1695, %v2958, 0
      %v3190 = vsel %vm1695, %v2962, 0
      %v3193 = vsel %vm1695, %v2966, 0
      %v3196 = vsel %vm1695, %v2970, 0
      %v3199 = vsel %vm1695, %v2974, 0
      %v3202 = vsel %vm1695, %v2978, 0
      %v3205 = vsel %vm1695, %v2982, 0
      %v3208 = vsel %vm1695, %v2986, 0
      %v3211 = vsel %vm1695, %v2990, 0
      %v3214 = vsel %vm1695, %v2994, 0
      %v3217 = vsel %vm1695, %v2998, 0
      %v3220 = vsel %vm1695, %v3002, 0
      %v3223 = vsel %vm1695, %v3006, 0
      %v3226 = vsel %vm1695, %v3010, 0
      %v3229 = vsel %vm1695, %v3014, 0
      %3231 = vmatprep.subr.bf16.mxu0 0
      %3232 = vmatpush1.bf16.msra.mxu0 %v3129
      %3233 = vmatprep.subr.bf16.mxu0 0
      %3234 = vmatpush1.bf16.msra.mxu0 %v3130
      %3235 = vmatprep.subr.bf16.mxu0 0
      %3236 = vmatpush1.bf16.msra.mxu0 %v3131
      %3237 = vmatprep.subr.bf16.mxu0 0
      %3238 = vmatpush1.bf16.msra.mxu0 %v3132
      %3239 = vmatprep.subr.bf16.mxu0 0
      %3240 = vmatpush1.bf16.msra.mxu0 %v3133
      %3241 = vmatprep.subr.bf16.mxu0 0
      %3242 = vmatpush1.bf16.msra.mxu0 %v3134
      %3243 = vmatprep.subr.bf16.mxu0 0
      %3244 = vmatpush1.bf16.msra.mxu0 %v3135
      %3245 = vmatprep.subr.bf16.mxu0 0
      %3246 = vmatpush1.bf16.msra.mxu0 %v3136
      %3247 = vmatprep.subr.bf16.mxu0 0
      %3248 = vmatpush1.bf16.msra.mxu0 %v3137
      %3249 = vmatprep.subr.bf16.mxu0 0
      %3250 = vmatpush1.bf16.msra.mxu0 %v3138
      %3251 = vmatprep.subr.bf16.mxu0 0
      %3252 = vmatpush1.bf16.msra.mxu0 %v3139
      %3253 = vmatprep.subr.bf16.mxu0 0
      %3254 = vmatpush1.bf16.msra.mxu0 %v3140
      %3255 = vmatprep.subr.bf16.mxu0 0
      %3256 = vmatpush1.bf16.msra.mxu0 %v3141
      %3257 = vmatprep.subr.bf16.mxu0 0
      %3258 = vmatpush1.bf16.msra.mxu0 %v3142
      %3259 = vmatprep.subr.bf16.mxu0 0
      %3260 = vmatpush1.bf16.msra.mxu0 %v3143
      %3261 = vmatprep.subr.bf16.mxu0 0
      %3262 = vmatpush1.bf16.msra.mxu0 %v3144
      %3263 = vmatprep.mubr.bf16.mxu0 %v2952
      %3264 = vmatmul.mubr.bf16.gmra.mrb[0].mxu0 %v2951
      %v3265 = vpop.f32.mrb[0].mxu0
      %v3266 = vadd.f32 %v3019, %v3265
      %v3267 = vpop.f32.mrb[0].mxu0
      %v3268 = vpop.f32.mrb[0].mxu0
      %v3269 = vadd.f32 %v3019, %v3268
      %v3270 = vpop.f32.mrb[0].mxu0
      %3271 = vmatprep.mubr.bf16.mxu0 %v2956
      %3272 = vmatmul.mubr.bf16.gmra.mrb[0].mxu0 %v2955
      %v3273 = vpop.f32.mrb[0].mxu0
      %v3274 = vadd.f32 %v3019, %v3273
      %v3275 = vpop.f32.mrb[0].mxu0
      %v3276 = vpop.f32.mrb[0].mxu0
      %v3277 = vadd.f32 %v3019, %v3276
      %v3278 = vpop.f32.mrb[0].mxu0
      %3279 = vmatprep.mubr.bf16.mxu0 %v2960
      %3280 = vmatmul.mubr.bf16.gmra.mrb[0].mxu0 %v2959
      %v3281 = vpop.f32.mrb[0].mxu0
      %v3282 = vadd.f32 %v3019, %v3281
      %v3283 = vpop.f32.mrb[0].mxu0
      %v3284 = vpop.f32.mrb[0].mxu0
      %v3285 = vadd.f32 %v3019, %v3284
      %v3286 = vpop.f32.mrb[0].mxu0
      %3287 = vmatprep.mubr.bf16.mxu0 %v2964
      %3288 = vmatmul.mubr.bf16.gmra.mrb[0].mxu0 %v2963
      %v3289 = vpop.f32.mrb[0].mxu0
      %v3290 = vadd.f32 %v3019, %v3289
      %v3291 = vpop.f32.mrb[0].mxu0
      %v3292 = vpop.f32.mrb[0].mxu0
      %v3293 = vadd.f32 %v3019, %v3292
      %v3294 = vpop.f32.mrb[0].mxu0
      %3295 = vmatprep.mubr.bf16.mxu0 %v2968
      %3296 = vmatmul.mubr.bf16.gmra.mrb[0].mxu0 %v2967
      %v3297 = vpop.f32.mrb[0].mxu0
      %v3298 = vadd.f32 %v3019, %v3297
      %v3299 = vpop.f32.mrb[0].mxu0
      %v3300 = vpop.f32.mrb[0].mxu0
      %v3301 = vadd.f32 %v3019, %v3300
      %v3302 = vpop.f32.mrb[0].mxu0
      %3303 = vmatprep.mubr.bf16.mxu0 %v2972
      %3304 = vmatmul.mubr.bf16.gmra.mrb[0].mxu0 %v2971
      %v3305 = vpop.f32.mrb[0].mxu0
      %v3306 = vadd.f32 %v3019, %v3305
      %v3307 = vpop.f32.mrb[0].mxu0
      %v3308 = vpop.f32.mrb[0].mxu0
      %v3309 = vadd.f32 %v3019, %v3308
      %v3310 = vpop.f32.mrb[0].mxu0
      %3311 = vmatprep.mubr.bf16.mxu0 %v2976
      %3312 = vmatmul.mubr.bf16.gmra.mrb[0].mxu0 %v2975
      %v3313 = vpop.f32.mrb[0].mxu0
      %v3314 = vadd.f32 %v3019, %v3313
      %v3315 = vpop.f32.mrb[0].mxu0
      %v3316 = vpop.f32.mrb[0].mxu0
      %v3317 = vadd.f32 %v3019, %v3316
      %v3318 = vpop.f32.mrb[0].mxu0
      %3319 = vmatprep.mubr.bf16.mxu0 %v2980
      %3320 = vmatmul.mubr.bf16.gmra.mrb[0].mxu0 %v2979
      %v3321 = vpop.f32.mrb[0].mxu0
      %v3322 = vadd.f32 %v3019, %v3321
      %v3323 = vpop.f32.mrb[0].mxu0
      %v3324 = vpop.f32.mrb[0].mxu0
      %v3325 = vadd.f32 %v3019, %v3324
      %v3326 = vpop.f32.mrb[0].mxu0
      %3327 = vmatprep.mubr.bf16.mxu0 %v2984
      %3328 = vmatmul.mubr.bf16.gmra.mrb[0].mxu0 %v2983
      %v3329 = vpop.f32.mrb[0].mxu0
      %v3330 = vadd.f32 %v3019, %v3329
      %v3331 = vpop.f32.mrb[0].mxu0
      %v3332 = vpop.f32.mrb[0].mxu0
      %v3333 = vadd.f32 %v3019, %v3332
      %v3334 = vpop.f32.mrb[0].mxu0
      %3335 = vmatprep.mubr.bf16.mxu0 %v2988
      %3336 = vmatmul.mubr.bf16.gmra.mrb[0].mxu0 %v2987
      %v3337 = vpop.f32.mrb[0].mxu0
      %v3338 = vadd.f32 %v3019, %v3337
      %v3339 = vpop.f32.mrb[0].mxu0
      %v3340 = vpop.f32.mrb[0].mxu0
      %v3341 = vadd.f32 %v3019, %v3340
      %v3342 = vpop.f32.mrb[0].mxu0
      %3343 = vmatprep.mubr.bf16.mxu0 %v2992
      %3344 = vmatmul.mubr.bf16.gmra.mrb[0].mxu0 %v2991
      %v3345 = vpop.f32.mrb[0].mxu0
      %v3346 = vadd.f32 %v3019, %v3345
      %v3347 = vpop.f32.mrb[0].mxu0
      %v3348 = vpop.f32.mrb[0].mxu0
      %v3349 = vadd.f32 %v3019, %v3348
      %v3350 = vpop.f32.mrb[0].mxu0
      %3351 = vmatprep.mubr.bf16.mxu0 %v2996
      %3352 = vmatmul.mubr.bf16.gmra.mrb[0].mxu0 %v2995
      %v3353 = vpop.f32.mrb[0].mxu0
      %v3354 = vadd.f32 %v3019, %v3353
      %v3355 = vpop.f32.mrb[0].mxu0
      %v3356 = vpop.f32.mrb[0].mxu0
      %v3357 = vadd.f32 %v3019, %v3356
      %v3358 = vpop.f32.mrb[0].mxu0
      %3359 = vmatprep.mubr.bf16.mxu0 %v3000
      %3360 = vmatmul.mubr.bf16.gmra.mrb[0].mxu0 %v2999
      %v3361 = vpop.f32.mrb[0].mxu0
      %v3362 = vadd.f32 %v3019, %v3361
      %v3363 = vpop.f32.mrb[0].mxu0
      %v3364 = vpop.f32.mrb[0].mxu0
      %v3365 = vadd.f32 %v3019, %v3364
      %v3366 = vpop.f32.mrb[0].mxu0
      %3367 = vmatprep.mubr.bf16.mxu0 %v3004
      %3368 = vmatmul.mubr.bf16.gmra.mrb[0].mxu0 %v3003
      %v3369 = vpop.f32.mrb[0].mxu0
      %v3370 = vadd.f32 %v3019, %v3369
      %v3371 = vpop.f32.mrb[0].mxu0
      %v3372 = vpop.f32.mrb[0].mxu0
      %v3373 = vadd.f32 %v3019, %v3372
      %v3374 = vpop.f32.mrb[0].mxu0
      %3375 = vmatprep.mubr.bf16.mxu0 %v3008
      %3376 = vmatmul.mubr.bf16.gmra.mrb[0].mxu0 %v3007
      %v3377 = vpop.f32.mrb[0].mxu0
      %v3378 = vadd.f32 %v3019, %v3377
      %v3379 = vpop.f32.mrb[0].mxu0
      %v3380 = vpop.f32.mrb[0].mxu0
      %v3381 = vadd.f32 %v3019, %v3380
      %v3382 = vpop.f32.mrb[0].mxu0
      %3383 = vmatprep.mubr.bf16.mxu0 %v3012
      %3384 = vmatmul.mubr.bf16.gmra.mrb[0].mxu0 %v3011
      %v3385 = vpop.f32.mrb[0].mxu0
      %v3386 = vadd.f32 %v3019, %v3385
      %v3387 = vpop.f32.mrb[0].mxu0
      %v3388 = vpop.f32.mrb[0].mxu0
      %v3389 = vadd.f32 %v3019, %v3388
      %v3390 = vpop.f32.mrb[0].mxu0
      %3391 = vdwg.mxu0
      %3392 = vmatprep.subr.bf16.mxu0 0
      %3393 = vmatpush1.bf16.msra.mxu0 %v3145
      %3394 = vmatprep.subr.bf16.mxu0 0
      %3395 = vmatpush1.bf16.msra.mxu0 %v3146
      %3396 = vmatprep.subr.bf16.mxu0 0
      %3397 = vmatpush1.bf16.msra.mxu0 %v3147
      %3398 = vmatprep.subr.bf16.mxu0 0
      %3399 = vmatpush1.bf16.msra.mxu0 %v3148
      %3400 = vmatprep.subr.bf16.mxu0 0
      %3401 = vmatpush1.bf16.msra.mxu0 %v3149
      %3402 = vmatprep.subr.bf16.mxu0 0
      %3403 = vmatpush1.bf16.msra.mxu0 %v3150
      %3404 = vmatprep.subr.bf16.mxu0 0
      %3405 = vmatpush1.bf16.msra.mxu0 %v3151
      %3406 = vmatprep.subr.bf16.mxu0 0
      %3407 = vmatpush1.bf16.msra.mxu0 %v3152
      %3408 = vmatprep.subr.bf16.mxu0 0
      %3409 = vmatpush1.bf16.msra.mxu0 %v3153
      %3410 = vmatprep.subr.bf16.mxu0 0
      %3411 = vmatpush1.bf16.msra.mxu0 %v3154
      %3412 = vmatprep.subr.bf16.mxu0 0
      %3413 = vmatpush1.bf16.msra.mxu0 %v3155
      %3414 = vmatprep.subr.bf16.mxu0 0
      %3415 = vmatpush1.bf16.msra.mxu0 0
      %3416 = vmatprep.subr.bf16.mxu0 0
      %3417 = vmatpush1.bf16.msra.mxu0 0
      %3418 = vmatprep.subr.bf16.mxu0 0
      %3419 = vmatpush1.bf16.msra.mxu0 0
      %3420 = vmatprep.subr.bf16.mxu0 0
      %3421 = vmatpush1.bf16.msra.mxu0 0
      %3422 = vmatprep.subr.bf16.mxu0 0
      %3423 = vmatpush1.bf16.msra.mxu0 0
      %3424 = vmatprep.mubr.bf16.mxu0 %v3184
      %3425 = vmatmul.mubr.bf16.gmra.mrb[0].mxu0 %v2953
      %v3426 = vpop.f32.mrb[0].mxu0
      %v3427 = vadd.f32 %v3266, %v3426
      %v3428 = vpop.f32.mrb[0].mxu0
      %v3429 = vpop.f32.mrb[0].mxu0
      %v3430 = vadd.f32 %v3269, %v3429
      %v3431 = vpop.f32.mrb[0].mxu0
      %3432 = vmatprep.mubr.bf16.mxu0 %v3187
      %3433 = vmatmul.mubr.bf16.gmra.mrb[0].mxu0 %v2957
      %v3434 = vpop.f32.mrb[0].mxu0
      %v3435 = vadd.f32 %v3274, %v3434
      %v3436 = vpop.f32.mrb[0].mxu0
      %v3437 = vpop.f32.mrb[0].mxu0
      %v3438 = vadd.f32 %v3277, %v3437
      %v3439 = vpop.f32.mrb[0].mxu0
      %3440 = vmatprep.mubr.bf16.mxu0 %v3190
      %3441 = vmatmul.mubr.bf16.gmra.mrb[0].mxu0 %v2961
      %v3442 = vpop.f32.mrb[0].mxu0
      %v3443 = vadd.f32 %v3282, %v3442
      %v3444 = vpop.f32.mrb[0].mxu0
      %v3445 = vpop.f32.mrb[0].mxu0
      %v3446 = vadd.f32 %v3285, %v3445
      %v3447 = vpop.f32.mrb[0].mxu0
      %3448 = vmatprep.mubr.bf16.mxu0 %v3193
      %3449 = vmatmul.mubr.bf16.gmra.mrb[0].mxu0 %v2965
      %v3450 = vpop.f32.mrb[0].mxu0
      %v3451 = vadd.f32 %v3290, %v3450
      %v3452 = vpop.f32.mrb[0].mxu0
      %v3453 = vpop.f32.mrb[0].mxu0
      %v3454 = vadd.f32 %v3293, %v3453
      %v3455 = vpop.f32.mrb[0].mxu0
      %3456 = vmatprep.mubr.bf16.mxu0 %v3196
      %3457 = vmatmul.mubr.bf16.gmra.mrb[0].mxu0 %v2969
      %v3458 = vpop.f32.mrb[0].mxu0
      %v3459 = vadd.f32 %v3298, %v3458
      %v3460 = vpop.f32.mrb[0].mxu0
      %v3461 = vpop.f32.mrb[0].mxu0
      %v3462 = vadd.f32 %v3301, %v3461
      %v3463 = vpop.f32.mrb[0].mxu0
      %3464 = vmatprep.mubr.bf16.mxu0 %v3199
      %3465 = vmatmul.mubr.bf16.gmra.mrb[0].mxu0 %v2973
      %v3466 = vpop.f32.mrb[0].mxu0
      %v3467 = vadd.f32 %v3306, %v3466
      %v3468 = vpop.f32.mrb[0].mxu0
      %v3469 = vpop.f32.mrb[0].mxu0
      %v3470 = vadd.f32 %v3309, %v3469
      %v3471 = vpop.f32.mrb[0].mxu0
      %3472 = vmatprep.mubr.bf16.mxu0 %v3202
      %3473 = vmatmul.mubr.bf16.gmra.mrb[0].mxu0 %v2977
      %v3474 = vpop.f32.mrb[0].mxu0
      %v3475 = vadd.f32 %v3314, %v3474
      %v3476 = vpop.f32.mrb[0].mxu0
      %v3477 = vpop.f32.mrb[0].mxu0
      %v3478 = vadd.f32 %v3317, %v3477
      %v3479 = vpop.f32.mrb[0].mxu0
      %3480 = vmatprep.mubr.bf16.mxu0 %v3205
      %3481 = vmatmul.mubr.bf16.gmra.mrb[0].mxu0 %v2981
      %v3482 = vpop.f32.mrb[0].mxu0
      %v3483 = vadd.f32 %v3322, %v3482
      %v3484 = vpop.f32.mrb[0].mxu0
      %v3485 = vpop.f32.mrb[0].mxu0
      %v3486 = vadd.f32 %v3325, %v3485
      %v3487 = vpop.f32.mrb[0].mxu0
      %3488 = vmatprep.mubr.bf16.mxu0 %v3208
      %3489 = vmatmul.mubr.bf16.gmra.mrb[0].mxu0 %v2985
      %v3490 = vpop.f32.mrb[0].mxu0
      %v3491 = vadd.f32 %v3330, %v3490
      %v3492 = vpop.f32.mrb[0].mxu0
      %v3493 = vpop.f32.mrb[0].mxu0
      %v3494 = vadd.f32 %v3333, %v3493
      %v3495 = vpop.f32.mrb[0].mxu0
      %3496 = vmatprep.mubr.bf16.mxu0 %v3211
      %3497 = vmatmul.mubr.bf16.gmra.mrb[0].mxu0 %v2989
      %v3498 = vpop.f32.mrb[0].mxu0
      %v3499 = vadd.f32 %v3338, %v3498
      %v3500 = vpop.f32.mrb[0].mxu0
      %v3501 = vpop.f32.mrb[0].mxu0
      %v3502 = vadd.f32 %v3341, %v3501
      %v3503 = vpop.f32.mrb[0].mxu0
      %3504 = vmatprep.mubr.bf16.mxu0 %v3214
      %3505 = vmatmul.mubr.bf16.gmra.mrb[0].mxu0 %v2993
      %v3506 = vpop.f32.mrb[0].mxu0
      %v3507 = vadd.f32 %v3346, %v3506
      %v3508 = vpop.f32.mrb[0].mxu0
      %v3509 = vpop.f32.mrb[0].mxu0
      %v3510 = vadd.f32 %v3349, %v3509
      %v3511 = vpop.f32.mrb[0].mxu0
      %3512 = vmatprep.mubr.bf16.mxu0 %v3217
      %3513 = vmatmul.mubr.bf16.gmra.mrb[0].mxu0 %v2997
      %v3514 = vpop.f32.mrb[0].mxu0
      %v3515 = vadd.f32 %v3354, %v3514
      %v3516 = vpop.f32.mrb[0].mxu0
      %v3517 = vpop.f32.mrb[0].mxu0
      %v3518 = vadd.f32 %v3357, %v3517
      %v3519 = vpop.f32.mrb[0].mxu0
      %3520 = vmatprep.mubr.bf16.mxu0 %v3220
      %3521 = vmatmul.mubr.bf16.gmra.mrb[0].mxu0 %v3001
      %v3522 = vpop.f32.mrb[0].mxu0
      %v3523 = vadd.f32 %v3362, %v3522
      %v3524 = vpop.f32.mrb[0].mxu0
      %v3525 = vpop.f32.mrb[0].mxu0
      %v3526 = vadd.f32 %v3365, %v3525
      %v3527 = vpop.f32.mrb[0].mxu0
      %3528 = vmatprep.mubr.bf16.mxu0 %v3223
      %3529 = vmatmul.mubr.bf16.gmra.mrb[0].mxu0 %v3005
      %v3530 = vpop.f32.mrb[0].mxu0
      %v3531 = vadd.f32 %v3370, %v3530
      %v3532 = vpop.f32.mrb[0].mxu0
      %v3533 = vpop.f32.mrb[0].mxu0
      %v3534 = vadd.f32 %v3373, %v3533
      %v3535 = vpop.f32.mrb[0].mxu0
      %3536 = vmatprep.mubr.bf16.mxu0 %v3226
      %3537 = vmatmul.mubr.bf16.gmra.mrb[0].mxu0 %v3009
      %v3538 = vpop.f32.mrb[0].mxu0
      %v3539 = vadd.f32 %v3378, %v3538
      %v3540 = vpop.f32.mrb[0].mxu0
      %v3541 = vpop.f32.mrb[0].mxu0
      %v3542 = vadd.f32 %v3381, %v3541
      %v3543 = vpop.f32.mrb[0].mxu0
      %3544 = vmatprep.mubr.bf16.mxu0 %v3229
      %3545 = vmatmul.mubr.bf16.gmra.mrb[0].mxu0 %v3013
      %v3546 = vpop.f32.mrb[0].mxu0
      %v3547 = vadd.f32 %v3386, %v3546
      %v3548 = vpop.f32.mrb[0].mxu0
      %v3549 = vpop.f32.mrb[0].mxu0
      %v3550 = vadd.f32 %v3389, %v3549
      %v3551 = vpop.f32.mrb[0].mxu0
      %3552 = vdwg.mxu0
      %v3553 = vmax.f32 %v3427, 0.0
      %v3554 = vmax.f32 %v3430, 0.0
      %v3555 = vmax.f32 %v3435, 0.0
      %v3556 = vmax.f32 %v3438, 0.0
      %v3557 = vmax.f32 %v3443, 0.0
      %v3558 = vmax.f32 %v3446, 0.0
      %v3559 = vmax.f32 %v3451, 0.0
      %v3560 = vmax.f32 %v3454, 0.0
      %v3561 = vmax.f32 %v3459, 0.0
      %v3562 = vmax.f32 %v3462, 0.0
      %v3563 = vmax.f32 %v3467, 0.0
      %v3564 = vmax.f32 %v3470, 0.0
      %v3565 = vmax.f32 %v3475, 0.0
      %v3566 = vmax.f32 %v3478, 0.0
      %v3567 = vmax.f32 %v3483, 0.0
      %v3568 = vmax.f32 %v3486, 0.0
      %v3569 = vmax.f32 %v3491, 0.0
      %v3570 = vmax.f32 %v3494, 0.0
      %v3571 = vmax.f32 %v3499, 0.0
      %v3572 = vmax.f32 %v3502, 0.0
      %v3573 = vmax.f32 %v3507, 0.0
      %v3574 = vmax.f32 %v3510, 0.0
      %v3575 = vmax.f32 %v3515, 0.0
      %v3576 = vmax.f32 %v3518, 0.0
      %v3577 = vmax.f32 %v3523, 0.0
      %v3578 = vmax.f32 %v3526, 0.0
      %v3579 = vmax.f32 %v3531, 0.0
      %v3580 = vmax.f32 %v3534, 0.0
      %v3581 = vmax.f32 %v3539, 0.0
      %v3582 = vmax.f32 %v3542, 0.0
      %v3583 = vmax.f32 %v3547, 0.0
      %v3584 = vmax.f32 %v3550, 0.0
      %v3585 = vpack.c.bf16 %v3554, %v3553
      %v3586 = vpack.c.bf16 %v3556, %v3555
      %v3587 = vpack.c.bf16 %v3558, %v3557
      %v3588 = vpack.c.bf16 %v3560, %v3559
      %v3589 = vpack.c.bf16 %v3562, %v3561
      %v3590 = vpack.c.bf16 %v3564, %v3563
      %v3591 = vpack.c.bf16 %v3566, %v3565
      %v3592 = vpack.c.bf16 %v3568, %v3567
      %v3593 = vpack.c.bf16 %v3570, %v3569
      %v3594 = vpack.c.bf16 %v3572, %v3571
      %v3595 = vpack.c.bf16 %v3574, %v3573
      %v3596 = vpack.c.bf16 %v3576, %v3575
      %v3597 = vpack.c.bf16 %v3578, %v3577
      %v3598 = vpack.c.bf16 %v3580, %v3579
      %v3599 = vpack.c.bf16 %v3582, %v3581
      %v3600 = vpack.c.bf16 %v3584, %v3583
      %v3617 = vunpack.c.l.b16 %v3585
      %v3618 = vunpack.c.h.b16 %v3585
      %v3619 = vunpack.c.l.b16 %v3586
      %v3620 = vunpack.c.h.b16 %v3586
      %v3621 = vunpack.c.l.b16 %v3587
      %v3622 = vunpack.c.h.b16 %v3587
      %v3623 = vunpack.c.l.b16 %v3588
      %v3624 = vunpack.c.h.b16 %v3588
      %v3625 = vunpack.c.l.b16 %v3589
      %v3626 = vunpack.c.h.b16 %v3589
      %v3627 = vunpack.c.l.b16 %v3590
      %v3628 = vunpack.c.h.b16 %v3590
      %v3629 = vunpack.c.l.b16 %v3591
      %v3630 = vunpack.c.h.b16 %v3591
      %v3631 = vunpack.c.l.b16 %v3592
      %v3632 = vunpack.c.h.b16 %v3592
      %v3633 = vunpack.c.l.b16 %v3593
      %v3634 = vunpack.c.h.b16 %v3593
      %v3635 = vunpack.c.l.b16 %v3594
      %v3636 = vunpack.c.h.b16 %v3594
      %v3637 = vunpack.c.l.b16 %v3595
      %v3638 = vunpack.c.h.b16 %v3595
      %v3639 = vunpack.c.l.b16 %v3596
      %v3640 = vunpack.c.h.b16 %v3596
      %v3641 = vunpack.c.l.b16 %v3597
      %v3642 = vunpack.c.h.b16 %v3597
      %v3643 = vunpack.c.l.b16 %v3598
      %v3644 = vunpack.c.h.b16 %v3598
      %v3645 = vunpack.c.l.b16 %v3599
      %v3646 = vunpack.c.h.b16 %v3599
      %v3647 = vunpack.c.l.b16 %v3600
      %v3648 = vunpack.c.h.b16 %v3600
      %v3649 = vpack.c.b16 %v3617, %v3617
      %v3650 = vpack.c.b16 %v3618, %v3618
      %v3651 = vpack.c.b16 %v3619, %v3619
      %v3652 = vpack.c.b16 %v3620, %v3620
      %v3653 = vpack.c.b16 %v3621, %v3621
      %v3654 = vpack.c.b16 %v3622, %v3622
      %v3655 = vpack.c.b16 %v3623, %v3623
      %v3656 = vpack.c.b16 %v3624, %v3624
      %v3657 = vpack.c.b16 %v3625, %v3625
      %v3658 = vpack.c.b16 %v3626, %v3626
      %v3659 = vpack.c.b16 %v3627, %v3627
      %v3660 = vpack.c.b16 %v3628, %v3628
      %v3661 = vpack.c.b16 %v3629, %v3629
      %v3662 = vpack.c.b16 %v3630, %v3630
      %v3663 = vpack.c.b16 %v3631, %v3631
      %v3664 = vpack.c.b16 %v3632, %v3632
      %v3665 = vpack.c.b16 %v3633, %v3633
      %v3666 = vpack.c.b16 %v3634, %v3634
      %v3667 = vpack.c.b16 %v3635, %v3635
      %v3668 = vpack.c.b16 %v3636, %v3636
      %v3669 = vpack.c.b16 %v3637, %v3637
      %v3670 = vpack.c.b16 %v3638, %v3638
      %v3671 = vpack.c.b16 %v3639, %v3639
      %v3672 = vpack.c.b16 %v3640, %v3640
      %v3673 = vpack.c.b16 %v3641, %v3641
      %v3674 = vpack.c.b16 %v3642, %v3642
      %v3675 = vpack.c.b16 %v3643, %v3643
      %v3676 = vpack.c.b16 %v3644, %v3644
      %v3677 = vpack.c.b16 %v3645, %v3645
      %v3678 = vpack.c.b16 %v3646, %v3646
      %v3679 = vpack.c.b16 %v3647, %v3647
      %v3680 = vpack.c.b16 %v3648, %v3648
      %3681 = vrot.lane.b32.xlu0 %v3649, 64
      %v3682 = vpop.permute.xlu0 %3681
      %3683 = vrot.lane.b32.xlu0 %v3650, 64
      %v3684 = vpop.permute.xlu0 %3683
      %3685 = vrot.lane.b32.xlu0 %v3651, 64
      %v3686 = vpop.permute.xlu0 %3685
      %3687 = vrot.lane.b32.xlu0 %v3652, 64
      %v3688 = vpop.permute.xlu0 %3687
      %3689 = vrot.lane.b32.xlu0 %v3653, 64
      %v3690 = vpop.permute.xlu0 %3689
      %3691 = vrot.lane.b32.xlu0 %v3654, 64
      %v3692 = vpop.permute.xlu0 %3691
      %3693 = vrot.lane.b32.xlu0 %v3655, 64
      %v3694 = vpop.permute.xlu0 %3693
      %3695 = vrot.lane.b32.xlu0 %v3656, 64
      %v3696 = vpop.permute.xlu0 %3695
      %3697 = vrot.lane.b32.xlu0 %v3657, 64
      %v3698 = vpop.permute.xlu0 %3697
      %3699 = vrot.lane.b32.xlu0 %v3658, 64
      %v3700 = vpop.permute.xlu0 %3699
      %3701 = vrot.lane.b32.xlu0 %v3659, 64
      %v3702 = vpop.permute.xlu0 %3701
      %3703 = vrot.lane.b32.xlu0 %v3660, 64
      %v3704 = vpop.permute.xlu0 %3703
      %3705 = vrot.lane.b32.xlu0 %v3661, 64
      %v3706 = vpop.permute.xlu0 %3705
      %3707 = vrot.lane.b32.xlu0 %v3662, 64
      %v3708 = vpop.permute.xlu0 %3707
      %3709 = vrot.lane.b32.xlu0 %v3663, 64
      %v3710 = vpop.permute.xlu0 %3709
      %3711 = vrot.lane.b32.xlu0 %v3664, 64
      %v3712 = vpop.permute.xlu0 %3711
      %3713 = vrot.lane.b32.xlu0 %v3665, 64
      %v3714 = vpop.permute.xlu0 %3713
      %3715 = vrot.lane.b32.xlu0 %v3666, 64
      %v3716 = vpop.permute.xlu0 %3715
      %3717 = vrot.lane.b32.xlu0 %v3667, 64
      %v3718 = vpop.permute.xlu0 %3717
      %3719 = vrot.lane.b32.xlu0 %v3668, 64
      %v3720 = vpop.permute.xlu0 %3719
      %3721 = vrot.lane.b32.xlu0 %v3669, 64
      %v3722 = vpop.permute.xlu0 %3721
      %3723 = vrot.lane.b32.xlu0 %v3670, 64
      %v3724 = vpop.permute.xlu0 %3723
      %3725 = vrot.lane.b32.xlu0 %v3671, 64
      %v3726 = vpop.permute.xlu0 %3725
      %3727 = vrot.lane.b32.xlu0 %v3672, 64
      %v3728 = vpop.permute.xlu0 %3727
      %3729 = vrot.lane.b32.xlu0 %v3673, 64
      %v3730 = vpop.permute.xlu0 %3729
      %3731 = vrot.lane.b32.xlu0 %v3674, 64
      %v3732 = vpop.permute.xlu0 %3731
      %3733 = vrot.lane.b32.xlu0 %v3675, 64
      %v3734 = vpop.permute.xlu0 %3733
      %3735 = vrot.lane.b32.xlu0 %v3676, 64
      %v3736 = vpop.permute.xlu0 %3735
      %3737 = vrot.lane.b32.xlu0 %v3677, 64
      %v3738 = vpop.permute.xlu0 %3737
      %3739 = vrot.lane.b32.xlu0 %v3678, 64
      %v3740 = vpop.permute.xlu0 %3739
      %3741 = vrot.lane.b32.xlu0 %v3679, 64
      %v3742 = vpop.permute.xlu0 %3741
      %3743 = vrot.lane.b32.xlu0 %v3680, 64
      %v3744 = vpop.permute.xlu0 %3743
      %vm3777 = vcmask 1043968
      %3778 = vst.msk [vmem:[%s386] sm:$0xf] %vm3777, %v3682
      %3779 = vst.msk [vmem:[%s386 + $0x8] sm:$0xf] %vm3777, %v3684
      %3780 = vst.msk [vmem:[%s386 + $0x10] sm:$0xf] %vm3777, %v3686
      %3781 = vst.msk [vmem:[%s386 + $0x18] sm:$0xf] %vm3777, %v3688
      %3782 = vst.msk [vmem:[%s386 + $0x20] sm:$0xf] %vm3777, %v3690
      %3783 = vst.msk [vmem:[%s386 + $0x28] sm:$0xf] %vm3777, %v3692
      %3784 = vst.msk [vmem:[%s386 + $0x30] sm:$0xf] %vm3777, %v3694
      %3785 = vst.msk [vmem:[%s386 + $0x38] sm:$0xf] %vm3777, %v3696
      %3786 = vst.msk [vmem:[%s386 + $0x40] sm:$0xf] %vm3777, %v3698
      %3787 = vst.msk [vmem:[%s386 + $0x48] sm:$0xf] %vm3777, %v3700
      %3788 = vst.msk [vmem:[%s386 + $0x50] sm:$0xf] %vm3777, %v3702
      %3789 = vst.msk [vmem:[%s386 + $0x58] sm:$0xf] %vm3777, %v3704
      %3790 = vst.msk [vmem:[%s386 + $0x60] sm:$0xf] %vm3777, %v3706
      %3791 = vst.msk [vmem:[%s386 + $0x68] sm:$0xf] %vm3777, %v3708
      %3792 = vst.msk [vmem:[%s386 + $0x70] sm:$0xf] %vm3777, %v3710
      %3793 = vst.msk [vmem:[%s386 + $0x78] sm:$0xf] %vm3777, %v3712
      %3794 = vst.msk [vmem:[%s386 + $0x80] sm:$0xf] %vm3777, %v3714
      %3795 = vst.msk [vmem:[%s386 + $0x88] sm:$0xf] %vm3777, %v3716
      %3796 = vst.msk [vmem:[%s386 + $0x90] sm:$0xf] %vm3777, %v3718
      %3797 = vst.msk [vmem:[%s386 + $0x98] sm:$0xf] %vm3777, %v3720
      %3798 = vst.msk [vmem:[%s386 + $0xa0] sm:$0xf] %vm3777, %v3722
      %3799 = vst.msk [vmem:[%s386 + $0xa8] sm:$0xf] %vm3777, %v3724
      %3800 = vst.msk [vmem:[%s386 + $0xb0] sm:$0xf] %vm3777, %v3726
      %3801 = vst.msk [vmem:[%s386 + $0xb8] sm:$0xf] %vm3777, %v3728
      %3802 = vst.msk [vmem:[%s386 + $0xc0] sm:$0xf] %vm3777, %v3730
      %3803 = vst.msk [vmem:[%s386 + $0xc8] sm:$0xf] %vm3777, %v3732
      %3804 = vst.msk [vmem:[%s386 + $0xd0] sm:$0xf] %vm3777, %v3734
      %3805 = vst.msk [vmem:[%s386 + $0xd8] sm:$0xf] %vm3777, %v3736
      %3806 = vst.msk [vmem:[%s386 + $0xe0] sm:$0xf] %vm3777, %v3738
      %3807 = vst.msk [vmem:[%s386 + $0xe8] sm:$0xf] %vm3777, %v3740
      %3808 = vst.msk [vmem:[%s386 + $0xf0] sm:$0xf] %vm3777, %v3742
      %3809 = vst.msk [vmem:[%s386 + $0xf8] sm:$0xf] %vm3777, %v3744
      %v3810 = vld [vmem:[%s5] sm:$0xf]
      %v3811 = vld [vmem:[%s5 + $0x4] sm:$0xf]
      %v3812 = vld [vmem:[%s5 + $0x8] sm:$0xf]
      %v3813 = vld [vmem:[%s5 + $0xc] sm:$0xf]
      %v3814 = vld [vmem:[%s5 + $0x10] sm:$0xf]
      %v3815 = vld [vmem:[%s5 + $0x14] sm:$0xf]
      %v3816 = vld [vmem:[%s5 + $0x18] sm:$0xf]
      %v3817 = vld [vmem:[%s5 + $0x1c] sm:$0xf]
      %v3818 = vld [vmem:[%s5 + $0x20] sm:$0xf]
      %v3819 = vld [vmem:[%s5 + $0x24] sm:$0xf]
      %v3820 = vld [vmem:[%s5 + $0x28] sm:$0xf]
      %v3821 = vld [vmem:[%s5 + $0x2c] sm:$0xf]
      %v3822 = vld [vmem:[%s5 + $0x30] sm:$0xf]
      %v3823 = vld [vmem:[%s5 + $0x34] sm:$0xf]
      %v3824 = vld [vmem:[%s5 + $0x38] sm:$0xf]
      %v3825 = vld [vmem:[%s5 + $0x3c] sm:$0xf]
      %v3826 = vld [vmem:[%s5 + $0x40] sm:$0xf]
      %v3827 = vld [vmem:[%s5 + $0x44] sm:$0xf]
      %v3828 = vld [vmem:[%s6] sm:$0x1]
      %3829 = vst.msk [vmem:[#allocation2] sm:$0xf] %vm982, 0
      %3830 = vst.msk [vmem:[#allocation2 + $0x4] sm:$0xf] %vm982, 0
      %3831 = vst.msk [vmem:[#allocation2 + $0x8] sm:$0xf] %vm982, 0
      %v3832 = vld [vmem:[#allocation2 + $0xc] sm:$0x1]
      %v3833 = vsel %vm988, 0, %v3832
      %3834 = vst [vmem:[#allocation2 + $0xc] sm:$0x1] %v3833
      %3835 = vst.msk [vmem:[#allocation2 + $0x10] sm:$0xf] %vm982, 0
      %3836 = vst.msk [vmem:[#allocation2 + $0x14] sm:$0xf] %vm982, 0
      %3837 = vst.msk [vmem:[#allocation2 + $0x18] sm:$0xf] %vm982, 0
      %v3838 = vld [vmem:[#allocation2 + $0x1c] sm:$0x1]
      %v3839 = vsel %vm988, 0, %v3838
      %3840 = vst [vmem:[#allocation2 + $0x1c] sm:$0x1] %v3839
      %3841 = vst.msk [vmem:[#allocation2 + $0x20] sm:$0xf] %vm982, 0
      %3842 = vst.msk [vmem:[#allocation2 + $0x24] sm:$0xf] %vm982, 0
      %3843 = vst.msk [vmem:[#allocation2 + $0x28] sm:$0xf] %vm982, 0
      %v3844 = vld [vmem:[#allocation2 + $0x2c] sm:$0x1]
      %v3845 = vsel %vm988, 0, %v3844
      %3846 = vst [vmem:[#allocation2 + $0x2c] sm:$0x1] %v3845
      %3847 = vst.msk [vmem:[#allocation2 + $0x30] sm:$0xf] %vm982, 0
      %3848 = vst.msk [vmem:[#allocation2 + $0x34] sm:$0xf] %vm982, 0
      %3849 = vst.msk [vmem:[#allocation2 + $0x38] sm:$0xf] %vm982, 0
      %v3850 = vld [vmem:[#allocation2 + $0x3c] sm:$0x1]
      %v3851 = vsel %vm988, 0, %v3850
      %3852 = vst [vmem:[#allocation2 + $0x3c] sm:$0x1] %v3851
      %3853 = vst.msk [vmem:[#allocation2 + $0x40] sm:$0xf] %vm982, 0
      %3854 = vst.msk [vmem:[#allocation2 + $0x44] sm:$0xf] %vm982, 0
      %3855 = vst.msk [vmem:[#allocation2 + $0x48] sm:$0xf] %vm982, 0
      %v3856 = vld [vmem:[#allocation2 + $0x4c] sm:$0x1]
      %v3857 = vsel %vm988, 0, %v3856
      %3858 = vst [vmem:[#allocation2 + $0x4c] sm:$0x1] %v3857
      %3859 = vst.msk [vmem:[#allocation2 + $0x50] sm:$0xf] %vm982, 0
      %3860 = vst.msk [vmem:[#allocation2 + $0x54] sm:$0xf] %vm982, 0
      %3861 = vst.msk [vmem:[#allocation2 + $0x58] sm:$0xf] %vm982, 0
      %v3862 = vld [vmem:[#allocation2 + $0x5c] sm:$0x1]
      %v3863 = vsel %vm988, 0, %v3862
      %3864 = vst [vmem:[#allocation2 + $0x5c] sm:$0x1] %v3863
      %3865 = vst.msk [vmem:[#allocation2 + $0x60] sm:$0xf] %vm982, 0
      %3866 = vst.msk [vmem:[#allocation2 + $0x64] sm:$0xf] %vm982, 0
      %3867 = vst.msk [vmem:[#allocation2 + $0x68] sm:$0xf] %vm982, 0
      %v3868 = vld [vmem:[#allocation2 + $0x6c] sm:$0x1]
      %v3869 = vsel %vm988, 0, %v3868
      %3870 = vst [vmem:[#allocation2 + $0x6c] sm:$0x1] %v3869
      %3871 = vst.msk [vmem:[#allocation2 + $0x70] sm:$0xf] %vm982, 0
      %3872 = vst.msk [vmem:[#allocation2 + $0x74] sm:$0xf] %vm982, 0
      %3873 = vst.msk [vmem:[#allocation2 + $0x78] sm:$0xf] %vm982, 0
      %v3874 = vld [vmem:[#allocation2 + $0x7c] sm:$0x1]
      %v3875 = vsel %vm988, 0, %v3874
      %3876 = vst [vmem:[#allocation2 + $0x7c] sm:$0x1] %v3875
      %3877 = vst.msk [vmem:[#allocation2 + $0x80] sm:$0xf] %vm982, 0
      %3878 = vst.msk [vmem:[#allocation2 + $0x84] sm:$0xf] %vm982, 0
      %3879 = vst.msk [vmem:[#allocation2 + $0x88] sm:$0xf] %vm982, 0
      %v3880 = vld [vmem:[#allocation2 + $0x8c] sm:$0x1]
      %v3881 = vsel %vm988, 0, %v3880
      %3882 = vst [vmem:[#allocation2 + $0x8c] sm:$0x1] %v3881
      %3883 = vst.msk [vmem:[#allocation2 + $0x90] sm:$0xf] %vm982, 0
      %3884 = vst.msk [vmem:[#allocation2 + $0x94] sm:$0xf] %vm982, 0
      %3885 = vst.msk [vmem:[#allocation2 + $0x98] sm:$0xf] %vm982, 0
      %v3886 = vld [vmem:[#allocation2 + $0x9c] sm:$0x1]
      %v3887 = vsel %vm988, 0, %v3886
      %3888 = vst [vmem:[#allocation2 + $0x9c] sm:$0x1] %v3887
      %3889 = vst.msk [vmem:[#allocation2 + $0xa0] sm:$0xf] %vm982, 0
      %3890 = vst.msk [vmem:[#allocation2 + $0xa4] sm:$0xf] %vm982, 0
      %3891 = vst.msk [vmem:[#allocation2 + $0xa8] sm:$0xf] %vm982, 0
      %v3892 = vld [vmem:[#allocation2 + $0xac] sm:$0x1]
      %v3893 = vsel %vm988, 0, %v3892
      %3894 = vst [vmem:[#allocation2 + $0xac] sm:$0x1] %v3893
      %3895 = vst.msk [vmem:[#allocation2 + $0xb0] sm:$0xf] %vm982, 0
      %3896 = vst.msk [vmem:[#allocation2 + $0xb4] sm:$0xf] %vm982, 0
      %3897 = vst.msk [vmem:[#allocation2 + $0xb8] sm:$0xf] %vm982, 0
      %v3898 = vld [vmem:[#allocation2 + $0xbc] sm:$0x1]
      %v3899 = vsel %vm988, 0, %v3898
      %3900 = vst [vmem:[#allocation2 + $0xbc] sm:$0x1] %v3899
      %3901 = vst.msk [vmem:[#allocation2 + $0xc0] sm:$0xf] %vm982, 0
      %3902 = vst.msk [vmem:[#allocation2 + $0xc4] sm:$0xf] %vm982, 0
      %3903 = vst.msk [vmem:[#allocation2 + $0xc8] sm:$0xf] %vm982, 0
      %v3904 = vld [vmem:[#allocation2 + $0xcc] sm:$0x1]
      %v3905 = vsel %vm988, 0, %v3904
      %3906 = vst [vmem:[#allocation2 + $0xcc] sm:$0x1] %v3905
      %3907 = vst.msk [vmem:[#allocation2 + $0xd0] sm:$0xf] %vm982, 0
      %3908 = vst.msk [vmem:[#allocation2 + $0xd4] sm:$0xf] %vm982, 0
      %3909 = vst.msk [vmem:[#allocation2 + $0xd8] sm:$0xf] %vm982, 0
      %v3910 = vld [vmem:[#allocation2 + $0xdc] sm:$0x1]
      %v3911 = vsel %vm988, 0, %v3910
      %3912 = vst [vmem:[#allocation2 + $0xdc] sm:$0x1] %v3911
      %3913 = vst.msk [vmem:[#allocation2 + $0xe0] sm:$0xf] %vm982, 0
      %3914 = vst.msk [vmem:[#allocation2 + $0xe4] sm:$0xf] %vm982, 0
      %3915 = vst.msk [vmem:[#allocation2 + $0xe8] sm:$0xf] %vm982, 0
      %v3916 = vld [vmem:[#allocation2 + $0xec] sm:$0x1]
      %v3917 = vsel %vm988, 0, %v3916
      %3918 = vst [vmem:[#allocation2 + $0xec] sm:$0x1] %v3917
      %3919 = vst.msk [vmem:[#allocation2 + $0xf0] sm:$0xf] %vm982, 0
      %3920 = vst.msk [vmem:[#allocation2 + $0xf4] sm:$0xf] %vm982, 0
      %3921 = vst.msk [vmem:[#allocation2 + $0xf8] sm:$0xf] %vm982, 0
      %v3922 = vld [vmem:[#allocation2 + $0xfc] sm:$0x1]
      %v3923 = vsel %vm988, 0, %v3922
      %3924 = vst [vmem:[#allocation2 + $0xfc] sm:$0x1] %v3923
      %3925 = vst.msk [vmem:[#allocation2 + $0x100] sm:$0xf] %vm982, 0
      %3926 = vst.msk [vmem:[#allocation2 + $0x104] sm:$0xf] %vm982, 0
      %3927 = vst.msk [vmem:[#allocation2 + $0x108] sm:$0xf] %vm982, 0
      %v3928 = vld [vmem:[#allocation2 + $0x10c] sm:$0x1]
      %v3929 = vsel %vm988, 0, %v3928
      %3930 = vst [vmem:[#allocation2 + $0x10c] sm:$0x1] %v3929
      %3931 = vst.msk [vmem:[#allocation2 + $0x110] sm:$0xf] %vm982, 0
      %3932 = vst.msk [vmem:[#allocation2 + $0x114] sm:$0xf] %vm982, 0
      %3933 = vst.msk [vmem:[#allocation2 + $0x118] sm:$0xf] %vm982, 0
      %v3934 = vld [vmem:[#allocation2 + $0x11c] sm:$0x1]
      %v3935 = vsel %vm988, 0, %v3934
      %3936 = vst [vmem:[#allocation2 + $0x11c] sm:$0x1] %v3935
      %3937 = vrot.lane.b32.xlu0 %v830, 16
      %v3938 = vpop.permute.xlu0 %3937
      %3939 = vrot.lane.b32.xlu0 %v831, 16
      %v3940 = vpop.permute.xlu0 %3939
      %3941 = vrot.lane.b32.xlu0 %v832, 16
      %v3942 = vpop.permute.xlu0 %3941
      %3943 = vrot.lane.b32.xlu0 %v833, 16
      %v3944 = vpop.permute.xlu0 %3943
      %3945 = vrot.lane.b32.xlu0 %v834, 16
      %v3946 = vpop.permute.xlu0 %3945
      %3947 = vrot.lane.b32.xlu0 %v835, 16
      %v3948 = vpop.permute.xlu0 %3947
      %3949 = vrot.lane.b32.xlu0 %v836, 16
      %v3950 = vpop.permute.xlu0 %3949
      %3951 = vrot.lane.b32.xlu0 %v837, 16
      %v3952 = vpop.permute.xlu0 %3951
      %3953 = vrot.lane.b32.xlu0 %v838, 16
      %v3954 = vpop.permute.xlu0 %3953
      %3955 = vrot.lane.b32.xlu0 %v839, 16
      %v3956 = vpop.permute.xlu0 %3955
      %3957 = vrot.lane.b32.xlu0 %v840, 16
      %v3958 = vpop.permute.xlu0 %3957
      %3959 = vrot.lane.b32.xlu0 %v841, 16
      %v3960 = vpop.permute.xlu0 %3959
      %3961 = vrot.lane.b32.xlu0 %v842, 16
      %v3962 = vpop.permute.xlu0 %3961
      %3963 = vrot.lane.b32.xlu0 %v843, 16
      %v3964 = vpop.permute.xlu0 %3963
      %3965 = vrot.lane.b32.xlu0 %v844, 16
      %v3966 = vpop.permute.xlu0 %3965
      %3967 = vrot.lane.b32.xlu0 %v845, 16
      %v3968 = vpop.permute.xlu0 %3967
      %3969 = vrot.lane.b32.xlu0 %v846, 16
      %v3970 = vpop.permute.xlu0 %3969
      %3971 = vrot.lane.b32.xlu0 %v847, 16
      %v3972 = vpop.permute.xlu0 %3971
      %3973 = vrot.lane.b32.xlu0 %v848, 16
      %v3974 = vpop.permute.xlu0 %3973
      %3975 = vrot.lane.b32.xlu0 %v849, 16
      %v3976 = vpop.permute.xlu0 %3975
      %3977 = vrot.lane.b32.xlu0 %v850, 16
      %v3978 = vpop.permute.xlu0 %3977
      %3979 = vrot.lane.b32.xlu0 %v851, 16
      %v3980 = vpop.permute.xlu0 %3979
      %3981 = vrot.lane.b32.xlu0 %v852, 16
      %v3982 = vpop.permute.xlu0 %3981
      %3983 = vrot.lane.b32.xlu0 %v853, 16
      %v3984 = vpop.permute.xlu0 %3983
      %3985 = vrot.lane.b32.xlu0 %v854, 16
      %v3986 = vpop.permute.xlu0 %3985
      %3987 = vrot.lane.b32.xlu0 %v855, 16
      %v3988 = vpop.permute.xlu0 %3987
      %3989 = vrot.lane.b32.xlu0 %v856, 16
      %v3990 = vpop.permute.xlu0 %3989
      %3991 = vrot.lane.b32.xlu0 %v857, 16
      %v3992 = vpop.permute.xlu0 %3991
      %3993 = vrot.lane.b32.xlu0 %v858, 16
      %v3994 = vpop.permute.xlu0 %3993
      %3995 = vrot.lane.b32.xlu0 %v859, 16
      %v3996 = vpop.permute.xlu0 %3995
      %3997 = vrot.lane.b32.xlu0 %v860, 16
      %v3998 = vpop.permute.xlu0 %3997
      %3999 = vrot.lane.b32.xlu0 %v861, 16
      %v4000 = vpop.permute.xlu0 %3999
      %vm4033 = vcmask 125952
      %4034 = vst.msk [vmem:[%s1190 + $0x4] sm:$0xf] %vm4033, %v3938
      %4035 = vst.msk [vmem:[%s1190 + $0x8] sm:$0xf] %vm4033, %v3940
      %4036 = vst.msk [vmem:[%s1190 + $0x14] sm:$0xf] %vm4033, %v3942
      %4037 = vst.msk [vmem:[%s1190 + $0x18] sm:$0xf] %vm4033, %v3944
      %4038 = vst.msk [vmem:[%s1190 + $0x24] sm:$0xf] %vm4033, %v3946
      %4039 = vst.msk [vmem:[%s1190 + $0x28] sm:$0xf] %vm4033, %v3948
      %4040 = vst.msk [vmem:[%s1190 + $0x34] sm:$0xf] %vm4033, %v3950
      %4041 = vst.msk [vmem:[%s1190 + $0x38] sm:$0xf] %vm4033, %v3952
      %4042 = vst.msk [vmem:[%s1190 + $0x44] sm:$0xf] %vm4033, %v3954
      %4043 = vst.msk [vmem:[%s1190 + $0x48] sm:$0xf] %vm4033, %v3956
      %4044 = vst.msk [vmem:[%s1190 + $0x54] sm:$0xf] %vm4033, %v3958
      %4045 = vst.msk [vmem:[%s1190 + $0x58] sm:$0xf] %vm4033, %v3960
      %4046 = vst.msk [vmem:[%s1190 + $0x64] sm:$0xf] %vm4033, %v3962
      %4047 = vst.msk [vmem:[%s1190 + $0x68] sm:$0xf] %vm4033, %v3964
      %4048 = vst.msk [vmem:[%s1190 + $0x74] sm:$0xf] %vm4033, %v3966
      %4049 = vst.msk [vmem:[%s1190 + $0x78] sm:$0xf] %vm4033, %v3968
      %4050 = vst.msk [vmem:[%s1190 + $0x84] sm:$0xf] %vm4033, %v3970
      %4051 = vst.msk [vmem:[%s1190 + $0x88] sm:$0xf] %vm4033, %v3972
      %4052 = vst.msk [vmem:[%s1190 + $0x94] sm:$0xf] %vm4033, %v3974
      %4053 = vst.msk [vmem:[%s1190 + $0x98] sm:$0xf] %vm4033, %v3976
      %4054 = vst.msk [vmem:[%s1190 + $0xa4] sm:$0xf] %vm4033, %v3978
      %4055 = vst.msk [vmem:[%s1190 + $0xa8] sm:$0xf] %vm4033, %v3980
      %4056 = vst.msk [vmem:[%s1190 + $0xb4] sm:$0xf] %vm4033, %v3982
      %4057 = vst.msk [vmem:[%s1190 + $0xb8] sm:$0xf] %vm4033, %v3984
      %4058 = vst.msk [vmem:[%s1190 + $0xc4] sm:$0xf] %vm4033, %v3986
      %4059 = vst.msk [vmem:[%s1190 + $0xc8] sm:$0xf] %vm4033, %v3988
      %4060 = vst.msk [vmem:[%s1190 + $0xd4] sm:$0xf] %vm4033, %v3990
      %4061 = vst.msk [vmem:[%s1190 + $0xd8] sm:$0xf] %vm4033, %v3992
      %4062 = vst.msk [vmem:[%s1190 + $0xe4] sm:$0xf] %vm4033, %v3994
      %4063 = vst.msk [vmem:[%s1190 + $0xe8] sm:$0xf] %vm4033, %v3996
      %4064 = vst.msk [vmem:[%s1190 + $0xf4] sm:$0xf] %vm4033, %v3998
      %4065 = vst.msk [vmem:[%s1190 + $0xf8] sm:$0xf] %vm4033, %v4000
      %v4066 = vld [vmem:[#allocation2] sm:$0x8]
      %v4067 = vld [vmem:[#allocation2 + $0x4] sm:$0xf]
      %v4068 = vld [vmem:[#allocation2 + $0x8] sm:$0xf]
      %v4069 = vld [vmem:[#allocation2 + $0x10] sm:$0x8]
      %v4070 = vld [vmem:[#allocation2 + $0x14] sm:$0xf]
      %v4071 = vld [vmem:[#allocation2 + $0x18] sm:$0xf]
      %v4072 = vld [vmem:[#allocation2 + $0x20] sm:$0x8]
      %v4073 = vld [vmem:[#allocation2 + $0x24] sm:$0xf]
      %v4074 = vld [vmem:[#allocation2 + $0x28] sm:$0xf]
      %v4075 = vld [vmem:[#allocation2 + $0x30] sm:$0x8]
      %v4076 = vld [vmem:[#allocation2 + $0x34] sm:$0xf]
      %v4077 = vld [vmem:[#allocation2 + $0x38] sm:$0xf]
      %v4078 = vld [vmem:[#allocation2 + $0x40] sm:$0x8]
      %v4079 = vld [vmem:[#allocation2 + $0x44] sm:$0xf]
      %v4080 = vld [vmem:[#allocation2 + $0x48] sm:$0xf]
      %v4081 = vld [vmem:[#allocation2 + $0x50] sm:$0x8]
      %v4082 = vld [vmem:[#allocation2 + $0x54] sm:$0xf]
      %v4083 = vld [vmem:[#allocation2 + $0x58] sm:$0xf]
      %v4084 = vld [vmem:[#allocation2 + $0x60] sm:$0x8]
      %v4085 = vld [vmem:[#allocation2 + $0x64] sm:$0xf]
      %v4086 = vld [vmem:[#allocation2 + $0x68] sm:$0xf]
      %v4087 = vld [vmem:[#allocation2 + $0x70] sm:$0x8]
      %v4088 = vld [vmem:[#allocation2 + $0x74] sm:$0xf]
      %v4089 = vld [vmem:[#allocation2 + $0x78] sm:$0xf]
      %v4090 = vld [vmem:[#allocation2 + $0x80] sm:$0x8]
      %v4091 = vld [vmem:[#allocation2 + $0x84] sm:$0xf]
      %v4092 = vld [vmem:[#allocation2 + $0x88] sm:$0xf]
      %v4093 = vld [vmem:[#allocation2 + $0x90] sm:$0x8]
      %v4094 = vld [vmem:[#allocation2 + $0x94] sm:$0xf]
      %v4095 = vld [vmem:[#allocation2 + $0x98] sm:$0xf]
      %v4096 = vld [vmem:[#allocation2 + $0xa0] sm:$0x8]
      %v4097 = vld [vmem:[#allocation2 + $0xa4] sm:$0xf]
      %v4098 = vld [vmem:[#allocation2 + $0xa8] sm:$0xf]
      %v4099 = vld [vmem:[#allocation2 + $0xb0] sm:$0x8]
      %v4100 = vld [vmem:[#allocation2 + $0xb4] sm:$0xf]
      %v4101 = vld [vmem:[#allocation2 + $0xb8] sm:$0xf]
      %v4102 = vld [vmem:[#allocation2 + $0xc0] sm:$0x8]
      %v4103 = vld [vmem:[#allocation2 + $0xc4] sm:$0xf]
      %v4104 = vld [vmem:[#allocation2 + $0xc8] sm:$0xf]
      %v4105 = vld [vmem:[#allocation2 + $0xd0] sm:$0x8]
      %v4106 = vld [vmem:[#allocation2 + $0xd4] sm:$0xf]
      %v4107 = vld [vmem:[#allocation2 + $0xd8] sm:$0xf]
      %v4108 = vld [vmem:[#allocation2 + $0xe0] sm:$0x8]
      %v4109 = vld [vmem:[#allocation2 + $0xe4] sm:$0xf]
      %v4110 = vld [vmem:[#allocation2 + $0xe8] sm:$0xf]
      %v4111 = vld [vmem:[#allocation2 + $0xf0] sm:$0x8]
      %v4112 = vld [vmem:[#allocation2 + $0xf4] sm:$0xf]
      %v4113 = vld [vmem:[#allocation2 + $0xf8] sm:$0xf]
      %v4114 = vld [vmem:[#allocation2 + $0x100] sm:$0x8]
      %v4115 = vld [vmem:[#allocation2 + $0x104] sm:$0xf]
      %v4116 = vld [vmem:[#allocation2 + $0x108] sm:$0xf]
      %v4117 = vld [vmem:[#allocation2 + $0x110] sm:$0x8]
      %v4118 = vld [vmem:[#allocation2 + $0x114] sm:$0xf]
      %v4119 = vld [vmem:[#allocation2 + $0x118] sm:$0xf]
      %v4121 = vshrl.u32 %v4066, 16
      %v4123 = vrot.slane %v4121, 7
      %v4124 = vrot.slane %v4123, 4
      %v4126 = vshrl.u32 %v4067, 16
      %v4128 = vrot.slane %v4126, 7
      %v4129 = vshll.u32 %v4067, 16
      %v4131 = vor.u32 %v4128, %v4129
      %v4132 = vsel %vm1278, %v4124, %v4131
      %v4133 = vrot.slane %v4128, 4
      %v4135 = vshrl.u32 %v4068, 16
      %v4137 = vrot.slane %v4135, 7
      %v4138 = vshll.u32 %v4068, 16
      %v4140 = vor.u32 %v4137, %v4138
      %v4141 = vsel %vm1278, %v4133, %v4140
      %v4143 = vshrl.u32 %v4069, 16
      %v4145 = vrot.slane %v4143, 7
      %v4146 = vrot.slane %v4145, 4
      %v4148 = vshrl.u32 %v4070, 16
      %v4150 = vrot.slane %v4148, 7
      %v4151 = vshll.u32 %v4070, 16
      %v4153 = vor.u32 %v4150, %v4151
      %v4154 = vsel %vm1278, %v4146, %v4153
      %v4155 = vrot.slane %v4150, 4
      %v4157 = vshrl.u32 %v4071, 16
      %v4159 = vrot.slane %v4157, 7
      %v4160 = vshll.u32 %v4071, 16
      %v4162 = vor.u32 %v4159, %v4160
      %v4163 = vsel %vm1278, %v4155, %v4162
      %v4165 = vshrl.u32 %v4072, 16
      %v4167 = vrot.slane %v4165, 7
      %v4168 = vrot.slane %v4167, 4
      %v4170 = vshrl.u32 %v4073, 16
      %v4172 = vrot.slane %v4170, 7
      %v4173 = vshll.u32 %v4073, 16
      %v4175 = vor.u32 %v4172, %v4173
      %v4176 = vsel %vm1278, %v4168, %v4175
      %v4177 = vrot.slane %v4172, 4
      %v4179 = vshrl.u32 %v4074, 16
      %v4181 = vrot.slane %v4179, 7
      %v4182 = vshll.u32 %v4074, 16
      %v4184 = vor.u32 %v4181, %v4182
      %v4185 = vsel %vm1278, %v4177, %v4184
      %v4187 = vshrl.u32 %v4075, 16
      %v4189 = vrot.slane %v4187, 7
      %v4190 = vrot.slane %v4189, 4
      %v4192 = vshrl.u32 %v4076, 16
      %v4194 = vrot.slane %v4192, 7
      %v4195 = vshll.u32 %v4076, 16
      %v4197 = vor.u32 %v4194, %v4195
      %v4198 = vsel %vm1278, %v4190, %v4197
      %v4199 = vrot.slane %v4194, 4
      %v4201 = vshrl.u32 %v4077, 16
      %v4203 = vrot.slane %v4201, 7
      %v4204 = vshll.u32 %v4077, 16
      %v4206 = vor.u32 %v4203, %v4204
      %v4207 = vsel %vm1278, %v4199, %v4206
      %v4209 = vshrl.u32 %v4078, 16
      %v4211 = vrot.slane %v4209, 7
      %v4212 = vrot.slane %v4211, 4
      %v4214 = vshrl.u32 %v4079, 16
      %v4216 = vrot.slane %v4214, 7
      %v4217 = vshll.u32 %v4079, 16
      %v4219 = vor.u32 %v4216, %v4217
      %v4220 = vsel %vm1278, %v4212, %v4219
      %v4221 = vrot.slane %v4216, 4
      %v4223 = vshrl.u32 %v4080, 16
      %v4225 = vrot.slane %v4223, 7
      %v4226 = vshll.u32 %v4080, 16
      %v4228 = vor.u32 %v4225, %v4226
      %v4229 = vsel %vm1278, %v4221, %v4228
      %v4231 = vshrl.u32 %v4081, 16
      %v4233 = vrot.slane %v4231, 7
      %v4234 = vrot.slane %v4233, 4
      %v4236 = vshrl.u32 %v4082, 16
      %v4238 = vrot.slane %v4236, 7
      %v4239 = vshll.u32 %v4082, 16
      %v4241 = vor.u32 %v4238, %v4239
      %v4242 = vsel %vm1278, %v4234, %v4241
      %v4243 = vrot.slane %v4238, 4
      %v4245 = vshrl.u32 %v4083, 16
      %v4247 = vrot.slane %v4245, 7
      %v4248 = vshll.u32 %v4083, 16
      %v4250 = vor.u32 %v4247, %v4248
      %v4251 = vsel %vm1278, %v4243, %v4250
      %v4253 = vshrl.u32 %v4084, 16
      %v4255 = vrot.slane %v4253, 7
      %v4256 = vrot.slane %v4255, 4
      %v4258 = vshrl.u32 %v4085, 16
      %v4260 = vrot.slane %v4258, 7
      %v4261 = vshll.u32 %v4085, 16
      %v4263 = vor.u32 %v4260, %v4261
      %v4264 = vsel %vm1278, %v4256, %v4263
      %v4265 = vrot.slane %v4260, 4
      %v4267 = vshrl.u32 %v4086, 16
      %v4269 = vrot.slane %v4267, 7
      %v4270 = vshll.u32 %v4086, 16
      %v4272 = vor.u32 %v4269, %v4270
      %v4273 = vsel %vm1278, %v4265, %v4272
      %v4275 = vshrl.u32 %v4087, 16
      %v4277 = vrot.slane %v4275, 7
      %v4278 = vrot.slane %v4277, 4
      %v4280 = vshrl.u32 %v4088, 16
      %v4282 = vrot.slane %v4280, 7
      %v4283 = vshll.u32 %v4088, 16
      %v4285 = vor.u32 %v4282, %v4283
      %v4286 = vsel %vm1278, %v4278, %v4285
      %v4287 = vrot.slane %v4282, 4
      %v4289 = vshrl.u32 %v4089, 16
      %v4291 = vrot.slane %v4289, 7
      %v4292 = vshll.u32 %v4089, 16
      %v4294 = vor.u32 %v4291, %v4292
      %v4295 = vsel %vm1278, %v4287, %v4294
      %v4297 = vshrl.u32 %v4090, 16
      %v4299 = vrot.slane %v4297, 7
      %v4300 = vrot.slane %v4299, 4
      %v4302 = vshrl.u32 %v4091, 16
      %v4304 = vrot.slane %v4302, 7
      %v4305 = vshll.u32 %v4091, 16
      %v4307 = vor.u32 %v4304, %v4305
      %v4308 = vsel %vm1278, %v4300, %v4307
      %v4309 = vrot.slane %v4304, 4
      %v4311 = vshrl.u32 %v4092, 16
      %v4313 = vrot.slane %v4311, 7
      %v4314 = vshll.u32 %v4092, 16
      %v4316 = vor.u32 %v4313, %v4314
      %v4317 = vsel %vm1278, %v4309, %v4316
      %v4319 = vshrl.u32 %v4093, 16
      %v4321 = vrot.slane %v4319, 7
      %v4322 = vrot.slane %v4321, 4
      %v4324 = vshrl.u32 %v4094, 16
      %v4326 = vrot.slane %v4324, 7
      %v4327 = vshll.u32 %v4094, 16
      %v4329 = vor.u32 %v4326, %v4327
      %v4330 = vsel %vm1278, %v4322, %v4329
      %v4331 = vrot.slane %v4326, 4
      %v4333 = vshrl.u32 %v4095, 16
      %v4335 = vrot.slane %v4333, 7
      %v4336 = vshll.u32 %v4095, 16
      %v4338 = vor.u32 %v4335, %v4336
      %v4339 = vsel %vm1278, %v4331, %v4338
      %v4341 = vshrl.u32 %v4096, 16
      %v4343 = vrot.slane %v4341, 7
      %v4344 = vrot.slane %v4343, 4
      %v4346 = vshrl.u32 %v4097, 16
      %v4348 = vrot.slane %v4346, 7
      %v4349 = vshll.u32 %v4097, 16
      %v4351 = vor.u32 %v4348, %v4349
      %v4352 = vsel %vm1278, %v4344, %v4351
      %v4353 = vrot.slane %v4348, 4
      %v4355 = vshrl.u32 %v4098, 16
      %v4357 = vrot.slane %v4355, 7
      %v4358 = vshll.u32 %v4098, 16
      %v4360 = vor.u32 %v4357, %v4358
      %v4361 = vsel %vm1278, %v4353, %v4360
      %v4363 = vshrl.u32 %v4099, 16
      %v4365 = vrot.slane %v4363, 7
      %v4366 = vrot.slane %v4365, 4
      %v4368 = vshrl.u32 %v4100, 16
      %v4370 = vrot.slane %v4368, 7
      %v4371 = vshll.u32 %v4100, 16
      %v4373 = vor.u32 %v4370, %v4371
      %v4374 = vsel %vm1278, %v4366, %v4373
      %v4375 = vrot.slane %v4370, 4
      %v4377 = vshrl.u32 %v4101, 16
      %v4379 = vrot.slane %v4377, 7
      %v4380 = vshll.u32 %v4101, 16
      %v4382 = vor.u32 %v4379, %v4380
      %v4383 = vsel %vm1278, %v4375, %v4382
      %v4385 = vshrl.u32 %v4102, 16
      %v4387 = vrot.slane %v4385, 7
      %v4388 = vrot.slane %v4387, 4
      %v4390 = vshrl.u32 %v4103, 16
      %v4392 = vrot.slane %v4390, 7
      %v4393 = vshll.u32 %v4103, 16
      %v4395 = vor.u32 %v4392, %v4393
      %v4396 = vsel %vm1278, %v4388, %v4395
      %v4397 = vrot.slane %v4392, 4
      %v4399 = vshrl.u32 %v4104, 16
      %v4401 = vrot.slane %v4399, 7
      %v4402 = vshll.u32 %v4104, 16
      %v4404 = vor.u32 %v4401, %v4402
      %v4405 = vsel %vm1278, %v4397, %v4404
      %v4407 = vshrl.u32 %v4105, 16
      %v4409 = vrot.slane %v4407, 7
      %v4410 = vrot.slane %v4409, 4
      %v4412 = vshrl.u32 %v4106, 16
      %v4414 = vrot.slane %v4412, 7
      %v4415 = vshll.u32 %v4106, 16
      %v4417 = vor.u32 %v4414, %v4415
      %v4418 = vsel %vm1278, %v4410, %v4417
      %v4419 = vrot.slane %v4414, 4
      %v4421 = vshrl.u32 %v4107, 16
      %v4423 = vrot.slane %v4421, 7
      %v4424 = vshll.u32 %v4107, 16
      %v4426 = vor.u32 %v4423, %v4424
      %v4427 = vsel %vm1278, %v4419, %v4426
      %v4429 = vshrl.u32 %v4108, 16
      %v4431 = vrot.slane %v4429, 7
      %v4432 = vrot.slane %v4431, 4
      %v4434 = vshrl.u32 %v4109, 16
      %v4436 = vrot.slane %v4434, 7
      %v4437 = vshll.u32 %v4109, 16
      %v4439 = vor.u32 %v4436, %v4437
      %v4440 = vsel %vm1278, %v4432, %v4439
      %v4441 = vrot.slane %v4436, 4
      %v4443 = vshrl.u32 %v4110, 16
      %v4445 = vrot.slane %v4443, 7
      %v4446 = vshll.u32 %v4110, 16
      %v4448 = vor.u32 %v4445, %v4446
      %v4449 = vsel %vm1278, %v4441, %v4448
      %v4451 = vshrl.u32 %v4111, 16
      %v4453 = vrot.slane %v4451, 7
      %v4454 = vrot.slane %v4453, 4
      %v4456 = vshrl.u32 %v4112, 16
      %v4458 = vrot.slane %v4456, 7
      %v4459 = vshll.u32 %v4112, 16
      %v4461 = vor.u32 %v4458, %v4459
      %v4462 = vsel %vm1278, %v4454, %v4461
      %v4463 = vrot.slane %v4458, 4
      %v4465 = vshrl.u32 %v4113, 16
      %v4467 = vrot.slane %v4465, 7
      %v4468 = vshll.u32 %v4113, 16
      %v4470 = vor.u32 %v4467, %v4468
      %v4471 = vsel %vm1278, %v4463, %v4470
      %v4472 = vunpack.c.l.b16 %v4132
      %v4473 = vunpack.c.l.b16 %v4141
      %v4474 = vunpack.c.l.b16 %v4154
      %v4475 = vunpack.c.l.b16 %v4163
      %v4476 = vunpack.c.l.b16 %v4176
      %v4477 = vunpack.c.l.b16 %v4185
      %v4478 = vunpack.c.l.b16 %v4198
      %v4479 = vunpack.c.l.b16 %v4207
      %v4480 = vunpack.c.l.b16 %v4220
      %v4481 = vunpack.c.l.b16 %v4229
      %v4482 = vunpack.c.l.b16 %v4242
      %v4483 = vunpack.c.l.b16 %v4251
      %v4484 = vunpack.c.l.b16 %v4264
      %v4485 = vunpack.c.l.b16 %v4273
      %v4486 = vunpack.c.l.b16 %v4286
      %v4487 = vunpack.c.l.b16 %v4295
      %v4488 = vunpack.c.l.b16 %v4308
      %v4489 = vunpack.c.l.b16 %v4317
      %v4490 = vunpack.c.l.b16 %v4330
      %v4491 = vunpack.c.l.b16 %v4339
      %v4492 = vunpack.c.l.b16 %v4352
      %v4493 = vunpack.c.l.b16 %v4361
      %v4494 = vunpack.c.l.b16 %v4374
      %v4495 = vunpack.c.l.b16 %v4383
      %v4496 = vunpack.c.l.b16 %v4396
      %v4497 = vunpack.c.l.b16 %v4405
      %v4498 = vunpack.c.l.b16 %v4418
      %v4499 = vunpack.c.l.b16 %v4427
      %v4500 = vunpack.c.l.b16 %v4440
      %v4501 = vunpack.c.l.b16 %v4449
      %v4502 = vunpack.c.l.b16 %v4462
      %v4503 = vunpack.c.l.b16 %v4471
      %v4504 = vpack.c.b16 %v4473, %v4472
      %v4505 = vpack.c.b16 %v4475, %v4474
      %v4506 = vpack.c.b16 %v4477, %v4476
      %v4507 = vpack.c.b16 %v4479, %v4478
      %v4508 = vpack.c.b16 %v4481, %v4480
      %v4509 = vpack.c.b16 %v4483, %v4482
      %v4510 = vpack.c.b16 %v4485, %v4484
      %v4511 = vpack.c.b16 %v4487, %v4486
      %v4512 = vpack.c.b16 %v4489, %v4488
      %v4513 = vpack.c.b16 %v4491, %v4490
      %v4514 = vpack.c.b16 %v4493, %v4492
      %v4515 = vpack.c.b16 %v4495, %v4494
      %v4516 = vpack.c.b16 %v4497, %v4496
      %v4517 = vpack.c.b16 %v4499, %v4498
      %v4518 = vpack.c.b16 %v4501, %v4500
      %v4519 = vpack.c.b16 %v4503, %v4502
      %4536 = vst.msk [vmem:[#allocation3] sm:$0xff] %vm2752, %v4504
      %4537 = vst.msk [vmem:[#allocation3 + $0x20] sm:$0xff] %vm2752, %v4505
      %4538 = vst.msk [vmem:[#allocation3 + $0x40] sm:$0xff] %vm2752, %v4506
      %4539 = vst.msk [vmem:[#allocation3 + $0x60] sm:$0xff] %vm2752, %v4507
      %4540 = vst.msk [vmem:[#allocation3 + $0x80] sm:$0xff] %vm2752, %v4508
      %4541 = vst.msk [vmem:[#allocation3 + $0xa0] sm:$0xff] %vm2752, %v4509
      %4542 = vst.msk [vmem:[#allocation3 + $0xc0] sm:$0xff] %vm2752, %v4510
      %4543 = vst.msk [vmem:[#allocation3 + $0xe0] sm:$0xff] %vm2752, %v4511
      %4544 = vst.msk [vmem:[#allocation3 + $0x100] sm:$0xff] %vm2752, %v4512
      %4545 = vst.msk [vmem:[#allocation3 + $0x120] sm:$0xff] %vm2752, %v4513
      %4546 = vst.msk [vmem:[#allocation3 + $0x140] sm:$0xff] %vm2752, %v4514
      %4547 = vst.msk [vmem:[#allocation3 + $0x160] sm:$0xff] %vm2752, %v4515
      %4548 = vst.msk [vmem:[#allocation3 + $0x180] sm:$0xff] %vm2752, %v4516
      %4549 = vst.msk [vmem:[#allocation3 + $0x1a0] sm:$0xff] %vm2752, %v4517
      %4550 = vst.msk [vmem:[#allocation3 + $0x1c0] sm:$0xff] %vm2752, %v4518
      %4551 = vst.msk [vmem:[#allocation3 + $0x1e0] sm:$0xff] %vm2752, %v4519
      %v4553 = vshrl.u32 %v4114, 16
      %v4555 = vrot.slane %v4553, 7
      %v4556 = vrot.slane %v4555, 4
      %v4558 = vshrl.u32 %v4115, 16
      %v4560 = vrot.slane %v4558, 7
      %v4561 = vshll.u32 %v4115, 16
      %v4563 = vor.u32 %v4560, %v4561
      %v4564 = vsel %vm1278, %v4556, %v4563
      %v4565 = vrot.slane %v4560, 4
      %v4567 = vshrl.u32 %v4116, 16
      %v4569 = vrot.slane %v4567, 7
      %v4570 = vshll.u32 %v4116, 16
      %v4572 = vor.u32 %v4569, %v4570
      %v4573 = vsel %vm1278, %v4565, %v4572
      %v4574 = vunpack.c.l.b16 %v4564
      %v4575 = vunpack.c.l.b16 %v4573
      %v4576 = vpack.c.b16 %v4575, %v4574
      %4577 = vrot.lane.b32.xlu0 %v4505, 48
      %v4578 = vpop.permute.xlu0 %4577
      %4579 = vrot.lane.b32.xlu0 %v4506, 48
      %v4580 = vpop.permute.xlu0 %4579
      %4581 = vrot.lane.b32.xlu0 %v4507, 48
      %v4582 = vpop.permute.xlu0 %4581
      %4583 = vrot.lane.b32.xlu0 %v4508, 48
      %v4584 = vpop.permute.xlu0 %4583
      %4585 = vrot.lane.b32.xlu0 %v4509, 48
      %v4586 = vpop.permute.xlu0 %4585
      %4587 = vrot.lane.b32.xlu0 %v4510, 48
      %v4588 = vpop.permute.xlu0 %4587
      %4589 = vrot.lane.b32.xlu0 %v4511, 48
      %v4590 = vpop.permute.xlu0 %4589
      %4591 = vrot.lane.b32.xlu0 %v4512, 48
      %v4592 = vpop.permute.xlu0 %4591
      %4593 = vrot.lane.b32.xlu0 %v4513, 48
      %v4594 = vpop.permute.xlu0 %4593
      %4595 = vrot.lane.b32.xlu0 %v4514, 48
      %v4596 = vpop.permute.xlu0 %4595
      %4597 = vrot.lane.b32.xlu0 %v4515, 48
      %v4598 = vpop.permute.xlu0 %4597
      %4599 = vrot.lane.b32.xlu0 %v4516, 48
      %v4600 = vpop.permute.xlu0 %4599
      %4601 = vrot.lane.b32.xlu0 %v4517, 48
      %v4602 = vpop.permute.xlu0 %4601
      %4603 = vrot.lane.b32.xlu0 %v4518, 48
      %v4604 = vpop.permute.xlu0 %4603
      %4605 = vrot.lane.b32.xlu0 %v4519, 48
      %v4606 = vpop.permute.xlu0 %4605
      %4607 = vrot.lane.b32.xlu0 %v4576, 48
      %v4608 = vpop.permute.xlu0 %4607
      %vm4625 = vcmask 523648
      %4626 = vst.msk [vmem:[#allocation3] sm:$0xff] %vm4625, %v4578
      %4627 = vst.msk [vmem:[#allocation3 + $0x20] sm:$0xff] %vm4625, %v4580
      %4628 = vst.msk [vmem:[#allocation3 + $0x40] sm:$0xff] %vm4625, %v4582
      %4629 = vst.msk [vmem:[#allocation3 + $0x60] sm:$0xff] %vm4625, %v4584
      %4630 = vst.msk [vmem:[#allocation3 + $0x80] sm:$0xff] %vm4625, %v4586
      %4631 = vst.msk [vmem:[#allocation3 + $0xa0] sm:$0xff] %vm4625, %v4588
      %4632 = vst.msk [vmem:[#allocation3 + $0xc0] sm:$0xff] %vm4625, %v4590
      %4633 = vst.msk [vmem:[#allocation3 + $0xe0] sm:$0xff] %vm4625, %v4592
      %4634 = vst.msk [vmem:[#allocation3 + $0x100] sm:$0xff] %vm4625, %v4594
      %4635 = vst.msk [vmem:[#allocation3 + $0x120] sm:$0xff] %vm4625, %v4596
      %4636 = vst.msk [vmem:[#allocation3 + $0x140] sm:$0xff] %vm4625, %v4598
      %4637 = vst.msk [vmem:[#allocation3 + $0x160] sm:$0xff] %vm4625, %v4600
      %4638 = vst.msk [vmem:[#allocation3 + $0x180] sm:$0xff] %vm4625, %v4602
      %4639 = vst.msk [vmem:[#allocation3 + $0x1a0] sm:$0xff] %vm4625, %v4604
      %4640 = vst.msk [vmem:[#allocation3 + $0x1c0] sm:$0xff] %vm4625, %v4606
      %4641 = vst.msk [vmem:[#allocation3 + $0x1e0] sm:$0xff] %vm4625, %v4608
      %v4643 = vshrl.u32 %v4117, 16
      %v4645 = vrot.slane %v4643, 7
      %v4646 = vrot.slane %v4645, 4
      %v4648 = vshrl.u32 %v4118, 16
      %v4650 = vrot.slane %v4648, 7
      %v4651 = vshll.u32 %v4118, 16
      %v4653 = vor.u32 %v4650, %v4651
      %v4654 = vsel %vm1278, %v4646, %v4653
      %v4655 = vrot.slane %v4650, 4
      %v4657 = vshrl.u32 %v4119, 16
      %v4659 = vrot.slane %v4657, 7
      %v4660 = vshll.u32 %v4119, 16
      %v4662 = vor.u32 %v4659, %v4660
      %v4663 = vsel %vm1278, %v4655, %v4662
      %v4664 = vunpack.c.l.b16 %v4654
      %v4665 = vunpack.c.l.b16 %v4663
      %v4666 = vpack.c.b16 %v4665, %v4664
      %4667 = vrot.lane.b32.xlu0 %v4506, 96
      %v4668 = vpop.permute.xlu0 %4667
      %4669 = vrot.lane.b32.xlu0 %v4507, 96
      %v4670 = vpop.permute.xlu0 %4669
      %4671 = vrot.lane.b32.xlu0 %v4508, 96
      %v4672 = vpop.permute.xlu0 %4671
      %4673 = vrot.lane.b32.xlu0 %v4509, 96
      %v4674 = vpop.permute.xlu0 %4673
      %4675 = vrot.lane.b32.xlu0 %v4510, 96
      %v4676 = vpop.permute.xlu0 %4675
      %4677 = vrot.lane.b32.xlu0 %v4511, 96
      %v4678 = vpop.permute.xlu0 %4677
      %4679 = vrot.lane.b32.xlu0 %v4512, 96
      %v4680 = vpop.permute.xlu0 %4679
      %4681 = vrot.lane.b32.xlu0 %v4513, 96
      %v4682 = vpop.permute.xlu0 %4681
      %4683 = vrot.lane.b32.xlu0 %v4514, 96
      %v4684 = vpop.permute.xlu0 %4683
      %4685 = vrot.lane.b32.xlu0 %v4515, 96
      %v4686 = vpop.permute.xlu0 %4685
      %4687 = vrot.lane.b32.xlu0 %v4516, 96
      %v4688 = vpop.permute.xlu0 %4687
      %4689 = vrot.lane.b32.xlu0 %v4517, 96
      %v4690 = vpop.permute.xlu0 %4689
      %4691 = vrot.lane.b32.xlu0 %v4518, 96
      %v4692 = vpop.permute.xlu0 %4691
      %4693 = vrot.lane.b32.xlu0 %v4519, 96
      %v4694 = vpop.permute.xlu0 %4693
      %4695 = vrot.lane.b32.xlu0 %v4576, 96
      %v4696 = vpop.permute.xlu0 %4695
      %4697 = vrot.lane.b32.xlu0 %v4666, 96
      %v4698 = vpop.permute.xlu0 %4697
      %vm4715 = vcmask 917248
      %4716 = vst.msk [vmem:[#allocation3] sm:$0xff] %vm4715, %v4668
      %4717 = vst.msk [vmem:[#allocation3 + $0x20] sm:$0xff] %vm4715, %v4670
      %4718 = vst.msk [vmem:[#allocation3 + $0x40] sm:$0xff] %vm4715, %v4672
      %4719 = vst.msk [vmem:[#allocation3 + $0x60] sm:$0xff] %vm4715, %v4674
      %4720 = vst.msk [vmem:[#allocation3 + $0x80] sm:$0xff] %vm4715, %v4676
      %4721 = vst.msk [vmem:[#allocation3 + $0xa0] sm:$0xff] %vm4715, %v4678
      %4722 = vst.msk [vmem:[#allocation3 + $0xc0] sm:$0xff] %vm4715, %v4680
      %4723 = vst.msk [vmem:[#allocation3 + $0xe0] sm:$0xff] %vm4715, %v4682
      %4724 = vst.msk [vmem:[#allocation3 + $0x100] sm:$0xff] %vm4715, %v4684
      %4725 = vst.msk [vmem:[#allocation3 + $0x120] sm:$0xff] %vm4715, %v4686
      %4726 = vst.msk [vmem:[#allocation3 + $0x140] sm:$0xff] %vm4715, %v4688
      %4727 = vst.msk [vmem:[#allocation3 + $0x160] sm:$0xff] %vm4715, %v4690
      %4728 = vst.msk [vmem:[#allocation3 + $0x180] sm:$0xff] %vm4715, %v4692
      %4729 = vst.msk [vmem:[#allocation3 + $0x1a0] sm:$0xff] %vm4715, %v4694
      %4730 = vst.msk [vmem:[#allocation3 + $0x1c0] sm:$0xff] %vm4715, %v4696
      %4731 = vst.msk [vmem:[#allocation3 + $0x1e0] sm:$0xff] %vm4715, %v4698
      %v4732 = vld [vmem:[#allocation2 + $0x4] sm:$0xf]
      %v4733 = vld [vmem:[#allocation2 + $0x8] sm:$0xf]
      %v4734 = vld [vmem:[#allocation2 + $0x14] sm:$0xf]
      %v4735 = vld [vmem:[#allocation2 + $0x18] sm:$0xf]
      %v4736 = vld [vmem:[#allocation2 + $0x24] sm:$0xf]
      %v4737 = vld [vmem:[#allocation2 + $0x28] sm:$0xf]
      %v4738 = vld [vmem:[#allocation2 + $0x34] sm:$0xf]
      %v4739 = vld [vmem:[#allocation2 + $0x38] sm:$0xf]
      %v4740 = vld [vmem:[#allocation2 + $0x44] sm:$0xf]
      %v4741 = vld [vmem:[#allocation2 + $0x48] sm:$0xf]
      %v4742 = vld [vmem:[#allocation2 + $0x54] sm:$0xf]
      %v4743 = vld [vmem:[#allocation2 + $0x58] sm:$0xf]
      %v4744 = vld [vmem:[#allocation2 + $0x64] sm:$0xf]
      %v4745 = vld [vmem:[#allocation2 + $0x68] sm:$0xf]
      %v4746 = vld [vmem:[#allocation2 + $0x74] sm:$0xf]
      %v4747 = vld [vmem:[#allocation2 + $0x78] sm:$0xf]
      %v4748 = vld [vmem:[#allocation2 + $0x84] sm:$0xf]
      %v4749 = vld [vmem:[#allocation2 + $0x88] sm:$0xf]
      %v4750 = vld [vmem:[#allocation2 + $0x94] sm:$0xf]
      %v4751 = vld [vmem:[#allocation2 + $0x98] sm:$0xf]
      %v4752 = vld [vmem:[#allocation2 + $0xa4] sm:$0xf]
      %v4753 = vld [vmem:[#allocation2 + $0xa8] sm:$0xf]
      %v4754 = vld [vmem:[#allocation2 + $0xb4] sm:$0xf]
      %v4755 = vld [vmem:[#allocation2 + $0xb8] sm:$0xf]
      %v4756 = vld [vmem:[#allocation2 + $0xc4] sm:$0xf]
      %v4757 = vld [vmem:[#allocation2 + $0xc8] sm:$0xf]
      %v4758 = vld [vmem:[#allocation2 + $0xd4] sm:$0xf]
      %v4759 = vld [vmem:[#allocation2 + $0xd8] sm:$0xf]
      %v4760 = vld [vmem:[#allocation2 + $0xe4] sm:$0xf]
      %v4761 = vld [vmem:[#allocation2 + $0xe8] sm:$0xf]
      %v4762 = vld [vmem:[#allocation2 + $0xf4] sm:$0xf]
      %v4763 = vld [vmem:[#allocation2 + $0xf8] sm:$0xf]
      %v4764 = vld [vmem:[#allocation2 + $0x104] sm:$0xf]
      %v4765 = vld [vmem:[#allocation2 + $0x108] sm:$0xf]
      %v4766 = vld [vmem:[#allocation2 + $0x114] sm:$0xf]
      %v4767 = vld [vmem:[#allocation2 + $0x118] sm:$0xf]
      %v4800 = vunpack.c.l.b16 %v4732
      %v4801 = vunpack.c.l.b16 %v4733
      %v4802 = vunpack.c.l.b16 %v4734
      %v4803 = vunpack.c.l.b16 %v4735
      %v4804 = vunpack.c.l.b16 %v4736
      %v4805 = vunpack.c.l.b16 %v4737
      %v4806 = vunpack.c.l.b16 %v4738
      %v4807 = vunpack.c.l.b16 %v4739
      %v4808 = vunpack.c.l.b16 %v4740
      %v4809 = vunpack.c.l.b16 %v4741
      %v4810 = vunpack.c.l.b16 %v4742
      %v4811 = vunpack.c.l.b16 %v4743
      %v4812 = vunpack.c.l.b16 %v4744
      %v4813 = vunpack.c.l.b16 %v4745
      %v4814 = vunpack.c.l.b16 %v4746
      %v4815 = vunpack.c.l.b16 %v4747
      %v4816 = vunpack.c.l.b16 %v4748
      %v4817 = vunpack.c.l.b16 %v4749
      %v4818 = vunpack.c.l.b16 %v4750
      %v4819 = vunpack.c.l.b16 %v4751
      %v4820 = vunpack.c.l.b16 %v4752
      %v4821 = vunpack.c.l.b16 %v4753
      %v4822 = vunpack.c.l.b16 %v4754
      %v4823 = vunpack.c.l.b16 %v4755
      %v4824 = vunpack.c.l.b16 %v4756
      %v4825 = vunpack.c.l.b16 %v4757
      %v4826 = vunpack.c.l.b16 %v4758
      %v4827 = vunpack.c.l.b16 %v4759
      %v4828 = vunpack.c.l.b16 %v4760
      %v4829 = vunpack.c.l.b16 %v4761
      %v4830 = vunpack.c.l.b16 %v4762
      %v4831 = vunpack.c.l.b16 %v4763
      %v4832 = vpack.c.b16 %v4801, %v4800
      %v4833 = vpack.c.b16 %v4803, %v4802
      %v4834 = vpack.c.b16 %v4805, %v4804
      %v4835 = vpack.c.b16 %v4807, %v4806
      %v4836 = vpack.c.b16 %v4809, %v4808
      %v4837 = vpack.c.b16 %v4811, %v4810
      %v4838 = vpack.c.b16 %v4813, %v4812
      %v4839 = vpack.c.b16 %v4815, %v4814
      %v4840 = vpack.c.b16 %v4817, %v4816
      %v4841 = vpack.c.b16 %v4819, %v4818
      %v4842 = vpack.c.b16 %v4821, %v4820
      %v4843 = vpack.c.b16 %v4823, %v4822
      %v4844 = vpack.c.b16 %v4825, %v4824
      %v4845 = vpack.c.b16 %v4827, %v4826
      %v4846 = vpack.c.b16 %v4829, %v4828
      %v4847 = vpack.c.b16 %v4831, %v4830
      %4848 = vrot.lane.b32.xlu0 %v4832, 16
      %v4849 = vpop.permute.xlu0 %4848
      %4850 = vrot.lane.b32.xlu0 %v4833, 16
      %v4851 = vpop.permute.xlu0 %4850
      %4852 = vrot.lane.b32.xlu0 %v4834, 16
      %v4853 = vpop.permute.xlu0 %4852
      %4854 = vrot.lane.b32.xlu0 %v4835, 16
      %v4855 = vpop.permute.xlu0 %4854
      %4856 = vrot.lane.b32.xlu0 %v4836, 16
      %v4857 = vpop.permute.xlu0 %4856
      %4858 = vrot.lane.b32.xlu0 %v4837, 16
      %v4859 = vpop.permute.xlu0 %4858
      %4860 = vrot.lane.b32.xlu0 %v4838, 16
      %v4861 = vpop.permute.xlu0 %4860
      %4862 = vrot.lane.b32.xlu0 %v4839, 16
      %v4863 = vpop.permute.xlu0 %4862
      %4864 = vrot.lane.b32.xlu0 %v4840, 16
      %v4865 = vpop.permute.xlu0 %4864
      %4866 = vrot.lane.b32.xlu0 %v4841, 16
      %v4867 = vpop.permute.xlu0 %4866
      %4868 = vrot.lane.b32.xlu0 %v4842, 16
      %v4869 = vpop.permute.xlu0 %4868
      %4870 = vrot.lane.b32.xlu0 %v4843, 16
      %v4871 = vpop.permute.xlu0 %4870
      %4872 = vrot.lane.b32.xlu0 %v4844, 16
      %v4873 = vpop.permute.xlu0 %4872
      %4874 = vrot.lane.b32.xlu0 %v4845, 16
      %v4875 = vpop.permute.xlu0 %4874
      %4876 = vrot.lane.b32.xlu0 %v4846, 16
      %v4877 = vpop.permute.xlu0 %4876
      %4878 = vrot.lane.b32.xlu0 %v4847, 16
      %v4879 = vpop.permute.xlu0 %4878
      %vm4896 = vcmask 261248
      %4897 = vst.msk [vmem:[#allocation3] sm:$0xff] %vm4896, %v4849
      %4898 = vst.msk [vmem:[#allocation3 + $0x20] sm:$0xff] %vm4896, %v4851
      %4899 = vst.msk [vmem:[#allocation3 + $0x40] sm:$0xff] %vm4896, %v4853
      %4900 = vst.msk [vmem:[#allocation3 + $0x60] sm:$0xff] %vm4896, %v4855
      %4901 = vst.msk [vmem:[#allocation3 + $0x80] sm:$0xff] %vm4896, %v4857
      %4902 = vst.msk [vmem:[#allocation3 + $0xa0] sm:$0xff] %vm4896, %v4859
      %4903 = vst.msk [vmem:[#allocation3 + $0xc0] sm:$0xff] %vm4896, %v4861
      %4904 = vst.msk [vmem:[#allocation3 + $0xe0] sm:$0xff] %vm4896, %v4863
      %4905 = vst.msk [vmem:[#allocation3 + $0x100] sm:$0xff] %vm4896, %v4865
      %4906 = vst.msk [vmem:[#allocation3 + $0x120] sm:$0xff] %vm4896, %v4867
      %4907 = vst.msk [vmem:[#allocation3 + $0x140] sm:$0xff] %vm4896, %v4869
      %4908 = vst.msk [vmem:[#allocation3 + $0x160] sm:$0xff] %vm4896, %v4871
      %4909 = vst.msk [vmem:[#allocation3 + $0x180] sm:$0xff] %vm4896, %v4873
      %4910 = vst.msk [vmem:[#allocation3 + $0x1a0] sm:$0xff] %vm4896, %v4875
      %4911 = vst.msk [vmem:[#allocation3 + $0x1c0] sm:$0xff] %vm4896, %v4877
      %4912 = vst.msk [vmem:[#allocation3 + $0x1e0] sm:$0xff] %vm4896, %v4879
      %v4915 = vunpack.c.l.b16 %v4764
      %v4916 = vunpack.c.l.b16 %v4765
      %v4917 = vpack.c.b16 %v4916, %v4915
      %4918 = vrot.lane.b32.xlu0 %v4833, 64
      %v4919 = vpop.permute.xlu0 %4918
      %4920 = vrot.lane.b32.xlu0 %v4834, 64
      %v4921 = vpop.permute.xlu0 %4920
      %4922 = vrot.lane.b32.xlu0 %v4835, 64
      %v4923 = vpop.permute.xlu0 %4922
      %4924 = vrot.lane.b32.xlu0 %v4836, 64
      %v4925 = vpop.permute.xlu0 %4924
      %4926 = vrot.lane.b32.xlu0 %v4837, 64
      %v4927 = vpop.permute.xlu0 %4926
      %4928 = vrot.lane.b32.xlu0 %v4838, 64
      %v4929 = vpop.permute.xlu0 %4928
      %4930 = vrot.lane.b32.xlu0 %v4839, 64
      %v4931 = vpop.permute.xlu0 %4930
      %4932 = vrot.lane.b32.xlu0 %v4840, 64
      %v4933 = vpop.permute.xlu0 %4932
      %4934 = vrot.lane.b32.xlu0 %v4841, 64
      %v4935 = vpop.permute.xlu0 %4934
      %4936 = vrot.lane.b32.xlu0 %v4842, 64
      %v4937 = vpop.permute.xlu0 %4936
      %4938 = vrot.lane.b32.xlu0 %v4843, 64
      %v4939 = vpop.permute.xlu0 %4938
      %4940 = vrot.lane.b32.xlu0 %v4844, 64
      %v4941 = vpop.permute.xlu0 %4940
      %4942 = vrot.lane.b32.xlu0 %v4845, 64
      %v4943 = vpop.permute.xlu0 %4942
      %4944 = vrot.lane.b32.xlu0 %v4846, 64
      %v4945 = vpop.permute.xlu0 %4944
      %4946 = vrot.lane.b32.xlu0 %v4847, 64
      %v4947 = vpop.permute.xlu0 %4946
      %4948 = vrot.lane.b32.xlu0 %v4917, 64
      %v4949 = vpop.permute.xlu0 %4948
      %vm4966 = vcmask 654848
      %4967 = vst.msk [vmem:[#allocation3] sm:$0xff] %vm4966, %v4919
      %4968 = vst.msk [vmem:[#allocation3 + $0x20] sm:$0xff] %vm4966, %v4921
      %4969 = vst.msk [vmem:[#allocation3 + $0x40] sm:$0xff] %vm4966, %v4923
      %4970 = vst.msk [vmem:[#allocation3 + $0x60] sm:$0xff] %vm4966, %v4925
      %4971 = vst.msk [vmem:[#allocation3 + $0x80] sm:$0xff] %vm4966, %v4927
      %4972 = vst.msk [vmem:[#allocation3 + $0xa0] sm:$0xff] %vm4966, %v4929
      %4973 = vst.msk [vmem:[#allocation3 + $0xc0] sm:$0xff] %vm4966, %v4931
      %4974 = vst.msk [vmem:[#allocation3 + $0xe0] sm:$0xff] %vm4966, %v4933
      %4975 = vst.msk [vmem:[#allocation3 + $0x100] sm:$0xff] %vm4966, %v4935
      %4976 = vst.msk [vmem:[#allocation3 + $0x120] sm:$0xff] %vm4966, %v4937
      %4977 = vst.msk [vmem:[#allocation3 + $0x140] sm:$0xff] %vm4966, %v4939
      %4978 = vst.msk [vmem:[#allocation3 + $0x160] sm:$0xff] %vm4966, %v4941
      %4979 = vst.msk [vmem:[#allocation3 + $0x180] sm:$0xff] %vm4966, %v4943
      %4980 = vst.msk [vmem:[#allocation3 + $0x1a0] sm:$0xff] %vm4966, %v4945
      %4981 = vst.msk [vmem:[#allocation3 + $0x1c0] sm:$0xff] %vm4966, %v4947
      %4982 = vst.msk [vmem:[#allocation3 + $0x1e0] sm:$0xff] %vm4966, %v4949
      %v4985 = vunpack.c.l.b16 %v4766
      %v4986 = vunpack.c.l.b16 %v4767
      %v4987 = vpack.c.b16 %v4986, %v4985
      %4988 = vrot.lane.b32.xlu0 %v4834, 112
      %v4989 = vpop.permute.xlu0 %4988
      %4990 = vrot.lane.b32.xlu0 %v4835, 112
      %v4991 = vpop.permute.xlu0 %4990
      %4992 = vrot.lane.b32.xlu0 %v4836, 112
      %v4993 = vpop.permute.xlu0 %4992
      %4994 = vrot.lane.b32.xlu0 %v4837, 112
      %v4995 = vpop.permute.xlu0 %4994
      %4996 = vrot.lane.b32.xlu0 %v4838, 112
      %v4997 = vpop.permute.xlu0 %4996
      %4998 = vrot.lane.b32.xlu0 %v4839, 112
      %v4999 = vpop.permute.xlu0 %4998
      %5000 = vrot.lane.b32.xlu0 %v4840, 112
      %v5001 = vpop.permute.xlu0 %5000
      %5002 = vrot.lane.b32.xlu0 %v4841, 112
      %v5003 = vpop.permute.xlu0 %5002
      %5004 = vrot.lane.b32.xlu0 %v4842, 112
      %v5005 = vpop.permute.xlu0 %5004
      %5006 = vrot.lane.b32.xlu0 %v4843, 112
      %v5007 = vpop.permute.xlu0 %5006
      %5008 = vrot.lane.b32.xlu0 %v4844, 112
      %v5009 = vpop.permute.xlu0 %5008
      %5010 = vrot.lane.b32.xlu0 %v4845, 112
      %v5011 = vpop.permute.xlu0 %5010
      %5012 = vrot.lane.b32.xlu0 %v4846, 112
      %v5013 = vpop.permute.xlu0 %5012
      %5014 = vrot.lane.b32.xlu0 %v4847, 112
      %v5015 = vpop.permute.xlu0 %5014
      %5016 = vrot.lane.b32.xlu0 %v4917, 112
      %v5017 = vpop.permute.xlu0 %5016
      %5018 = vrot.lane.b32.xlu0 %v4987, 112
      %v5019 = vpop.permute.xlu0 %5018
      %5036 = vst.msk [vmem:[#allocation3] sm:$0xff] %vm2859, %v4989
      %5037 = vst.msk [vmem:[#allocation3 + $0x20] sm:$0xff] %vm2859, %v4991
      %5038 = vst.msk [vmem:[#allocation3 + $0x40] sm:$0xff] %vm2859, %v4993
      %5039 = vst.msk [vmem:[#allocation3 + $0x60] sm:$0xff] %vm2859, %v4995
      %5040 = vst.msk [vmem:[#allocation3 + $0x80] sm:$0xff] %vm2859, %v4997
      %5041 = vst.msk [vmem:[#allocation3 + $0xa0] sm:$0xff] %vm2859, %v4999
      %5042 = vst.msk [vmem:[#allocation3 + $0xc0] sm:$0xff] %vm2859, %v5001
      %5043 = vst.msk [vmem:[#allocation3 + $0xe0] sm:$0xff] %vm2859, %v5003
      %5044 = vst.msk [vmem:[#allocation3 + $0x100] sm:$0xff] %vm2859, %v5005
      %5045 = vst.msk [vmem:[#allocation3 + $0x120] sm:$0xff] %vm2859, %v5007
      %5046 = vst.msk [vmem:[#allocation3 + $0x140] sm:$0xff] %vm2859, %v5009
      %5047 = vst.msk [vmem:[#allocation3 + $0x160] sm:$0xff] %vm2859, %v5011
      %5048 = vst.msk [vmem:[#allocation3 + $0x180] sm:$0xff] %vm2859, %v5013
      %5049 = vst.msk [vmem:[#allocation3 + $0x1a0] sm:$0xff] %vm2859, %v5015
      %5050 = vst.msk [vmem:[#allocation3 + $0x1c0] sm:$0xff] %vm2859, %v5017
      %5051 = vst.msk [vmem:[#allocation3 + $0x1e0] sm:$0xff] %vm2859, %v5019
      %v5052 = vld [vmem:[#allocation2 + $0x4] sm:$0xf]
      %v5053 = vld [vmem:[#allocation2 + $0x8] sm:$0xf]
      %v5054 = vld [vmem:[#allocation2 + $0xc] sm:$0x1]
      %v5055 = vld [vmem:[#allocation2 + $0x14] sm:$0xf]
      %v5056 = vld [vmem:[#allocation2 + $0x18] sm:$0xf]
      %v5057 = vld [vmem:[#allocation2 + $0x1c] sm:$0x1]
      %v5058 = vld [vmem:[#allocation2 + $0x24] sm:$0xf]
      %v5059 = vld [vmem:[#allocation2 + $0x28] sm:$0xf]
      %v5060 = vld [vmem:[#allocation2 + $0x2c] sm:$0x1]
      %v5061 = vld [vmem:[#allocation2 + $0x34] sm:$0xf]
      %v5062 = vld [vmem:[#allocation2 + $0x38] sm:$0xf]
      %v5063 = vld [vmem:[#allocation2 + $0x3c] sm:$0x1]
      %v5064 = vld [vmem:[#allocation2 + $0x44] sm:$0xf]
      %v5065 = vld [vmem:[#allocation2 + $0x48] sm:$0xf]
      %v5066 = vld [vmem:[#allocation2 + $0x4c] sm:$0x1]
      %v5067 = vld [vmem:[#allocation2 + $0x54] sm:$0xf]
      %v5068 = vld [vmem:[#allocation2 + $0x58] sm:$0xf]
      %v5069 = vld [vmem:[#allocation2 + $0x5c] sm:$0x1]
      %v5070 = vld [vmem:[#allocation2 + $0x64] sm:$0xf]
      %v5071 = vld [vmem:[#allocation2 + $0x68] sm:$0xf]
      %v5072 = vld [vmem:[#allocation2 + $0x6c] sm:$0x1]
      %v5073 = vld [vmem:[#allocation2 + $0x74] sm:$0xf]
      %v5074 = vld [vmem:[#allocation2 + $0x78] sm:$0xf]
      %v5075 = vld [vmem:[#allocation2 + $0x7c] sm:$0x1]
      %v5076 = vld [vmem:[#allocation2 + $0x84] sm:$0xf]
      %v5077 = vld [vmem:[#allocation2 + $0x88] sm:$0xf]
      %v5078 = vld [vmem:[#allocation2 + $0x8c] sm:$0x1]
      %v5079 = vld [vmem:[#allocation2 + $0x94] sm:$0xf]
      %v5080 = vld [vmem:[#allocation2 + $0x98] sm:$0xf]
      %v5081 = vld [vmem:[#allocation2 + $0x9c] sm:$0x1]
      %v5082 = vld [vmem:[#allocation2 + $0xa4] sm:$0xf]
      %v5083 = vld [vmem:[#allocation2 + $0xa8] sm:$0xf]
      %v5084 = vld [vmem:[#allocation2 + $0xac] sm:$0x1]
      %v5085 = vld [vmem:[#allocation2 + $0xb4] sm:$0xf]
      %v5086 = vld [vmem:[#allocation2 + $0xb8] sm:$0xf]
      %v5087 = vld [vmem:[#allocation2 + $0xbc] sm:$0x1]
      %v5088 = vld [vmem:[#allocation2 + $0xc4] sm:$0xf]
      %v5089 = vld [vmem:[#allocation2 + $0xc8] sm:$0xf]
      %v5090 = vld [vmem:[#allocation2 + $0xcc] sm:$0x1]
      %v5091 = vld [vmem:[#allocation2 + $0xd4] sm:$0xf]
      %v5092 = vld [vmem:[#allocation2 + $0xd8] sm:$0xf]
      %v5093 = vld [vmem:[#allocation2 + $0xdc] sm:$0x1]
      %v5094 = vld [vmem:[#allocation2 + $0xe4] sm:$0xf]
      %v5095 = vld [vmem:[#allocation2 + $0xe8] sm:$0xf]
      %v5096 = vld [vmem:[#allocation2 + $0xec] sm:$0x1]
      %v5097 = vld [vmem:[#allocation2 + $0xf4] sm:$0xf]
      %v5098 = vld [vmem:[#allocation2 + $0xf8] sm:$0xf]
      %v5099 = vld [vmem:[#allocation2 + $0xfc] sm:$0x1]
      %v5100 = vld [vmem:[#allocation2 + $0x104] sm:$0xf]
      %v5101 = vld [vmem:[#allocation2 + $0x108] sm:$0xf]
      %v5102 = vld [vmem:[#allocation2 + $0x10c] sm:$0x1]
      %v5103 = vld [vmem:[#allocation2 + $0x114] sm:$0xf]
      %v5104 = vld [vmem:[#allocation2 + $0x118] sm:$0xf]
      %v5105 = vld [vmem:[#allocation2 + $0x11c] sm:$0x1]
      %v5107 = vshrl.u32 %v5052, 16
      %v5109 = vrot.slane %v5107, 4
      %v5110 = vshll.u32 %v5052, 16
      %v5112 = vrot.slane %v5110, 5
      %v5113 = vor.u32 %v5109, %v5112
      %v5114 = vrot.slane %v5113, 4
      %v5116 = vshll.u32 %v5053, 16
      %v5118 = vrot.slane %v5116, 5
      %v5119 = vsel %vm2269, %v5114, %v5118
      %v5120 = vshrl.u32 %v5053, 16
      %v5122 = vrot.slane %v5120, 4
      %v5123 = vor.u32 %v5122, %v5118
      %v5124 = vrot.slane %v5123, 4
      %v5126 = vshll.u32 %v5054, 16
      %v5128 = vrot.slane %v5126, 5
      %v5129 = vsel %vm2269, %v5124, %v5128
      %v5131 = vshrl.u32 %v5055, 16
      %v5133 = vrot.slane %v5131, 4
      %v5134 = vshll.u32 %v5055, 16
      %v5136 = vrot.slane %v5134, 5
      %v5137 = vor.u32 %v5133, %v5136
      %v5138 = vrot.slane %v5137, 4
      %v5140 = vshll.u32 %v5056, 16
      %v5142 = vrot.slane %v5140, 5
      %v5143 = vsel %vm2269, %v5138, %v5142
      %v5144 = vshrl.u32 %v5056, 16
      %v5146 = vrot.slane %v5144, 4
      %v5147 = vor.u32 %v5146, %v5142
      %v5148 = vrot.slane %v5147, 4
      %v5150 = vshll.u32 %v5057, 16
      %v5152 = vrot.slane %v5150, 5
      %v5153 = vsel %vm2269, %v5148, %v5152
      %v5155 = vshrl.u32 %v5058, 16
      %v5157 = vrot.slane %v5155, 4
      %v5158 = vshll.u32 %v5058, 16
      %v5160 = vrot.slane %v5158, 5
      %v5161 = vor.u32 %v5157, %v5160
      %v5162 = vrot.slane %v5161, 4
      %v5164 = vshll.u32 %v5059, 16
      %v5166 = vrot.slane %v5164, 5
      %v5167 = vsel %vm2269, %v5162, %v5166
      %v5168 = vshrl.u32 %v5059, 16
      %v5170 = vrot.slane %v5168, 4
      %v5171 = vor.u32 %v5170, %v5166
      %v5172 = vrot.slane %v5171, 4
      %v5174 = vshll.u32 %v5060, 16
      %v5176 = vrot.slane %v5174, 5
      %v5177 = vsel %vm2269, %v5172, %v5176
      %v5179 = vshrl.u32 %v5061, 16
      %v5181 = vrot.slane %v5179, 4
      %v5182 = vshll.u32 %v5061, 16
      %v5184 = vrot.slane %v5182, 5
      %v5185 = vor.u32 %v5181, %v5184
      %v5186 = vrot.slane %v5185, 4
      %v5188 = vshll.u32 %v5062, 16
      %v5190 = vrot.slane %v5188, 5
      %v5191 = vsel %vm2269, %v5186, %v5190
      %v5192 = vshrl.u32 %v5062, 16
      %v5194 = vrot.slane %v5192, 4
      %v5195 = vor.u32 %v5194, %v5190
      %v5196 = vrot.slane %v5195, 4
      %v5198 = vshll.u32 %v5063, 16
      %v5200 = vrot.slane %v5198, 5
      %v5201 = vsel %vm2269, %v5196, %v5200
      %v5203 = vshrl.u32 %v5064, 16
      %v5205 = vrot.slane %v5203, 4
      %v5206 = vshll.u32 %v5064, 16
      %v5208 = vrot.slane %v5206, 5
      %v5209 = vor.u32 %v5205, %v5208
      %v5210 = vrot.slane %v5209, 4
      %v5212 = vshll.u32 %v5065, 16
      %v5214 = vrot.slane %v5212, 5
      %v5215 = vsel %vm2269, %v5210, %v5214
      %v5216 = vshrl.u32 %v5065, 16
      %v5218 = vrot.slane %v5216, 4
      %v5219 = vor.u32 %v5218, %v5214
      %v5220 = vrot.slane %v5219, 4
      %v5222 = vshll.u32 %v5066, 16
      %v5224 = vrot.slane %v5222, 5
      %v5225 = vsel %vm2269, %v5220, %v5224
      %v5227 = vshrl.u32 %v5067, 16
      %v5229 = vrot.slane %v5227, 4
      %v5230 = vshll.u32 %v5067, 16
      %v5232 = vrot.slane %v5230, 5
      %v5233 = vor.u32 %v5229, %v5232
      %v5234 = vrot.slane %v5233, 4
      %v5236 = vshll.u32 %v5068, 16
      %v5238 = vrot.slane %v5236, 5
      %v5239 = vsel %vm2269, %v5234, %v5238
      %v5240 = vshrl.u32 %v5068, 16
      %v5242 = vrot.slane %v5240, 4
      %v5243 = vor.u32 %v5242, %v5238
      %v5244 = vrot.slane %v5243, 4
      %v5246 = vshll.u32 %v5069, 16
      %v5248 = vrot.slane %v5246, 5
      %v5249 = vsel %vm2269, %v5244, %v5248
      %v5251 = vshrl.u32 %v5070, 16
      %v5253 = vrot.slane %v5251, 4
      %v5254 = vshll.u32 %v5070, 16
      %v5256 = vrot.slane %v5254, 5
      %v5257 = vor.u32 %v5253, %v5256
      %v5258 = vrot.slane %v5257, 4
      %v5260 = vshll.u32 %v5071, 16
      %v5262 = vrot.slane %v5260, 5
      %v5263 = vsel %vm2269, %v5258, %v5262
      %v5264 = vshrl.u32 %v5071, 16
      %v5266 = vrot.slane %v5264, 4
      %v5267 = vor.u32 %v5266, %v5262
      %v5268 = vrot.slane %v5267, 4
      %v5270 = vshll.u32 %v5072, 16
      %v5272 = vrot.slane %v5270, 5
      %v5273 = vsel %vm2269, %v5268, %v5272
      %v5275 = vshrl.u32 %v5073, 16
      %v5277 = vrot.slane %v5275, 4
      %v5278 = vshll.u32 %v5073, 16
      %v5280 = vrot.slane %v5278, 5
      %v5281 = vor.u32 %v5277, %v5280
      %v5282 = vrot.slane %v5281, 4
      %v5284 = vshll.u32 %v5074, 16
      %v5286 = vrot.slane %v5284, 5
      %v5287 = vsel %vm2269, %v5282, %v5286
      %v5288 = vshrl.u32 %v5074, 16
      %v5290 = vrot.slane %v5288, 4
      %v5291 = vor.u32 %v5290, %v5286
      %v5292 = vrot.slane %v5291, 4
      %v5294 = vshll.u32 %v5075, 16
      %v5296 = vrot.slane %v5294, 5
      %v5297 = vsel %vm2269, %v5292, %v5296
      %v5299 = vshrl.u32 %v5076, 16
      %v5301 = vrot.slane %v5299, 4
      %v5302 = vshll.u32 %v5076, 16
      %v5304 = vrot.slane %v5302, 5
      %v5305 = vor.u32 %v5301, %v5304
      %v5306 = vrot.slane %v5305, 4
      %v5308 = vshll.u32 %v5077, 16
      %v5310 = vrot.slane %v5308, 5
      %v5311 = vsel %vm2269, %v5306, %v5310
      %v5312 = vshrl.u32 %v5077, 16
      %v5314 = vrot.slane %v5312, 4
      %v5315 = vor.u32 %v5314, %v5310
      %v5316 = vrot.slane %v5315, 4
      %v5318 = vshll.u32 %v5078, 16
      %v5320 = vrot.slane %v5318, 5
      %v5321 = vsel %vm2269, %v5316, %v5320
      %v5323 = vshrl.u32 %v5079, 16
      %v5325 = vrot.slane %v5323, 4
      %v5326 = vshll.u32 %v5079, 16
      %v5328 = vrot.slane %v5326, 5
      %v5329 = vor.u32 %v5325, %v5328
      %v5330 = vrot.slane %v5329, 4
      %v5332 = vshll.u32 %v5080, 16
      %v5334 = vrot.slane %v5332, 5
      %v5335 = vsel %vm2269, %v5330, %v5334
      %v5336 = vshrl.u32 %v5080, 16
      %v5338 = vrot.slane %v5336, 4
      %v5339 = vor.u32 %v5338, %v5334
      %v5340 = vrot.slane %v5339, 4
      %v5342 = vshll.u32 %v5081, 16
      %v5344 = vrot.slane %v5342, 5
      %v5345 = vsel %vm2269, %v5340, %v5344
      %v5347 = vshrl.u32 %v5082, 16
      %v5349 = vrot.slane %v5347, 4
      %v5350 = vshll.u32 %v5082, 16
      %v5352 = vrot.slane %v5350, 5
      %v5353 = vor.u32 %v5349, %v5352
      %v5354 = vrot.slane %v5353, 4
      %v5356 = vshll.u32 %v5083, 16
      %v5358 = vrot.slane %v5356, 5
      %v5359 = vsel %vm2269, %v5354, %v5358
      %v5360 = vshrl.u32 %v5083, 16
      %v5362 = vrot.slane %v5360, 4
      %v5363 = vor.u32 %v5362, %v5358
      %v5364 = vrot.slane %v5363, 4
      %v5366 = vshll.u32 %v5084, 16
      %v5368 = vrot.slane %v5366, 5
      %v5369 = vsel %vm2269, %v5364, %v5368
      %v5371 = vshrl.u32 %v5085, 16
      %v5373 = vrot.slane %v5371, 4
      %v5374 = vshll.u32 %v5085, 16
      %v5376 = vrot.slane %v5374, 5
      %v5377 = vor.u32 %v5373, %v5376
      %v5378 = vrot.slane %v5377, 4
      %v5380 = vshll.u32 %v5086, 16
      %v5382 = vrot.slane %v5380, 5
      %v5383 = vsel %vm2269, %v5378, %v5382
      %v5384 = vshrl.u32 %v5086, 16
      %v5386 = vrot.slane %v5384, 4
      %v5387 = vor.u32 %v5386, %v5382
      %v5388 = vrot.slane %v5387, 4
      %v5390 = vshll.u32 %v5087, 16
      %v5392 = vrot.slane %v5390, 5
      %v5393 = vsel %vm2269, %v5388, %v5392
      %v5395 = vshrl.u32 %v5088, 16
      %v5397 = vrot.slane %v5395, 4
      %v5398 = vshll.u32 %v5088, 16
      %v5400 = vrot.slane %v5398, 5
      %v5401 = vor.u32 %v5397, %v5400
      %v5402 = vrot.slane %v5401, 4
      %v5404 = vshll.u32 %v5089, 16
      %v5406 = vrot.slane %v5404, 5
      %v5407 = vsel %vm2269, %v5402, %v5406
      %v5408 = vshrl.u32 %v5089, 16
      %v5410 = vrot.slane %v5408, 4
      %v5411 = vor.u32 %v5410, %v5406
      %v5412 = vrot.slane %v5411, 4
      %v5414 = vshll.u32 %v5090, 16
      %v5416 = vrot.slane %v5414, 5
      %v5417 = vsel %vm2269, %v5412, %v5416
      %v5419 = vshrl.u32 %v5091, 16
      %v5421 = vrot.slane %v5419, 4
      %v5422 = vshll.u32 %v5091, 16
      %v5424 = vrot.slane %v5422, 5
      %v5425 = vor.u32 %v5421, %v5424
      %v5426 = vrot.slane %v5425, 4
      %v5428 = vshll.u32 %v5092, 16
      %v5430 = vrot.slane %v5428, 5
      %v5431 = vsel %vm2269, %v5426, %v5430
      %v5432 = vshrl.u32 %v5092, 16
      %v5434 = vrot.slane %v5432, 4
      %v5435 = vor.u32 %v5434, %v5430
      %v5436 = vrot.slane %v5435, 4
      %v5438 = vshll.u32 %v5093, 16
      %v5440 = vrot.slane %v5438, 5
      %v5441 = vsel %vm2269, %v5436, %v5440
      %v5443 = vshrl.u32 %v5094, 16
      %v5445 = vrot.slane %v5443, 4
      %v5446 = vshll.u32 %v5094, 16
      %v5448 = vrot.slane %v5446, 5
      %v5449 = vor.u32 %v5445, %v5448
      %v5450 = vrot.slane %v5449, 4
      %v5452 = vshll.u32 %v5095, 16
      %v5454 = vrot.slane %v5452, 5
      %v5455 = vsel %vm2269, %v5450, %v5454
      %v5456 = vshrl.u32 %v5095, 16
      %v5458 = vrot.slane %v5456, 4
      %v5459 = vor.u32 %v5458, %v5454
      %v5460 = vrot.slane %v5459, 4
      %v5462 = vshll.u32 %v5096, 16
      %v5464 = vrot.slane %v5462, 5
      %v5465 = vsel %vm2269, %v5460, %v5464
      %v5467 = vshrl.u32 %v5097, 16
      %v5469 = vrot.slane %v5467, 4
      %v5470 = vshll.u32 %v5097, 16
      %v5472 = vrot.slane %v5470, 5
      %v5473 = vor.u32 %v5469, %v5472
      %v5474 = vrot.slane %v5473, 4
      %v5476 = vshll.u32 %v5098, 16
      %v5478 = vrot.slane %v5476, 5
      %v5479 = vsel %vm2269, %v5474, %v5478
      %v5480 = vshrl.u32 %v5098, 16
      %v5482 = vrot.slane %v5480, 4
      %v5483 = vor.u32 %v5482, %v5478
      %v5484 = vrot.slane %v5483, 4
      %v5486 = vshll.u32 %v5099, 16
      %v5488 = vrot.slane %v5486, 5
      %v5489 = vsel %vm2269, %v5484, %v5488
      %v5490 = vunpack.c.l.b16 %v5119
      %v5491 = vunpack.c.l.b16 %v5129
      %v5492 = vunpack.c.l.b16 %v5143
      %v5493 = vunpack.c.l.b16 %v5153
      %v5494 = vunpack.c.l.b16 %v5167
      %v5495 = vunpack.c.l.b16 %v5177
      %v5496 = vunpack.c.l.b16 %v5191
      %v5497 = vunpack.c.l.b16 %v5201
      %v5498 = vunpack.c.l.b16 %v5215
      %v5499 = vunpack.c.l.b16 %v5225
      %v5500 = vunpack.c.l.b16 %v5239
      %v5501 = vunpack.c.l.b16 %v5249
      %v5502 = vunpack.c.l.b16 %v5263
      %v5503 = vunpack.c.l.b16 %v5273
      %v5504 = vunpack.c.l.b16 %v5287
      %v5505 = vunpack.c.l.b16 %v5297
      %v5506 = vunpack.c.l.b16 %v5311
      %v5507 = vunpack.c.l.b16 %v5321
      %v5508 = vunpack.c.l.b16 %v5335
      %v5509 = vunpack.c.l.b16 %v5345
      %v5510 = vunpack.c.l.b16 %v5359
      %v5511 = vunpack.c.l.b16 %v5369
      %v5512 = vunpack.c.l.b16 %v5383
      %v5513 = vunpack.c.l.b16 %v5393
      %v5514 = vunpack.c.l.b16 %v5407
      %v5515 = vunpack.c.l.b16 %v5417
      %v5516 = vunpack.c.l.b16 %v5431
      %v5517 = vunpack.c.l.b16 %v5441
      %v5518 = vunpack.c.l.b16 %v5455
      %v5519 = vunpack.c.l.b16 %v5465
      %v5520 = vunpack.c.l.b16 %v5479
      %v5521 = vunpack.c.l.b16 %v5489
      %v5522 = vpack.c.b16 %v5491, %v5490
      %v5523 = vpack.c.b16 %v5493, %v5492
      %v5524 = vpack.c.b16 %v5495, %v5494
      %v5525 = vpack.c.b16 %v5497, %v5496
      %v5526 = vpack.c.b16 %v5499, %v5498
      %v5527 = vpack.c.b16 %v5501, %v5500
      %v5528 = vpack.c.b16 %v5503, %v5502
      %v5529 = vpack.c.b16 %v5505, %v5504
      %v5530 = vpack.c.b16 %v5507, %v5506
      %v5531 = vpack.c.b16 %v5509, %v5508
      %v5532 = vpack.c.b16 %v5511, %v5510
      %v5533 = vpack.c.b16 %v5513, %v5512
      %v5534 = vpack.c.b16 %v5515, %v5514
      %v5535 = vpack.c.b16 %v5517, %v5516
      %v5536 = vpack.c.b16 %v5519, %v5518
      %v5537 = vpack.c.b16 %v5521, %v5520
      %5538 = vrot.lane.b32.xlu0 %v5522, 32
      %v5539 = vpop.permute.xlu0 %5538
      %5540 = vrot.lane.b32.xlu0 %v5523, 32
      %v5541 = vpop.permute.xlu0 %5540
      %5542 = vrot.lane.b32.xlu0 %v5524, 32
      %v5543 = vpop.permute.xlu0 %5542
      %5544 = vrot.lane.b32.xlu0 %v5525, 32
      %v5545 = vpop.permute.xlu0 %5544
      %5546 = vrot.lane.b32.xlu0 %v5526, 32
      %v5547 = vpop.permute.xlu0 %5546
      %5548 = vrot.lane.b32.xlu0 %v5527, 32
      %v5549 = vpop.permute.xlu0 %5548
      %5550 = vrot.lane.b32.xlu0 %v5528, 32
      %v5551 = vpop.permute.xlu0 %5550
      %5552 = vrot.lane.b32.xlu0 %v5529, 32
      %v5553 = vpop.permute.xlu0 %5552
      %5554 = vrot.lane.b32.xlu0 %v5530, 32
      %v5555 = vpop.permute.xlu0 %5554
      %5556 = vrot.lane.b32.xlu0 %v5531, 32
      %v5557 = vpop.permute.xlu0 %5556
      %5558 = vrot.lane.b32.xlu0 %v5532, 32
      %v5559 = vpop.permute.xlu0 %5558
      %5560 = vrot.lane.b32.xlu0 %v5533, 32
      %v5561 = vpop.permute.xlu0 %5560
      %5562 = vrot.lane.b32.xlu0 %v5534, 32
      %v5563 = vpop.permute.xlu0 %5562
      %5564 = vrot.lane.b32.xlu0 %v5535, 32
      %v5565 = vpop.permute.xlu0 %5564
      %5566 = vrot.lane.b32.xlu0 %v5536, 32
      %v5567 = vpop.permute.xlu0 %5566
      %5568 = vrot.lane.b32.xlu0 %v5537, 32
      %v5569 = vpop.permute.xlu0 %5568
      %vm5586 = vcmask 392448
      %5587 = vst.msk [vmem:[#allocation3] sm:$0xff] %vm5586, %v5539
      %5588 = vst.msk [vmem:[#allocation3 + $0x20] sm:$0xff] %vm5586, %v5541
      %5589 = vst.msk [vmem:[#allocation3 + $0x40] sm:$0xff] %vm5586, %v5543
      %5590 = vst.msk [vmem:[#allocation3 + $0x60] sm:$0xff] %vm5586, %v5545
      %5591 = vst.msk [vmem:[#allocation3 + $0x80] sm:$0xff] %vm5586, %v5547
      %5592 = vst.msk [vmem:[#allocation3 + $0xa0] sm:$0xff] %vm5586, %v5549
      %5593 = vst.msk [vmem:[#allocation3 + $0xc0] sm:$0xff] %vm5586, %v5551
      %5594 = vst.msk [vmem:[#allocation3 + $0xe0] sm:$0xff] %vm5586, %v5553
      %5595 = vst.msk [vmem:[#allocation3 + $0x100] sm:$0xff] %vm5586, %v5555
      %5596 = vst.msk [vmem:[#allocation3 + $0x120] sm:$0xff] %vm5586, %v5557
      %5597 = vst.msk [vmem:[#allocation3 + $0x140] sm:$0xff] %vm5586, %v5559
      %5598 = vst.msk [vmem:[#allocation3 + $0x160] sm:$0xff] %vm5586, %v5561
      %5599 = vst.msk [vmem:[#allocation3 + $0x180] sm:$0xff] %vm5586, %v5563
      %5600 = vst.msk [vmem:[#allocation3 + $0x1a0] sm:$0xff] %vm5586, %v5565
      %5601 = vst.msk [vmem:[#allocation3 + $0x1c0] sm:$0xff] %vm5586, %v5567
      %5602 = vst.msk [vmem:[#allocation3 + $0x1e0] sm:$0xff] %vm5586, %v5569
      %v5604 = vshrl.u32 %v5100, 16
      %v5606 = vrot.slane %v5604, 4
      %v5607 = vshll.u32 %v5100, 16
      %v5609 = vrot.slane %v5607, 5
      %v5610 = vor.u32 %v5606, %v5609
      %v5611 = vrot.slane %v5610, 4
      %v5613 = vshll.u32 %v5101, 16
      %v5615 = vrot.slane %v5613, 5
      %v5616 = vsel %vm2269, %v5611, %v5615
      %v5617 = vshrl.u32 %v5101, 16
      %v5619 = vrot.slane %v5617, 4
      %v5620 = vor.u32 %v5619, %v5615
      %v5621 = vrot.slane %v5620, 4
      %v5623 = vshll.u32 %v5102, 16
      %v5625 = vrot.slane %v5623, 5
      %v5626 = vsel %vm2269, %v5621, %v5625
      %v5627 = vunpack.c.l.b16 %v5616
      %v5628 = vunpack.c.l.b16 %v5626
      %v5629 = vpack.c.b16 %v5628, %v5627
      %5630 = vrot.lane.b32.xlu0 %v5523, 80
      %v5631 = vpop.permute.xlu0 %5630
      %5632 = vrot.lane.b32.xlu0 %v5524, 80
      %v5633 = vpop.permute.xlu0 %5632
      %5634 = vrot.lane.b32.xlu0 %v5525, 80
      %v5635 = vpop.permute.xlu0 %5634
      %5636 = vrot.lane.b32.xlu0 %v5526, 80
      %v5637 = vpop.permute.xlu0 %5636
      %5638 = vrot.lane.b32.xlu0 %v5527, 80
      %v5639 = vpop.permute.xlu0 %5638
      %5640 = vrot.lane.b32.xlu0 %v5528, 80
      %v5641 = vpop.permute.xlu0 %5640
      %5642 = vrot.lane.b32.xlu0 %v5529, 80
      %v5643 = vpop.permute.xlu0 %5642
      %5644 = vrot.lane.b32.xlu0 %v5530, 80
      %v5645 = vpop.permute.xlu0 %5644
      %5646 = vrot.lane.b32.xlu0 %v5531, 80
      %v5647 = vpop.permute.xlu0 %5646
      %5648 = vrot.lane.b32.xlu0 %v5532, 80
      %v5649 = vpop.permute.xlu0 %5648
      %5650 = vrot.lane.b32.xlu0 %v5533, 80
      %v5651 = vpop.permute.xlu0 %5650
      %5652 = vrot.lane.b32.xlu0 %v5534, 80
      %v5653 = vpop.permute.xlu0 %5652
      %5654 = vrot.lane.b32.xlu0 %v5535, 80
      %v5655 = vpop.permute.xlu0 %5654
      %5656 = vrot.lane.b32.xlu0 %v5536, 80
      %v5657 = vpop.permute.xlu0 %5656
      %5658 = vrot.lane.b32.xlu0 %v5537, 80
      %v5659 = vpop.permute.xlu0 %5658
      %5660 = vrot.lane.b32.xlu0 %v5629, 80
      %v5661 = vpop.permute.xlu0 %5660
      %vm5678 = vcmask 786048
      %5679 = vst.msk [vmem:[#allocation3] sm:$0xff] %vm5678, %v5631
      %5680 = vst.msk [vmem:[#allocation3 + $0x20] sm:$0xff] %vm5678, %v5633
      %5681 = vst.msk [vmem:[#allocation3 + $0x40] sm:$0xff] %vm5678, %v5635
      %5682 = vst.msk [vmem:[#allocation3 + $0x60] sm:$0xff] %vm5678, %v5637
      %5683 = vst.msk [vmem:[#allocation3 + $0x80] sm:$0xff] %vm5678, %v5639
      %5684 = vst.msk [vmem:[#allocation3 + $0xa0] sm:$0xff] %vm5678, %v5641
      %5685 = vst.msk [vmem:[#allocation3 + $0xc0] sm:$0xff] %vm5678, %v5643
      %5686 = vst.msk [vmem:[#allocation3 + $0xe0] sm:$0xff] %vm5678, %v5645
      %5687 = vst.msk [vmem:[#allocation3 + $0x100] sm:$0xff] %vm5678, %v5647
      %5688 = vst.msk [vmem:[#allocation3 + $0x120] sm:$0xff] %vm5678, %v5649
      %5689 = vst.msk [vmem:[#allocation3 + $0x140] sm:$0xff] %vm5678, %v5651
      %5690 = vst.msk [vmem:[#allocation3 + $0x160] sm:$0xff] %vm5678, %v5653
      %5691 = vst.msk [vmem:[#allocation3 + $0x180] sm:$0xff] %vm5678, %v5655
      %5692 = vst.msk [vmem:[#allocation3 + $0x1a0] sm:$0xff] %vm5678, %v5657
      %5693 = vst.msk [vmem:[#allocation3 + $0x1c0] sm:$0xff] %vm5678, %v5659
      %5694 = vst.msk [vmem:[#allocation3 + $0x1e0] sm:$0xff] %vm5678, %v5661
      %v5696 = vshrl.u32 %v5103, 16
      %v5698 = vrot.slane %v5696, 4
      %v5699 = vshll.u32 %v5103, 16
      %v5701 = vrot.slane %v5699, 5
      %v5702 = vor.u32 %v5698, %v5701
      %v5703 = vrot.slane %v5702, 4
      %v5705 = vshll.u32 %v5104, 16
      %v5707 = vrot.slane %v5705, 5
      %v5708 = vsel %vm2269, %v5703, %v5707
      %v5709 = vshrl.u32 %v5104, 16
      %v5711 = vrot.slane %v5709, 4
      %v5712 = vor.u32 %v5711, %v5707
      %v5713 = vrot.slane %v5712, 4
      %v5715 = vshll.u32 %v5105, 16
      %v5717 = vrot.slane %v5715, 5
      %v5718 = vsel %vm2269, %v5713, %v5717
      %v5719 = vunpack.c.l.b16 %v5708
      %v5720 = vunpack.c.l.b16 %v5718
      %v5721 = vpack.c.b16 %v5720, %v5719
      %5738 = vst.msk [vmem:[#allocation3 + $0x8] sm:$0xff] %vm2752, %v5524
      %5739 = vst.msk [vmem:[#allocation3 + $0x28] sm:$0xff] %vm2752, %v5525
      %5740 = vst.msk [vmem:[#allocation3 + $0x48] sm:$0xff] %vm2752, %v5526
      %5741 = vst.msk [vmem:[#allocation3 + $0x68] sm:$0xff] %vm2752, %v5527
      %5742 = vst.msk [vmem:[#allocation3 + $0x88] sm:$0xff] %vm2752, %v5528
      %5743 = vst.msk [vmem:[#allocation3 + $0xa8] sm:$0xff] %vm2752, %v5529
      %5744 = vst.msk [vmem:[#allocation3 + $0xc8] sm:$0xff] %vm2752, %v5530
      %5745 = vst.msk [vmem:[#allocation3 + $0xe8] sm:$0xff] %vm2752, %v5531
      %5746 = vst.msk [vmem:[#allocation3 + $0x108] sm:$0xff] %vm2752, %v5532
      %5747 = vst.msk [vmem:[#allocation3 + $0x128] sm:$0xff] %vm2752, %v5533
      %5748 = vst.msk [vmem:[#allocation3 + $0x148] sm:$0xff] %vm2752, %v5534
      %5749 = vst.msk [vmem:[#allocation3 + $0x168] sm:$0xff] %vm2752, %v5535
      %5750 = vst.msk [vmem:[#allocation3 + $0x188] sm:$0xff] %vm2752, %v5536
      %5751 = vst.msk [vmem:[#allocation3 + $0x1a8] sm:$0xff] %vm2752, %v5537
      %5752 = vst.msk [vmem:[#allocation3 + $0x1c8] sm:$0xff] %vm2752, %v5629
      %5753 = vst.msk [vmem:[#allocation3 + $0x1e8] sm:$0xff] %vm2752, %v5721
      %v5754 = vld [vmem:[#allocation3] sm:$0xff]
      %v5755 = vld [vmem:[#allocation3 + $0x8] sm:$0xff]
      %v5756 = vld [vmem:[#allocation3 + $0x20] sm:$0xff]
      %v5757 = vld [vmem:[#allocation3 + $0x28] sm:$0xff]
      %v5758 = vld [vmem:[#allocation3 + $0x40] sm:$0xff]
      %v5759 = vld [vmem:[#allocation3 + $0x48] sm:$0xff]
      %v5760 = vld [vmem:[#allocation3 + $0x60] sm:$0xff]
      %v5761 = vld [vmem:[#allocation3 + $0x68] sm:$0xff]
      %v5762 = vld [vmem:[#allocation3 + $0x80] sm:$0xff]
      %v5763 = vld [vmem:[#allocation3 + $0x88] sm:$0xff]
      %v5764 = vld [vmem:[#allocation3 + $0xa0] sm:$0xff]
      %v5765 = vld [vmem:[#allocation3 + $0xa8] sm:$0xff]
      %v5766 = vld [vmem:[#allocation3 + $0xc0] sm:$0xff]
      %v5767 = vld [vmem:[#allocation3 + $0xc8] sm:$0xff]
      %v5768 = vld [vmem:[#allocation3 + $0xe0] sm:$0xff]
      %v5769 = vld [vmem:[#allocation3 + $0xe8] sm:$0xff]
      %v5770 = vld [vmem:[#allocation3 + $0x100] sm:$0xff]
      %v5771 = vld [vmem:[#allocation3 + $0x108] sm:$0xff]
      %v5772 = vld [vmem:[#allocation3 + $0x120] sm:$0xff]
      %v5773 = vld [vmem:[#allocation3 + $0x128] sm:$0xff]
      %v5774 = vld [vmem:[#allocation3 + $0x140] sm:$0xff]
      %v5775 = vld [vmem:[#allocation3 + $0x148] sm:$0xff]
      %v5776 = vld [vmem:[#allocation3 + $0x160] sm:$0xff]
      %v5777 = vld [vmem:[#allocation3 + $0x168] sm:$0xff]
      %v5778 = vld [vmem:[#allocation3 + $0x180] sm:$0xff]
      %v5779 = vld [vmem:[#allocation3 + $0x188] sm:$0xff]
      %v5780 = vld [vmem:[#allocation3 + $0x1a0] sm:$0xff]
      %v5781 = vld [vmem:[#allocation3 + $0x1a8] sm:$0xff]
      %v5782 = vld [vmem:[#allocation3 + $0x1c0] sm:$0xff]
      %v5783 = vld [vmem:[#allocation3 + $0x1c8] sm:$0xff]
      %v5784 = vld [vmem:[#allocation3 + $0x1e0] sm:$0xff]
      %v5785 = vld [vmem:[#allocation3 + $0x1e8] sm:$0xff]
      %v5787 = vlaneseq
      %v5788 = vshrl.u32 %v5787, 7
      %v5789 = vsub.s32 0, %v5788
      %v5790 = vrot.slane %v3828, %v5789
      %v5810 = vunpack.c.l.b16 %v3810
      %v5811 = vunpack.c.l.b16 %v3811
      %v5812 = vunpack.c.l.b16 %v3812
      %v5813 = vunpack.c.l.b16 %v3813
      %v5814 = vunpack.c.l.b16 %v3814
      %v5815 = vunpack.c.l.b16 %v3815
      %v5816 = vunpack.c.l.b16 %v3816
      %v5817 = vunpack.c.l.b16 %v3817
      %v5818 = vunpack.c.l.b16 %v3818
      %v5819 = vunpack.c.l.b16 %v3819
      %v5820 = vunpack.c.l.b16 %v3820
      %v5821 = vunpack.c.l.b16 %v3821
      %v5822 = vunpack.c.l.b16 %v3822
      %v5823 = vunpack.c.l.b16 %v3823
      %v5824 = vunpack.c.l.b16 %v3824
      %v5825 = vunpack.c.l.b16 %v3825
      %v5826 = vunpack.c.l.b16 %v3826
      %v5827 = vunpack.c.l.b16 %v3827
      %v5828 = vpack.c.b16 %v5811, %v5810
      %v5829 = vpack.c.b16 %v5813, %v5812
      %v5830 = vpack.c.b16 %v5815, %v5814
      %v5831 = vpack.c.b16 %v5817, %v5816
      %v5832 = vpack.c.b16 %v5819, %v5818
      %v5833 = vpack.c.b16 %v5821, %v5820
      %v5834 = vpack.c.b16 %v5823, %v5822
      %v5835 = vpack.c.b16 %v5825, %v5824
      %v5836 = vpack.c.b16 %v5827, %v5826
      %v5847 = vsel %vm2752, %v5755, 0
      %v5850 = vsel %vm2752, %v5757, 0
      %v5853 = vsel %vm2752, %v5759, 0
      %v5856 = vsel %vm2752, %v5761, 0
      %v5859 = vsel %vm2752, %v5763, 0
      %v5862 = vsel %vm2752, %v5765, 0
      %v5865 = vsel %vm2752, %v5767, 0
      %v5868 = vsel %vm2752, %v5769, 0
      %v5871 = vsel %vm2752, %v5771, 0
      %v5874 = vsel %vm2752, %v5773, 0
      %v5877 = vsel %vm2752, %v5775, 0
      %v5880 = vsel %vm2752, %v5777, 0
      %v5883 = vsel %vm2752, %v5779, 0
      %v5886 = vsel %vm2752, %v5781, 0
      %v5889 = vsel %vm2752, %v5783, 0
      %v5892 = vsel %vm2752, %v5785, 0
      %5894 = vmatprep.subr.bf16.mxu0 0
      %5895 = vmatpush1.bf16.msra.mxu0 %v5828
      %5896 = vmatprep.subr.bf16.mxu0 0
      %5897 = vmatpush1.bf16.msra.mxu0 %v5829
      %5898 = vmatprep.subr.bf16.mxu0 0
      %5899 = vmatpush1.bf16.msra.mxu0 %v5830
      %5900 = vmatprep.subr.bf16.mxu0 0
      %5901 = vmatpush1.bf16.msra.mxu0 %v5831
      %5902 = vmatprep.subr.bf16.mxu0 0
      %5903 = vmatpush1.bf16.msra.mxu0 %v5832
      %5904 = vmatprep.subr.bf16.mxu0 0
      %5905 = vmatpush1.bf16.msra.mxu0 %v5833
      %5906 = vmatprep.subr.bf16.mxu0 0
      %5907 = vmatpush1.bf16.msra.mxu0 %v5834
      %5908 = vmatprep.subr.bf16.mxu0 0
      %5909 = vmatpush1.bf16.msra.mxu0 %v5835
      %5910 = vmatprep.subr.bf16.mxu0 0
      %5911 = vmatpush1.bf16.msra.mxu0 %v5836
      %5912 = vmatprep.subr.bf16.mxu0 0
      %5913 = vmatpush1.bf16.msra.mxu0 0
      %5914 = vmatprep.subr.bf16.mxu0 0
      %5915 = vmatpush1.bf16.msra.mxu0 0
      %5916 = vmatprep.subr.bf16.mxu0 0
      %5917 = vmatpush1.bf16.msra.mxu0 0
      %5918 = vmatprep.subr.bf16.mxu0 0
      %5919 = vmatpush1.bf16.msra.mxu0 0
      %5920 = vmatprep.subr.bf16.mxu0 0
      %5921 = vmatpush1.bf16.msra.mxu0 0
      %5922 = vmatprep.subr.bf16.mxu0 0
      %5923 = vmatpush1.bf16.msra.mxu0 0
      %5924 = vmatprep.subr.bf16.mxu0 0
      %5925 = vmatpush1.bf16.msra.mxu0 0
      %5926 = vmatprep.mubr.bf16.mxu0 %v5847
      %5927 = vmatmul.mubr.bf16.gmra.mrb[0].mxu0 %v5754
      %v5928 = vpop.f32.mrb[0].mxu0
      %v5929 = vadd.f32 %v5790, %v5928
      %v5930 = vpop.f32.mrb[0].mxu0
      %v5931 = vpop.f32.mrb[0].mxu0
      %v5932 = vadd.f32 %v5790, %v5931
      %v5933 = vpop.f32.mrb[0].mxu0
      %5934 = vmatprep.mubr.bf16.mxu0 %v5850
      %5935 = vmatmul.mubr.bf16.gmra.mrb[0].mxu0 %v5756
      %v5936 = vpop.f32.mrb[0].mxu0
      %v5937 = vadd.f32 %v5790, %v5936
      %v5938 = vpop.f32.mrb[0].mxu0
      %v5939 = vpop.f32.mrb[0].mxu0
      %v5940 = vadd.f32 %v5790, %v5939
      %v5941 = vpop.f32.mrb[0].mxu0
      %5942 = vmatprep.mubr.bf16.mxu0 %v5853
      %5943 = vmatmul.mubr.bf16.gmra.mrb[0].mxu0 %v5758
      %v5944 = vpop.f32.mrb[0].mxu0
      %v5945 = vadd.f32 %v5790, %v5944
      %v5946 = vpop.f32.mrb[0].mxu0
      %v5947 = vpop.f32.mrb[0].mxu0
      %v5948 = vadd.f32 %v5790, %v5947
      %v5949 = vpop.f32.mrb[0].mxu0
      %5950 = vmatprep.mubr.bf16.mxu0 %v5856
      %5951 = vmatmul.mubr.bf16.gmra.mrb[0].mxu0 %v5760
      %v5952 = vpop.f32.mrb[0].mxu0
      %v5953 = vadd.f32 %v5790, %v5952
      %v5954 = vpop.f32.mrb[0].mxu0
      %v5955 = vpop.f32.mrb[0].mxu0
      %v5956 = vadd.f32 %v5790, %v5955
      %v5957 = vpop.f32.mrb[0].mxu0
      %5958 = vmatprep.mubr.bf16.mxu0 %v5859
      %5959 = vmatmul.mubr.bf16.gmra.mrb[0].mxu0 %v5762
      %v5960 = vpop.f32.mrb[0].mxu0
      %v5961 = vadd.f32 %v5790, %v5960
      %v5962 = vpop.f32.mrb[0].mxu0
      %v5963 = vpop.f32.mrb[0].mxu0
      %v5964 = vadd.f32 %v5790, %v5963
      %v5965 = vpop.f32.mrb[0].mxu0
      %5966 = vmatprep.mubr.bf16.mxu0 %v5862
      %5967 = vmatmul.mubr.bf16.gmra.mrb[0].mxu0 %v5764
      %v5968 = vpop.f32.mrb[0].mxu0
      %v5969 = vadd.f32 %v5790, %v5968
      %v5970 = vpop.f32.mrb[0].mxu0
      %v5971 = vpop.f32.mrb[0].mxu0
      %v5972 = vadd.f32 %v5790, %v5971
      %v5973 = vpop.f32.mrb[0].mxu0
      %5974 = vmatprep.mubr.bf16.mxu0 %v5865
      %5975 = vmatmul.mubr.bf16.gmra.mrb[0].mxu0 %v5766
      %v5976 = vpop.f32.mrb[0].mxu0
      %v5977 = vadd.f32 %v5790, %v5976
      %v5978 = vpop.f32.mrb[0].mxu0
      %v5979 = vpop.f32.mrb[0].mxu0
      %v5980 = vadd.f32 %v5790, %v5979
      %v5981 = vpop.f32.mrb[0].mxu0
      %5982 = vmatprep.mubr.bf16.mxu0 %v5868
      %5983 = vmatmul.mubr.bf16.gmra.mrb[0].mxu0 %v5768
      %v5984 = vpop.f32.mrb[0].mxu0
      %v5985 = vadd.f32 %v5790, %v5984
      %v5986 = vpop.f32.mrb[0].mxu0
      %v5987 = vpop.f32.mrb[0].mxu0
      %v5988 = vadd.f32 %v5790, %v5987
      %v5989 = vpop.f32.mrb[0].mxu0
      %5990 = vmatprep.mubr.bf16.mxu0 %v5871
      %5991 = vmatmul.mubr.bf16.gmra.mrb[0].mxu0 %v5770
      %v5992 = vpop.f32.mrb[0].mxu0
      %v5993 = vadd.f32 %v5790, %v5992
      %v5994 = vpop.f32.mrb[0].mxu0
      %v5995 = vpop.f32.mrb[0].mxu0
      %v5996 = vadd.f32 %v5790, %v5995
      %v5997 = vpop.f32.mrb[0].mxu0
      %5998 = vmatprep.mubr.bf16.mxu0 %v5874
      %5999 = vmatmul.mubr.bf16.gmra.mrb[0].mxu0 %v5772
      %v6000 = vpop.f32.mrb[0].mxu0
      %v6001 = vadd.f32 %v5790, %v6000
      %v6002 = vpop.f32.mrb[0].mxu0
      %v6003 = vpop.f32.mrb[0].mxu0
      %v6004 = vadd.f32 %v5790, %v6003
      %v6005 = vpop.f32.mrb[0].mxu0
      %6006 = vmatprep.mubr.bf16.mxu0 %v5877
      %6007 = vmatmul.mubr.bf16.gmra.mrb[0].mxu0 %v5774
      %v6008 = vpop.f32.mrb[0].mxu0
      %v6009 = vadd.f32 %v5790, %v6008
      %v6010 = vpop.f32.mrb[0].mxu0
      %v6011 = vpop.f32.mrb[0].mxu0
      %v6012 = vadd.f32 %v5790, %v6011
      %v6013 = vpop.f32.mrb[0].mxu0
      %6014 = vmatprep.mubr.bf16.mxu0 %v5880
      %6015 = vmatmul.mubr.bf16.gmra.mrb[0].mxu0 %v5776
      %v6016 = vpop.f32.mrb[0].mxu0
      %v6017 = vadd.f32 %v5790, %v6016
      %v6018 = vpop.f32.mrb[0].mxu0
      %v6019 = vpop.f32.mrb[0].mxu0
      %v6020 = vadd.f32 %v5790, %v6019
      %v6021 = vpop.f32.mrb[0].mxu0
      %6022 = vmatprep.mubr.bf16.mxu0 %v5883
      %6023 = vmatmul.mubr.bf16.gmra.mrb[0].mxu0 %v5778
      %v6024 = vpop.f32.mrb[0].mxu0
      %v6025 = vadd.f32 %v5790, %v6024
      %v6026 = vpop.f32.mrb[0].mxu0
      %v6027 = vpop.f32.mrb[0].mxu0
      %v6028 = vadd.f32 %v5790, %v6027
      %v6029 = vpop.f32.mrb[0].mxu0
      %6030 = vmatprep.mubr.bf16.mxu0 %v5886
      %6031 = vmatmul.mubr.bf16.gmra.mrb[0].mxu0 %v5780
      %v6032 = vpop.f32.mrb[0].mxu0
      %v6033 = vadd.f32 %v5790, %v6032
      %v6034 = vpop.f32.mrb[0].mxu0
      %v6035 = vpop.f32.mrb[0].mxu0
      %v6036 = vadd.f32 %v5790, %v6035
      %v6037 = vpop.f32.mrb[0].mxu0
      %6038 = vmatprep.mubr.bf16.mxu0 %v5889
      %6039 = vmatmul.mubr.bf16.gmra.mrb[0].mxu0 %v5782
      %v6040 = vpop.f32.mrb[0].mxu0
      %v6041 = vadd.f32 %v5790, %v6040
      %v6042 = vpop.f32.mrb[0].mxu0
      %v6043 = vpop.f32.mrb[0].mxu0
      %v6044 = vadd.f32 %v5790, %v6043
      %v6045 = vpop.f32.mrb[0].mxu0
      %6046 = vmatprep.mubr.bf16.mxu0 %v5892
      %6047 = vmatmul.mubr.bf16.gmra.mrb[0].mxu0 %v5784
      %v6048 = vpop.f32.mrb[0].mxu0
      %v6049 = vadd.f32 %v5790, %v6048
      %v6050 = vpop.f32.mrb[0].mxu0
      %v6051 = vpop.f32.mrb[0].mxu0
      %v6052 = vadd.f32 %v5790, %v6051
      %v6053 = vpop.f32.mrb[0].mxu0
      %6054 = vdwg.mxu0
      %v6055 = vmax.f32 %v5929, 0.0
      %v6056 = vmax.f32 %v5932, 0.0
      %v6057 = vmax.f32 %v5937, 0.0
      %v6058 = vmax.f32 %v5940, 0.0
      %v6059 = vmax.f32 %v5945, 0.0
      %v6060 = vmax.f32 %v5948, 0.0
      %v6061 = vmax.f32 %v5953, 0.0
      %v6062 = vmax.f32 %v5956, 0.0
      %v6063 = vmax.f32 %v5961, 0.0
      %v6064 = vmax.f32 %v5964, 0.0
      %v6065 = vmax.f32 %v5969, 0.0
      %v6066 = vmax.f32 %v5972, 0.0
      %v6067 = vmax.f32 %v5977, 0.0
      %v6068 = vmax.f32 %v5980, 0.0
      %v6069 = vmax.f32 %v5985, 0.0
      %v6070 = vmax.f32 %v5988, 0.0
      %v6071 = vmax.f32 %v5993, 0.0
      %v6072 = vmax.f32 %v5996, 0.0
      %v6073 = vmax.f32 %v6001, 0.0
      %v6074 = vmax.f32 %v6004, 0.0
      %v6075 = vmax.f32 %v6009, 0.0
      %v6076 = vmax.f32 %v6012, 0.0
      %v6077 = vmax.f32 %v6017, 0.0
      %v6078 = vmax.f32 %v6020, 0.0
      %v6079 = vmax.f32 %v6025, 0.0
      %v6080 = vmax.f32 %v6028, 0.0
      %v6081 = vmax.f32 %v6033, 0.0
      %v6082 = vmax.f32 %v6036, 0.0
      %v6083 = vmax.f32 %v6041, 0.0
      %v6084 = vmax.f32 %v6044, 0.0
      %v6085 = vmax.f32 %v6049, 0.0
      %v6086 = vmax.f32 %v6052, 0.0
      %v6087 = vpack.c.bf16 %v6056, %v6055
      %v6088 = vpack.c.bf16 %v6058, %v6057
      %v6089 = vpack.c.bf16 %v6060, %v6059
      %v6090 = vpack.c.bf16 %v6062, %v6061
      %v6091 = vpack.c.bf16 %v6064, %v6063
      %v6092 = vpack.c.bf16 %v6066, %v6065
      %v6093 = vpack.c.bf16 %v6068, %v6067
      %v6094 = vpack.c.bf16 %v6070, %v6069
      %v6095 = vpack.c.bf16 %v6072, %v6071
      %v6096 = vpack.c.bf16 %v6074, %v6073
      %v6097 = vpack.c.bf16 %v6076, %v6075
      %v6098 = vpack.c.bf16 %v6078, %v6077
      %v6099 = vpack.c.bf16 %v6080, %v6079
      %v6100 = vpack.c.bf16 %v6082, %v6081
      %v6101 = vpack.c.bf16 %v6084, %v6083
      %v6102 = vpack.c.bf16 %v6086, %v6085
      %v6103 = vld [vmem:[%s7] sm:$0xf]
      %v6104 = vld [vmem:[%s7 + $0x4] sm:$0xf]
      %v6105 = vld [vmem:[%s7 + $0x8] sm:$0xf]
      %v6106 = vld [vmem:[%s7 + $0xc] sm:$0xf]
      %v6107 = vld [vmem:[%s7 + $0x10] sm:$0xf]
      %v6108 = vld [vmem:[%s7 + $0x14] sm:$0xf]
      %v6109 = vld [vmem:[%s7 + $0x18] sm:$0xf]
      %v6110 = vld [vmem:[%s7 + $0x1c] sm:$0xf]
      %v6111 = vld [vmem:[%s7 + $0x20] sm:$0xf]
      %v6112 = vld [vmem:[%s7 + $0x24] sm:$0xf]
      %v6113 = vld [vmem:[%s7 + $0x28] sm:$0xf]
      %v6114 = vld [vmem:[%s7 + $0x2c] sm:$0xf]
      %v6115 = vld [vmem:[%s7 + $0x30] sm:$0xf]
      %v6116 = vld [vmem:[%s7 + $0x34] sm:$0xf]
      %v6117 = vld [vmem:[%s7 + $0x38] sm:$0xf]
      %v6118 = vld [vmem:[%s7 + $0x3c] sm:$0xf]
      %v6119 = vld [vmem:[%s7 + $0x40] sm:$0xf]
      %v6120 = vld [vmem:[%s7 + $0x44] sm:$0xf]
      %v6121 = vld [vmem:[%s7 + $0x48] sm:$0xf]
      %v6122 = vld [vmem:[%s7 + $0x4c] sm:$0xf]
      %v6123 = vld [vmem:[%s7 + $0x50] sm:$0xf]
      %v6124 = vld [vmem:[%s7 + $0x54] sm:$0xf]
      %v6125 = vld [vmem:[%s7 + $0x58] sm:$0xf]
      %v6126 = vld [vmem:[%s7 + $0x5c] sm:$0xf]
      %v6127 = vld [vmem:[%s7 + $0x60] sm:$0xf]
      %v6128 = vld [vmem:[%s7 + $0x64] sm:$0xf]
      %v6129 = vld [vmem:[%s7 + $0x68] sm:$0xf]
      %v6130 = vld [vmem:[%s7 + $0x6c] sm:$0xf]
      %v6131 = vld [vmem:[%s7 + $0x70] sm:$0xf]
      %v6132 = vld [vmem:[%s7 + $0x74] sm:$0xf]
      %v6133 = vld [vmem:[%s7 + $0x78] sm:$0xf]
      %v6134 = vld [vmem:[%s7 + $0x7c] sm:$0xf]
      %v6135 = vld [vmem:[%s7 + $0x80] sm:$0xf]
      %v6136 = vld [vmem:[%s7 + $0x84] sm:$0xf]
      %v6137 = vld [vmem:[%s7 + $0x88] sm:$0xf]
      %v6138 = vld [vmem:[%s7 + $0x8c] sm:$0xf]
      %v6139 = vld [vmem:[%s8] sm:$0x1]
      %6140 = vst.msk [vmem:[#allocation2] sm:$0xf] %vm982, 0
      %6141 = vst.msk [vmem:[#allocation2 + $0x4] sm:$0xf] %vm982, 0
      %6142 = vst.msk [vmem:[#allocation2 + $0x8] sm:$0xf] %vm982, 0
      %v6143 = vld [vmem:[#allocation2 + $0xc] sm:$0x1]
      %v6144 = vsel %vm988, 0, %v6143
      %6145 = vst [vmem:[#allocation2 + $0xc] sm:$0x1] %v6144
      %6146 = vst.msk [vmem:[#allocation2 + $0x10] sm:$0xf] %vm982, 0
      %6147 = vst.msk [vmem:[#allocation2 + $0x14] sm:$0xf] %vm982, 0
      %6148 = vst.msk [vmem:[#allocation2 + $0x18] sm:$0xf] %vm982, 0
      %v6149 = vld [vmem:[#allocation2 + $0x1c] sm:$0x1]
      %v6150 = vsel %vm988, 0, %v6149
      %6151 = vst [vmem:[#allocation2 + $0x1c] sm:$0x1] %v6150
      %6152 = vst.msk [vmem:[#allocation2 + $0x20] sm:$0xf] %vm982, 0
      %6153 = vst.msk [vmem:[#allocation2 + $0x24] sm:$0xf] %vm982, 0
      %6154 = vst.msk [vmem:[#allocation2 + $0x28] sm:$0xf] %vm982, 0
      %v6155 = vld [vmem:[#allocation2 + $0x2c] sm:$0x1]
      %v6156 = vsel %vm988, 0, %v6155
      %6157 = vst [vmem:[#allocation2 + $0x2c] sm:$0x1] %v6156
      %6158 = vst.msk [vmem:[#allocation2 + $0x30] sm:$0xf] %vm982, 0
      %6159 = vst.msk [vmem:[#allocation2 + $0x34] sm:$0xf] %vm982, 0
      %6160 = vst.msk [vmem:[#allocation2 + $0x38] sm:$0xf] %vm982, 0
      %v6161 = vld [vmem:[#allocation2 + $0x3c] sm:$0x1]
      %v6162 = vsel %vm988, 0, %v6161
      %6163 = vst [vmem:[#allocation2 + $0x3c] sm:$0x1] %v6162
      %6164 = vst.msk [vmem:[#allocation2 + $0x40] sm:$0xf] %vm982, 0
      %6165 = vst.msk [vmem:[#allocation2 + $0x44] sm:$0xf] %vm982, 0
      %6166 = vst.msk [vmem:[#allocation2 + $0x48] sm:$0xf] %vm982, 0
      %v6167 = vld [vmem:[#allocation2 + $0x4c] sm:$0x1]
      %v6168 = vsel %vm988, 0, %v6167
      %6169 = vst [vmem:[#allocation2 + $0x4c] sm:$0x1] %v6168
      %6170 = vst.msk [vmem:[#allocation2 + $0x50] sm:$0xf] %vm982, 0
      %6171 = vst.msk [vmem:[#allocation2 + $0x54] sm:$0xf] %vm982, 0
      %6172 = vst.msk [vmem:[#allocation2 + $0x58] sm:$0xf] %vm982, 0
      %v6173 = vld [vmem:[#allocation2 + $0x5c] sm:$0x1]
      %v6174 = vsel %vm988, 0, %v6173
      %6175 = vst [vmem:[#allocation2 + $0x5c] sm:$0x1] %v6174
      %6176 = vst.msk [vmem:[#allocation2 + $0x60] sm:$0xf] %vm982, 0
      %6177 = vst.msk [vmem:[#allocation2 + $0x64] sm:$0xf] %vm982, 0
      %6178 = vst.msk [vmem:[#allocation2 + $0x68] sm:$0xf] %vm982, 0
      %v6179 = vld [vmem:[#allocation2 + $0x6c] sm:$0x1]
      %v6180 = vsel %vm988, 0, %v6179
      %6181 = vst [vmem:[#allocation2 + $0x6c] sm:$0x1] %v6180
      %6182 = vst.msk [vmem:[#allocation2 + $0x70] sm:$0xf] %vm982, 0
      %6183 = vst.msk [vmem:[#allocation2 + $0x74] sm:$0xf] %vm982, 0
      %6184 = vst.msk [vmem:[#allocation2 + $0x78] sm:$0xf] %vm982, 0
      %v6185 = vld [vmem:[#allocation2 + $0x7c] sm:$0x1]
      %v6186 = vsel %vm988, 0, %v6185
      %6187 = vst [vmem:[#allocation2 + $0x7c] sm:$0x1] %v6186
      %6188 = vst.msk [vmem:[#allocation2 + $0x80] sm:$0xf] %vm982, 0
      %6189 = vst.msk [vmem:[#allocation2 + $0x84] sm:$0xf] %vm982, 0
      %6190 = vst.msk [vmem:[#allocation2 + $0x88] sm:$0xf] %vm982, 0
      %v6191 = vld [vmem:[#allocation2 + $0x8c] sm:$0x1]
      %v6192 = vsel %vm988, 0, %v6191
      %6193 = vst [vmem:[#allocation2 + $0x8c] sm:$0x1] %v6192
      %6194 = vst.msk [vmem:[#allocation2 + $0x90] sm:$0xf] %vm982, 0
      %6195 = vst.msk [vmem:[#allocation2 + $0x94] sm:$0xf] %vm982, 0
      %6196 = vst.msk [vmem:[#allocation2 + $0x98] sm:$0xf] %vm982, 0
      %v6197 = vld [vmem:[#allocation2 + $0x9c] sm:$0x1]
      %v6198 = vsel %vm988, 0, %v6197
      %6199 = vst [vmem:[#allocation2 + $0x9c] sm:$0x1] %v6198
      %6200 = vst.msk [vmem:[#allocation2 + $0xa0] sm:$0xf] %vm982, 0
      %6201 = vst.msk [vmem:[#allocation2 + $0xa4] sm:$0xf] %vm982, 0
      %6202 = vst.msk [vmem:[#allocation2 + $0xa8] sm:$0xf] %vm982, 0
      %v6203 = vld [vmem:[#allocation2 + $0xac] sm:$0x1]
      %v6204 = vsel %vm988, 0, %v6203
      %6205 = vst [vmem:[#allocation2 + $0xac] sm:$0x1] %v6204
      %6206 = vst.msk [vmem:[#allocation2 + $0xb0] sm:$0xf] %vm982, 0
      %6207 = vst.msk [vmem:[#allocation2 + $0xb4] sm:$0xf] %vm982, 0
      %6208 = vst.msk [vmem:[#allocation2 + $0xb8] sm:$0xf] %vm982, 0
      %v6209 = vld [vmem:[#allocation2 + $0xbc] sm:$0x1]
      %v6210 = vsel %vm988, 0, %v6209
      %6211 = vst [vmem:[#allocation2 + $0xbc] sm:$0x1] %v6210
      %6212 = vst.msk [vmem:[#allocation2 + $0xc0] sm:$0xf] %vm982, 0
      %6213 = vst.msk [vmem:[#allocation2 + $0xc4] sm:$0xf] %vm982, 0
      %6214 = vst.msk [vmem:[#allocation2 + $0xc8] sm:$0xf] %vm982, 0
      %v6215 = vld [vmem:[#allocation2 + $0xcc] sm:$0x1]
      %v6216 = vsel %vm988, 0, %v6215
      %6217 = vst [vmem:[#allocation2 + $0xcc] sm:$0x1] %v6216
      %6218 = vst.msk [vmem:[#allocation2 + $0xd0] sm:$0xf] %vm982, 0
      %6219 = vst.msk [vmem:[#allocation2 + $0xd4] sm:$0xf] %vm982, 0
      %6220 = vst.msk [vmem:[#allocation2 + $0xd8] sm:$0xf] %vm982, 0
      %v6221 = vld [vmem:[#allocation2 + $0xdc] sm:$0x1]
      %v6222 = vsel %vm988, 0, %v6221
      %6223 = vst [vmem:[#allocation2 + $0xdc] sm:$0x1] %v6222
      %6224 = vst.msk [vmem:[#allocation2 + $0xe0] sm:$0xf] %vm982, 0
      %6225 = vst.msk [vmem:[#allocation2 + $0xe4] sm:$0xf] %vm982, 0
      %6226 = vst.msk [vmem:[#allocation2 + $0xe8] sm:$0xf] %vm982, 0
      %v6227 = vld [vmem:[#allocation2 + $0xec] sm:$0x1]
      %v6228 = vsel %vm988, 0, %v6227
      %6229 = vst [vmem:[#allocation2 + $0xec] sm:$0x1] %v6228
      %6230 = vst.msk [vmem:[#allocation2 + $0xf0] sm:$0xf] %vm982, 0
      %6231 = vst.msk [vmem:[#allocation2 + $0xf4] sm:$0xf] %vm982, 0
      %6232 = vst.msk [vmem:[#allocation2 + $0xf8] sm:$0xf] %vm982, 0
      %v6233 = vld [vmem:[#allocation2 + $0xfc] sm:$0x1]
      %v6234 = vsel %vm988, 0, %v6233
      %6235 = vst [vmem:[#allocation2 + $0xfc] sm:$0x1] %v6234
      %6236 = vst.msk [vmem:[#allocation2 + $0x100] sm:$0xf] %vm982, 0
      %6237 = vst.msk [vmem:[#allocation2 + $0x104] sm:$0xf] %vm982, 0
      %6238 = vst.msk [vmem:[#allocation2 + $0x108] sm:$0xf] %vm982, 0
      %v6239 = vld [vmem:[#allocation2 + $0x10c] sm:$0x1]
      %v6240 = vsel %vm988, 0, %v6239
      %6241 = vst [vmem:[#allocation2 + $0x10c] sm:$0x1] %v6240
      %6242 = vst.msk [vmem:[#allocation2 + $0x110] sm:$0xf] %vm982, 0
      %6243 = vst.msk [vmem:[#allocation2 + $0x114] sm:$0xf] %vm982, 0
      %6244 = vst.msk [vmem:[#allocation2 + $0x118] sm:$0xf] %vm982, 0
      %v6245 = vld [vmem:[#allocation2 + $0x11c] sm:$0x1]
      %v6246 = vsel %vm988, 0, %v6245
      %6247 = vst [vmem:[#allocation2 + $0x11c] sm:$0x1] %v6246
      %v6264 = vunpack.c.l.b16 %v6087
      %v6265 = vunpack.c.h.b16 %v6087
      %v6266 = vunpack.c.l.b16 %v6088
      %v6267 = vunpack.c.h.b16 %v6088
      %v6268 = vunpack.c.l.b16 %v6089
      %v6269 = vunpack.c.h.b16 %v6089
      %v6270 = vunpack.c.l.b16 %v6090
      %v6271 = vunpack.c.h.b16 %v6090
      %v6272 = vunpack.c.l.b16 %v6091
      %v6273 = vunpack.c.h.b16 %v6091
      %v6274 = vunpack.c.l.b16 %v6092
      %v6275 = vunpack.c.h.b16 %v6092
      %v6276 = vunpack.c.l.b16 %v6093
      %v6277 = vunpack.c.h.b16 %v6093
      %v6278 = vunpack.c.l.b16 %v6094
      %v6279 = vunpack.c.h.b16 %v6094
      %v6280 = vunpack.c.l.b16 %v6095
      %v6281 = vunpack.c.h.b16 %v6095
      %v6282 = vunpack.c.l.b16 %v6096
      %v6283 = vunpack.c.h.b16 %v6096
      %v6284 = vunpack.c.l.b16 %v6097
      %v6285 = vunpack.c.h.b16 %v6097
      %v6286 = vunpack.c.l.b16 %v6098
      %v6287 = vunpack.c.h.b16 %v6098
      %v6288 = vunpack.c.l.b16 %v6099
      %v6289 = vunpack.c.h.b16 %v6099
      %v6290 = vunpack.c.l.b16 %v6100
      %v6291 = vunpack.c.h.b16 %v6100
      %v6292 = vunpack.c.l.b16 %v6101
      %v6293 = vunpack.c.h.b16 %v6101
      %v6294 = vunpack.c.l.b16 %v6102
      %v6295 = vunpack.c.h.b16 %v6102
      %v6296 = vpack.c.b16 %v6264, %v6264
      %v6297 = vpack.c.b16 %v6265, %v6265
      %v6298 = vpack.c.b16 %v6266, %v6266
      %v6299 = vpack.c.b16 %v6267, %v6267
      %v6300 = vpack.c.b16 %v6268, %v6268
      %v6301 = vpack.c.b16 %v6269, %v6269
      %v6302 = vpack.c.b16 %v6270, %v6270
      %v6303 = vpack.c.b16 %v6271, %v6271
      %v6304 = vpack.c.b16 %v6272, %v6272
      %v6305 = vpack.c.b16 %v6273, %v6273
      %v6306 = vpack.c.b16 %v6274, %v6274
      %v6307 = vpack.c.b16 %v6275, %v6275
      %v6308 = vpack.c.b16 %v6276, %v6276
      %v6309 = vpack.c.b16 %v6277, %v6277
      %v6310 = vpack.c.b16 %v6278, %v6278
      %v6311 = vpack.c.b16 %v6279, %v6279
      %v6312 = vpack.c.b16 %v6280, %v6280
      %v6313 = vpack.c.b16 %v6281, %v6281
      %v6314 = vpack.c.b16 %v6282, %v6282
      %v6315 = vpack.c.b16 %v6283, %v6283
      %v6316 = vpack.c.b16 %v6284, %v6284
      %v6317 = vpack.c.b16 %v6285, %v6285
      %v6318 = vpack.c.b16 %v6286, %v6286
      %v6319 = vpack.c.b16 %v6287, %v6287
      %v6320 = vpack.c.b16 %v6288, %v6288
      %v6321 = vpack.c.b16 %v6289, %v6289
      %v6322 = vpack.c.b16 %v6290, %v6290
      %v6323 = vpack.c.b16 %v6291, %v6291
      %v6324 = vpack.c.b16 %v6292, %v6292
      %v6325 = vpack.c.b16 %v6293, %v6293
      %v6326 = vpack.c.b16 %v6294, %v6294
      %v6327 = vpack.c.b16 %v6295, %v6295
      %vm6360 = vcmask 257024
      %6361 = vst.msk [vmem:[%s1190 + $0x4] sm:$0xf] %vm6360, %v6296
      %6362 = vst.msk [vmem:[%s1190 + $0x8] sm:$0xf] %vm6360, %v6297
      %6363 = vst.msk [vmem:[%s1190 + $0x14] sm:$0xf] %vm6360, %v6298
      %6364 = vst.msk [vmem:[%s1190 + $0x18] sm:$0xf] %vm6360, %v6299
      %6365 = vst.msk [vmem:[%s1190 + $0x24] sm:$0xf] %vm6360, %v6300
      %6366 = vst.msk [vmem:[%s1190 + $0x28] sm:$0xf] %vm6360, %v6301
      %6367 = vst.msk [vmem:[%s1190 + $0x34] sm:$0xf] %vm6360, %v6302
      %6368 = vst.msk [vmem:[%s1190 + $0x38] sm:$0xf] %vm6360, %v6303
      %6369 = vst.msk [vmem:[%s1190 + $0x44] sm:$0xf] %vm6360, %v6304
      %6370 = vst.msk [vmem:[%s1190 + $0x48] sm:$0xf] %vm6360, %v6305
      %6371 = vst.msk [vmem:[%s1190 + $0x54] sm:$0xf] %vm6360, %v6306
      %6372 = vst.msk [vmem:[%s1190 + $0x58] sm:$0xf] %vm6360, %v6307
      %6373 = vst.msk [vmem:[%s1190 + $0x64] sm:$0xf] %vm6360, %v6308
      %6374 = vst.msk [vmem:[%s1190 + $0x68] sm:$0xf] %vm6360, %v6309
      %6375 = vst.msk [vmem:[%s1190 + $0x74] sm:$0xf] %vm6360, %v6310
      %6376 = vst.msk [vmem:[%s1190 + $0x78] sm:$0xf] %vm6360, %v6311
      %6377 = vst.msk [vmem:[%s1190 + $0x84] sm:$0xf] %vm6360, %v6312
      %6378 = vst.msk [vmem:[%s1190 + $0x88] sm:$0xf] %vm6360, %v6313
      %6379 = vst.msk [vmem:[%s1190 + $0x94] sm:$0xf] %vm6360, %v6314
      %6380 = vst.msk [vmem:[%s1190 + $0x98] sm:$0xf] %vm6360, %v6315
      %6381 = vst.msk [vmem:[%s1190 + $0xa4] sm:$0xf] %vm6360, %v6316
      %6382 = vst.msk [vmem:[%s1190 + $0xa8] sm:$0xf] %vm6360, %v6317
      %6383 = vst.msk [vmem:[%s1190 + $0xb4] sm:$0xf] %vm6360, %v6318
      %6384 = vst.msk [vmem:[%s1190 + $0xb8] sm:$0xf] %vm6360, %v6319
      %6385 = vst.msk [vmem:[%s1190 + $0xc4] sm:$0xf] %vm6360, %v6320
      %6386 = vst.msk [vmem:[%s1190 + $0xc8] sm:$0xf] %vm6360, %v6321
      %6387 = vst.msk [vmem:[%s1190 + $0xd4] sm:$0xf] %vm6360, %v6322
      %6388 = vst.msk [vmem:[%s1190 + $0xd8] sm:$0xf] %vm6360, %v6323
      %6389 = vst.msk [vmem:[%s1190 + $0xe4] sm:$0xf] %vm6360, %v6324
      %6390 = vst.msk [vmem:[%s1190 + $0xe8] sm:$0xf] %vm6360, %v6325
      %6391 = vst.msk [vmem:[%s1190 + $0xf4] sm:$0xf] %vm6360, %v6326
      %6392 = vst.msk [vmem:[%s1190 + $0xf8] sm:$0xf] %vm6360, %v6327
      %v6393 = vld [vmem:[#allocation2] sm:$0x8]
      %v6394 = vld [vmem:[#allocation2 + $0x4] sm:$0xf]
      %v6395 = vld [vmem:[#allocation2 + $0x8] sm:$0xf]
      %v6396 = vld [vmem:[#allocation2 + $0x10] sm:$0x8]
      %v6397 = vld [vmem:[#allocation2 + $0x14] sm:$0xf]
      %v6398 = vld [vmem:[#allocation2 + $0x18] sm:$0xf]
      %v6399 = vld [vmem:[#allocation2 + $0x20] sm:$0x8]
      %v6400 = vld [vmem:[#allocation2 + $0x24] sm:$0xf]
      %v6401 = vld [vmem:[#allocation2 + $0x28] sm:$0xf]
      %v6402 = vld [vmem:[#allocation2 + $0x30] sm:$0x8]
      %v6403 = vld [vmem:[#allocation2 + $0x34] sm:$0xf]
      %v6404 = vld [vmem:[#allocation2 + $0x38] sm:$0xf]
      %v6405 = vld [vmem:[#allocation2 + $0x40] sm:$0x8]
      %v6406 = vld [vmem:[#allocation2 + $0x44] sm:$0xf]
      %v6407 = vld [vmem:[#allocation2 + $0x48] sm:$0xf]
      %v6408 = vld [vmem:[#allocation2 + $0x50] sm:$0x8]
      %v6409 = vld [vmem:[#allocation2 + $0x54] sm:$0xf]
      %v6410 = vld [vmem:[#allocation2 + $0x58] sm:$0xf]
      %v6411 = vld [vmem:[#allocation2 + $0x60] sm:$0x8]
      %v6412 = vld [vmem:[#allocation2 + $0x64] sm:$0xf]
      %v6413 = vld [vmem:[#allocation2 + $0x68] sm:$0xf]
      %v6414 = vld [vmem:[#allocation2 + $0x70] sm:$0x8]
      %v6415 = vld [vmem:[#allocation2 + $0x74] sm:$0xf]
      %v6416 = vld [vmem:[#allocation2 + $0x78] sm:$0xf]
      %v6417 = vld [vmem:[#allocation2 + $0x80] sm:$0x8]
      %v6418 = vld [vmem:[#allocation2 + $0x84] sm:$0xf]
      %v6419 = vld [vmem:[#allocation2 + $0x88] sm:$0xf]
      %v6420 = vld [vmem:[#allocation2 + $0x90] sm:$0x8]
      %v6421 = vld [vmem:[#allocation2 + $0x94] sm:$0xf]
      %v6422 = vld [vmem:[#allocation2 + $0x98] sm:$0xf]
      %v6423 = vld [vmem:[#allocation2 + $0xa0] sm:$0x8]
      %v6424 = vld [vmem:[#allocation2 + $0xa4] sm:$0xf]
      %v6425 = vld [vmem:[#allocation2 + $0xa8] sm:$0xf]
      %v6426 = vld [vmem:[#allocation2 + $0xb0] sm:$0x8]
      %v6427 = vld [vmem:[#allocation2 + $0xb4] sm:$0xf]
      %v6428 = vld [vmem:[#allocation2 + $0xb8] sm:$0xf]
      %v6429 = vld [vmem:[#allocation2 + $0xc0] sm:$0x8]
      %v6430 = vld [vmem:[#allocation2 + $0xc4] sm:$0xf]
      %v6431 = vld [vmem:[#allocation2 + $0xc8] sm:$0xf]
      %v6432 = vld [vmem:[#allocation2 + $0xd0] sm:$0x8]
      %v6433 = vld [vmem:[#allocation2 + $0xd4] sm:$0xf]
      %v6434 = vld [vmem:[#allocation2 + $0xd8] sm:$0xf]
      %v6435 = vld [vmem:[#allocation2 + $0xe0] sm:$0x8]
      %v6436 = vld [vmem:[#allocation2 + $0xe4] sm:$0xf]
      %v6437 = vld [vmem:[#allocation2 + $0xe8] sm:$0xf]
      %v6438 = vld [vmem:[#allocation2 + $0xf0] sm:$0x8]
      %v6439 = vld [vmem:[#allocation2 + $0xf4] sm:$0xf]
      %v6440 = vld [vmem:[#allocation2 + $0xf8] sm:$0xf]
      %v6441 = vld [vmem:[#allocation2 + $0x100] sm:$0x8]
      %v6442 = vld [vmem:[#allocation2 + $0x104] sm:$0xf]
      %v6443 = vld [vmem:[#allocation2 + $0x108] sm:$0xf]
      %v6444 = vld [vmem:[#allocation2 + $0x110] sm:$0x8]
      %v6445 = vld [vmem:[#allocation2 + $0x114] sm:$0xf]
      %v6446 = vld [vmem:[#allocation2 + $0x118] sm:$0xf]
      %v6448 = vshrl.u32 %v6393, 16
      %v6450 = vrot.slane %v6448, 7
      %v6451 = vrot.slane %v6450, 4
      %v6453 = vshrl.u32 %v6394, 16
      %v6455 = vrot.slane %v6453, 7
      %v6456 = vshll.u32 %v6394, 16
      %v6458 = vor.u32 %v6455, %v6456
      %v6459 = vsel %vm1278, %v6451, %v6458
      %v6460 = vrot.slane %v6455, 4
      %v6462 = vshrl.u32 %v6395, 16
      %v6464 = vrot.slane %v6462, 7
      %v6465 = vshll.u32 %v6395, 16
      %v6467 = vor.u32 %v6464, %v6465
      %v6468 = vsel %vm1278, %v6460, %v6467
      %v6470 = vshrl.u32 %v6396, 16
      %v6472 = vrot.slane %v6470, 7
      %v6473 = vrot.slane %v6472, 4
      %v6475 = vshrl.u32 %v6397, 16
      %v6477 = vrot.slane %v6475, 7
      %v6478 = vshll.u32 %v6397, 16
      %v6480 = vor.u32 %v6477, %v6478
      %v6481 = vsel %vm1278, %v6473, %v6480
      %v6482 = vrot.slane %v6477, 4
      %v6484 = vshrl.u32 %v6398, 16
      %v6486 = vrot.slane %v6484, 7
      %v6487 = vshll.u32 %v6398, 16
      %v6489 = vor.u32 %v6486, %v6487
      %v6490 = vsel %vm1278, %v6482, %v6489
      %v6492 = vshrl.u32 %v6399, 16
      %v6494 = vrot.slane %v6492, 7
      %v6495 = vrot.slane %v6494, 4
      %v6497 = vshrl.u32 %v6400, 16
      %v6499 = vrot.slane %v6497, 7
      %v6500 = vshll.u32 %v6400, 16
      %v6502 = vor.u32 %v6499, %v6500
      %v6503 = vsel %vm1278, %v6495, %v6502
      %v6504 = vrot.slane %v6499, 4
      %v6506 = vshrl.u32 %v6401, 16
      %v6508 = vrot.slane %v6506, 7
      %v6509 = vshll.u32 %v6401, 16
      %v6511 = vor.u32 %v6508, %v6509
      %v6512 = vsel %vm1278, %v6504, %v6511
      %v6514 = vshrl.u32 %v6402, 16
      %v6516 = vrot.slane %v6514, 7
      %v6517 = vrot.slane %v6516, 4
      %v6519 = vshrl.u32 %v6403, 16
      %v6521 = vrot.slane %v6519, 7
      %v6522 = vshll.u32 %v6403, 16
      %v6524 = vor.u32 %v6521, %v6522
      %v6525 = vsel %vm1278, %v6517, %v6524
      %v6526 = vrot.slane %v6521, 4
      %v6528 = vshrl.u32 %v6404, 16
      %v6530 = vrot.slane %v6528, 7
      %v6531 = vshll.u32 %v6404, 16
      %v6533 = vor.u32 %v6530, %v6531
      %v6534 = vsel %vm1278, %v6526, %v6533
      %v6536 = vshrl.u32 %v6405, 16
      %v6538 = vrot.slane %v6536, 7
      %v6539 = vrot.slane %v6538, 4
      %v6541 = vshrl.u32 %v6406, 16
      %v6543 = vrot.slane %v6541, 7
      %v6544 = vshll.u32 %v6406, 16
      %v6546 = vor.u32 %v6543, %v6544
      %v6547 = vsel %vm1278, %v6539, %v6546
      %v6548 = vrot.slane %v6543, 4
      %v6550 = vshrl.u32 %v6407, 16
      %v6552 = vrot.slane %v6550, 7
      %v6553 = vshll.u32 %v6407, 16
      %v6555 = vor.u32 %v6552, %v6553
      %v6556 = vsel %vm1278, %v6548, %v6555
      %v6558 = vshrl.u32 %v6408, 16
      %v6560 = vrot.slane %v6558, 7
      %v6561 = vrot.slane %v6560, 4
      %v6563 = vshrl.u32 %v6409, 16
      %v6565 = vrot.slane %v6563, 7
      %v6566 = vshll.u32 %v6409, 16
      %v6568 = vor.u32 %v6565, %v6566
      %v6569 = vsel %vm1278, %v6561, %v6568
      %v6570 = vrot.slane %v6565, 4
      %v6572 = vshrl.u32 %v6410, 16
      %v6574 = vrot.slane %v6572, 7
      %v6575 = vshll.u32 %v6410, 16
      %v6577 = vor.u32 %v6574, %v6575
      %v6578 = vsel %vm1278, %v6570, %v6577
      %v6580 = vshrl.u32 %v6411, 16
      %v6582 = vrot.slane %v6580, 7
      %v6583 = vrot.slane %v6582, 4
      %v6585 = vshrl.u32 %v6412, 16
      %v6587 = vrot.slane %v6585, 7
      %v6588 = vshll.u32 %v6412, 16
      %v6590 = vor.u32 %v6587, %v6588
      %v6591 = vsel %vm1278, %v6583, %v6590
      %v6592 = vrot.slane %v6587, 4
      %v6594 = vshrl.u32 %v6413, 16
      %v6596 = vrot.slane %v6594, 7
      %v6597 = vshll.u32 %v6413, 16
      %v6599 = vor.u32 %v6596, %v6597
      %v6600 = vsel %vm1278, %v6592, %v6599
      %v6602 = vshrl.u32 %v6414, 16
      %v6604 = vrot.slane %v6602, 7
      %v6605 = vrot.slane %v6604, 4
      %v6607 = vshrl.u32 %v6415, 16
      %v6609 = vrot.slane %v6607, 7
      %v6610 = vshll.u32 %v6415, 16
      %v6612 = vor.u32 %v6609, %v6610
      %v6613 = vsel %vm1278, %v6605, %v6612
      %v6614 = vrot.slane %v6609, 4
      %v6616 = vshrl.u32 %v6416, 16
      %v6618 = vrot.slane %v6616, 7
      %v6619 = vshll.u32 %v6416, 16
      %v6621 = vor.u32 %v6618, %v6619
      %v6622 = vsel %vm1278, %v6614, %v6621
      %v6624 = vshrl.u32 %v6417, 16
      %v6626 = vrot.slane %v6624, 7
      %v6627 = vrot.slane %v6626, 4
      %v6629 = vshrl.u32 %v6418, 16
      %v6631 = vrot.slane %v6629, 7
      %v6632 = vshll.u32 %v6418, 16
      %v6634 = vor.u32 %v6631, %v6632
      %v6635 = vsel %vm1278, %v6627, %v6634
      %v6636 = vrot.slane %v6631, 4
      %v6638 = vshrl.u32 %v6419, 16
      %v6640 = vrot.slane %v6638, 7
      %v6641 = vshll.u32 %v6419, 16
      %v6643 = vor.u32 %v6640, %v6641
      %v6644 = vsel %vm1278, %v6636, %v6643
      %v6646 = vshrl.u32 %v6420, 16
      %v6648 = vrot.slane %v6646, 7
      %v6649 = vrot.slane %v6648, 4
      %v6651 = vshrl.u32 %v6421, 16
      %v6653 = vrot.slane %v6651, 7
      %v6654 = vshll.u32 %v6421, 16
      %v6656 = vor.u32 %v6653, %v6654
      %v6657 = vsel %vm1278, %v6649, %v6656
      %v6658 = vrot.slane %v6653, 4
      %v6660 = vshrl.u32 %v6422, 16
      %v6662 = vrot.slane %v6660, 7
      %v6663 = vshll.u32 %v6422, 16
      %v6665 = vor.u32 %v6662, %v6663
      %v6666 = vsel %vm1278, %v6658, %v6665
      %v6668 = vshrl.u32 %v6423, 16
      %v6670 = vrot.slane %v6668, 7
      %v6671 = vrot.slane %v6670, 4
      %v6673 = vshrl.u32 %v6424, 16
      %v6675 = vrot.slane %v6673, 7
      %v6676 = vshll.u32 %v6424, 16
      %v6678 = vor.u32 %v6675, %v6676
      %v6679 = vsel %vm1278, %v6671, %v6678
      %v6680 = vrot.slane %v6675, 4
      %v6682 = vshrl.u32 %v6425, 16
      %v6684 = vrot.slane %v6682, 7
      %v6685 = vshll.u32 %v6425, 16
      %v6687 = vor.u32 %v6684, %v6685
      %v6688 = vsel %vm1278, %v6680, %v6687
      %v6690 = vshrl.u32 %v6426, 16
      %v6692 = vrot.slane %v6690, 7
      %v6693 = vrot.slane %v6692, 4
      %v6695 = vshrl.u32 %v6427, 16
      %v6697 = vrot.slane %v6695, 7
      %v6698 = vshll.u32 %v6427, 16
      %v6700 = vor.u32 %v6697, %v6698
      %v6701 = vsel %vm1278, %v6693, %v6700
      %v6702 = vrot.slane %v6697, 4
      %v6704 = vshrl.u32 %v6428, 16
      %v6706 = vrot.slane %v6704, 7
      %v6707 = vshll.u32 %v6428, 16
      %v6709 = vor.u32 %v6706, %v6707
      %v6710 = vsel %vm1278, %v6702, %v6709
      %v6712 = vshrl.u32 %v6429, 16
      %v6714 = vrot.slane %v6712, 7
      %v6715 = vrot.slane %v6714, 4
      %v6717 = vshrl.u32 %v6430, 16
      %v6719 = vrot.slane %v6717, 7
      %v6720 = vshll.u32 %v6430, 16
      %v6722 = vor.u32 %v6719, %v6720
      %v6723 = vsel %vm1278, %v6715, %v6722
      %v6724 = vrot.slane %v6719, 4
      %v6726 = vshrl.u32 %v6431, 16
      %v6728 = vrot.slane %v6726, 7
      %v6729 = vshll.u32 %v6431, 16
      %v6731 = vor.u32 %v6728, %v6729
      %v6732 = vsel %vm1278, %v6724, %v6731
      %v6734 = vshrl.u32 %v6432, 16
      %v6736 = vrot.slane %v6734, 7
      %v6737 = vrot.slane %v6736, 4
      %v6739 = vshrl.u32 %v6433, 16
      %v6741 = vrot.slane %v6739, 7
      %v6742 = vshll.u32 %v6433, 16
      %v6744 = vor.u32 %v6741, %v6742
      %v6745 = vsel %vm1278, %v6737, %v6744
      %v6746 = vrot.slane %v6741, 4
      %v6748 = vshrl.u32 %v6434, 16
      %v6750 = vrot.slane %v6748, 7
      %v6751 = vshll.u32 %v6434, 16
      %v6753 = vor.u32 %v6750, %v6751
      %v6754 = vsel %vm1278, %v6746, %v6753
      %v6756 = vshrl.u32 %v6435, 16
      %v6758 = vrot.slane %v6756, 7
      %v6759 = vrot.slane %v6758, 4
      %v6761 = vshrl.u32 %v6436, 16
      %v6763 = vrot.slane %v6761, 7
      %v6764 = vshll.u32 %v6436, 16
      %v6766 = vor.u32 %v6763, %v6764
      %v6767 = vsel %vm1278, %v6759, %v6766
      %v6768 = vrot.slane %v6763, 4
      %v6770 = vshrl.u32 %v6437, 16
      %v6772 = vrot.slane %v6770, 7
      %v6773 = vshll.u32 %v6437, 16
      %v6775 = vor.u32 %v6772, %v6773
      %v6776 = vsel %vm1278, %v6768, %v6775
      %v6778 = vshrl.u32 %v6438, 16
      %v6780 = vrot.slane %v6778, 7
      %v6781 = vrot.slane %v6780, 4
      %v6783 = vshrl.u32 %v6439, 16
      %v6785 = vrot.slane %v6783, 7
      %v6786 = vshll.u32 %v6439, 16
      %v6788 = vor.u32 %v6785, %v6786
      %v6789 = vsel %vm1278, %v6781, %v6788
      %v6790 = vrot.slane %v6785, 4
      %v6792 = vshrl.u32 %v6440, 16
      %v6794 = vrot.slane %v6792, 7
      %v6795 = vshll.u32 %v6440, 16
      %v6797 = vor.u32 %v6794, %v6795
      %v6798 = vsel %vm1278, %v6790, %v6797
      %v6799 = vunpack.c.l.b16 %v6459
      %v6800 = vunpack.c.l.b16 %v6468
      %v6801 = vunpack.c.l.b16 %v6481
      %v6802 = vunpack.c.l.b16 %v6490
      %v6803 = vunpack.c.l.b16 %v6503
      %v6804 = vunpack.c.l.b16 %v6512
      %v6805 = vunpack.c.l.b16 %v6525
      %v6806 = vunpack.c.l.b16 %v6534
      %v6807 = vunpack.c.l.b16 %v6547
      %v6808 = vunpack.c.l.b16 %v6556
      %v6809 = vunpack.c.l.b16 %v6569
      %v6810 = vunpack.c.l.b16 %v6578
      %v6811 = vunpack.c.l.b16 %v6591
      %v6812 = vunpack.c.l.b16 %v6600
      %v6813 = vunpack.c.l.b16 %v6613
      %v6814 = vunpack.c.l.b16 %v6622
      %v6815 = vunpack.c.l.b16 %v6635
      %v6816 = vunpack.c.l.b16 %v6644
      %v6817 = vunpack.c.l.b16 %v6657
      %v6818 = vunpack.c.l.b16 %v6666
      %v6819 = vunpack.c.l.b16 %v6679
      %v6820 = vunpack.c.l.b16 %v6688
      %v6821 = vunpack.c.l.b16 %v6701
      %v6822 = vunpack.c.l.b16 %v6710
      %v6823 = vunpack.c.l.b16 %v6723
      %v6824 = vunpack.c.l.b16 %v6732
      %v6825 = vunpack.c.l.b16 %v6745
      %v6826 = vunpack.c.l.b16 %v6754
      %v6827 = vunpack.c.l.b16 %v6767
      %v6828 = vunpack.c.l.b16 %v6776
      %v6829 = vunpack.c.l.b16 %v6789
      %v6830 = vunpack.c.l.b16 %v6798
      %v6831 = vpack.c.b16 %v6800, %v6799
      %v6832 = vpack.c.b16 %v6802, %v6801
      %v6833 = vpack.c.b16 %v6804, %v6803
      %v6834 = vpack.c.b16 %v6806, %v6805
      %v6835 = vpack.c.b16 %v6808, %v6807
      %v6836 = vpack.c.b16 %v6810, %v6809
      %v6837 = vpack.c.b16 %v6812, %v6811
      %v6838 = vpack.c.b16 %v6814, %v6813
      %v6839 = vpack.c.b16 %v6816, %v6815
      %v6840 = vpack.c.b16 %v6818, %v6817
      %v6841 = vpack.c.b16 %v6820, %v6819
      %v6842 = vpack.c.b16 %v6822, %v6821
      %v6843 = vpack.c.b16 %v6824, %v6823
      %v6844 = vpack.c.b16 %v6826, %v6825
      %v6845 = vpack.c.b16 %v6828, %v6827
      %v6846 = vpack.c.b16 %v6830, %v6829
      %6863 = vst.msk [vmem:[#allocation3] sm:$0xff] %vm524, %v6831
      %6864 = vst.msk [vmem:[#allocation3 + $0x20] sm:$0xff] %vm524, %v6832
      %6865 = vst.msk [vmem:[#allocation3 + $0x40] sm:$0xff] %vm524, %v6833
      %6866 = vst.msk [vmem:[#allocation3 + $0x60] sm:$0xff] %vm524, %v6834
      %6867 = vst.msk [vmem:[#allocation3 + $0x80] sm:$0xff] %vm524, %v6835
      %6868 = vst.msk [vmem:[#allocation3 + $0xa0] sm:$0xff] %vm524, %v6836
      %6869 = vst.msk [vmem:[#allocation3 + $0xc0] sm:$0xff] %vm524, %v6837
      %6870 = vst.msk [vmem:[#allocation3 + $0xe0] sm:$0xff] %vm524, %v6838
      %6871 = vst.msk [vmem:[#allocation3 + $0x100] sm:$0xff] %vm524, %v6839
      %6872 = vst.msk [vmem:[#allocation3 + $0x120] sm:$0xff] %vm524, %v6840
      %6873 = vst.msk [vmem:[#allocation3 + $0x140] sm:$0xff] %vm524, %v6841
      %6874 = vst.msk [vmem:[#allocation3 + $0x160] sm:$0xff] %vm524, %v6842
      %6875 = vst.msk [vmem:[#allocation3 + $0x180] sm:$0xff] %vm524, %v6843
      %6876 = vst.msk [vmem:[#allocation3 + $0x1a0] sm:$0xff] %vm524, %v6844
      %6877 = vst.msk [vmem:[#allocation3 + $0x1c0] sm:$0xff] %vm524, %v6845
      %6878 = vst.msk [vmem:[#allocation3 + $0x1e0] sm:$0xff] %vm524, %v6846
      %v6880 = vshrl.u32 %v6441, 16
      %v6882 = vrot.slane %v6880, 7
      %v6883 = vrot.slane %v6882, 4
      %v6885 = vshrl.u32 %v6442, 16
      %v6887 = vrot.slane %v6885, 7
      %v6888 = vshll.u32 %v6442, 16
      %v6890 = vor.u32 %v6887, %v6888
      %v6891 = vsel %vm1278, %v6883, %v6890
      %v6892 = vrot.slane %v6887, 4
      %v6894 = vshrl.u32 %v6443, 16
      %v6896 = vrot.slane %v6894, 7
      %v6897 = vshll.u32 %v6443, 16
      %v6899 = vor.u32 %v6896, %v6897
      %v6900 = vsel %vm1278, %v6892, %v6899
      %v6901 = vunpack.c.l.b16 %v6891
      %v6902 = vunpack.c.l.b16 %v6900
      %v6903 = vpack.c.b16 %v6902, %v6901
      %6904 = vrot.lane.b32.xlu0 %v6832, 96
      %v6905 = vpop.permute.xlu0 %6904
      %6906 = vrot.lane.b32.xlu0 %v6833, 96
      %v6907 = vpop.permute.xlu0 %6906
      %6908 = vrot.lane.b32.xlu0 %v6834, 96
      %v6909 = vpop.permute.xlu0 %6908
      %6910 = vrot.lane.b32.xlu0 %v6835, 96
      %v6911 = vpop.permute.xlu0 %6910
      %6912 = vrot.lane.b32.xlu0 %v6836, 96
      %v6913 = vpop.permute.xlu0 %6912
      %6914 = vrot.lane.b32.xlu0 %v6837, 96
      %v6915 = vpop.permute.xlu0 %6914
      %6916 = vrot.lane.b32.xlu0 %v6838, 96
      %v6917 = vpop.permute.xlu0 %6916
      %6918 = vrot.lane.b32.xlu0 %v6839, 96
      %v6919 = vpop.permute.xlu0 %6918
      %6920 = vrot.lane.b32.xlu0 %v6840, 96
      %v6921 = vpop.permute.xlu0 %6920
      %6922 = vrot.lane.b32.xlu0 %v6841, 96
      %v6923 = vpop.permute.xlu0 %6922
      %6924 = vrot.lane.b32.xlu0 %v6842, 96
      %v6925 = vpop.permute.xlu0 %6924
      %6926 = vrot.lane.b32.xlu0 %v6843, 96
      %v6927 = vpop.permute.xlu0 %6926
      %6928 = vrot.lane.b32.xlu0 %v6844, 96
      %v6929 = vpop.permute.xlu0 %6928
      %6930 = vrot.lane.b32.xlu0 %v6845, 96
      %v6931 = vpop.permute.xlu0 %6930
      %6932 = vrot.lane.b32.xlu0 %v6846, 96
      %v6933 = vpop.permute.xlu0 %6932
      %6934 = vrot.lane.b32.xlu0 %v6903, 96
      %v6935 = vpop.permute.xlu0 %6934
      %6952 = vst.msk [vmem:[#allocation3] sm:$0xff] %vm2750, %v6905
      %6953 = vst.msk [vmem:[#allocation3 + $0x20] sm:$0xff] %vm2750, %v6907
      %6954 = vst.msk [vmem:[#allocation3 + $0x40] sm:$0xff] %vm2750, %v6909
      %6955 = vst.msk [vmem:[#allocation3 + $0x60] sm:$0xff] %vm2750, %v6911
      %6956 = vst.msk [vmem:[#allocation3 + $0x80] sm:$0xff] %vm2750, %v6913
      %6957 = vst.msk [vmem:[#allocation3 + $0xa0] sm:$0xff] %vm2750, %v6915
      %6958 = vst.msk [vmem:[#allocation3 + $0xc0] sm:$0xff] %vm2750, %v6917
      %6959 = vst.msk [vmem:[#allocation3 + $0xe0] sm:$0xff] %vm2750, %v6919
      %6960 = vst.msk [vmem:[#allocation3 + $0x100] sm:$0xff] %vm2750, %v6921
      %6961 = vst.msk [vmem:[#allocation3 + $0x120] sm:$0xff] %vm2750, %v6923
      %6962 = vst.msk [vmem:[#allocation3 + $0x140] sm:$0xff] %vm2750, %v6925
      %6963 = vst.msk [vmem:[#allocation3 + $0x160] sm:$0xff] %vm2750, %v6927
      %6964 = vst.msk [vmem:[#allocation3 + $0x180] sm:$0xff] %vm2750, %v6929
      %6965 = vst.msk [vmem:[#allocation3 + $0x1a0] sm:$0xff] %vm2750, %v6931
      %6966 = vst.msk [vmem:[#allocation3 + $0x1c0] sm:$0xff] %vm2750, %v6933
      %6967 = vst.msk [vmem:[#allocation3 + $0x1e0] sm:$0xff] %vm2750, %v6935
      %v6969 = vshrl.u32 %v6444, 16
      %v6971 = vrot.slane %v6969, 7
      %v6972 = vrot.slane %v6971, 4
      %v6974 = vshrl.u32 %v6445, 16
      %v6976 = vrot.slane %v6974, 7
      %v6977 = vshll.u32 %v6445, 16
      %v6979 = vor.u32 %v6976, %v6977
      %v6980 = vsel %vm1278, %v6972, %v6979
      %v6981 = vrot.slane %v6976, 4
      %v6983 = vshrl.u32 %v6446, 16
      %v6985 = vrot.slane %v6983, 7
      %v6986 = vshll.u32 %v6446, 16
      %v6988 = vor.u32 %v6985, %v6986
      %v6989 = vsel %vm1278, %v6981, %v6988
      %v6990 = vunpack.c.l.b16 %v6980
      %v6991 = vunpack.c.l.b16 %v6989
      %v6992 = vpack.c.b16 %v6991, %v6990
      %6993 = vrot.lane.b32.xlu0 %v6833, 64
      %v6994 = vpop.permute.xlu0 %6993
      %6995 = vrot.lane.b32.xlu0 %v6834, 64
      %v6996 = vpop.permute.xlu0 %6995
      %6997 = vrot.lane.b32.xlu0 %v6835, 64
      %v6998 = vpop.permute.xlu0 %6997
      %6999 = vrot.lane.b32.xlu0 %v6836, 64
      %v7000 = vpop.permute.xlu0 %6999
      %7001 = vrot.lane.b32.xlu0 %v6837, 64
      %v7002 = vpop.permute.xlu0 %7001
      %7003 = vrot.lane.b32.xlu0 %v6838, 64
      %v7004 = vpop.permute.xlu0 %7003
      %7005 = vrot.lane.b32.xlu0 %v6839, 64
      %v7006 = vpop.permute.xlu0 %7005
      %7007 = vrot.lane.b32.xlu0 %v6840, 64
      %v7008 = vpop.permute.xlu0 %7007
      %7009 = vrot.lane.b32.xlu0 %v6841, 64
      %v7010 = vpop.permute.xlu0 %7009
      %7011 = vrot.lane.b32.xlu0 %v6842, 64
      %v7012 = vpop.permute.xlu0 %7011
      %7013 = vrot.lane.b32.xlu0 %v6843, 64
      %v7014 = vpop.permute.xlu0 %7013
      %7015 = vrot.lane.b32.xlu0 %v6844, 64
      %v7016 = vpop.permute.xlu0 %7015
      %7017 = vrot.lane.b32.xlu0 %v6845, 64
      %v7018 = vpop.permute.xlu0 %7017
      %7019 = vrot.lane.b32.xlu0 %v6846, 64
      %v7020 = vpop.permute.xlu0 %7019
      %7021 = vrot.lane.b32.xlu0 %v6903, 64
      %v7022 = vpop.permute.xlu0 %7021
      %7023 = vrot.lane.b32.xlu0 %v6992, 64
      %v7024 = vpop.permute.xlu0 %7023
      %vm7041 = vcmask 785920
      %7042 = vst.msk [vmem:[#allocation3 + $0x8] sm:$0xff] %vm7041, %v6994
      %7043 = vst.msk [vmem:[#allocation3 + $0x28] sm:$0xff] %vm7041, %v6996
      %7044 = vst.msk [vmem:[#allocation3 + $0x48] sm:$0xff] %vm7041, %v6998
      %7045 = vst.msk [vmem:[#allocation3 + $0x68] sm:$0xff] %vm7041, %v7000
      %7046 = vst.msk [vmem:[#allocation3 + $0x88] sm:$0xff] %vm7041, %v7002
      %7047 = vst.msk [vmem:[#allocation3 + $0xa8] sm:$0xff] %vm7041, %v7004
      %7048 = vst.msk [vmem:[#allocation3 + $0xc8] sm:$0xff] %vm7041, %v7006
      %7049 = vst.msk [vmem:[#allocation3 + $0xe8] sm:$0xff] %vm7041, %v7008
      %7050 = vst.msk [vmem:[#allocation3 + $0x108] sm:$0xff] %vm7041, %v7010
      %7051 = vst.msk [vmem:[#allocation3 + $0x128] sm:$0xff] %vm7041, %v7012
      %7052 = vst.msk [vmem:[#allocation3 + $0x148] sm:$0xff] %vm7041, %v7014
      %7053 = vst.msk [vmem:[#allocation3 + $0x168] sm:$0xff] %vm7041, %v7016
      %7054 = vst.msk [vmem:[#allocation3 + $0x188] sm:$0xff] %vm7041, %v7018
      %7055 = vst.msk [vmem:[#allocation3 + $0x1a8] sm:$0xff] %vm7041, %v7020
      %7056 = vst.msk [vmem:[#allocation3 + $0x1c8] sm:$0xff] %vm7041, %v7022
      %7057 = vst.msk [vmem:[#allocation3 + $0x1e8] sm:$0xff] %vm7041, %v7024
      %v7058 = vld [vmem:[#allocation2 + $0x4] sm:$0xf]
      %v7059 = vld [vmem:[#allocation2 + $0x8] sm:$0xf]
      %v7060 = vld [vmem:[#allocation2 + $0x14] sm:$0xf]
      %v7061 = vld [vmem:[#allocation2 + $0x18] sm:$0xf]
      %v7062 = vld [vmem:[#allocation2 + $0x24] sm:$0xf]
      %v7063 = vld [vmem:[#allocation2 + $0x28] sm:$0xf]
      %v7064 = vld [vmem:[#allocation2 + $0x34] sm:$0xf]
      %v7065 = vld [vmem:[#allocation2 + $0x38] sm:$0xf]
      %v7066 = vld [vmem:[#allocation2 + $0x44] sm:$0xf]
      %v7067 = vld [vmem:[#allocation2 + $0x48] sm:$0xf]
      %v7068 = vld [vmem:[#allocation2 + $0x54] sm:$0xf]
      %v7069 = vld [vmem:[#allocation2 + $0x58] sm:$0xf]
      %v7070 = vld [vmem:[#allocation2 + $0x64] sm:$0xf]
      %v7071 = vld [vmem:[#allocation2 + $0x68] sm:$0xf]
      %v7072 = vld [vmem:[#allocation2 + $0x74] sm:$0xf]
      %v7073 = vld [vmem:[#allocation2 + $0x78] sm:$0xf]
      %v7074 = vld [vmem:[#allocation2 + $0x84] sm:$0xf]
      %v7075 = vld [vmem:[#allocation2 + $0x88] sm:$0xf]
      %v7076 = vld [vmem:[#allocation2 + $0x94] sm:$0xf]
      %v7077 = vld [vmem:[#allocation2 + $0x98] sm:$0xf]
      %v7078 = vld [vmem:[#allocation2 + $0xa4] sm:$0xf]
      %v7079 = vld [vmem:[#allocation2 + $0xa8] sm:$0xf]
      %v7080 = vld [vmem:[#allocation2 + $0xb4] sm:$0xf]
      %v7081 = vld [vmem:[#allocation2 + $0xb8] sm:$0xf]
      %v7082 = vld [vmem:[#allocation2 + $0xc4] sm:$0xf]
      %v7083 = vld [vmem:[#allocation2 + $0xc8] sm:$0xf]
      %v7084 = vld [vmem:[#allocation2 + $0xd4] sm:$0xf]
      %v7085 = vld [vmem:[#allocation2 + $0xd8] sm:$0xf]
      %v7086 = vld [vmem:[#allocation2 + $0xe4] sm:$0xf]
      %v7087 = vld [vmem:[#allocation2 + $0xe8] sm:$0xf]
      %v7088 = vld [vmem:[#allocation2 + $0xf4] sm:$0xf]
      %v7089 = vld [vmem:[#allocation2 + $0xf8] sm:$0xf]
      %v7090 = vld [vmem:[#allocation2 + $0x104] sm:$0xf]
      %v7091 = vld [vmem:[#allocation2 + $0x108] sm:$0xf]
      %v7092 = vld [vmem:[#allocation2 + $0x114] sm:$0xf]
      %v7093 = vld [vmem:[#allocation2 + $0x118] sm:$0xf]
      %v7126 = vunpack.c.l.b16 %v7058
      %v7127 = vunpack.c.l.b16 %v7059
      %v7128 = vunpack.c.l.b16 %v7060
      %v7129 = vunpack.c.l.b16 %v7061
      %v7130 = vunpack.c.l.b16 %v7062
      %v7131 = vunpack.c.l.b16 %v7063
      %v7132 = vunpack.c.l.b16 %v7064
      %v7133 = vunpack.c.l.b16 %v7065
      %v7134 = vunpack.c.l.b16 %v7066
      %v7135 = vunpack.c.l.b16 %v7067
      %v7136 = vunpack.c.l.b16 %v7068
      %v7137 = vunpack.c.l.b16 %v7069
      %v7138 = vunpack.c.l.b16 %v7070
      %v7139 = vunpack.c.l.b16 %v7071
      %v7140 = vunpack.c.l.b16 %v7072
      %v7141 = vunpack.c.l.b16 %v7073
      %v7142 = vunpack.c.l.b16 %v7074
      %v7143 = vunpack.c.l.b16 %v7075
      %v7144 = vunpack.c.l.b16 %v7076
      %v7145 = vunpack.c.l.b16 %v7077
      %v7146 = vunpack.c.l.b16 %v7078
      %v7147 = vunpack.c.l.b16 %v7079
      %v7148 = vunpack.c.l.b16 %v7080
      %v7149 = vunpack.c.l.b16 %v7081
      %v7150 = vunpack.c.l.b16 %v7082
      %v7151 = vunpack.c.l.b16 %v7083
      %v7152 = vunpack.c.l.b16 %v7084
      %v7153 = vunpack.c.l.b16 %v7085
      %v7154 = vunpack.c.l.b16 %v7086
      %v7155 = vunpack.c.l.b16 %v7087
      %v7156 = vunpack.c.l.b16 %v7088
      %v7157 = vunpack.c.l.b16 %v7089
      %v7158 = vpack.c.b16 %v7127, %v7126
      %v7159 = vpack.c.b16 %v7129, %v7128
      %v7160 = vpack.c.b16 %v7131, %v7130
      %v7161 = vpack.c.b16 %v7133, %v7132
      %v7162 = vpack.c.b16 %v7135, %v7134
      %v7163 = vpack.c.b16 %v7137, %v7136
      %v7164 = vpack.c.b16 %v7139, %v7138
      %v7165 = vpack.c.b16 %v7141, %v7140
      %v7166 = vpack.c.b16 %v7143, %v7142
      %v7167 = vpack.c.b16 %v7145, %v7144
      %v7168 = vpack.c.b16 %v7147, %v7146
      %v7169 = vpack.c.b16 %v7149, %v7148
      %v7170 = vpack.c.b16 %v7151, %v7150
      %v7171 = vpack.c.b16 %v7153, %v7152
      %v7172 = vpack.c.b16 %v7155, %v7154
      %v7173 = vpack.c.b16 %v7157, %v7156
      %7174 = vrot.lane.b32.xlu0 %v7158, 32
      %v7175 = vpop.permute.xlu0 %7174
      %7176 = vrot.lane.b32.xlu0 %v7159, 32
      %v7177 = vpop.permute.xlu0 %7176
      %7178 = vrot.lane.b32.xlu0 %v7160, 32
      %v7179 = vpop.permute.xlu0 %7178
      %7180 = vrot.lane.b32.xlu0 %v7161, 32
      %v7181 = vpop.permute.xlu0 %7180
      %7182 = vrot.lane.b32.xlu0 %v7162, 32
      %v7183 = vpop.permute.xlu0 %7182
      %7184 = vrot.lane.b32.xlu0 %v7163, 32
      %v7185 = vpop.permute.xlu0 %7184
      %7186 = vrot.lane.b32.xlu0 %v7164, 32
      %v7187 = vpop.permute.xlu0 %7186
      %7188 = vrot.lane.b32.xlu0 %v7165, 32
      %v7189 = vpop.permute.xlu0 %7188
      %7190 = vrot.lane.b32.xlu0 %v7166, 32
      %v7191 = vpop.permute.xlu0 %7190
      %7192 = vrot.lane.b32.xlu0 %v7167, 32
      %v7193 = vpop.permute.xlu0 %7192
      %7194 = vrot.lane.b32.xlu0 %v7168, 32
      %v7195 = vpop.permute.xlu0 %7194
      %7196 = vrot.lane.b32.xlu0 %v7169, 32
      %v7197 = vpop.permute.xlu0 %7196
      %7198 = vrot.lane.b32.xlu0 %v7170, 32
      %v7199 = vpop.permute.xlu0 %7198
      %7200 = vrot.lane.b32.xlu0 %v7171, 32
      %v7201 = vpop.permute.xlu0 %7200
      %7202 = vrot.lane.b32.xlu0 %v7172, 32
      %v7203 = vpop.permute.xlu0 %7202
      %7204 = vrot.lane.b32.xlu0 %v7173, 32
      %v7205 = vpop.permute.xlu0 %7204
      %vm7222 = vcmask 523520
      %7223 = vst.msk [vmem:[#allocation3] sm:$0xff] %vm7222, %v7175
      %7224 = vst.msk [vmem:[#allocation3 + $0x20] sm:$0xff] %vm7222, %v7177
      %7225 = vst.msk [vmem:[#allocation3 + $0x40] sm:$0xff] %vm7222, %v7179
      %7226 = vst.msk [vmem:[#allocation3 + $0x60] sm:$0xff] %vm7222, %v7181
      %7227 = vst.msk [vmem:[#allocation3 + $0x80] sm:$0xff] %vm7222, %v7183
      %7228 = vst.msk [vmem:[#allocation3 + $0xa0] sm:$0xff] %vm7222, %v7185
      %7229 = vst.msk [vmem:[#allocation3 + $0xc0] sm:$0xff] %vm7222, %v7187
      %7230 = vst.msk [vmem:[#allocation3 + $0xe0] sm:$0xff] %vm7222, %v7189
      %7231 = vst.msk [vmem:[#allocation3 + $0x100] sm:$0xff] %vm7222, %v7191
      %7232 = vst.msk [vmem:[#allocation3 + $0x120] sm:$0xff] %vm7222, %v7193
      %7233 = vst.msk [vmem:[#allocation3 + $0x140] sm:$0xff] %vm7222, %v7195
      %7234 = vst.msk [vmem:[#allocation3 + $0x160] sm:$0xff] %vm7222, %v7197
      %7235 = vst.msk [vmem:[#allocation3 + $0x180] sm:$0xff] %vm7222, %v7199
      %7236 = vst.msk [vmem:[#allocation3 + $0x1a0] sm:$0xff] %vm7222, %v7201
      %7237 = vst.msk [vmem:[#allocation3 + $0x1c0] sm:$0xff] %vm7222, %v7203
      %7238 = vst.msk [vmem:[#allocation3 + $0x1e0] sm:$0xff] %vm7222, %v7205
      %v7241 = vunpack.c.l.b16 %v7090
      %v7242 = vunpack.c.l.b16 %v7091
      %v7243 = vpack.c.b16 %v7242, %v7241
      %7260 = vst.msk [vmem:[#allocation3 + $0x8] sm:$0xff] %vm524, %v7159
      %7261 = vst.msk [vmem:[#allocation3 + $0x28] sm:$0xff] %vm524, %v7160
      %7262 = vst.msk [vmem:[#allocation3 + $0x48] sm:$0xff] %vm524, %v7161
      %7263 = vst.msk [vmem:[#allocation3 + $0x68] sm:$0xff] %vm524, %v7162
      %7264 = vst.msk [vmem:[#allocation3 + $0x88] sm:$0xff] %vm524, %v7163
      %7265 = vst.msk [vmem:[#allocation3 + $0xa8] sm:$0xff] %vm524, %v7164
      %7266 = vst.msk [vmem:[#allocation3 + $0xc8] sm:$0xff] %vm524, %v7165
      %7267 = vst.msk [vmem:[#allocation3 + $0xe8] sm:$0xff] %vm524, %v7166
      %7268 = vst.msk [vmem:[#allocation3 + $0x108] sm:$0xff] %vm524, %v7167
      %7269 = vst.msk [vmem:[#allocation3 + $0x128] sm:$0xff] %vm524, %v7168
      %7270 = vst.msk [vmem:[#allocation3 + $0x148] sm:$0xff] %vm524, %v7169
      %7271 = vst.msk [vmem:[#allocation3 + $0x168] sm:$0xff] %vm524, %v7170
      %7272 = vst.msk [vmem:[#allocation3 + $0x188] sm:$0xff] %vm524, %v7171
      %7273 = vst.msk [vmem:[#allocation3 + $0x1a8] sm:$0xff] %vm524, %v7172
      %7274 = vst.msk [vmem:[#allocation3 + $0x1c8] sm:$0xff] %vm524, %v7173
      %7275 = vst.msk [vmem:[#allocation3 + $0x1e8] sm:$0xff] %vm524, %v7243
      %v7278 = vunpack.c.l.b16 %v7092
      %v7279 = vunpack.c.l.b16 %v7093
      %v7280 = vpack.c.b16 %v7279, %v7278
      %7281 = vrot.lane.b32.xlu0 %v7160, 96
      %v7282 = vpop.permute.xlu0 %7281
      %7283 = vrot.lane.b32.xlu0 %v7161, 96
      %v7284 = vpop.permute.xlu0 %7283
      %7285 = vrot.lane.b32.xlu0 %v7162, 96
      %v7286 = vpop.permute.xlu0 %7285
      %7287 = vrot.lane.b32.xlu0 %v7163, 96
      %v7288 = vpop.permute.xlu0 %7287
      %7289 = vrot.lane.b32.xlu0 %v7164, 96
      %v7290 = vpop.permute.xlu0 %7289
      %7291 = vrot.lane.b32.xlu0 %v7165, 96
      %v7292 = vpop.permute.xlu0 %7291
      %7293 = vrot.lane.b32.xlu0 %v7166, 96
      %v7294 = vpop.permute.xlu0 %7293
      %7295 = vrot.lane.b32.xlu0 %v7167, 96
      %v7296 = vpop.permute.xlu0 %7295
      %7297 = vrot.lane.b32.xlu0 %v7168, 96
      %v7298 = vpop.permute.xlu0 %7297
      %7299 = vrot.lane.b32.xlu0 %v7169, 96
      %v7300 = vpop.permute.xlu0 %7299
      %7301 = vrot.lane.b32.xlu0 %v7170, 96
      %v7302 = vpop.permute.xlu0 %7301
      %7303 = vrot.lane.b32.xlu0 %v7171, 96
      %v7304 = vpop.permute.xlu0 %7303
      %7305 = vrot.lane.b32.xlu0 %v7172, 96
      %v7306 = vpop.permute.xlu0 %7305
      %7307 = vrot.lane.b32.xlu0 %v7173, 96
      %v7308 = vpop.permute.xlu0 %7307
      %7309 = vrot.lane.b32.xlu0 %v7243, 96
      %v7310 = vpop.permute.xlu0 %7309
      %7311 = vrot.lane.b32.xlu0 %v7280, 96
      %v7312 = vpop.permute.xlu0 %7311
      %7329 = vst.msk [vmem:[#allocation3 + $0x8] sm:$0xff] %vm2750, %v7282
      %7330 = vst.msk [vmem:[#allocation3 + $0x28] sm:$0xff] %vm2750, %v7284
      %7331 = vst.msk [vmem:[#allocation3 + $0x48] sm:$0xff] %vm2750, %v7286
      %7332 = vst.msk [vmem:[#allocation3 + $0x68] sm:$0xff] %vm2750, %v7288
      %7333 = vst.msk [vmem:[#allocation3 + $0x88] sm:$0xff] %vm2750, %v7290
      %7334 = vst.msk [vmem:[#allocation3 + $0xa8] sm:$0xff] %vm2750, %v7292
      %7335 = vst.msk [vmem:[#allocation3 + $0xc8] sm:$0xff] %vm2750, %v7294
      %7336 = vst.msk [vmem:[#allocation3 + $0xe8] sm:$0xff] %vm2750, %v7296
      %7337 = vst.msk [vmem:[#allocation3 + $0x108] sm:$0xff] %vm2750, %v7298
      %7338 = vst.msk [vmem:[#allocation3 + $0x128] sm:$0xff] %vm2750, %v7300
      %7339 = vst.msk [vmem:[#allocation3 + $0x148] sm:$0xff] %vm2750, %v7302
      %7340 = vst.msk [vmem:[#allocation3 + $0x168] sm:$0xff] %vm2750, %v7304
      %7341 = vst.msk [vmem:[#allocation3 + $0x188] sm:$0xff] %vm2750, %v7306
      %7342 = vst.msk [vmem:[#allocation3 + $0x1a8] sm:$0xff] %vm2750, %v7308
      %7343 = vst.msk [vmem:[#allocation3 + $0x1c8] sm:$0xff] %vm2750, %v7310
      %7344 = vst.msk [vmem:[#allocation3 + $0x1e8] sm:$0xff] %vm2750, %v7312
      %v7345 = vld [vmem:[#allocation2 + $0x4] sm:$0xf]
      %v7346 = vld [vmem:[#allocation2 + $0x8] sm:$0xf]
      %v7347 = vld [vmem:[#allocation2 + $0xc] sm:$0x1]
      %v7348 = vld [vmem:[#allocation2 + $0x14] sm:$0xf]
      %v7349 = vld [vmem:[#allocation2 + $0x18] sm:$0xf]
      %v7350 = vld [vmem:[#allocation2 + $0x1c] sm:$0x1]
      %v7351 = vld [vmem:[#allocation2 + $0x24] sm:$0xf]
      %v7352 = vld [vmem:[#allocation2 + $0x28] sm:$0xf]
      %v7353 = vld [vmem:[#allocation2 + $0x2c] sm:$0x1]
      %v7354 = vld [vmem:[#allocation2 + $0x34] sm:$0xf]
      %v7355 = vld [vmem:[#allocation2 + $0x38] sm:$0xf]
      %v7356 = vld [vmem:[#allocation2 + $0x3c] sm:$0x1]
      %v7357 = vld [vmem:[#allocation2 + $0x44] sm:$0xf]
      %v7358 = vld [vmem:[#allocation2 + $0x48] sm:$0xf]
      %v7359 = vld [vmem:[#allocation2 + $0x4c] sm:$0x1]
      %v7360 = vld [vmem:[#allocation2 + $0x54] sm:$0xf]
      %v7361 = vld [vmem:[#allocation2 + $0x58] sm:$0xf]
      %v7362 = vld [vmem:[#allocation2 + $0x5c] sm:$0x1]
      %v7363 = vld [vmem:[#allocation2 + $0x64] sm:$0xf]
      %v7364 = vld [vmem:[#allocation2 + $0x68] sm:$0xf]
      %v7365 = vld [vmem:[#allocation2 + $0x6c] sm:$0x1]
      %v7366 = vld [vmem:[#allocation2 + $0x74] sm:$0xf]
      %v7367 = vld [vmem:[#allocation2 + $0x78] sm:$0xf]
      %v7368 = vld [vmem:[#allocation2 + $0x7c] sm:$0x1]
      %v7369 = vld [vmem:[#allocation2 + $0x84] sm:$0xf]
      %v7370 = vld [vmem:[#allocation2 + $0x88] sm:$0xf]
      %v7371 = vld [vmem:[#allocation2 + $0x8c] sm:$0x1]
      %v7372 = vld [vmem:[#allocation2 + $0x94] sm:$0xf]
      %v7373 = vld [vmem:[#allocation2 + $0x98] sm:$0xf]
      %v7374 = vld [vmem:[#allocation2 + $0x9c] sm:$0x1]
      %v7375 = vld [vmem:[#allocation2 + $0xa4] sm:$0xf]
      %v7376 = vld [vmem:[#allocation2 + $0xa8] sm:$0xf]
      %v7377 = vld [vmem:[#allocation2 + $0xac] sm:$0x1]
      %v7378 = vld [vmem:[#allocation2 + $0xb4] sm:$0xf]
      %v7379 = vld [vmem:[#allocation2 + $0xb8] sm:$0xf]
      %v7380 = vld [vmem:[#allocation2 + $0xbc] sm:$0x1]
      %v7381 = vld [vmem:[#allocation2 + $0xc4] sm:$0xf]
      %v7382 = vld [vmem:[#allocation2 + $0xc8] sm:$0xf]
      %v7383 = vld [vmem:[#allocation2 + $0xcc] sm:$0x1]
      %v7384 = vld [vmem:[#allocation2 + $0xd4] sm:$0xf]
      %v7385 = vld [vmem:[#allocation2 + $0xd8] sm:$0xf]
      %v7386 = vld [vmem:[#allocation2 + $0xdc] sm:$0x1]
      %v7387 = vld [vmem:[#allocation2 + $0xe4] sm:$0xf]
      %v7388 = vld [vmem:[#allocation2 + $0xe8] sm:$0xf]
      %v7389 = vld [vmem:[#allocation2 + $0xec] sm:$0x1]
      %v7390 = vld [vmem:[#allocation2 + $0xf4] sm:$0xf]
      %v7391 = vld [vmem:[#allocation2 + $0xf8] sm:$0xf]
      %v7392 = vld [vmem:[#allocation2 + $0xfc] sm:$0x1]
      %v7393 = vld [vmem:[#allocation2 + $0x104] sm:$0xf]
      %v7394 = vld [vmem:[#allocation2 + $0x108] sm:$0xf]
      %v7395 = vld [vmem:[#allocation2 + $0x10c] sm:$0x1]
      %v7396 = vld [vmem:[#allocation2 + $0x114] sm:$0xf]
      %v7397 = vld [vmem:[#allocation2 + $0x118] sm:$0xf]
      %v7398 = vld [vmem:[#allocation2 + $0x11c] sm:$0x1]
      %v7400 = vshrl.u32 %v7345, 16
      %v7402 = vrot.slane %v7400, 4
      %v7403 = vshll.u32 %v7345, 16
      %v7405 = vrot.slane %v7403, 5
      %v7406 = vor.u32 %v7402, %v7405
      %v7407 = vrot.slane %v7406, 4
      %v7409 = vshll.u32 %v7346, 16
      %v7411 = vrot.slane %v7409, 5
      %v7412 = vsel %vm2269, %v7407, %v7411
      %v7413 = vshrl.u32 %v7346, 16
      %v7415 = vrot.slane %v7413, 4
      %v7416 = vor.u32 %v7415, %v7411
      %v7417 = vrot.slane %v7416, 4
      %v7419 = vshll.u32 %v7347, 16
      %v7421 = vrot.slane %v7419, 5
      %v7422 = vsel %vm2269, %v7417, %v7421
      %v7424 = vshrl.u32 %v7348, 16
      %v7426 = vrot.slane %v7424, 4
      %v7427 = vshll.u32 %v7348, 16
      %v7429 = vrot.slane %v7427, 5
      %v7430 = vor.u32 %v7426, %v7429
      %v7431 = vrot.slane %v7430, 4
      %v7433 = vshll.u32 %v7349, 16
      %v7435 = vrot.slane %v7433, 5
      %v7436 = vsel %vm2269, %v7431, %v7435
      %v7437 = vshrl.u32 %v7349, 16
      %v7439 = vrot.slane %v7437, 4
      %v7440 = vor.u32 %v7439, %v7435
      %v7441 = vrot.slane %v7440, 4
      %v7443 = vshll.u32 %v7350, 16
      %v7445 = vrot.slane %v7443, 5
      %v7446 = vsel %vm2269, %v7441, %v7445
      %v7448 = vshrl.u32 %v7351, 16
      %v7450 = vrot.slane %v7448, 4
      %v7451 = vshll.u32 %v7351, 16
      %v7453 = vrot.slane %v7451, 5
      %v7454 = vor.u32 %v7450, %v7453
      %v7455 = vrot.slane %v7454, 4
      %v7457 = vshll.u32 %v7352, 16
      %v7459 = vrot.slane %v7457, 5
      %v7460 = vsel %vm2269, %v7455, %v7459
      %v7461 = vshrl.u32 %v7352, 16
      %v7463 = vrot.slane %v7461, 4
      %v7464 = vor.u32 %v7463, %v7459
      %v7465 = vrot.slane %v7464, 4
      %v7467 = vshll.u32 %v7353, 16
      %v7469 = vrot.slane %v7467, 5
      %v7470 = vsel %vm2269, %v7465, %v7469
      %v7472 = vshrl.u32 %v7354, 16
      %v7474 = vrot.slane %v7472, 4
      %v7475 = vshll.u32 %v7354, 16
      %v7477 = vrot.slane %v7475, 5
      %v7478 = vor.u32 %v7474, %v7477
      %v7479 = vrot.slane %v7478, 4
      %v7481 = vshll.u32 %v7355, 16
      %v7483 = vrot.slane %v7481, 5
      %v7484 = vsel %vm2269, %v7479, %v7483
      %v7485 = vshrl.u32 %v7355, 16
      %v7487 = vrot.slane %v7485, 4
      %v7488 = vor.u32 %v7487, %v7483
      %v7489 = vrot.slane %v7488, 4
      %v7491 = vshll.u32 %v7356, 16
      %v7493 = vrot.slane %v7491, 5
      %v7494 = vsel %vm2269, %v7489, %v7493
      %v7496 = vshrl.u32 %v7357, 16
      %v7498 = vrot.slane %v7496, 4
      %v7499 = vshll.u32 %v7357, 16
      %v7501 = vrot.slane %v7499, 5
      %v7502 = vor.u32 %v7498, %v7501
      %v7503 = vrot.slane %v7502, 4
      %v7505 = vshll.u32 %v7358, 16
      %v7507 = vrot.slane %v7505, 5
      %v7508 = vsel %vm2269, %v7503, %v7507
      %v7509 = vshrl.u32 %v7358, 16
      %v7511 = vrot.slane %v7509, 4
      %v7512 = vor.u32 %v7511, %v7507
      %v7513 = vrot.slane %v7512, 4
      %v7515 = vshll.u32 %v7359, 16
      %v7517 = vrot.slane %v7515, 5
      %v7518 = vsel %vm2269, %v7513, %v7517
      %v7520 = vshrl.u32 %v7360, 16
      %v7522 = vrot.slane %v7520, 4
      %v7523 = vshll.u32 %v7360, 16
      %v7525 = vrot.slane %v7523, 5
      %v7526 = vor.u32 %v7522, %v7525
      %v7527 = vrot.slane %v7526, 4
      %v7529 = vshll.u32 %v7361, 16
      %v7531 = vrot.slane %v7529, 5
      %v7532 = vsel %vm2269, %v7527, %v7531
      %v7533 = vshrl.u32 %v7361, 16
      %v7535 = vrot.slane %v7533, 4
      %v7536 = vor.u32 %v7535, %v7531
      %v7537 = vrot.slane %v7536, 4
      %v7539 = vshll.u32 %v7362, 16
      %v7541 = vrot.slane %v7539, 5
      %v7542 = vsel %vm2269, %v7537, %v7541
      %v7544 = vshrl.u32 %v7363, 16
      %v7546 = vrot.slane %v7544, 4
      %v7547 = vshll.u32 %v7363, 16
      %v7549 = vrot.slane %v7547, 5
      %v7550 = vor.u32 %v7546, %v7549
      %v7551 = vrot.slane %v7550, 4
      %v7553 = vshll.u32 %v7364, 16
      %v7555 = vrot.slane %v7553, 5
      %v7556 = vsel %vm2269, %v7551, %v7555
      %v7557 = vshrl.u32 %v7364, 16
      %v7559 = vrot.slane %v7557, 4
      %v7560 = vor.u32 %v7559, %v7555
      %v7561 = vrot.slane %v7560, 4
      %v7563 = vshll.u32 %v7365, 16
      %v7565 = vrot.slane %v7563, 5
      %v7566 = vsel %vm2269, %v7561, %v7565
      %v7568 = vshrl.u32 %v7366, 16
      %v7570 = vrot.slane %v7568, 4
      %v7571 = vshll.u32 %v7366, 16
      %v7573 = vrot.slane %v7571, 5
      %v7574 = vor.u32 %v7570, %v7573
      %v7575 = vrot.slane %v7574, 4
      %v7577 = vshll.u32 %v7367, 16
      %v7579 = vrot.slane %v7577, 5
      %v7580 = vsel %vm2269, %v7575, %v7579
      %v7581 = vshrl.u32 %v7367, 16
      %v7583 = vrot.slane %v7581, 4
      %v7584 = vor.u32 %v7583, %v7579
      %v7585 = vrot.slane %v7584, 4
      %v7587 = vshll.u32 %v7368, 16
      %v7589 = vrot.slane %v7587, 5
      %v7590 = vsel %vm2269, %v7585, %v7589
      %v7592 = vshrl.u32 %v7369, 16
      %v7594 = vrot.slane %v7592, 4
      %v7595 = vshll.u32 %v7369, 16
      %v7597 = vrot.slane %v7595, 5
      %v7598 = vor.u32 %v7594, %v7597
      %v7599 = vrot.slane %v7598, 4
      %v7601 = vshll.u32 %v7370, 16
      %v7603 = vrot.slane %v7601, 5
      %v7604 = vsel %vm2269, %v7599, %v7603
      %v7605 = vshrl.u32 %v7370, 16
      %v7607 = vrot.slane %v7605, 4
      %v7608 = vor.u32 %v7607, %v7603
      %v7609 = vrot.slane %v7608, 4
      %v7611 = vshll.u32 %v7371, 16
      %v7613 = vrot.slane %v7611, 5
      %v7614 = vsel %vm2269, %v7609, %v7613
      %v7616 = vshrl.u32 %v7372, 16
      %v7618 = vrot.slane %v7616, 4
      %v7619 = vshll.u32 %v7372, 16
      %v7621 = vrot.slane %v7619, 5
      %v7622 = vor.u32 %v7618, %v7621
      %v7623 = vrot.slane %v7622, 4
      %v7625 = vshll.u32 %v7373, 16
      %v7627 = vrot.slane %v7625, 5
      %v7628 = vsel %vm2269, %v7623, %v7627
      %v7629 = vshrl.u32 %v7373, 16
      %v7631 = vrot.slane %v7629, 4
      %v7632 = vor.u32 %v7631, %v7627
      %v7633 = vrot.slane %v7632, 4
      %v7635 = vshll.u32 %v7374, 16
      %v7637 = vrot.slane %v7635, 5
      %v7638 = vsel %vm2269, %v7633, %v7637
      %v7640 = vshrl.u32 %v7375, 16
      %v7642 = vrot.slane %v7640, 4
      %v7643 = vshll.u32 %v7375, 16
      %v7645 = vrot.slane %v7643, 5
      %v7646 = vor.u32 %v7642, %v7645
      %v7647 = vrot.slane %v7646, 4
      %v7649 = vshll.u32 %v7376, 16
      %v7651 = vrot.slane %v7649, 5
      %v7652 = vsel %vm2269, %v7647, %v7651
      %v7653 = vshrl.u32 %v7376, 16
      %v7655 = vrot.slane %v7653, 4
      %v7656 = vor.u32 %v7655, %v7651
      %v7657 = vrot.slane %v7656, 4
      %v7659 = vshll.u32 %v7377, 16
      %v7661 = vrot.slane %v7659, 5
      %v7662 = vsel %vm2269, %v7657, %v7661
      %v7664 = vshrl.u32 %v7378, 16
      %v7666 = vrot.slane %v7664, 4
      %v7667 = vshll.u32 %v7378, 16
      %v7669 = vrot.slane %v7667, 5
      %v7670 = vor.u32 %v7666, %v7669
      %v7671 = vrot.slane %v7670, 4
      %v7673 = vshll.u32 %v7379, 16
      %v7675 = vrot.slane %v7673, 5
      %v7676 = vsel %vm2269, %v7671, %v7675
      %v7677 = vshrl.u32 %v7379, 16
      %v7679 = vrot.slane %v7677, 4
      %v7680 = vor.u32 %v7679, %v7675
      %v7681 = vrot.slane %v7680, 4
      %v7683 = vshll.u32 %v7380, 16
      %v7685 = vrot.slane %v7683, 5
      %v7686 = vsel %vm2269, %v7681, %v7685
      %v7688 = vshrl.u32 %v7381, 16
      %v7690 = vrot.slane %v7688, 4
      %v7691 = vshll.u32 %v7381, 16
      %v7693 = vrot.slane %v7691, 5
      %v7694 = vor.u32 %v7690, %v7693
      %v7695 = vrot.slane %v7694, 4
      %v7697 = vshll.u32 %v7382, 16
      %v7699 = vrot.slane %v7697, 5
      %v7700 = vsel %vm2269, %v7695, %v7699
      %v7701 = vshrl.u32 %v7382, 16
      %v7703 = vrot.slane %v7701, 4
      %v7704 = vor.u32 %v7703, %v7699
      %v7705 = vrot.slane %v7704, 4
      %v7707 = vshll.u32 %v7383, 16
      %v7709 = vrot.slane %v7707, 5
      %v7710 = vsel %vm2269, %v7705, %v7709
      %v7712 = vshrl.u32 %v7384, 16
      %v7714 = vrot.slane %v7712, 4
      %v7715 = vshll.u32 %v7384, 16
      %v7717 = vrot.slane %v7715, 5
      %v7718 = vor.u32 %v7714, %v7717
      %v7719 = vrot.slane %v7718, 4
      %v7721 = vshll.u32 %v7385, 16
      %v7723 = vrot.slane %v7721, 5
      %v7724 = vsel %vm2269, %v7719, %v7723
      %v7725 = vshrl.u32 %v7385, 16
      %v7727 = vrot.slane %v7725, 4
      %v7728 = vor.u32 %v7727, %v7723
      %v7729 = vrot.slane %v7728, 4
      %v7731 = vshll.u32 %v7386, 16
      %v7733 = vrot.slane %v7731, 5
      %v7734 = vsel %vm2269, %v7729, %v7733
      %v7736 = vshrl.u32 %v7387, 16
      %v7738 = vrot.slane %v7736, 4
      %v7739 = vshll.u32 %v7387, 16
      %v7741 = vrot.slane %v7739, 5
      %v7742 = vor.u32 %v7738, %v7741
      %v7743 = vrot.slane %v7742, 4
      %v7745 = vshll.u32 %v7388, 16
      %v7747 = vrot.slane %v7745, 5
      %v7748 = vsel %vm2269, %v7743, %v7747
      %v7749 = vshrl.u32 %v7388, 16
      %v7751 = vrot.slane %v7749, 4
      %v7752 = vor.u32 %v7751, %v7747
      %v7753 = vrot.slane %v7752, 4
      %v7755 = vshll.u32 %v7389, 16
      %v7757 = vrot.slane %v7755, 5
      %v7758 = vsel %vm2269, %v7753, %v7757
      %v7760 = vshrl.u32 %v7390, 16
      %v7762 = vrot.slane %v7760, 4
      %v7763 = vshll.u32 %v7390, 16
      %v7765 = vrot.slane %v7763, 5
      %v7766 = vor.u32 %v7762, %v7765
      %v7767 = vrot.slane %v7766, 4
      %v7769 = vshll.u32 %v7391, 16
      %v7771 = vrot.slane %v7769, 5
      %v7772 = vsel %vm2269, %v7767, %v7771
      %v7773 = vshrl.u32 %v7391, 16
      %v7775 = vrot.slane %v7773, 4
      %v7776 = vor.u32 %v7775, %v7771
      %v7777 = vrot.slane %v7776, 4
      %v7779 = vshll.u32 %v7392, 16
      %v7781 = vrot.slane %v7779, 5
      %v7782 = vsel %vm2269, %v7777, %v7781
      %v7783 = vunpack.c.l.b16 %v7412
      %v7784 = vunpack.c.l.b16 %v7422
      %v7785 = vunpack.c.l.b16 %v7436
      %v7786 = vunpack.c.l.b16 %v7446
      %v7787 = vunpack.c.l.b16 %v7460
      %v7788 = vunpack.c.l.b16 %v7470
      %v7789 = vunpack.c.l.b16 %v7484
      %v7790 = vunpack.c.l.b16 %v7494
      %v7791 = vunpack.c.l.b16 %v7508
      %v7792 = vunpack.c.l.b16 %v7518
      %v7793 = vunpack.c.l.b16 %v7532
      %v7794 = vunpack.c.l.b16 %v7542
      %v7795 = vunpack.c.l.b16 %v7556
      %v7796 = vunpack.c.l.b16 %v7566
      %v7797 = vunpack.c.l.b16 %v7580
      %v7798 = vunpack.c.l.b16 %v7590
      %v7799 = vunpack.c.l.b16 %v7604
      %v7800 = vunpack.c.l.b16 %v7614
      %v7801 = vunpack.c.l.b16 %v7628
      %v7802 = vunpack.c.l.b16 %v7638
      %v7803 = vunpack.c.l.b16 %v7652
      %v7804 = vunpack.c.l.b16 %v7662
      %v7805 = vunpack.c.l.b16 %v7676
      %v7806 = vunpack.c.l.b16 %v7686
      %v7807 = vunpack.c.l.b16 %v7700
      %v7808 = vunpack.c.l.b16 %v7710
      %v7809 = vunpack.c.l.b16 %v7724
      %v7810 = vunpack.c.l.b16 %v7734
      %v7811 = vunpack.c.l.b16 %v7748
      %v7812 = vunpack.c.l.b16 %v7758
      %v7813 = vunpack.c.l.b16 %v7772
      %v7814 = vunpack.c.l.b16 %v7782
      %v7815 = vpack.c.b16 %v7784, %v7783
      %v7816 = vpack.c.b16 %v7786, %v7785
      %v7817 = vpack.c.b16 %v7788, %v7787
      %v7818 = vpack.c.b16 %v7790, %v7789
      %v7819 = vpack.c.b16 %v7792, %v7791
      %v7820 = vpack.c.b16 %v7794, %v7793
      %v7821 = vpack.c.b16 %v7796, %v7795
      %v7822 = vpack.c.b16 %v7798, %v7797
      %v7823 = vpack.c.b16 %v7800, %v7799
      %v7824 = vpack.c.b16 %v7802, %v7801
      %v7825 = vpack.c.b16 %v7804, %v7803
      %v7826 = vpack.c.b16 %v7806, %v7805
      %v7827 = vpack.c.b16 %v7808, %v7807
      %v7828 = vpack.c.b16 %v7810, %v7809
      %v7829 = vpack.c.b16 %v7812, %v7811
      %v7830 = vpack.c.b16 %v7814, %v7813
      %7831 = vrot.lane.b32.xlu0 %v7815, 64
      %v7832 = vpop.permute.xlu0 %7831
      %7833 = vrot.lane.b32.xlu0 %v7816, 64
      %v7834 = vpop.permute.xlu0 %7833
      %7835 = vrot.lane.b32.xlu0 %v7817, 64
      %v7836 = vpop.permute.xlu0 %7835
      %7837 = vrot.lane.b32.xlu0 %v7818, 64
      %v7838 = vpop.permute.xlu0 %7837
      %7839 = vrot.lane.b32.xlu0 %v7819, 64
      %v7840 = vpop.permute.xlu0 %7839
      %7841 = vrot.lane.b32.xlu0 %v7820, 64
      %v7842 = vpop.permute.xlu0 %7841
      %7843 = vrot.lane.b32.xlu0 %v7821, 64
      %v7844 = vpop.permute.xlu0 %7843
      %7845 = vrot.lane.b32.xlu0 %v7822, 64
      %v7846 = vpop.permute.xlu0 %7845
      %7847 = vrot.lane.b32.xlu0 %v7823, 64
      %v7848 = vpop.permute.xlu0 %7847
      %7849 = vrot.lane.b32.xlu0 %v7824, 64
      %v7850 = vpop.permute.xlu0 %7849
      %7851 = vrot.lane.b32.xlu0 %v7825, 64
      %v7852 = vpop.permute.xlu0 %7851
      %7853 = vrot.lane.b32.xlu0 %v7826, 64
      %v7854 = vpop.permute.xlu0 %7853
      %7855 = vrot.lane.b32.xlu0 %v7827, 64
      %v7856 = vpop.permute.xlu0 %7855
      %7857 = vrot.lane.b32.xlu0 %v7828, 64
      %v7858 = vpop.permute.xlu0 %7857
      %7859 = vrot.lane.b32.xlu0 %v7829, 64
      %v7860 = vpop.permute.xlu0 %7859
      %7861 = vrot.lane.b32.xlu0 %v7830, 64
      %v7862 = vpop.permute.xlu0 %7861
      %7879 = vst.msk [vmem:[#allocation3] sm:$0xff] %vm7041, %v7832
      %7880 = vst.msk [vmem:[#allocation3 + $0x20] sm:$0xff] %vm7041, %v7834
      %7881 = vst.msk [vmem:[#allocation3 + $0x40] sm:$0xff] %vm7041, %v7836
      %7882 = vst.msk [vmem:[#allocation3 + $0x60] sm:$0xff] %vm7041, %v7838
      %7883 = vst.msk [vmem:[#allocation3 + $0x80] sm:$0xff] %vm7041, %v7840
      %7884 = vst.msk [vmem:[#allocation3 + $0xa0] sm:$0xff] %vm7041, %v7842
      %7885 = vst.msk [vmem:[#allocation3 + $0xc0] sm:$0xff] %vm7041, %v7844
      %7886 = vst.msk [vmem:[#allocation3 + $0xe0] sm:$0xff] %vm7041, %v7846
      %7887 = vst.msk [vmem:[#allocation3 + $0x100] sm:$0xff] %vm7041, %v7848
      %7888 = vst.msk [vmem:[#allocation3 + $0x120] sm:$0xff] %vm7041, %v7850
      %7889 = vst.msk [vmem:[#allocation3 + $0x140] sm:$0xff] %vm7041, %v7852
      %7890 = vst.msk [vmem:[#allocation3 + $0x160] sm:$0xff] %vm7041, %v7854
      %7891 = vst.msk [vmem:[#allocation3 + $0x180] sm:$0xff] %vm7041, %v7856
      %7892 = vst.msk [vmem:[#allocation3 + $0x1a0] sm:$0xff] %vm7041, %v7858
      %7893 = vst.msk [vmem:[#allocation3 + $0x1c0] sm:$0xff] %vm7041, %v7860
      %7894 = vst.msk [vmem:[#allocation3 + $0x1e0] sm:$0xff] %vm7041, %v7862
      %v7896 = vshrl.u32 %v7393, 16
      %v7898 = vrot.slane %v7896, 4
      %v7899 = vshll.u32 %v7393, 16
      %v7901 = vrot.slane %v7899, 5
      %v7902 = vor.u32 %v7898, %v7901
      %v7903 = vrot.slane %v7902, 4
      %v7905 = vshll.u32 %v7394, 16
      %v7907 = vrot.slane %v7905, 5
      %v7908 = vsel %vm2269, %v7903, %v7907
      %v7909 = vshrl.u32 %v7394, 16
      %v7911 = vrot.slane %v7909, 4
      %v7912 = vor.u32 %v7911, %v7907
      %v7913 = vrot.slane %v7912, 4
      %v7915 = vshll.u32 %v7395, 16
      %v7917 = vrot.slane %v7915, 5
      %v7918 = vsel %vm2269, %v7913, %v7917
      %v7919 = vunpack.c.l.b16 %v7908
      %v7920 = vunpack.c.l.b16 %v7918
      %v7921 = vpack.c.b16 %v7920, %v7919
      %7922 = vrot.lane.b32.xlu0 %v7816, 32
      %v7923 = vpop.permute.xlu0 %7922
      %7924 = vrot.lane.b32.xlu0 %v7817, 32
      %v7925 = vpop.permute.xlu0 %7924
      %7926 = vrot.lane.b32.xlu0 %v7818, 32
      %v7927 = vpop.permute.xlu0 %7926
      %7928 = vrot.lane.b32.xlu0 %v7819, 32
      %v7929 = vpop.permute.xlu0 %7928
      %7930 = vrot.lane.b32.xlu0 %v7820, 32
      %v7931 = vpop.permute.xlu0 %7930
      %7932 = vrot.lane.b32.xlu0 %v7821, 32
      %v7933 = vpop.permute.xlu0 %7932
      %7934 = vrot.lane.b32.xlu0 %v7822, 32
      %v7935 = vpop.permute.xlu0 %7934
      %7936 = vrot.lane.b32.xlu0 %v7823, 32
      %v7937 = vpop.permute.xlu0 %7936
      %7938 = vrot.lane.b32.xlu0 %v7824, 32
      %v7939 = vpop.permute.xlu0 %7938
      %7940 = vrot.lane.b32.xlu0 %v7825, 32
      %v7941 = vpop.permute.xlu0 %7940
      %7942 = vrot.lane.b32.xlu0 %v7826, 32
      %v7943 = vpop.permute.xlu0 %7942
      %7944 = vrot.lane.b32.xlu0 %v7827, 32
      %v7945 = vpop.permute.xlu0 %7944
      %7946 = vrot.lane.b32.xlu0 %v7828, 32
      %v7947 = vpop.permute.xlu0 %7946
      %7948 = vrot.lane.b32.xlu0 %v7829, 32
      %v7949 = vpop.permute.xlu0 %7948
      %7950 = vrot.lane.b32.xlu0 %v7830, 32
      %v7951 = vpop.permute.xlu0 %7950
      %7952 = vrot.lane.b32.xlu0 %v7921, 32
      %v7953 = vpop.permute.xlu0 %7952
      %7970 = vst.msk [vmem:[#allocation3 + $0x8] sm:$0xff] %vm7222, %v7923
      %7971 = vst.msk [vmem:[#allocation3 + $0x28] sm:$0xff] %vm7222, %v7925
      %7972 = vst.msk [vmem:[#allocation3 + $0x48] sm:$0xff] %vm7222, %v7927
      %7973 = vst.msk [vmem:[#allocation3 + $0x68] sm:$0xff] %vm7222, %v7929
      %7974 = vst.msk [vmem:[#allocation3 + $0x88] sm:$0xff] %vm7222, %v7931
      %7975 = vst.msk [vmem:[#allocation3 + $0xa8] sm:$0xff] %vm7222, %v7933
      %7976 = vst.msk [vmem:[#allocation3 + $0xc8] sm:$0xff] %vm7222, %v7935
      %7977 = vst.msk [vmem:[#allocation3 + $0xe8] sm:$0xff] %vm7222, %v7937
      %7978 = vst.msk [vmem:[#allocation3 + $0x108] sm:$0xff] %vm7222, %v7939
      %7979 = vst.msk [vmem:[#allocation3 + $0x128] sm:$0xff] %vm7222, %v7941
      %7980 = vst.msk [vmem:[#allocation3 + $0x148] sm:$0xff] %vm7222, %v7943
      %7981 = vst.msk [vmem:[#allocation3 + $0x168] sm:$0xff] %vm7222, %v7945
      %7982 = vst.msk [vmem:[#allocation3 + $0x188] sm:$0xff] %vm7222, %v7947
      %7983 = vst.msk [vmem:[#allocation3 + $0x1a8] sm:$0xff] %vm7222, %v7949
      %7984 = vst.msk [vmem:[#allocation3 + $0x1c8] sm:$0xff] %vm7222, %v7951
      %7985 = vst.msk [vmem:[#allocation3 + $0x1e8] sm:$0xff] %vm7222, %v7953
      %v7987 = vshrl.u32 %v7396, 16
      %v7989 = vrot.slane %v7987, 4
      %v7990 = vshll.u32 %v7396, 16
      %v7992 = vrot.slane %v7990, 5
      %v7993 = vor.u32 %v7989, %v7992
      %v7994 = vrot.slane %v7993, 4
      %v7996 = vshll.u32 %v7397, 16
      %v7998 = vrot.slane %v7996, 5
      %v7999 = vsel %vm2269, %v7994, %v7998
      %v8000 = vshrl.u32 %v7397, 16
      %v8002 = vrot.slane %v8000, 4
      %v8003 = vor.u32 %v8002, %v7998
      %v8004 = vrot.slane %v8003, 4
      %v8006 = vshll.u32 %v7398, 16
      %v8008 = vrot.slane %v8006, 5
      %v8009 = vsel %vm2269, %v8004, %v8008
      %v8010 = vunpack.c.l.b16 %v7999
      %v8011 = vunpack.c.l.b16 %v8009
      %v8012 = vpack.c.b16 %v8011, %v8010
      %8029 = vst.msk [vmem:[#allocation3 + $0x10] sm:$0xff] %vm524, %v7817
      %8030 = vst.msk [vmem:[#allocation3 + $0x30] sm:$0xff] %vm524, %v7818
      %8031 = vst.msk [vmem:[#allocation3 + $0x50] sm:$0xff] %vm524, %v7819
      %8032 = vst.msk [vmem:[#allocation3 + $0x70] sm:$0xff] %vm524, %v7820
      %8033 = vst.msk [vmem:[#allocation3 + $0x90] sm:$0xff] %vm524, %v7821
      %8034 = vst.msk [vmem:[#allocation3 + $0xb0] sm:$0xff] %vm524, %v7822
      %8035 = vst.msk [vmem:[#allocation3 + $0xd0] sm:$0xff] %vm524, %v7823
      %8036 = vst.msk [vmem:[#allocation3 + $0xf0] sm:$0xff] %vm524, %v7824
      %8037 = vst.msk [vmem:[#allocation3 + $0x110] sm:$0xff] %vm524, %v7825
      %8038 = vst.msk [vmem:[#allocation3 + $0x130] sm:$0xff] %vm524, %v7826
      %8039 = vst.msk [vmem:[#allocation3 + $0x150] sm:$0xff] %vm524, %v7827
      %8040 = vst.msk [vmem:[#allocation3 + $0x170] sm:$0xff] %vm524, %v7828
      %8041 = vst.msk [vmem:[#allocation3 + $0x190] sm:$0xff] %vm524, %v7829
      %8042 = vst.msk [vmem:[#allocation3 + $0x1b0] sm:$0xff] %vm524, %v7830
      %8043 = vst.msk [vmem:[#allocation3 + $0x1d0] sm:$0xff] %vm524, %v7921
      %8044 = vst.msk [vmem:[#allocation3 + $0x1f0] sm:$0xff] %vm524, %v8012
      %v8045 = vld [vmem:[#allocation3] sm:$0xff]
      %v8046 = vld [vmem:[#allocation3 + $0x8] sm:$0xff]
      %v8047 = vld [vmem:[#allocation3 + $0x10] sm:$0xff]
      %v8048 = vld [vmem:[#allocation3 + $0x20] sm:$0xff]
      %v8049 = vld [vmem:[#allocation3 + $0x28] sm:$0xff]
      %v8050 = vld [vmem:[#allocation3 + $0x30] sm:$0xff]
      %v8051 = vld [vmem:[#allocation3 + $0x40] sm:$0xff]
      %v8052 = vld [vmem:[#allocation3 + $0x48] sm:$0xff]
      %v8053 = vld [vmem:[#allocation3 + $0x50] sm:$0xff]
      %v8054 = vld [vmem:[#allocation3 + $0x60] sm:$0xff]
      %v8055 = vld [vmem:[#allocation3 + $0x68] sm:$0xff]
      %v8056 = vld [vmem:[#allocation3 + $0x70] sm:$0xff]
      %v8057 = vld [vmem:[#allocation3 + $0x80] sm:$0xff]
      %v8058 = vld [vmem:[#allocation3 + $0x88] sm:$0xff]
      %v8059 = vld [vmem:[#allocation3 + $0x90] sm:$0xff]
      %v8060 = vld [vmem:[#allocation3 + $0xa0] sm:$0xff]
      %v8061 = vld [vmem:[#allocation3 + $0xa8] sm:$0xff]
      %v8062 = vld [vmem:[#allocation3 + $0xb0] sm:$0xff]
      %v8063 = vld [vmem:[#allocation3 + $0xc0] sm:$0xff]
      %v8064 = vld [vmem:[#allocation3 + $0xc8] sm:$0xff]
      %v8065 = vld [vmem:[#allocation3 + $0xd0] sm:$0xff]
      %v8066 = vld [vmem:[#allocation3 + $0xe0] sm:$0xff]
      %v8067 = vld [vmem:[#allocation3 + $0xe8] sm:$0xff]
      %v8068 = vld [vmem:[#allocation3 + $0xf0] sm:$0xff]
      %v8069 = vld [vmem:[#allocation3 + $0x100] sm:$0xff]
      %v8070 = vld [vmem:[#allocation3 + $0x108] sm:$0xff]
      %v8071 = vld [vmem:[#allocation3 + $0x110] sm:$0xff]
      %v8072 = vld [vmem:[#allocation3 + $0x120] sm:$0xff]
      %v8073 = vld [vmem:[#allocation3 + $0x128] sm:$0xff]
      %v8074 = vld [vmem:[#allocation3 + $0x130] sm:$0xff]
      %v8075 = vld [vmem:[#allocation3 + $0x140] sm:$0xff]
      %v8076 = vld [vmem:[#allocation3 + $0x148] sm:$0xff]
      %v8077 = vld [vmem:[#allocation3 + $0x150] sm:$0xff]
      %v8078 = vld [vmem:[#allocation3 + $0x160] sm:$0xff]
      %v8079 = vld [vmem:[#allocation3 + $0x168] sm:$0xff]
      %v8080 = vld [vmem:[#allocation3 + $0x170] sm:$0xff]
      %v8081 = vld [vmem:[#allocation3 + $0x180] sm:$0xff]
      %v8082 = vld [vmem:[#allocation3 + $0x188] sm:$0xff]
      %v8083 = vld [vmem:[#allocation3 + $0x190] sm:$0xff]
      %v8084 = vld [vmem:[#allocation3 + $0x1a0] sm:$0xff]
      %v8085 = vld [vmem:[#allocation3 + $0x1a8] sm:$0xff]
      %v8086 = vld [vmem:[#allocation3 + $0x1b0] sm:$0xff]
      %v8087 = vld [vmem:[#allocation3 + $0x1c0] sm:$0xff]
      %v8088 = vld [vmem:[#allocation3 + $0x1c8] sm:$0xff]
      %v8089 = vld [vmem:[#allocation3 + $0x1d0] sm:$0xff]
      %v8090 = vld [vmem:[#allocation3 + $0x1e0] sm:$0xff]
      %v8091 = vld [vmem:[#allocation3 + $0x1e8] sm:$0xff]
      %v8092 = vld [vmem:[#allocation3 + $0x1f0] sm:$0xff]
      %v8094 = vlaneseq
      %v8095 = vshrl.u32 %v8094, 7
      %v8096 = vsub.s32 0, %v8095
      %v8097 = vrot.slane %v6139, %v8096
      %v8135 = vunpack.c.l.b16 %v6103
      %v8136 = vunpack.c.l.b16 %v6104
      %v8137 = vunpack.c.l.b16 %v6105
      %v8138 = vunpack.c.l.b16 %v6106
      %v8139 = vunpack.c.l.b16 %v6107
      %v8140 = vunpack.c.l.b16 %v6108
      %v8141 = vunpack.c.l.b16 %v6109
      %v8142 = vunpack.c.l.b16 %v6110
      %v8143 = vunpack.c.l.b16 %v6111
      %v8144 = vunpack.c.l.b16 %v6112
      %v8145 = vunpack.c.l.b16 %v6113
      %v8146 = vunpack.c.l.b16 %v6114
      %v8147 = vunpack.c.l.b16 %v6115
      %v8148 = vunpack.c.l.b16 %v6116
      %v8149 = vunpack.c.l.b16 %v6117
      %v8150 = vunpack.c.l.b16 %v6118
      %v8151 = vunpack.c.l.b16 %v6119
      %v8152 = vunpack.c.l.b16 %v6120
      %v8153 = vunpack.c.l.b16 %v6121
      %v8154 = vunpack.c.l.b16 %v6122
      %v8155 = vunpack.c.l.b16 %v6123
      %v8156 = vunpack.c.l.b16 %v6124
      %v8157 = vunpack.c.l.b16 %v6125
      %v8158 = vunpack.c.l.b16 %v6126
      %v8159 = vunpack.c.l.b16 %v6127
      %v8160 = vunpack.c.l.b16 %v6128
      %v8161 = vunpack.c.l.b16 %v6129
      %v8162 = vunpack.c.l.b16 %v6130
      %v8163 = vunpack.c.l.b16 %v6131
      %v8164 = vunpack.c.l.b16 %v6132
      %v8165 = vunpack.c.l.b16 %v6133
      %v8166 = vunpack.c.l.b16 %v6134
      %v8167 = vunpack.c.l.b16 %v6135
      %v8168 = vunpack.c.l.b16 %v6136
      %v8169 = vunpack.c.l.b16 %v6137
      %v8170 = vunpack.c.l.b16 %v6138
      %v8171 = vpack.c.b16 %v8136, %v8135
      %v8172 = vpack.c.b16 %v8138, %v8137
      %v8173 = vpack.c.b16 %v8140, %v8139
      %v8174 = vpack.c.b16 %v8142, %v8141
      %v8175 = vpack.c.b16 %v8144, %v8143
      %v8176 = vpack.c.b16 %v8146, %v8145
      %v8177 = vpack.c.b16 %v8148, %v8147
      %v8178 = vpack.c.b16 %v8150, %v8149
      %v8179 = vpack.c.b16 %v8152, %v8151
      %v8180 = vpack.c.b16 %v8154, %v8153
      %v8181 = vpack.c.b16 %v8156, %v8155
      %v8182 = vpack.c.b16 %v8158, %v8157
      %v8183 = vpack.c.b16 %v8160, %v8159
      %v8184 = vpack.c.b16 %v8162, %v8161
      %v8185 = vpack.c.b16 %v8164, %v8163
      %v8186 = vpack.c.b16 %v8166, %v8165
      %v8187 = vpack.c.b16 %v8168, %v8167
      %v8188 = vpack.c.b16 %v8170, %v8169
      %v8208 = vsel %vm524, %v8047, 0
      %v8211 = vsel %vm524, %v8050, 0
      %v8214 = vsel %vm524, %v8053, 0
      %v8217 = vsel %vm524, %v8056, 0
      %v8220 = vsel %vm524, %v8059, 0
      %v8223 = vsel %vm524, %v8062, 0
      %v8226 = vsel %vm524, %v8065, 0
      %v8229 = vsel %vm524, %v8068, 0
      %v8232 = vsel %vm524, %v8071, 0
      %v8235 = vsel %vm524, %v8074, 0
      %v8238 = vsel %vm524, %v8077, 0
      %v8241 = vsel %vm524, %v8080, 0
      %v8244 = vsel %vm524, %v8083, 0
      %v8247 = vsel %vm524, %v8086, 0
      %v8250 = vsel %vm524, %v8089, 0
      %v8253 = vsel %vm524, %v8092, 0
      %8255 = vmatprep.subr.bf16.mxu0 0
      %8256 = vmatpush1.bf16.msra.mxu0 %v8171
      %8257 = vmatprep.subr.bf16.mxu0 0
      %8258 = vmatpush1.bf16.msra.mxu0 %v8172
      %8259 = vmatprep.subr.bf16.mxu0 0
      %8260 = vmatpush1.bf16.msra.mxu0 %v8173
      %8261 = vmatprep.subr.bf16.mxu0 0
      %8262 = vmatpush1.bf16.msra.mxu0 %v8174
      %8263 = vmatprep.subr.bf16.mxu0 0
      %8264 = vmatpush1.bf16.msra.mxu0 %v8175
      %8265 = vmatprep.subr.bf16.mxu0 0
      %8266 = vmatpush1.bf16.msra.mxu0 %v8176
      %8267 = vmatprep.subr.bf16.mxu0 0
      %8268 = vmatpush1.bf16.msra.mxu0 %v8177
      %8269 = vmatprep.subr.bf16.mxu0 0
      %8270 = vmatpush1.bf16.msra.mxu0 %v8178
      %8271 = vmatprep.subr.bf16.mxu0 0
      %8272 = vmatpush1.bf16.msra.mxu0 %v8179
      %8273 = vmatprep.subr.bf16.mxu0 0
      %8274 = vmatpush1.bf16.msra.mxu0 %v8180
      %8275 = vmatprep.subr.bf16.mxu0 0
      %8276 = vmatpush1.bf16.msra.mxu0 %v8181
      %8277 = vmatprep.subr.bf16.mxu0 0
      %8278 = vmatpush1.bf16.msra.mxu0 %v8182
      %8279 = vmatprep.subr.bf16.mxu0 0
      %8280 = vmatpush1.bf16.msra.mxu0 %v8183
      %8281 = vmatprep.subr.bf16.mxu0 0
      %8282 = vmatpush1.bf16.msra.mxu0 %v8184
      %8283 = vmatprep.subr.bf16.mxu0 0
      %8284 = vmatpush1.bf16.msra.mxu0 %v8185
      %8285 = vmatprep.subr.bf16.mxu0 0
      %8286 = vmatpush1.bf16.msra.mxu0 %v8186
      %8287 = vmatprep.mubr.bf16.mxu0 %v8046
      %8288 = vmatmul.mubr.bf16.gmra.mrb[0].mxu0 %v8045
      %v8289 = vpop.f32.mrb[0].mxu0
      %v8290 = vadd.f32 %v8097, %v8289
      %v8291 = vpop.f32.mrb[0].mxu0
      %v8292 = vpop.f32.mrb[0].mxu0
      %v8293 = vadd.f32 %v8097, %v8292
      %v8294 = vpop.f32.mrb[0].mxu0
      %8295 = vmatprep.mubr.bf16.mxu0 %v8049
      %8296 = vmatmul.mubr.bf16.gmra.mrb[0].mxu0 %v8048
      %v8297 = vpop.f32.mrb[0].mxu0
      %v8298 = vadd.f32 %v8097, %v8297
      %v8299 = vpop.f32.mrb[0].mxu0
      %v8300 = vpop.f32.mrb[0].mxu0
      %v8301 = vadd.f32 %v8097, %v8300
      %v8302 = vpop.f32.mrb[0].mxu0
      %8303 = vmatprep.mubr.bf16.mxu0 %v8052
      %8304 = vmatmul.mubr.bf16.gmra.mrb[0].mxu0 %v8051
      %v8305 = vpop.f32.mrb[0].mxu0
      %v8306 = vadd.f32 %v8097, %v8305
      %v8307 = vpop.f32.mrb[0].mxu0
      %v8308 = vpop.f32.mrb[0].mxu0
      %v8309 = vadd.f32 %v8097, %v8308
      %v8310 = vpop.f32.mrb[0].mxu0
      %8311 = vmatprep.mubr.bf16.mxu0 %v8055
      %8312 = vmatmul.mubr.bf16.gmra.mrb[0].mxu0 %v8054
      %v8313 = vpop.f32.mrb[0].mxu0
      %v8314 = vadd.f32 %v8097, %v8313
      %v8315 = vpop.f32.mrb[0].mxu0
      %v8316 = vpop.f32.mrb[0].mxu0
      %v8317 = vadd.f32 %v8097, %v8316
      %v8318 = vpop.f32.mrb[0].mxu0
      %8319 = vmatprep.mubr.bf16.mxu0 %v8058
      %8320 = vmatmul.mubr.bf16.gmra.mrb[0].mxu0 %v8057
      %v8321 = vpop.f32.mrb[0].mxu0
      %v8322 = vadd.f32 %v8097, %v8321
      %v8323 = vpop.f32.mrb[0].mxu0
      %v8324 = vpop.f32.mrb[0].mxu0
      %v8325 = vadd.f32 %v8097, %v8324
      %v8326 = vpop.f32.mrb[0].mxu0
      %8327 = vmatprep.mubr.bf16.mxu0 %v8061
      %8328 = vmatmul.mubr.bf16.gmra.mrb[0].mxu0 %v8060
      %v8329 = vpop.f32.mrb[0].mxu0
      %v8330 = vadd.f32 %v8097, %v8329
      %v8331 = vpop.f32.mrb[0].mxu0
      %v8332 = vpop.f32.mrb[0].mxu0
      %v8333 = vadd.f32 %v8097, %v8332
      %v8334 = vpop.f32.mrb[0].mxu0
      %8335 = vmatprep.mubr.bf16.mxu0 %v8064
      %8336 = vmatmul.mubr.bf16.gmra.mrb[0].mxu0 %v8063
      %v8337 = vpop.f32.mrb[0].mxu0
      %v8338 = vadd.f32 %v8097, %v8337
      %v8339 = vpop.f32.mrb[0].mxu0
      %v8340 = vpop.f32.mrb[0].mxu0
      %v8341 = vadd.f32 %v8097, %v8340
      %v8342 = vpop.f32.mrb[0].mxu0
      %8343 = vmatprep.mubr.bf16.mxu0 %v8067
      %8344 = vmatmul.mubr.bf16.gmra.mrb[0].mxu0 %v8066
      %v8345 = vpop.f32.mrb[0].mxu0
      %v8346 = vadd.f32 %v8097, %v8345
      %v8347 = vpop.f32.mrb[0].mxu0
      %v8348 = vpop.f32.mrb[0].mxu0
      %v8349 = vadd.f32 %v8097, %v8348
      %v8350 = vpop.f32.mrb[0].mxu0
      %8351 = vmatprep.mubr.bf16.mxu0 %v8070
      %8352 = vmatmul.mubr.bf16.gmra.mrb[0].mxu0 %v8069
      %v8353 = vpop.f32.mrb[0].mxu0
      %v8354 = vadd.f32 %v8097, %v8353
      %v8355 = vpop.f32.mrb[0].mxu0
      %v8356 = vpop.f32.mrb[0].mxu0
      %v8357 = vadd.f32 %v8097, %v8356
      %v8358 = vpop.f32.mrb[0].mxu0
      %8359 = vmatprep.mubr.bf16.mxu0 %v8073
      %8360 = vmatmul.mubr.bf16.gmra.mrb[0].mxu0 %v8072
      %v8361 = vpop.f32.mrb[0].mxu0
      %v8362 = vadd.f32 %v8097, %v8361
      %v8363 = vpop.f32.mrb[0].mxu0
      %v8364 = vpop.f32.mrb[0].mxu0
      %v8365 = vadd.f32 %v8097, %v8364
      %v8366 = vpop.f32.mrb[0].mxu0
      %8367 = vmatprep.mubr.bf16.mxu0 %v8076
      %8368 = vmatmul.mubr.bf16.gmra.mrb[0].mxu0 %v8075
      %v8369 = vpop.f32.mrb[0].mxu0
      %v8370 = vadd.f32 %v8097, %v8369
      %v8371 = vpop.f32.mrb[0].mxu0
      %v8372 = vpop.f32.mrb[0].mxu0
      %v8373 = vadd.f32 %v8097, %v8372
      %v8374 = vpop.f32.mrb[0].mxu0
      %8375 = vmatprep.mubr.bf16.mxu0 %v8079
      %8376 = vmatmul.mubr.bf16.gmra.mrb[0].mxu0 %v8078
      %v8377 = vpop.f32.mrb[0].mxu0
      %v8378 = vadd.f32 %v8097, %v8377
      %v8379 = vpop.f32.mrb[0].mxu0
      %v8380 = vpop.f32.mrb[0].mxu0
      %v8381 = vadd.f32 %v8097, %v8380
      %v8382 = vpop.f32.mrb[0].mxu0
      %8383 = vmatprep.mubr.bf16.mxu0 %v8082
      %8384 = vmatmul.mubr.bf16.gmra.mrb[0].mxu0 %v8081
      %v8385 = vpop.f32.mrb[0].mxu0
      %v8386 = vadd.f32 %v8097, %v8385
      %v8387 = vpop.f32.mrb[0].mxu0
      %v8388 = vpop.f32.mrb[0].mxu0
      %v8389 = vadd.f32 %v8097, %v8388
      %v8390 = vpop.f32.mrb[0].mxu0
      %8391 = vmatprep.mubr.bf16.mxu0 %v8085
      %8392 = vmatmul.mubr.bf16.gmra.mrb[0].mxu0 %v8084
      %v8393 = vpop.f32.mrb[0].mxu0
      %v8394 = vadd.f32 %v8097, %v8393
      %v8395 = vpop.f32.mrb[0].mxu0
      %v8396 = vpop.f32.mrb[0].mxu0
      %v8397 = vadd.f32 %v8097, %v8396
      %v8398 = vpop.f32.mrb[0].mxu0
      %8399 = vmatprep.mubr.bf16.mxu0 %v8088
      %8400 = vmatmul.mubr.bf16.gmra.mrb[0].mxu0 %v8087
      %v8401 = vpop.f32.mrb[0].mxu0
      %v8402 = vadd.f32 %v8097, %v8401
      %v8403 = vpop.f32.mrb[0].mxu0
      %v8404 = vpop.f32.mrb[0].mxu0
      %v8405 = vadd.f32 %v8097, %v8404
      %v8406 = vpop.f32.mrb[0].mxu0
      %8407 = vmatprep.mubr.bf16.mxu0 %v8091
      %8408 = vmatmul.mubr.bf16.gmra.mrb[0].mxu0 %v8090
      %v8409 = vpop.f32.mrb[0].mxu0
      %v8410 = vadd.f32 %v8097, %v8409
      %v8411 = vpop.f32.mrb[0].mxu0
      %v8412 = vpop.f32.mrb[0].mxu0
      %v8413 = vadd.f32 %v8097, %v8412
      %v8414 = vpop.f32.mrb[0].mxu0
      %8415 = vdwg.mxu0
      %8416 = vmatprep.subr.bf16.mxu0 0
      %8417 = vmatpush1.bf16.msra.mxu0 %v8187
      %8418 = vmatprep.subr.bf16.mxu0 0
      %8419 = vmatpush1.bf16.msra.mxu0 %v8188
      %8420 = vmatprep.subr.bf16.mxu0 0
      %8421 = vmatpush1.bf16.msra.mxu0 0
      %8422 = vmatprep.subr.bf16.mxu0 0
      %8423 = vmatpush1.bf16.msra.mxu0 0
      %8424 = vmatprep.subr.bf16.mxu0 0
      %8425 = vmatpush1.bf16.msra.mxu0 0
      %8426 = vmatprep.subr.bf16.mxu0 0
      %8427 = vmatpush1.bf16.msra.mxu0 0
      %8428 = vmatprep.subr.bf16.mxu0 0
      %8429 = vmatpush1.bf16.msra.mxu0 0
      %8430 = vmatprep.subr.bf16.mxu0 0
      %8431 = vmatpush1.bf16.msra.mxu0 0
      %8432 = vmatprep.subr.bf16.mxu0 0
      %8433 = vmatpush1.bf16.msra.mxu0 0
      %8434 = vmatprep.subr.bf16.mxu0 0
      %8435 = vmatpush1.bf16.msra.mxu0 0
      %8436 = vmatprep.subr.bf16.mxu0 0
      %8437 = vmatpush1.bf16.msra.mxu0 0
      %8438 = vmatprep.subr.bf16.mxu0 0
      %8439 = vmatpush1.bf16.msra.mxu0 0
      %8440 = vmatprep.subr.bf16.mxu0 0
      %8441 = vmatpush1.bf16.msra.mxu0 0
      %8442 = vmatprep.subr.bf16.mxu0 0
      %8443 = vmatpush1.bf16.msra.mxu0 0
      %8444 = vmatprep.subr.bf16.mxu0 0
      %8445 = vmatpush1.bf16.msra.mxu0 0
      %8446 = vmatprep.subr.bf16.mxu0 0
      %8447 = vmatpush1.bf16.msra.mxu0 0
      %8448 = vmatprep.mubr.bf16.mxu0 0
      %8449 = vmatmul.mubr.bf16.gmra.mrb[0].mxu0 %v8208
      %v8450 = vpop.f32.mrb[0].mxu0
      %v8451 = vadd.f32 %v8290, %v8450
      %v8452 = vpop.f32.mrb[0].mxu0
      %v8453 = vpop.f32.mrb[0].mxu0
      %v8454 = vadd.f32 %v8293, %v8453
      %v8455 = vpop.f32.mrb[0].mxu0
      %8456 = vmatprep.mubr.bf16.mxu0 0
      %8457 = vmatmul.mubr.bf16.gmra.mrb[0].mxu0 %v8211
      %v8458 = vpop.f32.mrb[0].mxu0
      %v8459 = vadd.f32 %v8298, %v8458
      %v8460 = vpop.f32.mrb[0].mxu0
      %v8461 = vpop.f32.mrb[0].mxu0
      %v8462 = vadd.f32 %v8301, %v8461
      %v8463 = vpop.f32.mrb[0].mxu0
      %8464 = vmatprep.mubr.bf16.mxu0 0
      %8465 = vmatmul.mubr.bf16.gmra.mrb[0].mxu0 %v8214
      %v8466 = vpop.f32.mrb[0].mxu0
      %v8467 = vadd.f32 %v8306, %v8466
      %v8468 = vpop.f32.mrb[0].mxu0
      %v8469 = vpop.f32.mrb[0].mxu0
      %v8470 = vadd.f32 %v8309, %v8469
      %v8471 = vpop.f32.mrb[0].mxu0
      %8472 = vmatprep.mubr.bf16.mxu0 0
      %8473 = vmatmul.mubr.bf16.gmra.mrb[0].mxu0 %v8217
      %v8474 = vpop.f32.mrb[0].mxu0
      %v8475 = vadd.f32 %v8314, %v8474
      %v8476 = vpop.f32.mrb[0].mxu0
      %v8477 = vpop.f32.mrb[0].mxu0
      %v8478 = vadd.f32 %v8317, %v8477
      %v8479 = vpop.f32.mrb[0].mxu0
      %8480 = vmatprep.mubr.bf16.mxu0 0
      %8481 = vmatmul.mubr.bf16.gmra.mrb[0].mxu0 %v8220
      %v8482 = vpop.f32.mrb[0].mxu0
      %v8483 = vadd.f32 %v8322, %v8482
      %v8484 = vpop.f32.mrb[0].mxu0
      %v8485 = vpop.f32.mrb[0].mxu0
      %v8486 = vadd.f32 %v8325, %v8485
      %v8487 = vpop.f32.mrb[0].mxu0
      %8488 = vmatprep.mubr.bf16.mxu0 0
      %8489 = vmatmul.mubr.bf16.gmra.mrb[0].mxu0 %v8223
      %v8490 = vpop.f32.mrb[0].mxu0
      %v8491 = vadd.f32 %v8330, %v8490
      %v8492 = vpop.f32.mrb[0].mxu0
      %v8493 = vpop.f32.mrb[0].mxu0
      %v8494 = vadd.f32 %v8333, %v8493
      %v8495 = vpop.f32.mrb[0].mxu0
      %8496 = vmatprep.mubr.bf16.mxu0 0
      %8497 = vmatmul.mubr.bf16.gmra.mrb[0].mxu0 %v8226
      %v8498 = vpop.f32.mrb[0].mxu0
      %v8499 = vadd.f32 %v8338, %v8498
      %v8500 = vpop.f32.mrb[0].mxu0
      %v8501 = vpop.f32.mrb[0].mxu0
      %v8502 = vadd.f32 %v8341, %v8501
      %v8503 = vpop.f32.mrb[0].mxu0
      %8504 = vmatprep.mubr.bf16.mxu0 0
      %8505 = vmatmul.mubr.bf16.gmra.mrb[0].mxu0 %v8229
      %v8506 = vpop.f32.mrb[0].mxu0
      %v8507 = vadd.f32 %v8346, %v8506
      %v8508 = vpop.f32.mrb[0].mxu0
      %v8509 = vpop.f32.mrb[0].mxu0
      %v8510 = vadd.f32 %v8349, %v8509
      %v8511 = vpop.f32.mrb[0].mxu0
      %8512 = vmatprep.mubr.bf16.mxu0 0
      %8513 = vmatmul.mubr.bf16.gmra.mrb[0].mxu0 %v8232
      %v8514 = vpop.f32.mrb[0].mxu0
      %v8515 = vadd.f32 %v8354, %v8514
      %v8516 = vpop.f32.mrb[0].mxu0
      %v8517 = vpop.f32.mrb[0].mxu0
      %v8518 = vadd.f32 %v8357, %v8517
      %v8519 = vpop.f32.mrb[0].mxu0
      %8520 = vmatprep.mubr.bf16.mxu0 0
      %8521 = vmatmul.mubr.bf16.gmra.mrb[0].mxu0 %v8235
      %v8522 = vpop.f32.mrb[0].mxu0
      %v8523 = vadd.f32 %v8362, %v8522
      %v8524 = vpop.f32.mrb[0].mxu0
      %v8525 = vpop.f32.mrb[0].mxu0
      %v8526 = vadd.f32 %v8365, %v8525
      %v8527 = vpop.f32.mrb[0].mxu0
      %8528 = vmatprep.mubr.bf16.mxu0 0
      %8529 = vmatmul.mubr.bf16.gmra.mrb[0].mxu0 %v8238
      %v8530 = vpop.f32.mrb[0].mxu0
      %v8531 = vadd.f32 %v8370, %v8530
      %v8532 = vpop.f32.mrb[0].mxu0
      %v8533 = vpop.f32.mrb[0].mxu0
      %v8534 = vadd.f32 %v8373, %v8533
      %v8535 = vpop.f32.mrb[0].mxu0
      %8536 = vmatprep.mubr.bf16.mxu0 0
      %8537 = vmatmul.mubr.bf16.gmra.mrb[0].mxu0 %v8241
      %v8538 = vpop.f32.mrb[0].mxu0
      %v8539 = vadd.f32 %v8378, %v8538
      %v8540 = vpop.f32.mrb[0].mxu0
      %v8541 = vpop.f32.mrb[0].mxu0
      %v8542 = vadd.f32 %v8381, %v8541
      %v8543 = vpop.f32.mrb[0].mxu0
      %8544 = vmatprep.mubr.bf16.mxu0 0
      %8545 = vmatmul.mubr.bf16.gmra.mrb[0].mxu0 %v8244
      %v8546 = vpop.f32.mrb[0].mxu0
      %v8547 = vadd.f32 %v8386, %v8546
      %v8548 = vpop.f32.mrb[0].mxu0
      %v8549 = vpop.f32.mrb[0].mxu0
      %v8550 = vadd.f32 %v8389, %v8549
      %v8551 = vpop.f32.mrb[0].mxu0
      %8552 = vmatprep.mubr.bf16.mxu0 0
      %8553 = vmatmul.mubr.bf16.gmra.mrb[0].mxu0 %v8247
      %v8554 = vpop.f32.mrb[0].mxu0
      %v8555 = vadd.f32 %v8394, %v8554
      %v8556 = vpop.f32.mrb[0].mxu0
      %v8557 = vpop.f32.mrb[0].mxu0
      %v8558 = vadd.f32 %v8397, %v8557
      %v8559 = vpop.f32.mrb[0].mxu0
      %8560 = vmatprep.mubr.bf16.mxu0 0
      %8561 = vmatmul.mubr.bf16.gmra.mrb[0].mxu0 %v8250
      %v8562 = vpop.f32.mrb[0].mxu0
      %v8563 = vadd.f32 %v8402, %v8562
      %v8564 = vpop.f32.mrb[0].mxu0
      %v8565 = vpop.f32.mrb[0].mxu0
      %v8566 = vadd.f32 %v8405, %v8565
      %v8567 = vpop.f32.mrb[0].mxu0
      %8568 = vmatprep.mubr.bf16.mxu0 0
      %8569 = vmatmul.mubr.bf16.gmra.mrb[0].mxu0 %v8253
      %v8570 = vpop.f32.mrb[0].mxu0
      %v8571 = vadd.f32 %v8410, %v8570
      %v8572 = vpop.f32.mrb[0].mxu0
      %v8573 = vpop.f32.mrb[0].mxu0
      %v8574 = vadd.f32 %v8413, %v8573
      %v8575 = vpop.f32.mrb[0].mxu0
      %8576 = vdwg.mxu0
      %v8577 = vmax.f32 %v8451, 0.0
      %v8578 = vmax.f32 %v8454, 0.0
      %v8579 = vmax.f32 %v8459, 0.0
      %v8580 = vmax.f32 %v8462, 0.0
      %v8581 = vmax.f32 %v8467, 0.0
      %v8582 = vmax.f32 %v8470, 0.0
      %v8583 = vmax.f32 %v8475, 0.0
      %v8584 = vmax.f32 %v8478, 0.0
      %v8585 = vmax.f32 %v8483, 0.0
      %v8586 = vmax.f32 %v8486, 0.0
      %v8587 = vmax.f32 %v8491, 0.0
      %v8588 = vmax.f32 %v8494, 0.0
      %v8589 = vmax.f32 %v8499, 0.0
      %v8590 = vmax.f32 %v8502, 0.0
      %v8591 = vmax.f32 %v8507, 0.0
      %v8592 = vmax.f32 %v8510, 0.0
      %v8593 = vmax.f32 %v8515, 0.0
      %v8594 = vmax.f32 %v8518, 0.0
      %v8595 = vmax.f32 %v8523, 0.0
      %v8596 = vmax.f32 %v8526, 0.0
      %v8597 = vmax.f32 %v8531, 0.0
      %v8598 = vmax.f32 %v8534, 0.0
      %v8599 = vmax.f32 %v8539, 0.0
      %v8600 = vmax.f32 %v8542, 0.0
      %v8601 = vmax.f32 %v8547, 0.0
      %v8602 = vmax.f32 %v8550, 0.0
      %v8603 = vmax.f32 %v8555, 0.0
      %v8604 = vmax.f32 %v8558, 0.0
      %v8605 = vmax.f32 %v8563, 0.0
      %v8606 = vmax.f32 %v8566, 0.0
      %v8607 = vmax.f32 %v8571, 0.0
      %v8608 = vmax.f32 %v8574, 0.0
      %v8609 = vpack.c.bf16 %v8578, %v8577
      %v8610 = vpack.c.bf16 %v8580, %v8579
      %v8611 = vpack.c.bf16 %v8582, %v8581
      %v8612 = vpack.c.bf16 %v8584, %v8583
      %v8613 = vpack.c.bf16 %v8586, %v8585
      %v8614 = vpack.c.bf16 %v8588, %v8587
      %v8615 = vpack.c.bf16 %v8590, %v8589
      %v8616 = vpack.c.bf16 %v8592, %v8591
      %v8617 = vpack.c.bf16 %v8594, %v8593
      %v8618 = vpack.c.bf16 %v8596, %v8595
      %v8619 = vpack.c.bf16 %v8598, %v8597
      %v8620 = vpack.c.bf16 %v8600, %v8599
      %v8621 = vpack.c.bf16 %v8602, %v8601
      %v8622 = vpack.c.bf16 %v8604, %v8603
      %v8623 = vpack.c.bf16 %v8606, %v8605
      %v8624 = vpack.c.bf16 %v8608, %v8607
      %v8641 = vunpack.c.l.b16 %v8609
      %v8642 = vunpack.c.h.b16 %v8609
      %v8643 = vunpack.c.l.b16 %v8610
      %v8644 = vunpack.c.h.b16 %v8610
      %v8645 = vunpack.c.l.b16 %v8611
      %v8646 = vunpack.c.h.b16 %v8611
      %v8647 = vunpack.c.l.b16 %v8612
      %v8648 = vunpack.c.h.b16 %v8612
      %v8649 = vunpack.c.l.b16 %v8613
      %v8650 = vunpack.c.h.b16 %v8613
      %v8651 = vunpack.c.l.b16 %v8614
      %v8652 = vunpack.c.h.b16 %v8614
      %v8653 = vunpack.c.l.b16 %v8615
      %v8654 = vunpack.c.h.b16 %v8615
      %v8655 = vunpack.c.l.b16 %v8616
      %v8656 = vunpack.c.h.b16 %v8616
      %v8657 = vunpack.c.l.b16 %v8617
      %v8658 = vunpack.c.h.b16 %v8617
      %v8659 = vunpack.c.l.b16 %v8618
      %v8660 = vunpack.c.h.b16 %v8618
      %v8661 = vunpack.c.l.b16 %v8619
      %v8662 = vunpack.c.h.b16 %v8619
      %v8663 = vunpack.c.l.b16 %v8620
      %v8664 = vunpack.c.h.b16 %v8620
      %v8665 = vunpack.c.l.b16 %v8621
      %v8666 = vunpack.c.h.b16 %v8621
      %v8667 = vunpack.c.l.b16 %v8622
      %v8668 = vunpack.c.h.b16 %v8622
      %v8669 = vunpack.c.l.b16 %v8623
      %v8670 = vunpack.c.h.b16 %v8623
      %v8671 = vunpack.c.l.b16 %v8624
      %v8672 = vunpack.c.h.b16 %v8624
      %v8673 = vpack.c.b16 %v8641, %v8641
      %v8674 = vpack.c.b16 %v8642, %v8642
      %v8675 = vpack.c.b16 %v8643, %v8643
      %v8676 = vpack.c.b16 %v8644, %v8644
      %v8677 = vpack.c.b16 %v8645, %v8645
      %v8678 = vpack.c.b16 %v8646, %v8646
      %v8679 = vpack.c.b16 %v8647, %v8647
      %v8680 = vpack.c.b16 %v8648, %v8648
      %v8681 = vpack.c.b16 %v8649, %v8649
      %v8682 = vpack.c.b16 %v8650, %v8650
      %v8683 = vpack.c.b16 %v8651, %v8651
      %v8684 = vpack.c.b16 %v8652, %v8652
      %v8685 = vpack.c.b16 %v8653, %v8653
      %v8686 = vpack.c.b16 %v8654, %v8654
      %v8687 = vpack.c.b16 %v8655, %v8655
      %v8688 = vpack.c.b16 %v8656, %v8656
      %v8689 = vpack.c.b16 %v8657, %v8657
      %v8690 = vpack.c.b16 %v8658, %v8658
      %v8691 = vpack.c.b16 %v8659, %v8659
      %v8692 = vpack.c.b16 %v8660, %v8660
      %v8693 = vpack.c.b16 %v8661, %v8661
      %v8694 = vpack.c.b16 %v8662, %v8662
      %v8695 = vpack.c.b16 %v8663, %v8663
      %v8696 = vpack.c.b16 %v8664, %v8664
      %v8697 = vpack.c.b16 %v8665, %v8665
      %v8698 = vpack.c.b16 %v8666, %v8666
      %v8699 = vpack.c.b16 %v8667, %v8667
      %v8700 = vpack.c.b16 %v8668, %v8668
      %v8701 = vpack.c.b16 %v8669, %v8669
      %v8702 = vpack.c.b16 %v8670, %v8670
      %v8703 = vpack.c.b16 %v8671, %v8671
      %v8704 = vpack.c.b16 %v8672, %v8672
      %8737 = vst.msk [vmem:[%s386 + $0x4] sm:$0xf] %vm6360, %v8673
      %8738 = vst.msk [vmem:[%s386 + $0xc] sm:$0xf] %vm6360, %v8674
      %8739 = vst.msk [vmem:[%s386 + $0x14] sm:$0xf] %vm6360, %v8675
      %8740 = vst.msk [vmem:[%s386 + $0x1c] sm:$0xf] %vm6360, %v8676
      %8741 = vst.msk [vmem:[%s386 + $0x24] sm:$0xf] %vm6360, %v8677
      %8742 = vst.msk [vmem:[%s386 + $0x2c] sm:$0xf] %vm6360, %v8678
      %8743 = vst.msk [vmem:[%s386 + $0x34] sm:$0xf] %vm6360, %v8679
      %8744 = vst.msk [vmem:[%s386 + $0x3c] sm:$0xf] %vm6360, %v8680
      %8745 = vst.msk [vmem:[%s386 + $0x44] sm:$0xf] %vm6360, %v8681
      %8746 = vst.msk [vmem:[%s386 + $0x4c] sm:$0xf] %vm6360, %v8682
      %8747 = vst.msk [vmem:[%s386 + $0x54] sm:$0xf] %vm6360, %v8683
      %8748 = vst.msk [vmem:[%s386 + $0x5c] sm:$0xf] %vm6360, %v8684
      %8749 = vst.msk [vmem:[%s386 + $0x64] sm:$0xf] %vm6360, %v8685
      %8750 = vst.msk [vmem:[%s386 + $0x6c] sm:$0xf] %vm6360, %v8686
      %8751 = vst.msk [vmem:[%s386 + $0x74] sm:$0xf] %vm6360, %v8687
      %8752 = vst.msk [vmem:[%s386 + $0x7c] sm:$0xf] %vm6360, %v8688
      %8753 = vst.msk [vmem:[%s386 + $0x84] sm:$0xf] %vm6360, %v8689
      %8754 = vst.msk [vmem:[%s386 + $0x8c] sm:$0xf] %vm6360, %v8690
      %8755 = vst.msk [vmem:[%s386 + $0x94] sm:$0xf] %vm6360, %v8691
      %8756 = vst.msk [vmem:[%s386 + $0x9c] sm:$0xf] %vm6360, %v8692
      %8757 = vst.msk [vmem:[%s386 + $0xa4] sm:$0xf] %vm6360, %v8693
      %8758 = vst.msk [vmem:[%s386 + $0xac] sm:$0xf] %vm6360, %v8694
      %8759 = vst.msk [vmem:[%s386 + $0xb4] sm:$0xf] %vm6360, %v8695
      %8760 = vst.msk [vmem:[%s386 + $0xbc] sm:$0xf] %vm6360, %v8696
      %8761 = vst.msk [vmem:[%s386 + $0xc4] sm:$0xf] %vm6360, %v8697
      %8762 = vst.msk [vmem:[%s386 + $0xcc] sm:$0xf] %vm6360, %v8698
      %8763 = vst.msk [vmem:[%s386 + $0xd4] sm:$0xf] %vm6360, %v8699
      %8764 = vst.msk [vmem:[%s386 + $0xdc] sm:$0xf] %vm6360, %v8700
      %8765 = vst.msk [vmem:[%s386 + $0xe4] sm:$0xf] %vm6360, %v8701
      %8766 = vst.msk [vmem:[%s386 + $0xec] sm:$0xf] %vm6360, %v8702
      %8767 = vst.msk [vmem:[%s386 + $0xf4] sm:$0xf] %vm6360, %v8703
      %8768 = vst.msk [vmem:[%s386 + $0xfc] sm:$0xf] %vm6360, %v8704
      %v8769 = vld [vmem:[%s381] sm:$0xf]
      %v8770 = vld [vmem:[%s381 + $0x4] sm:$0xf]
      %v8771 = vld [vmem:[%s381 + $0x8] sm:$0xf]
      %v8772 = vld [vmem:[%s381 + $0xc] sm:$0xf]
      %v8773 = vld [vmem:[%s381 + $0x10] sm:$0xf]
      %v8774 = vld [vmem:[%s381 + $0x14] sm:$0xf]
      %v8775 = vld [vmem:[%s381 + $0x18] sm:$0xf]
      %v8776 = vld [vmem:[%s381 + $0x1c] sm:$0xf]
      %v8777 = vld [vmem:[%s381 + $0x20] sm:$0xf]
      %v8778 = vld [vmem:[%s381 + $0x24] sm:$0xf]
      %v8779 = vld [vmem:[%s381 + $0x28] sm:$0xf]
      %v8780 = vld [vmem:[%s381 + $0x2c] sm:$0xf]
      %v8781 = vld [vmem:[%s381 + $0x30] sm:$0xf]
      %v8782 = vld [vmem:[%s381 + $0x34] sm:$0xf]
      %v8783 = vld [vmem:[%s381 + $0x38] sm:$0xf]
      %v8784 = vld [vmem:[%s381 + $0x3c] sm:$0xf]
      %v8785 = vld [vmem:[%s381 + $0x40] sm:$0xf]
      %v8786 = vld [vmem:[%s381 + $0x44] sm:$0xf]
      %v8787 = vld [vmem:[%s381 + $0x48] sm:$0xf]
      %v8788 = vld [vmem:[%s381 + $0x4c] sm:$0xf]
      %v8789 = vld [vmem:[%s381 + $0x50] sm:$0xf]
      %v8790 = vld [vmem:[%s381 + $0x54] sm:$0xf]
      %v8791 = vld [vmem:[%s381 + $0x58] sm:$0xf]
      %v8792 = vld [vmem:[%s381 + $0x5c] sm:$0xf]
      %v8793 = vld [vmem:[%s381 + $0x60] sm:$0xf]
      %v8794 = vld [vmem:[%s381 + $0x64] sm:$0xf]
      %v8795 = vld [vmem:[%s381 + $0x68] sm:$0xf]
      %v8796 = vld [vmem:[%s381 + $0x6c] sm:$0xf]
      %v8797 = vld [vmem:[%s381 + $0x70] sm:$0xf]
      %v8798 = vld [vmem:[%s381 + $0x74] sm:$0xf]
      %v8799 = vld [vmem:[%s381 + $0x78] sm:$0xf]
      %v8800 = vld [vmem:[%s381 + $0x7c] sm:$0xf]
      %8801 = vst.msk [vmem:[#allocation2] sm:$0xf] %vm982, 4286578559
      %8802 = vst.msk [vmem:[#allocation2 + $0x4] sm:$0xf] %vm982, 4286578559
      %8803 = vst.msk [vmem:[#allocation2 + $0x8] sm:$0xf] %vm982, 4286578559
      %v8804 = vld [vmem:[#allocation2 + $0xc] sm:$0x1]
      %v8805 = vsel %vm988, 4286578559, %v8804
      %8806 = vst [vmem:[#allocation2 + $0xc] sm:$0x1] %v8805
      %8807 = vst.msk [vmem:[#allocation2 + $0x10] sm:$0xf] %vm982, 4286578559
      %8808 = vst.msk [vmem:[#allocation2 + $0x14] sm:$0xf] %vm982, 4286578559
      %8809 = vst.msk [vmem:[#allocation2 + $0x18] sm:$0xf] %vm982, 4286578559
      %v8810 = vld [vmem:[#allocation2 + $0x1c] sm:$0x1]
      %v8811 = vsel %vm988, 4286578559, %v8810
      %8812 = vst [vmem:[#allocation2 + $0x1c] sm:$0x1] %v8811
      %8813 = vst.msk [vmem:[#allocation2 + $0x20] sm:$0xf] %vm982, 4286578559
      %8814 = vst.msk [vmem:[#allocation2 + $0x24] sm:$0xf] %vm982, 4286578559
      %8815 = vst.msk [vmem:[#allocation2 + $0x28] sm:$0xf] %vm982, 4286578559
      %v8816 = vld [vmem:[#allocation2 + $0x2c] sm:$0x1]
      %v8817 = vsel %vm988, 4286578559, %v8816
      %8818 = vst [vmem:[#allocation2 + $0x2c] sm:$0x1] %v8817
      %8819 = vst.msk [vmem:[#allocation2 + $0x30] sm:$0xf] %vm982, 4286578559
      %8820 = vst.msk [vmem:[#allocation2 + $0x34] sm:$0xf] %vm982, 4286578559
      %8821 = vst.msk [vmem:[#allocation2 + $0x38] sm:$0xf] %vm982, 4286578559
      %v8822 = vld [vmem:[#allocation2 + $0x3c] sm:$0x1]
      %v8823 = vsel %vm988, 4286578559, %v8822
      %8824 = vst [vmem:[#allocation2 + $0x3c] sm:$0x1] %v8823
      %8825 = vst.msk [vmem:[#allocation2 + $0x40] sm:$0xf] %vm982, 4286578559
      %8826 = vst.msk [vmem:[#allocation2 + $0x44] sm:$0xf] %vm982, 4286578559
      %8827 = vst.msk [vmem:[#allocation2 + $0x48] sm:$0xf] %vm982, 4286578559
      %v8828 = vld [vmem:[#allocation2 + $0x4c] sm:$0x1]
      %v8829 = vsel %vm988, 4286578559, %v8828
      %8830 = vst [vmem:[#allocation2 + $0x4c] sm:$0x1] %v8829
      %8831 = vst.msk [vmem:[#allocation2 + $0x50] sm:$0xf] %vm982, 4286578559
      %8832 = vst.msk [vmem:[#allocation2 + $0x54] sm:$0xf] %vm982, 4286578559
      %8833 = vst.msk [vmem:[#allocation2 + $0x58] sm:$0xf] %vm982, 4286578559
      %v8834 = vld [vmem:[#allocation2 + $0x5c] sm:$0x1]
      %v8835 = vsel %vm988, 4286578559, %v8834
      %8836 = vst [vmem:[#allocation2 + $0x5c] sm:$0x1] %v8835
      %8837 = vst.msk [vmem:[#allocation2 + $0x60] sm:$0xf] %vm982, 4286578559
      %8838 = vst.msk [vmem:[#allocation2 + $0x64] sm:$0xf] %vm982, 4286578559
      %8839 = vst.msk [vmem:[#allocation2 + $0x68] sm:$0xf] %vm982, 4286578559
      %v8840 = vld [vmem:[#allocation2 + $0x6c] sm:$0x1]
      %v8841 = vsel %vm988, 4286578559, %v8840
      %8842 = vst [vmem:[#allocation2 + $0x6c] sm:$0x1] %v8841
      %8843 = vst.msk [vmem:[#allocation2 + $0x70] sm:$0xf] %vm982, 4286578559
      %8844 = vst.msk [vmem:[#allocation2 + $0x74] sm:$0xf] %vm982, 4286578559
      %8845 = vst.msk [vmem:[#allocation2 + $0x78] sm:$0xf] %vm982, 4286578559
      %v8846 = vld [vmem:[#allocation2 + $0x7c] sm:$0x1]
      %v8847 = vsel %vm988, 4286578559, %v8846
      %8848 = vst [vmem:[#allocation2 + $0x7c] sm:$0x1] %v8847
      %8849 = vst.msk [vmem:[#allocation2 + $0x80] sm:$0xf] %vm982, 4286578559
      %8850 = vst.msk [vmem:[#allocation2 + $0x84] sm:$0xf] %vm982, 4286578559
      %8851 = vst.msk [vmem:[#allocation2 + $0x88] sm:$0xf] %vm982, 4286578559
      %v8852 = vld [vmem:[#allocation2 + $0x8c] sm:$0x1]
      %v8853 = vsel %vm988, 4286578559, %v8852
      %8854 = vst [vmem:[#allocation2 + $0x8c] sm:$0x1] %v8853
      %8855 = vst.msk [vmem:[#allocation2 + $0x90] sm:$0xf] %vm982, 4286578559
      %8856 = vst.msk [vmem:[#allocation2 + $0x94] sm:$0xf] %vm982, 4286578559
      %8857 = vst.msk [vmem:[#allocation2 + $0x98] sm:$0xf] %vm982, 4286578559
      %v8858 = vld [vmem:[#allocation2 + $0x9c] sm:$0x1]
      %v8859 = vsel %vm988, 4286578559, %v8858
      %8860 = vst [vmem:[#allocation2 + $0x9c] sm:$0x1] %v8859
      %8861 = vst.msk [vmem:[#allocation2 + $0xa0] sm:$0xf] %vm982, 4286578559
      %8862 = vst.msk [vmem:[#allocation2 + $0xa4] sm:$0xf] %vm982, 4286578559
      %8863 = vst.msk [vmem:[#allocation2 + $0xa8] sm:$0xf] %vm982, 4286578559
      %v8864 = vld [vmem:[#allocation2 + $0xac] sm:$0x1]
      %v8865 = vsel %vm988, 4286578559, %v8864
      %8866 = vst [vmem:[#allocation2 + $0xac] sm:$0x1] %v8865
      %8867 = vst.msk [vmem:[#allocation2 + $0xb0] sm:$0xf] %vm982, 4286578559
      %8868 = vst.msk [vmem:[#allocation2 + $0xb4] sm:$0xf] %vm982, 4286578559
      %8869 = vst.msk [vmem:[#allocation2 + $0xb8] sm:$0xf] %vm982, 4286578559
      %v8870 = vld [vmem:[#allocation2 + $0xbc] sm:$0x1]
      %v8871 = vsel %vm988, 4286578559, %v8870
      %8872 = vst [vmem:[#allocation2 + $0xbc] sm:$0x1] %v8871
      %8873 = vst.msk [vmem:[#allocation2 + $0xc0] sm:$0xf] %vm982, 4286578559
      %8874 = vst.msk [vmem:[#allocation2 + $0xc4] sm:$0xf] %vm982, 4286578559
      %8875 = vst.msk [vmem:[#allocation2 + $0xc8] sm:$0xf] %vm982, 4286578559
      %v8876 = vld [vmem:[#allocation2 + $0xcc] sm:$0x1]
      %v8877 = vsel %vm988, 4286578559, %v8876
      %8878 = vst [vmem:[#allocation2 + $0xcc] sm:$0x1] %v8877
      %8879 = vst.msk [vmem:[#allocation2 + $0xd0] sm:$0xf] %vm982, 4286578559
      %8880 = vst.msk [vmem:[#allocation2 + $0xd4] sm:$0xf] %vm982, 4286578559
      %8881 = vst.msk [vmem:[#allocation2 + $0xd8] sm:$0xf] %vm982, 4286578559
      %v8882 = vld [vmem:[#allocation2 + $0xdc] sm:$0x1]
      %v8883 = vsel %vm988, 4286578559, %v8882
      %8884 = vst [vmem:[#allocation2 + $0xdc] sm:$0x1] %v8883
      %8885 = vst.msk [vmem:[#allocation2 + $0xe0] sm:$0xf] %vm982, 4286578559
      %8886 = vst.msk [vmem:[#allocation2 + $0xe4] sm:$0xf] %vm982, 4286578559
      %8887 = vst.msk [vmem:[#allocation2 + $0xe8] sm:$0xf] %vm982, 4286578559
      %v8888 = vld [vmem:[#allocation2 + $0xec] sm:$0x1]
      %v8889 = vsel %vm988, 4286578559, %v8888
      %8890 = vst [vmem:[#allocation2 + $0xec] sm:$0x1] %v8889
      %8891 = vst.msk [vmem:[#allocation2 + $0xf0] sm:$0xf] %vm982, 4286578559
      %8892 = vst.msk [vmem:[#allocation2 + $0xf4] sm:$0xf] %vm982, 4286578559
      %8893 = vst.msk [vmem:[#allocation2 + $0xf8] sm:$0xf] %vm982, 4286578559
      %v8894 = vld [vmem:[#allocation2 + $0xfc] sm:$0x1]
      %v8895 = vsel %vm988, 4286578559, %v8894
      %8896 = vst [vmem:[#allocation2 + $0xfc] sm:$0x1] %v8895
      %8897 = vst.msk [vmem:[#allocation2 + $0x100] sm:$0xf] %vm982, 4286578559
      %8898 = vst.msk [vmem:[#allocation2 + $0x104] sm:$0xf] %vm982, 4286578559
      %8899 = vst.msk [vmem:[#allocation2 + $0x108] sm:$0xf] %vm982, 4286578559
      %v8900 = vld [vmem:[#allocation2 + $0x10c] sm:$0x1]
      %v8901 = vsel %vm988, 4286578559, %v8900
      %8902 = vst [vmem:[#allocation2 + $0x10c] sm:$0x1] %v8901
      %8903 = vst.msk [vmem:[#allocation2 + $0x110] sm:$0xf] %vm982, 4286578559
      %8904 = vst.msk [vmem:[#allocation2 + $0x114] sm:$0xf] %vm982, 4286578559
      %8905 = vst.msk [vmem:[#allocation2 + $0x118] sm:$0xf] %vm982, 4286578559
      %v8906 = vld [vmem:[#allocation2 + $0x11c] sm:$0x1]
      %v8907 = vsel %vm988, 4286578559, %v8906
      %8908 = vst [vmem:[#allocation2 + $0x11c] sm:$0x1] %v8907
      %8909 = vst.msk [vmem:[%s1190 + $0x4] sm:$0xf] %vm6360, %v8769
      %8910 = vst.msk [vmem:[%s1190 + $0x8] sm:$0xf] %vm6360, %v8770
      %8911 = vst.msk [vmem:[%s1190 + $0x14] sm:$0xf] %vm6360, %v8771
      %8912 = vst.msk [vmem:[%s1190 + $0x18] sm:$0xf] %vm6360, %v8772
      %8913 = vst.msk [vmem:[%s1190 + $0x24] sm:$0xf] %vm6360, %v8773
      %8914 = vst.msk [vmem:[%s1190 + $0x28] sm:$0xf] %vm6360, %v8774
      %8915 = vst.msk [vmem:[%s1190 + $0x34] sm:$0xf] %vm6360, %v8775
      %8916 = vst.msk [vmem:[%s1190 + $0x38] sm:$0xf] %vm6360, %v8776
      %8917 = vst.msk [vmem:[%s1190 + $0x44] sm:$0xf] %vm6360, %v8777
      %8918 = vst.msk [vmem:[%s1190 + $0x48] sm:$0xf] %vm6360, %v8778
      %8919 = vst.msk [vmem:[%s1190 + $0x54] sm:$0xf] %vm6360, %v8779
      %8920 = vst.msk [vmem:[%s1190 + $0x58] sm:$0xf] %vm6360, %v8780
      %8921 = vst.msk [vmem:[%s1190 + $0x64] sm:$0xf] %vm6360, %v8781
      %8922 = vst.msk [vmem:[%s1190 + $0x68] sm:$0xf] %vm6360, %v8782
      %8923 = vst.msk [vmem:[%s1190 + $0x74] sm:$0xf] %vm6360, %v8783
      %8924 = vst.msk [vmem:[%s1190 + $0x78] sm:$0xf] %vm6360, %v8784
      %8925 = vst.msk [vmem:[%s1190 + $0x84] sm:$0xf] %vm6360, %v8785
      %8926 = vst.msk [vmem:[%s1190 + $0x88] sm:$0xf] %vm6360, %v8786
      %8927 = vst.msk [vmem:[%s1190 + $0x94] sm:$0xf] %vm6360, %v8787
      %8928 = vst.msk [vmem:[%s1190 + $0x98] sm:$0xf] %vm6360, %v8788
      %8929 = vst.msk [vmem:[%s1190 + $0xa4] sm:$0xf] %vm6360, %v8789
      %8930 = vst.msk [vmem:[%s1190 + $0xa8] sm:$0xf] %vm6360, %v8790
      %8931 = vst.msk [vmem:[%s1190 + $0xb4] sm:$0xf] %vm6360, %v8791
      %8932 = vst.msk [vmem:[%s1190 + $0xb8] sm:$0xf] %vm6360, %v8792
      %8933 = vst.msk [vmem:[%s1190 + $0xc4] sm:$0xf] %vm6360, %v8793
      %8934 = vst.msk [vmem:[%s1190 + $0xc8] sm:$0xf] %vm6360, %v8794
      %8935 = vst.msk [vmem:[%s1190 + $0xd4] sm:$0xf] %vm6360, %v8795
      %8936 = vst.msk [vmem:[%s1190 + $0xd8] sm:$0xf] %vm6360, %v8796
      %8937 = vst.msk [vmem:[%s1190 + $0xe4] sm:$0xf] %vm6360, %v8797
      %8938 = vst.msk [vmem:[%s1190 + $0xe8] sm:$0xf] %vm6360, %v8798
      %8939 = vst.msk [vmem:[%s1190 + $0xf4] sm:$0xf] %vm6360, %v8799
      %8940 = vst.msk [vmem:[%s1190 + $0xf8] sm:$0xf] %vm6360, %v8800
      %v8941 = vld [vmem:[#allocation2] sm:$0x8]
      %v8942 = vld [vmem:[#allocation2 + $0x4] sm:$0xf]
      %v8943 = vld [vmem:[#allocation2 + $0x8] sm:$0xf]
      %v8944 = vld [vmem:[#allocation2 + $0x10] sm:$0x8]
      %v8945 = vld [vmem:[#allocation2 + $0x14] sm:$0xf]
      %v8946 = vld [vmem:[#allocation2 + $0x18] sm:$0xf]
      %v8947 = vld [vmem:[#allocation2 + $0x20] sm:$0x8]
      %v8948 = vld [vmem:[#allocation2 + $0x24] sm:$0xf]
      %v8949 = vld [vmem:[#allocation2 + $0x28] sm:$0xf]
      %v8950 = vld [vmem:[#allocation2 + $0x30] sm:$0x8]
      %v8951 = vld [vmem:[#allocation2 + $0x34] sm:$0xf]
      %v8952 = vld [vmem:[#allocation2 + $0x38] sm:$0xf]
      %v8953 = vld [vmem:[#allocation2 + $0x40] sm:$0x8]
      %v8954 = vld [vmem:[#allocation2 + $0x44] sm:$0xf]
      %v8955 = vld [vmem:[#allocation2 + $0x48] sm:$0xf]
      %v8956 = vld [vmem:[#allocation2 + $0x50] sm:$0x8]
      %v8957 = vld [vmem:[#allocation2 + $0x54] sm:$0xf]
      %v8958 = vld [vmem:[#allocation2 + $0x58] sm:$0xf]
      %v8959 = vld [vmem:[#allocation2 + $0x60] sm:$0x8]
      %v8960 = vld [vmem:[#allocation2 + $0x64] sm:$0xf]
      %v8961 = vld [vmem:[#allocation2 + $0x68] sm:$0xf]
      %v8962 = vld [vmem:[#allocation2 + $0x70] sm:$0x8]
      %v8963 = vld [vmem:[#allocation2 + $0x74] sm:$0xf]
      %v8964 = vld [vmem:[#allocation2 + $0x78] sm:$0xf]
      %v8965 = vld [vmem:[#allocation2 + $0x80] sm:$0x8]
      %v8966 = vld [vmem:[#allocation2 + $0x84] sm:$0xf]
      %v8967 = vld [vmem:[#allocation2 + $0x88] sm:$0xf]
      %v8968 = vld [vmem:[#allocation2 + $0x90] sm:$0x8]
      %v8969 = vld [vmem:[#allocation2 + $0x94] sm:$0xf]
      %v8970 = vld [vmem:[#allocation2 + $0x98] sm:$0xf]
      %v8971 = vld [vmem:[#allocation2 + $0xa0] sm:$0x8]
      %v8972 = vld [vmem:[#allocation2 + $0xa4] sm:$0xf]
      %v8973 = vld [vmem:[#allocation2 + $0xa8] sm:$0xf]
      %v8974 = vld [vmem:[#allocation2 + $0xb0] sm:$0x8]
      %v8975 = vld [vmem:[#allocation2 + $0xb4] sm:$0xf]
      %v8976 = vld [vmem:[#allocation2 + $0xb8] sm:$0xf]
      %v8977 = vld [vmem:[#allocation2 + $0xc0] sm:$0x8]
      %v8978 = vld [vmem:[#allocation2 + $0xc4] sm:$0xf]
      %v8979 = vld [vmem:[#allocation2 + $0xc8] sm:$0xf]
      %v8980 = vld [vmem:[#allocation2 + $0xd0] sm:$0x8]
      %v8981 = vld [vmem:[#allocation2 + $0xd4] sm:$0xf]
      %v8982 = vld [vmem:[#allocation2 + $0xd8] sm:$0xf]
      %v8983 = vld [vmem:[#allocation2 + $0xe0] sm:$0x8]
      %v8984 = vld [vmem:[#allocation2 + $0xe4] sm:$0xf]
      %v8985 = vld [vmem:[#allocation2 + $0xe8] sm:$0xf]
      %v8986 = vld [vmem:[#allocation2 + $0xf0] sm:$0x8]
      %v8987 = vld [vmem:[#allocation2 + $0xf4] sm:$0xf]
      %v8988 = vld [vmem:[#allocation2 + $0xf8] sm:$0xf]
      %v8989 = vld [vmem:[#allocation2 + $0x100] sm:$0x8]
      %v8990 = vld [vmem:[#allocation2 + $0x104] sm:$0xf]
      %v8991 = vld [vmem:[#allocation2 + $0x108] sm:$0xf]
      %v8992 = vld [vmem:[#allocation2 + $0x110] sm:$0x8]
      %v8993 = vld [vmem:[#allocation2 + $0x114] sm:$0xf]
      %v8994 = vld [vmem:[#allocation2 + $0x118] sm:$0xf]
      %v8995 = vmax.bf16 %v8941, %v8944
      %v8996 = vmax.bf16 %v8942, %v8945
      %v8997 = vmax.bf16 %v8943, %v8946
      %v8998 = vmax.bf16 %v8944, %v8947
      %v8999 = vmax.bf16 %v8945, %v8948
      %v9000 = vmax.bf16 %v8946, %v8949
      %v9001 = vmax.bf16 %v8947, %v8950
      %v9002 = vmax.bf16 %v8948, %v8951
      %v9003 = vmax.bf16 %v8949, %v8952
      %v9004 = vmax.bf16 %v8950, %v8953
      %v9005 = vmax.bf16 %v8951, %v8954
      %v9006 = vmax.bf16 %v8952, %v8955
      %v9007 = vmax.bf16 %v8953, %v8956
      %v9008 = vmax.bf16 %v8954, %v8957
      %v9009 = vmax.bf16 %v8955, %v8958
      %v9010 = vmax.bf16 %v8956, %v8959
      %v9011 = vmax.bf16 %v8957, %v8960
      %v9012 = vmax.bf16 %v8958, %v8961
      %v9013 = vmax.bf16 %v8959, %v8962
      %v9014 = vmax.bf16 %v8960, %v8963
      %v9015 = vmax.bf16 %v8961, %v8964
      %v9016 = vmax.bf16 %v8962, %v8965
      %v9017 = vmax.bf16 %v8963, %v8966
      %v9018 = vmax.bf16 %v8964, %v8967
      %v9019 = vmax.bf16 %v8965, %v8968
      %v9020 = vmax.bf16 %v8966, %v8969
      %v9021 = vmax.bf16 %v8967, %v8970
      %v9022 = vmax.bf16 %v8968, %v8971
      %v9023 = vmax.bf16 %v8969, %v8972
      %v9024 = vmax.bf16 %v8970, %v8973
      %v9025 = vmax.bf16 %v8971, %v8974
      %v9026 = vmax.bf16 %v8972, %v8975
      %v9027 = vmax.bf16 %v8973, %v8976
      %v9028 = vmax.bf16 %v8974, %v8977
      %v9029 = vmax.bf16 %v8975, %v8978
      %v9030 = vmax.bf16 %v8976, %v8979
      %v9031 = vmax.bf16 %v8977, %v8980
      %v9032 = vmax.bf16 %v8978, %v8981
      %v9033 = vmax.bf16 %v8979, %v8982
      %v9034 = vmax.bf16 %v8980, %v8983
      %v9035 = vmax.bf16 %v8981, %v8984
      %v9036 = vmax.bf16 %v8982, %v8985
      %v9037 = vmax.bf16 %v8983, %v8986
      %v9038 = vmax.bf16 %v8984, %v8987
      %v9039 = vmax.bf16 %v8985, %v8988
      %v9040 = vmax.bf16 %v8986, %v8989
      %v9041 = vmax.bf16 %v8987, %v8990
      %v9042 = vmax.bf16 %v8988, %v8991
      %v9043 = vmax.bf16 %v8995, %v8947
      %v9044 = vmax.bf16 %v8996, %v8948
      %v9045 = vmax.bf16 %v8997, %v8949
      %v9046 = vmax.bf16 %v8998, %v8950
      %v9047 = vmax.bf16 %v8999, %v8951
      %v9048 = vmax.bf16 %v9000, %v8952
      %v9049 = vmax.bf16 %v9001, %v8953
      %v9050 = vmax.bf16 %v9002, %v8954
      %v9051 = vmax.bf16 %v9003, %v8955
      %v9052 = vmax.bf16 %v9004, %v8956
      %v9053 = vmax.bf16 %v9005, %v8957
      %v9054 = vmax.bf16 %v9006, %v8958
      %v9055 = vmax.bf16 %v9007, %v8959
      %v9056 = vmax.bf16 %v9008, %v8960
      %v9057 = vmax.bf16 %v9009, %v8961
      %v9058 = vmax.bf16 %v9010, %v8962
      %v9059 = vmax.bf16 %v9011, %v8963
      %v9060 = vmax.bf16 %v9012, %v8964
      %v9061 = vmax.bf16 %v9013, %v8965
      %v9062 = vmax.bf16 %v9014, %v8966
      %v9063 = vmax.bf16 %v9015, %v8967
      %v9064 = vmax.bf16 %v9016, %v8968
      %v9065 = vmax.bf16 %v9017, %v8969
      %v9066 = vmax.bf16 %v9018, %v8970
      %v9067 = vmax.bf16 %v9019, %v8971
      %v9068 = vmax.bf16 %v9020, %v8972
      %v9069 = vmax.bf16 %v9021, %v8973
      %v9070 = vmax.bf16 %v9022, %v8974
      %v9071 = vmax.bf16 %v9023, %v8975
      %v9072 = vmax.bf16 %v9024, %v8976
      %v9073 = vmax.bf16 %v9025, %v8977
      %v9074 = vmax.bf16 %v9026, %v8978
      %v9075 = vmax.bf16 %v9027, %v8979
      %v9076 = vmax.bf16 %v9028, %v8980
      %v9077 = vmax.bf16 %v9029, %v8981
      %v9078 = vmax.bf16 %v9030, %v8982
      %v9079 = vmax.bf16 %v9031, %v8983
      %v9080 = vmax.bf16 %v9032, %v8984
      %v9081 = vmax.bf16 %v9033, %v8985
      %v9082 = vmax.bf16 %v9034, %v8986
      %v9083 = vmax.bf16 %v9035, %v8987
      %v9084 = vmax.bf16 %v9036, %v8988
      %v9085 = vmax.bf16 %v9037, %v8989
      %v9086 = vmax.bf16 %v9038, %v8990
      %v9087 = vmax.bf16 %v9039, %v8991
      %v9088 = vmax.bf16 %v9040, %v8992
      %v9089 = vmax.bf16 %v9041, %v8993
      %v9090 = vmax.bf16 %v9042, %v8994
      %v9092 = vshll.u32 %v8942, 16
      %v9094 = vrot.slane %v9092, 5
      %v9095 = vshrl.u32 %v8942, 16
      %v9097 = vrot.slane %v9095, 4
      %v9098 = vor.u32 %v9097, %v9094
      %v9099 = vrot.slane %v9098, 4
      %v9101 = vshll.u32 %v8943, 16
      %v9103 = vrot.slane %v9101, 5
      %v9104 = vsel %vm2269, %v9099, %v9103
      %v9105 = vshrl.u32 %v8943, 16
      %v9107 = vrot.slane %v9105, 4
      %v9108 = vor.u32 %v9107, %v9103
      %v9109 = vrot.slane %v9108, 4
      %v9111 = vshll.u32 %v8945, 16
      %v9113 = vrot.slane %v9111, 5
      %v9114 = vshrl.u32 %v8945, 16
      %v9116 = vrot.slane %v9114, 4
      %v9117 = vor.u32 %v9116, %v9113
      %v9118 = vrot.slane %v9117, 4
      %v9120 = vshll.u32 %v8946, 16
      %v9122 = vrot.slane %v9120, 5
      %v9123 = vsel %vm2269, %v9118, %v9122
      %v9124 = vshrl.u32 %v8946, 16
      %v9126 = vrot.slane %v9124, 4
      %v9127 = vor.u32 %v9126, %v9122
      %v9128 = vrot.slane %v9127, 4
      %v9130 = vshll.u32 %v8948, 16
      %v9132 = vrot.slane %v9130, 5
      %v9133 = vshrl.u32 %v8948, 16
      %v9135 = vrot.slane %v9133, 4
      %v9136 = vor.u32 %v9135, %v9132
      %v9137 = vrot.slane %v9136, 4
      %v9139 = vshll.u32 %v8949, 16
      %v9141 = vrot.slane %v9139, 5
      %v9142 = vsel %vm2269, %v9137, %v9141
      %v9143 = vshrl.u32 %v8949, 16
      %v9145 = vrot.slane %v9143, 4
      %v9146 = vor.u32 %v9145, %v9141
      %v9147 = vrot.slane %v9146, 4
      %v9149 = vshll.u32 %v8951, 16
      %v9151 = vrot.slane %v9149, 5
      %v9152 = vshrl.u32 %v8951, 16
      %v9154 = vrot.slane %v9152, 4
      %v9155 = vor.u32 %v9154, %v9151
      %v9156 = vrot.slane %v9155, 4
      %v9158 = vshll.u32 %v8952, 16
      %v9160 = vrot.slane %v9158, 5
      %v9161 = vsel %vm2269, %v9156, %v9160
      %v9162 = vshrl.u32 %v8952, 16
      %v9164 = vrot.slane %v9162, 4
      %v9165 = vor.u32 %v9164, %v9160
      %v9166 = vrot.slane %v9165, 4
      %v9168 = vshll.u32 %v8954, 16
      %v9170 = vrot.slane %v9168, 5
      %v9171 = vshrl.u32 %v8954, 16
      %v9173 = vrot.slane %v9171, 4
      %v9174 = vor.u32 %v9173, %v9170
      %v9175 = vrot.slane %v9174, 4
      %v9177 = vshll.u32 %v8955, 16
      %v9179 = vrot.slane %v9177, 5
      %v9180 = vsel %vm2269, %v9175, %v9179
      %v9181 = vshrl.u32 %v8955, 16
      %v9183 = vrot.slane %v9181, 4
      %v9184 = vor.u32 %v9183, %v9179
      %v9185 = vrot.slane %v9184, 4
      %v9187 = vshll.u32 %v8957, 16
      %v9189 = vrot.slane %v9187, 5
      %v9190 = vshrl.u32 %v8957, 16
      %v9192 = vrot.slane %v9190, 4
      %v9193 = vor.u32 %v9192, %v9189
      %v9194 = vrot.slane %v9193, 4
      %v9196 = vshll.u32 %v8958, 16
      %v9198 = vrot.slane %v9196, 5
      %v9199 = vsel %vm2269, %v9194, %v9198
      %v9200 = vshrl.u32 %v8958, 16
      %v9202 = vrot.slane %v9200, 4
      %v9203 = vor.u32 %v9202, %v9198
      %v9204 = vrot.slane %v9203, 4
      %v9206 = vshll.u32 %v8960, 16
      %v9208 = vrot.slane %v9206, 5
      %v9209 = vshrl.u32 %v8960, 16
      %v9211 = vrot.slane %v9209, 4
      %v9212 = vor.u32 %v9211, %v9208
      %v9213 = vrot.slane %v9212, 4
      %v9215 = vshll.u32 %v8961, 16
      %v9217 = vrot.slane %v9215, 5
      %v9218 = vsel %vm2269, %v9213, %v9217
      %v9219 = vshrl.u32 %v8961, 16
      %v9221 = vrot.slane %v9219, 4
      %v9222 = vor.u32 %v9221, %v9217
      %v9223 = vrot.slane %v9222, 4
      %v9225 = vshll.u32 %v8963, 16
      %v9227 = vrot.slane %v9225, 5
      %v9228 = vshrl.u32 %v8963, 16
      %v9230 = vrot.slane %v9228, 4
      %v9231 = vor.u32 %v9230, %v9227
      %v9232 = vrot.slane %v9231, 4
      %v9234 = vshll.u32 %v8964, 16
      %v9236 = vrot.slane %v9234, 5
      %v9237 = vsel %vm2269, %v9232, %v9236
      %v9238 = vshrl.u32 %v8964, 16
      %v9240 = vrot.slane %v9238, 4
      %v9241 = vor.u32 %v9240, %v9236
      %v9242 = vrot.slane %v9241, 4
      %v9244 = vshll.u32 %v8966, 16
      %v9246 = vrot.slane %v9244, 5
      %v9247 = vshrl.u32 %v8966, 16
      %v9249 = vrot.slane %v9247, 4
      %v9250 = vor.u32 %v9249, %v9246
      %v9251 = vrot.slane %v9250, 4
      %v9253 = vshll.u32 %v8967, 16
      %v9255 = vrot.slane %v9253, 5
      %v9256 = vsel %vm2269, %v9251, %v9255
      %v9257 = vshrl.u32 %v8967, 16
      %v9259 = vrot.slane %v9257, 4
      %v9260 = vor.u32 %v9259, %v9255
      %v9261 = vrot.slane %v9260, 4
      %v9263 = vshll.u32 %v8969, 16
      %v9265 = vrot.slane %v9263, 5
      %v9266 = vshrl.u32 %v8969, 16
      %v9268 = vrot.slane %v9266, 4
      %v9269 = vor.u32 %v9268, %v9265
      %v9270 = vrot.slane %v9269, 4
      %v9272 = vshll.u32 %v8970, 16
      %v9274 = vrot.slane %v9272, 5
      %v9275 = vsel %vm2269, %v9270, %v9274
      %v9276 = vshrl.u32 %v8970, 16
      %v9278 = vrot.slane %v9276, 4
      %v9279 = vor.u32 %v9278, %v9274
      %v9280 = vrot.slane %v9279, 4
      %v9282 = vshll.u32 %v8972, 16
      %v9284 = vrot.slane %v9282, 5
      %v9285 = vshrl.u32 %v8972, 16
      %v9287 = vrot.slane %v9285, 4
      %v9288 = vor.u32 %v9287, %v9284
      %v9289 = vrot.slane %v9288, 4
      %v9291 = vshll.u32 %v8973, 16
      %v9293 = vrot.slane %v9291, 5
      %v9294 = vsel %vm2269, %v9289, %v9293
      %v9295 = vshrl.u32 %v8973, 16
      %v9297 = vrot.slane %v9295, 4
      %v9298 = vor.u32 %v9297, %v9293
      %v9299 = vrot.slane %v9298, 4
      %v9301 = vshll.u32 %v8975, 16
      %v9303 = vrot.slane %v9301, 5
      %v9304 = vshrl.u32 %v8975, 16
      %v9306 = vrot.slane %v9304, 4
      %v9307 = vor.u32 %v9306, %v9303
      %v9308 = vrot.slane %v9307, 4
      %v9310 = vshll.u32 %v8976, 16
      %v9312 = vrot.slane %v9310, 5
      %v9313 = vsel %vm2269, %v9308, %v9312
      %v9314 = vshrl.u32 %v8976, 16
      %v9316 = vrot.slane %v9314, 4
      %v9317 = vor.u32 %v9316, %v9312
      %v9318 = vrot.slane %v9317, 4
      %v9320 = vshll.u32 %v8978, 16
      %v9322 = vrot.slane %v9320, 5
      %v9323 = vshrl.u32 %v8978, 16
      %v9325 = vrot.slane %v9323, 4
      %v9326 = vor.u32 %v9325, %v9322
      %v9327 = vrot.slane %v9326, 4
      %v9329 = vshll.u32 %v8979, 16
      %v9331 = vrot.slane %v9329, 5
      %v9332 = vsel %vm2269, %v9327, %v9331
      %v9333 = vshrl.u32 %v8979, 16
      %v9335 = vrot.slane %v9333, 4
      %v9336 = vor.u32 %v9335, %v9331
      %v9337 = vrot.slane %v9336, 4
      %v9339 = vshll.u32 %v8981, 16
      %v9341 = vrot.slane %v9339, 5
      %v9342 = vshrl.u32 %v8981, 16
      %v9344 = vrot.slane %v9342, 4
      %v9345 = vor.u32 %v9344, %v9341
      %v9346 = vrot.slane %v9345, 4
      %v9348 = vshll.u32 %v8982, 16
      %v9350 = vrot.slane %v9348, 5
      %v9351 = vsel %vm2269, %v9346, %v9350
      %v9352 = vshrl.u32 %v8982, 16
      %v9354 = vrot.slane %v9352, 4
      %v9355 = vor.u32 %v9354, %v9350
      %v9356 = vrot.slane %v9355, 4
      %v9358 = vshll.u32 %v8984, 16
      %v9360 = vrot.slane %v9358, 5
      %v9361 = vshrl.u32 %v8984, 16
      %v9363 = vrot.slane %v9361, 4
      %v9364 = vor.u32 %v9363, %v9360
      %v9365 = vrot.slane %v9364, 4
      %v9367 = vshll.u32 %v8985, 16
      %v9369 = vrot.slane %v9367, 5
      %v9370 = vsel %vm2269, %v9365, %v9369
      %v9371 = vshrl.u32 %v8985, 16
      %v9373 = vrot.slane %v9371, 4
      %v9374 = vor.u32 %v9373, %v9369
      %v9375 = vrot.slane %v9374, 4
      %v9377 = vshll.u32 %v8987, 16
      %v9379 = vrot.slane %v9377, 5
      %v9380 = vshrl.u32 %v8987, 16
      %v9382 = vrot.slane %v9380, 4
      %v9383 = vor.u32 %v9382, %v9379
      %v9384 = vrot.slane %v9383, 4
      %v9386 = vshll.u32 %v8988, 16
      %v9388 = vrot.slane %v9386, 5
      %v9389 = vsel %vm2269, %v9384, %v9388
      %v9390 = vshrl.u32 %v8988, 16
      %v9392 = vrot.slane %v9390, 4
      %v9393 = vor.u32 %v9392, %v9388
      %v9394 = vrot.slane %v9393, 4
      %v9443 = vmax.bf16 %v9043, %v9094
      %v9444 = vmax.bf16 %v9044, %v9104
      %v9445 = vmax.bf16 %v9045, %v9109
      %v9446 = vmax.bf16 %v9046, %v9113
      %v9447 = vmax.bf16 %v9047, %v9123
      %v9448 = vmax.bf16 %v9048, %v9128
      %v9449 = vmax.bf16 %v9049, %v9132
      %v9450 = vmax.bf16 %v9050, %v9142
      %v9451 = vmax.bf16 %v9051, %v9147
      %v9452 = vmax.bf16 %v9052, %v9151
      %v9453 = vmax.bf16 %v9053, %v9161
      %v9454 = vmax.bf16 %v9054, %v9166
      %v9455 = vmax.bf16 %v9055, %v9170
      %v9456 = vmax.bf16 %v9056, %v9180
      %v9457 = vmax.bf16 %v9057, %v9185
      %v9458 = vmax.bf16 %v9058, %v9189
      %v9459 = vmax.bf16 %v9059, %v9199
      %v9460 = vmax.bf16 %v9060, %v9204
      %v9461 = vmax.bf16 %v9061, %v9208
      %v9462 = vmax.bf16 %v9062, %v9218
      %v9463 = vmax.bf16 %v9063, %v9223
      %v9464 = vmax.bf16 %v9064, %v9227
      %v9465 = vmax.bf16 %v9065, %v9237
      %v9466 = vmax.bf16 %v9066, %v9242
      %v9467 = vmax.bf16 %v9067, %v9246
      %v9468 = vmax.bf16 %v9068, %v9256
      %v9469 = vmax.bf16 %v9069, %v9261
      %v9470 = vmax.bf16 %v9070, %v9265
      %v9471 = vmax.bf16 %v9071, %v9275
      %v9472 = vmax.bf16 %v9072, %v9280
      %v9473 = vmax.bf16 %v9073, %v9284
      %v9474 = vmax.bf16 %v9074, %v9294
      %v9475 = vmax.bf16 %v9075, %v9299
      %v9476 = vmax.bf16 %v9076, %v9303
      %v9477 = vmax.bf16 %v9077, %v9313
      %v9478 = vmax.bf16 %v9078, %v9318
      %v9479 = vmax.bf16 %v9079, %v9322
      %v9480 = vmax.bf16 %v9080, %v9332
      %v9481 = vmax.bf16 %v9081, %v9337
      %v9482 = vmax.bf16 %v9082, %v9341
      %v9483 = vmax.bf16 %v9083, %v9351
      %v9484 = vmax.bf16 %v9084, %v9356
      %v9485 = vmax.bf16 %v9085, %v9360
      %v9486 = vmax.bf16 %v9086, %v9370
      %v9487 = vmax.bf16 %v9087, %v9375
      %v9488 = vmax.bf16 %v9088, %v9379
      %v9489 = vmax.bf16 %v9089, %v9389
      %v9490 = vmax.bf16 %v9090, %v9394
      %v9492 = vshll.u32 %v8990, 16
      %v9494 = vrot.slane %v9492, 5
      %v9495 = vshrl.u32 %v8990, 16
      %v9497 = vrot.slane %v9495, 4
      %v9498 = vor.u32 %v9497, %v9494
      %v9499 = vrot.slane %v9498, 4
      %v9501 = vshll.u32 %v8991, 16
      %v9503 = vrot.slane %v9501, 5
      %v9504 = vsel %vm2269, %v9499, %v9503
      %v9505 = vshrl.u32 %v8991, 16
      %v9507 = vrot.slane %v9505, 4
      %v9508 = vor.u32 %v9507, %v9503
      %v9509 = vrot.slane %v9508, 4
      %v9513 = vmax.bf16 %v9443, %v9113
      %v9514 = vmax.bf16 %v9444, %v9123
      %v9515 = vmax.bf16 %v9445, %v9128
      %v9516 = vmax.bf16 %v9446, %v9132
      %v9517 = vmax.bf16 %v9447, %v9142
      %v9518 = vmax.bf16 %v9448, %v9147
      %v9519 = vmax.bf16 %v9449, %v9151
      %v9520 = vmax.bf16 %v9450, %v9161
      %v9521 = vmax.bf16 %v9451, %v9166
      %v9522 = vmax.bf16 %v9452, %v9170
      %v9523 = vmax.bf16 %v9453, %v9180
      %v9524 = vmax.bf16 %v9454, %v9185
      %v9525 = vmax.bf16 %v9455, %v9189
      %v9526 = vmax.bf16 %v9456, %v9199
      %v9527 = vmax.bf16 %v9457, %v9204
      %v9528 = vmax.bf16 %v9458, %v9208
      %v9529 = vmax.bf16 %v9459, %v9218
      %v9530 = vmax.bf16 %v9460, %v9223
      %v9531 = vmax.bf16 %v9461, %v9227
      %v9532 = vmax.bf16 %v9462, %v9237
      %v9533 = vmax.bf16 %v9463, %v9242
      %v9534 = vmax.bf16 %v9464, %v9246
      %v9535 = vmax.bf16 %v9465, %v9256
      %v9536 = vmax.bf16 %v9466, %v9261
      %v9537 = vmax.bf16 %v9467, %v9265
      %v9538 = vmax.bf16 %v9468, %v9275
      %v9539 = vmax.bf16 %v9469, %v9280
      %v9540 = vmax.bf16 %v9470, %v9284
      %v9541 = vmax.bf16 %v9471, %v9294
      %v9542 = vmax.bf16 %v9472, %v9299
      %v9543 = vmax.bf16 %v9473, %v9303
      %v9544 = vmax.bf16 %v9474, %v9313
      %v9545 = vmax.bf16 %v9475, %v9318
      %v9546 = vmax.bf16 %v9476, %v9322
      %v9547 = vmax.bf16 %v9477, %v9332
      %v9548 = vmax.bf16 %v9478, %v9337
      %v9549 = vmax.bf16 %v9479, %v9341
      %v9550 = vmax.bf16 %v9480, %v9351
      %v9551 = vmax.bf16 %v9481, %v9356
      %v9552 = vmax.bf16 %v9482, %v9360
      %v9553 = vmax.bf16 %v9483, %v9370
      %v9554 = vmax.bf16 %v9484, %v9375
      %v9555 = vmax.bf16 %v9485, %v9379
      %v9556 = vmax.bf16 %v9486, %v9389
      %v9557 = vmax.bf16 %v9487, %v9394
      %v9558 = vmax.bf16 %v9488, %v9494
      %v9559 = vmax.bf16 %v9489, %v9504
      %v9560 = vmax.bf16 %v9490, %v9509
      %v9562 = vshll.u32 %v8993, 16
      %v9564 = vrot.slane %v9562, 5
      %v9565 = vshrl.u32 %v8993, 16
      %v9567 = vrot.slane %v9565, 4
      %v9568 = vor.u32 %v9567, %v9564
      %v9569 = vrot.slane %v9568, 4
      %v9571 = vshll.u32 %v8994, 16
      %v9573 = vrot.slane %v9571, 5
      %v9574 = vsel %vm2269, %v9569, %v9573
      %v9575 = vshrl.u32 %v8994, 16
      %v9577 = vrot.slane %v9575, 4
      %v9578 = vor.u32 %v9577, %v9573
      %v9579 = vrot.slane %v9578, 4
      %v9583 = vmax.bf16 %v9513, %v9132
      %v9584 = vmax.bf16 %v9514, %v9142
      %v9585 = vmax.bf16 %v9515, %v9147
      %v9586 = vmax.bf16 %v9516, %v9151
      %v9587 = vmax.bf16 %v9517, %v9161
      %v9588 = vmax.bf16 %v9518, %v9166
      %v9589 = vmax.bf16 %v9519, %v9170
      %v9590 = vmax.bf16 %v9520, %v9180
      %v9591 = vmax.bf16 %v9521, %v9185
      %v9592 = vmax.bf16 %v9522, %v9189
      %v9593 = vmax.bf16 %v9523, %v9199
      %v9594 = vmax.bf16 %v9524, %v9204
      %v9595 = vmax.bf16 %v9525, %v9208
      %v9596 = vmax.bf16 %v9526, %v9218
      %v9597 = vmax.bf16 %v9527, %v9223
      %v9598 = vmax.bf16 %v9528, %v9227
      %v9599 = vmax.bf16 %v9529, %v9237
      %v9600 = vmax.bf16 %v9530, %v9242
      %v9601 = vmax.bf16 %v9531, %v9246
      %v9602 = vmax.bf16 %v9532, %v9256
      %v9603 = vmax.bf16 %v9533, %v9261
      %v9604 = vmax.bf16 %v9534, %v9265
      %v9605 = vmax.bf16 %v9535, %v9275
      %v9606 = vmax.bf16 %v9536, %v9280
      %v9607 = vmax.bf16 %v9537, %v9284
      %v9608 = vmax.bf16 %v9538, %v9294
      %v9609 = vmax.bf16 %v9539, %v9299
      %v9610 = vmax.bf16 %v9540, %v9303
      %v9611 = vmax.bf16 %v9541, %v9313
      %v9612 = vmax.bf16 %v9542, %v9318
      %v9613 = vmax.bf16 %v9543, %v9322
      %v9614 = vmax.bf16 %v9544, %v9332
      %v9615 = vmax.bf16 %v9545, %v9337
      %v9616 = vmax.bf16 %v9546, %v9341
      %v9617 = vmax.bf16 %v9547, %v9351
      %v9618 = vmax.bf16 %v9548, %v9356
      %v9619 = vmax.bf16 %v9549, %v9360
      %v9620 = vmax.bf16 %v9550, %v9370
      %v9621 = vmax.bf16 %v9551, %v9375
      %v9622 = vmax.bf16 %v9552, %v9379
      %v9623 = vmax.bf16 %v9553, %v9389
      %v9624 = vmax.bf16 %v9554, %v9394
      %v9625 = vmax.bf16 %v9555, %v9494
      %v9626 = vmax.bf16 %v9556, %v9504
      %v9627 = vmax.bf16 %v9557, %v9509
      %v9628 = vmax.bf16 %v9558, %v9564
      %v9629 = vmax.bf16 %v9559, %v9574
      %v9630 = vmax.bf16 %v9560, %v9579
      %v9631 = vld [vmem:[#allocation2 + $0xc] sm:$0x1]
      %v9632 = vld [vmem:[#allocation2 + $0x1c] sm:$0x1]
      %v9633 = vld [vmem:[#allocation2 + $0x2c] sm:$0x1]
      %v9634 = vld [vmem:[#allocation2 + $0x3c] sm:$0x1]
      %v9635 = vld [vmem:[#allocation2 + $0x4c] sm:$0x1]
      %v9636 = vld [vmem:[#allocation2 + $0x5c] sm:$0x1]
      %v9637 = vld [vmem:[#allocation2 + $0x6c] sm:$0x1]
      %v9638 = vld [vmem:[#allocation2 + $0x7c] sm:$0x1]
      %v9639 = vld [vmem:[#allocation2 + $0x8c] sm:$0x1]
      %v9640 = vld [vmem:[#allocation2 + $0x9c] sm:$0x1]
      %v9641 = vld [vmem:[#allocation2 + $0xac] sm:$0x1]
      %v9642 = vld [vmem:[#allocation2 + $0xbc] sm:$0x1]
      %v9643 = vld [vmem:[#allocation2 + $0xcc] sm:$0x1]
      %v9644 = vld [vmem:[#allocation2 + $0xdc] sm:$0x1]
      %v9645 = vld [vmem:[#allocation2 + $0xec] sm:$0x1]
      %v9646 = vld [vmem:[#allocation2 + $0xfc] sm:$0x1]
      %v9647 = vld [vmem:[#allocation2 + $0x10c] sm:$0x1]
      %v9648 = vld [vmem:[#allocation2 + $0x11c] sm:$0x1]
      %vm9697 = vcmask 1042432
      %vm9698 = vcmask 1046532
      %vm9699 = vmor %vm9697, %vm9698
      %v9700 = vrot.slane %v8942, 5
      %v9701 = vrot.slane %v9700, 4
      %v9702 = vrot.slane %v8943, 5
      %v9703 = vsel %vm9699, %v9701, %v9702
      %v9704 = vrot.slane %v9702, 4
      %v9705 = vrot.slane %v9631, 5
      %v9706 = vsel %vm9699, %v9704, %v9705
      %v9707 = vrot.slane %v8945, 5
      %v9708 = vrot.slane %v9707, 4
      %v9709 = vrot.slane %v8946, 5
      %v9710 = vsel %vm9699, %v9708, %v9709
      %v9711 = vrot.slane %v9709, 4
      %v9712 = vrot.slane %v9632, 5
      %v9713 = vsel %vm9699, %v9711, %v9712
      %v9714 = vrot.slane %v8948, 5
      %v9715 = vrot.slane %v9714, 4
      %v9716 = vrot.slane %v8949, 5
      %v9717 = vsel %vm9699, %v9715, %v9716
      %v9718 = vrot.slane %v9716, 4
      %v9719 = vrot.slane %v9633, 5
      %v9720 = vsel %vm9699, %v9718, %v9719
      %v9721 = vrot.slane %v8951, 5
      %v9722 = vrot.slane %v9721, 4
      %v9723 = vrot.slane %v8952, 5
      %v9724 = vsel %vm9699, %v9722, %v9723
      %v9725 = vrot.slane %v9723, 4
      %v9726 = vrot.slane %v9634, 5
      %v9727 = vsel %vm9699, %v9725, %v9726
      %v9728 = vrot.slane %v8954, 5
      %v9729 = vrot.slane %v9728, 4
      %v9730 = vrot.slane %v8955, 5
      %v9731 = vsel %vm9699, %v9729, %v9730
      %v9732 = vrot.slane %v9730, 4
      %v9733 = vrot.slane %v9635, 5
      %v9734 = vsel %vm9699, %v9732, %v9733
      %v9735 = vrot.slane %v8957, 5
      %v9736 = vrot.slane %v9735, 4
      %v9737 = vrot.slane %v8958, 5
      %v9738 = vsel %vm9699, %v9736, %v9737
      %v9739 = vrot.slane %v9737, 4
      %v9740 = vrot.slane %v9636, 5
      %v9741 = vsel %vm9699, %v9739, %v9740
      %v9742 = vrot.slane %v8960, 5
      %v9743 = vrot.slane %v9742, 4
      %v9744 = vrot.slane %v8961, 5
      %v9745 = vsel %vm9699, %v9743, %v9744
      %v9746 = vrot.slane %v9744, 4
      %v9747 = vrot.slane %v9637, 5
      %v9748 = vsel %vm9699, %v9746, %v9747
      %v9749 = vrot.slane %v8963, 5
      %v9750 = vrot.slane %v9749, 4
      %v9751 = vrot.slane %v8964, 5
      %v9752 = vsel %vm9699, %v9750, %v9751
      %v9753 = vrot.slane %v9751, 4
      %v9754 = vrot.slane %v9638, 5
      %v9755 = vsel %vm9699, %v9753, %v9754
      %v9756 = vrot.slane %v8966, 5
      %v9757 = vrot.slane %v9756, 4
      %v9758 = vrot.slane %v8967, 5
      %v9759 = vsel %vm9699, %v9757, %v9758
      %v9760 = vrot.slane %v9758, 4
      %v9761 = vrot.slane %v9639, 5
      %v9762 = vsel %vm9699, %v9760, %v9761
      %v9763 = vrot.slane %v8969, 5
      %v9764 = vrot.slane %v9763, 4
      %v9765 = vrot.slane %v8970, 5
      %v9766 = vsel %vm9699, %v9764, %v9765
      %v9767 = vrot.slane %v9765, 4
      %v9768 = vrot.slane %v9640, 5
      %v9769 = vsel %vm9699, %v9767, %v9768
      %v9770 = vrot.slane %v8972, 5
      %v9771 = vrot.slane %v9770, 4
      %v9772 = vrot.slane %v8973, 5
      %v9773 = vsel %vm9699, %v9771, %v9772
      %v9774 = vrot.slane %v9772, 4
      %v9775 = vrot.slane %v9641, 5
      %v9776 = vsel %vm9699, %v9774, %v9775
      %v9777 = vrot.slane %v8975, 5
      %v9778 = vrot.slane %v9777, 4
      %v9779 = vrot.slane %v8976, 5
      %v9780 = vsel %vm9699, %v9778, %v9779
      %v9781 = vrot.slane %v9779, 4
      %v9782 = vrot.slane %v9642, 5
      %v9783 = vsel %vm9699, %v9781, %v9782
      %v9784 = vrot.slane %v8978, 5
      %v9785 = vrot.slane %v9784, 4
      %v9786 = vrot.slane %v8979, 5
      %v9787 = vsel %vm9699, %v9785, %v9786
      %v9788 = vrot.slane %v9786, 4
      %v9789 = vrot.slane %v9643, 5
      %v9790 = vsel %vm9699, %v9788, %v9789
      %v9791 = vrot.slane %v8981, 5
      %v9792 = vrot.slane %v9791, 4
      %v9793 = vrot.slane %v8982, 5
      %v9794 = vsel %vm9699, %v9792, %v9793
      %v9795 = vrot.slane %v9793, 4
      %v9796 = vrot.slane %v9644, 5
      %v9797 = vsel %vm9699, %v9795, %v9796
      %v9798 = vrot.slane %v8984, 5
      %v9799 = vrot.slane %v9798, 4
      %v9800 = vrot.slane %v8985, 5
      %v9801 = vsel %vm9699, %v9799, %v9800
      %v9802 = vrot.slane %v9800, 4
      %v9803 = vrot.slane %v9645, 5
      %v9804 = vsel %vm9699, %v9802, %v9803
      %v9805 = vrot.slane %v8987, 5
      %v9806 = vrot.slane %v9805, 4
      %v9807 = vrot.slane %v8988, 5
      %v9808 = vsel %vm9699, %v9806, %v9807
      %v9809 = vrot.slane %v9807, 4
      %v9810 = vrot.slane %v9646, 5
      %v9811 = vsel %vm9699, %v9809, %v9810
      %v9860 = vmax.bf16 %v9583, %v9700
      %v9861 = vmax.bf16 %v9584, %v9703
      %v9862 = vmax.bf16 %v9585, %v9706
      %v9863 = vmax.bf16 %v9586, %v9707
      %v9864 = vmax.bf16 %v9587, %v9710
      %v9865 = vmax.bf16 %v9588, %v9713
      %v9866 = vmax.bf16 %v9589, %v9714
      %v9867 = vmax.bf16 %v9590, %v9717
      %v9868 = vmax.bf16 %v9591, %v9720
      %v9869 = vmax.bf16 %v9592, %v9721
      %v9870 = vmax.bf16 %v9593, %v9724
      %v9871 = vmax.bf16 %v9594, %v9727
      %v9872 = vmax.bf16 %v9595, %v9728
      %v9873 = vmax.bf16 %v9596, %v9731
      %v9874 = vmax.bf16 %v9597, %v9734
      %v9875 = vmax.bf16 %v9598, %v9735
      %v9876 = vmax.bf16 %v9599, %v9738
      %v9877 = vmax.bf16 %v9600, %v9741
      %v9878 = vmax.bf16 %v9601, %v9742
      %v9879 = vmax.bf16 %v9602, %v9745
      %v9880 = vmax.bf16 %v9603, %v9748
      %v9881 = vmax.bf16 %v9604, %v9749
      %v9882 = vmax.bf16 %v9605, %v9752
      %v9883 = vmax.bf16 %v9606, %v9755
      %v9884 = vmax.bf16 %v9607, %v9756
      %v9885 = vmax.bf16 %v9608, %v9759
      %v9886 = vmax.bf16 %v9609, %v9762
      %v9887 = vmax.bf16 %v9610, %v9763
      %v9888 = vmax.bf16 %v9611, %v9766
      %v9889 = vmax.bf16 %v9612, %v9769
      %v9890 = vmax.bf16 %v9613, %v9770
      %v9891 = vmax.bf16 %v9614, %v9773
      %v9892 = vmax.bf16 %v9615, %v9776
      %v9893 = vmax.bf16 %v9616, %v9777
      %v9894 = vmax.bf16 %v9617, %v9780
      %v9895 = vmax.bf16 %v9618, %v9783
      %v9896 = vmax.bf16 %v9619, %v9784
      %v9897 = vmax.bf16 %v9620, %v9787
      %v9898 = vmax.bf16 %v9621, %v9790
      %v9899 = vmax.bf16 %v9622, %v9791
      %v9900 = vmax.bf16 %v9623, %v9794
      %v9901 = vmax.bf16 %v9624, %v9797
      %v9902 = vmax.bf16 %v9625, %v9798
      %v9903 = vmax.bf16 %v9626, %v9801
      %v9904 = vmax.bf16 %v9627, %v9804
      %v9905 = vmax.bf16 %v9628, %v9805
      %v9906 = vmax.bf16 %v9629, %v9808
      %v9907 = vmax.bf16 %v9630, %v9811
      %v9911 = vrot.slane %v8990, 5
      %v9912 = vrot.slane %v9911, 4
      %v9913 = vrot.slane %v8991, 5
      %v9914 = vsel %vm9699, %v9912, %v9913
      %v9915 = vrot.slane %v9913, 4
      %v9916 = vrot.slane %v9647, 5
      %v9917 = vsel %vm9699, %v9915, %v9916
      %v9921 = vmax.bf16 %v9860, %v9707
      %v9922 = vmax.bf16 %v9861, %v9710
      %v9923 = vmax.bf16 %v9862, %v9713
      %v9924 = vmax.bf16 %v9863, %v9714
      %v9925 = vmax.bf16 %v9864, %v9717
      %v9926 = vmax.bf16 %v9865, %v9720
      %v9927 = vmax.bf16 %v9866, %v9721
      %v9928 = vmax.bf16 %v9867, %v9724
      %v9929 = vmax.bf16 %v9868, %v9727
      %v9930 = vmax.bf16 %v9869, %v9728
      %v9931 = vmax.bf16 %v9870, %v9731
      %v9932 = vmax.bf16 %v9871, %v9734
      %v9933 = vmax.bf16 %v9872, %v9735
      %v9934 = vmax.bf16 %v9873, %v9738
      %v9935 = vmax.bf16 %v9874, %v9741
      %v9936 = vmax.bf16 %v9875, %v9742
      %v9937 = vmax.bf16 %v9876, %v9745
      %v9938 = vmax.bf16 %v9877, %v9748
      %v9939 = vmax.bf16 %v9878, %v9749
      %v9940 = vmax.bf16 %v9879, %v9752
      %v9941 = vmax.bf16 %v9880, %v9755
      %v9942 = vmax.bf16 %v9881, %v9756
      %v9943 = vmax.bf16 %v9882, %v9759
      %v9944 = vmax.bf16 %v9883, %v9762
      %v9945 = vmax.bf16 %v9884, %v9763
      %v9946 = vmax.bf16 %v9885, %v9766
      %v9947 = vmax.bf16 %v9886, %v9769
      %v9948 = vmax.bf16 %v9887, %v9770
      %v9949 = vmax.bf16 %v9888, %v9773
      %v9950 = vmax.bf16 %v9889, %v9776
      %v9951 = vmax.bf16 %v9890, %v9777
      %v9952 = vmax.bf16 %v9891, %v9780
      %v9953 = vmax.bf16 %v9892, %v9783
      %v9954 = vmax.bf16 %v9893, %v9784
      %v9955 = vmax.bf16 %v9894, %v9787
      %v9956 = vmax.bf16 %v9895, %v9790
      %v9957 = vmax.bf16 %v9896, %v9791
      %v9958 = vmax.bf16 %v9897, %v9794
      %v9959 = vmax.bf16 %v9898, %v9797
      %v9960 = vmax.bf16 %v9899, %v9798
      %v9961 = vmax.bf16 %v9900, %v9801
      %v9962 = vmax.bf16 %v9901, %v9804
      %v9963 = vmax.bf16 %v9902, %v9805
      %v9964 = vmax.bf16 %v9903, %v9808
      %v9965 = vmax.bf16 %v9904, %v9811
      %v9966 = vmax.bf16 %v9905, %v9911
      %v9967 = vmax.bf16 %v9906, %v9914
      %v9968 = vmax.bf16 %v9907, %v9917
      %v9972 = vrot.slane %v8993, 5
      %v9973 = vrot.slane %v9972, 4
      %v9974 = vrot.slane %v8994, 5
      %v9975 = vsel %vm9699, %v9973, %v9974
      %v9976 = vrot.slane %v9974, 4
      %v9977 = vrot.slane %v9648, 5
      %v9978 = vsel %vm9699, %v9976, %v9977
      %v9982 = vmax.bf16 %v9921, %v9714
      %v9983 = vmax.bf16 %v9922, %v9717
      %v9984 = vmax.bf16 %v9923, %v9720
      %v9985 = vmax.bf16 %v9924, %v9721
      %v9986 = vmax.bf16 %v9925, %v9724
      %v9987 = vmax.bf16 %v9926, %v9727
      %v9988 = vmax.bf16 %v9927, %v9728
      %v9989 = vmax.bf16 %v9928, %v9731
      %v9990 = vmax.bf16 %v9929, %v9734
      %v9991 = vmax.bf16 %v9930, %v9735
      %v9992 = vmax.bf16 %v9931, %v9738
      %v9993 = vmax.bf16 %v9932, %v9741
      %v9994 = vmax.bf16 %v9933, %v9742
      %v9995 = vmax.bf16 %v9934, %v9745
      %v9996 = vmax.bf16 %v9935, %v9748
      %v9997 = vmax.bf16 %v9936, %v9749
      %v9998 = vmax.bf16 %v9937, %v9752
      %v9999 = vmax.bf16 %v9938, %v9755
      %v10000 = vmax.bf16 %v9939, %v9756
      %v10001 = vmax.bf16 %v9940, %v9759
      %v10002 = vmax.bf16 %v9941, %v9762
      %v10003 = vmax.bf16 %v9942, %v9763
      %v10004 = vmax.bf16 %v9943, %v9766
      %v10005 = vmax.bf16 %v9944, %v9769
      %v10006 = vmax.bf16 %v9945, %v9770
      %v10007 = vmax.bf16 %v9946, %v9773
      %v10008 = vmax.bf16 %v9947, %v9776
      %v10009 = vmax.bf16 %v9948, %v9777
      %v10010 = vmax.bf16 %v9949, %v9780
      %v10011 = vmax.bf16 %v9950, %v9783
      %v10012 = vmax.bf16 %v9951, %v9784
      %v10013 = vmax.bf16 %v9952, %v9787
      %v10014 = vmax.bf16 %v9953, %v9790
      %v10015 = vmax.bf16 %v9954, %v9791
      %v10016 = vmax.bf16 %v9955, %v9794
      %v10017 = vmax.bf16 %v9956, %v9797
      %v10018 = vmax.bf16 %v9957, %v9798
      %v10019 = vmax.bf16 %v9958, %v9801
      %v10020 = vmax.bf16 %v9959, %v9804
      %v10021 = vmax.bf16 %v9960, %v9805
      %v10022 = vmax.bf16 %v9961, %v9808
      %v10023 = vmax.bf16 %v9962, %v9811
      %v10024 = vmax.bf16 %v9963, %v9911
      %v10025 = vmax.bf16 %v9964, %v9914
      %v10026 = vmax.bf16 %v9965, %v9917
      %v10027 = vmax.bf16 %v9966, %v9972
      %v10028 = vmax.bf16 %v9967, %v9975
      %v10029 = vmax.bf16 %v9968, %v9978
      %v10031 = vshrl.u32 %v9982, 16
      %v10033 = vrot.slane %v10031, 7
      %v10034 = vrot.slane %v10033, 4
      %v10036 = vshrl.u32 %v9983, 16
      %v10038 = vrot.slane %v10036, 7
      %v10039 = vshll.u32 %v9983, 16
      %v10041 = vor.u32 %v10038, %v10039
      %v10042 = vsel %vm1278, %v10034, %v10041
      %v10043 = vrot.slane %v10038, 4
      %v10045 = vshrl.u32 %v9984, 16
      %v10047 = vrot.slane %v10045, 7
      %v10048 = vshll.u32 %v9984, 16
      %v10050 = vor.u32 %v10047, %v10048
      %v10051 = vsel %vm1278, %v10043, %v10050
      %v10053 = vshrl.u32 %v9985, 16
      %v10055 = vrot.slane %v10053, 7
      %v10056 = vrot.slane %v10055, 4
      %v10058 = vshrl.u32 %v9986, 16
      %v10060 = vrot.slane %v10058, 7
      %v10061 = vshll.u32 %v9986, 16
      %v10063 = vor.u32 %v10060, %v10061
      %v10064 = vsel %vm1278, %v10056, %v10063
      %v10065 = vrot.slane %v10060, 4
      %v10067 = vshrl.u32 %v9987, 16
      %v10069 = vrot.slane %v10067, 7
      %v10070 = vshll.u32 %v9987, 16
      %v10072 = vor.u32 %v10069, %v10070
      %v10073 = vsel %vm1278, %v10065, %v10072
      %v10075 = vshrl.u32 %v9988, 16
      %v10077 = vrot.slane %v10075, 7
      %v10078 = vrot.slane %v10077, 4
      %v10080 = vshrl.u32 %v9989, 16
      %v10082 = vrot.slane %v10080, 7
      %v10083 = vshll.u32 %v9989, 16
      %v10085 = vor.u32 %v10082, %v10083
      %v10086 = vsel %vm1278, %v10078, %v10085
      %v10087 = vrot.slane %v10082, 4
      %v10089 = vshrl.u32 %v9990, 16
      %v10091 = vrot.slane %v10089, 7
      %v10092 = vshll.u32 %v9990, 16
      %v10094 = vor.u32 %v10091, %v10092
      %v10095 = vsel %vm1278, %v10087, %v10094
      %v10097 = vshrl.u32 %v9991, 16
      %v10099 = vrot.slane %v10097, 7
      %v10100 = vrot.slane %v10099, 4
      %v10102 = vshrl.u32 %v9992, 16
      %v10104 = vrot.slane %v10102, 7
      %v10105 = vshll.u32 %v9992, 16
      %v10107 = vor.u32 %v10104, %v10105
      %v10108 = vsel %vm1278, %v10100, %v10107
      %v10109 = vrot.slane %v10104, 4
      %v10111 = vshrl.u32 %v9993, 16
      %v10113 = vrot.slane %v10111, 7
      %v10114 = vshll.u32 %v9993, 16
      %v10116 = vor.u32 %v10113, %v10114
      %v10117 = vsel %vm1278, %v10109, %v10116
      %v10119 = vshrl.u32 %v9994, 16
      %v10121 = vrot.slane %v10119, 7
      %v10122 = vrot.slane %v10121, 4
      %v10124 = vshrl.u32 %v9995, 16
      %v10126 = vrot.slane %v10124, 7
      %v10127 = vshll.u32 %v9995, 16
      %v10129 = vor.u32 %v10126, %v10127
      %v10130 = vsel %vm1278, %v10122, %v10129
      %v10131 = vrot.slane %v10126, 4
      %v10133 = vshrl.u32 %v9996, 16
      %v10135 = vrot.slane %v10133, 7
      %v10136 = vshll.u32 %v9996, 16
      %v10138 = vor.u32 %v10135, %v10136
      %v10139 = vsel %vm1278, %v10131, %v10138
      %v10141 = vshrl.u32 %v9997, 16
      %v10143 = vrot.slane %v10141, 7
      %v10144 = vrot.slane %v10143, 4
      %v10146 = vshrl.u32 %v9998, 16
      %v10148 = vrot.slane %v10146, 7
      %v10149 = vshll.u32 %v9998, 16
      %v10151 = vor.u32 %v10148, %v10149
      %v10152 = vsel %vm1278, %v10144, %v10151
      %v10153 = vrot.slane %v10148, 4
      %v10155 = vshrl.u32 %v9999, 16
      %v10157 = vrot.slane %v10155, 7
      %v10158 = vshll.u32 %v9999, 16
      %v10160 = vor.u32 %v10157, %v10158
      %v10161 = vsel %vm1278, %v10153, %v10160
      %v10163 = vshrl.u32 %v10000, 16
      %v10165 = vrot.slane %v10163, 7
      %v10166 = vrot.slane %v10165, 4
      %v10168 = vshrl.u32 %v10001, 16
      %v10170 = vrot.slane %v10168, 7
      %v10171 = vshll.u32 %v10001, 16
      %v10173 = vor.u32 %v10170, %v10171
      %v10174 = vsel %vm1278, %v10166, %v10173
      %v10175 = vrot.slane %v10170, 4
      %v10177 = vshrl.u32 %v10002, 16
      %v10179 = vrot.slane %v10177, 7
      %v10180 = vshll.u32 %v10002, 16
      %v10182 = vor.u32 %v10179, %v10180
      %v10183 = vsel %vm1278, %v10175, %v10182
      %v10185 = vshrl.u32 %v10003, 16
      %v10187 = vrot.slane %v10185, 7
      %v10188 = vrot.slane %v10187, 4
      %v10190 = vshrl.u32 %v10004, 16
      %v10192 = vrot.slane %v10190, 7
      %v10193 = vshll.u32 %v10004, 16
      %v10195 = vor.u32 %v10192, %v10193
      %v10196 = vsel %vm1278, %v10188, %v10195
      %v10197 = vrot.slane %v10192, 4
      %v10199 = vshrl.u32 %v10005, 16
      %v10201 = vrot.slane %v10199, 7
      %v10202 = vshll.u32 %v10005, 16
      %v10204 = vor.u32 %v10201, %v10202
      %v10205 = vsel %vm1278, %v10197, %v10204
      %v10207 = vshrl.u32 %v10006, 16
      %v10209 = vrot.slane %v10207, 7
      %v10210 = vrot.slane %v10209, 4
      %v10212 = vshrl.u32 %v10007, 16
      %v10214 = vrot.slane %v10212, 7
      %v10215 = vshll.u32 %v10007, 16
      %v10217 = vor.u32 %v10214, %v10215
      %v10218 = vsel %vm1278, %v10210, %v10217
      %v10219 = vrot.slane %v10214, 4
      %v10221 = vshrl.u32 %v10008, 16
      %v10223 = vrot.slane %v10221, 7
      %v10224 = vshll.u32 %v10008, 16
      %v10226 = vor.u32 %v10223, %v10224
      %v10227 = vsel %vm1278, %v10219, %v10226
      %v10229 = vshrl.u32 %v10009, 16
      %v10231 = vrot.slane %v10229, 7
      %v10232 = vrot.slane %v10231, 4
      %v10234 = vshrl.u32 %v10010, 16
      %v10236 = vrot.slane %v10234, 7
      %v10237 = vshll.u32 %v10010, 16
      %v10239 = vor.u32 %v10236, %v10237
      %v10240 = vsel %vm1278, %v10232, %v10239
      %v10241 = vrot.slane %v10236, 4
      %v10243 = vshrl.u32 %v10011, 16
      %v10245 = vrot.slane %v10243, 7
      %v10246 = vshll.u32 %v10011, 16
      %v10248 = vor.u32 %v10245, %v10246
      %v10249 = vsel %vm1278, %v10241, %v10248
      %v10251 = vshrl.u32 %v10012, 16
      %v10253 = vrot.slane %v10251, 7
      %v10254 = vrot.slane %v10253, 4
      %v10256 = vshrl.u32 %v10013, 16
      %v10258 = vrot.slane %v10256, 7
      %v10259 = vshll.u32 %v10013, 16
      %v10261 = vor.u32 %v10258, %v10259
      %v10262 = vsel %vm1278, %v10254, %v10261
      %v10263 = vrot.slane %v10258, 4
      %v10265 = vshrl.u32 %v10014, 16
      %v10267 = vrot.slane %v10265, 7
      %v10268 = vshll.u32 %v10014, 16
      %v10270 = vor.u32 %v10267, %v10268
      %v10271 = vsel %vm1278, %v10263, %v10270
      %v10273 = vshrl.u32 %v10015, 16
      %v10275 = vrot.slane %v10273, 7
      %v10276 = vrot.slane %v10275, 4
      %v10278 = vshrl.u32 %v10016, 16
      %v10280 = vrot.slane %v10278, 7
      %v10281 = vshll.u32 %v10016, 16
      %v10283 = vor.u32 %v10280, %v10281
      %v10284 = vsel %vm1278, %v10276, %v10283
      %v10285 = vrot.slane %v10280, 4
      %v10287 = vshrl.u32 %v10017, 16
      %v10289 = vrot.slane %v10287, 7
      %v10290 = vshll.u32 %v10017, 16
      %v10292 = vor.u32 %v10289, %v10290
      %v10293 = vsel %vm1278, %v10285, %v10292
      %v10295 = vshrl.u32 %v10018, 16
      %v10297 = vrot.slane %v10295, 7
      %v10298 = vrot.slane %v10297, 4
      %v10300 = vshrl.u32 %v10019, 16
      %v10302 = vrot.slane %v10300, 7
      %v10303 = vshll.u32 %v10019, 16
      %v10305 = vor.u32 %v10302, %v10303
      %v10306 = vsel %vm1278, %v10298, %v10305
      %v10307 = vrot.slane %v10302, 4
      %v10309 = vshrl.u32 %v10020, 16
      %v10311 = vrot.slane %v10309, 7
      %v10312 = vshll.u32 %v10020, 16
      %v10314 = vor.u32 %v10311, %v10312
      %v10315 = vsel %vm1278, %v10307, %v10314
      %v10317 = vshrl.u32 %v10021, 16
      %v10319 = vrot.slane %v10317, 7
      %v10320 = vrot.slane %v10319, 4
      %v10322 = vshrl.u32 %v10022, 16
      %v10324 = vrot.slane %v10322, 7
      %v10325 = vshll.u32 %v10022, 16
      %v10327 = vor.u32 %v10324, %v10325
      %v10328 = vsel %vm1278, %v10320, %v10327
      %v10329 = vrot.slane %v10324, 4
      %v10331 = vshrl.u32 %v10023, 16
      %v10333 = vrot.slane %v10331, 7
      %v10334 = vshll.u32 %v10023, 16
      %v10336 = vor.u32 %v10333, %v10334
      %v10337 = vsel %vm1278, %v10329, %v10336
      %v10339 = vshrl.u32 %v10024, 16
      %v10341 = vrot.slane %v10339, 7
      %v10342 = vrot.slane %v10341, 4
      %v10344 = vshrl.u32 %v10025, 16
      %v10346 = vrot.slane %v10344, 7
      %v10347 = vshll.u32 %v10025, 16
      %v10349 = vor.u32 %v10346, %v10347
      %v10350 = vsel %vm1278, %v10342, %v10349
      %v10351 = vrot.slane %v10346, 4
      %v10353 = vshrl.u32 %v10026, 16
      %v10355 = vrot.slane %v10353, 7
      %v10356 = vshll.u32 %v10026, 16
      %v10358 = vor.u32 %v10355, %v10356
      %v10359 = vsel %vm1278, %v10351, %v10358
      %v10361 = vshrl.u32 %v10027, 16
      %v10363 = vrot.slane %v10361, 7
      %v10364 = vrot.slane %v10363, 4
      %v10366 = vshrl.u32 %v10028, 16
      %v10368 = vrot.slane %v10366, 7
      %v10369 = vshll.u32 %v10028, 16
      %v10371 = vor.u32 %v10368, %v10369
      %v10372 = vsel %vm1278, %v10364, %v10371
      %v10373 = vrot.slane %v10368, 4
      %v10375 = vshrl.u32 %v10029, 16
      %v10377 = vrot.slane %v10375, 7
      %v10378 = vshll.u32 %v10029, 16
      %v10380 = vor.u32 %v10377, %v10378
      %v10381 = vsel %vm1278, %v10373, %v10380
      %v10382 = vld [vmem:[%s9] sm:$0xf]
      %v10383 = vld [vmem:[%s9 + $0x4] sm:$0xf]
      %v10384 = vld [vmem:[%s9 + $0x8] sm:$0xf]
      %v10385 = vld [vmem:[%s9 + $0xc] sm:$0xf]
      %v10386 = vld [vmem:[%s10] sm:$0x1]
      %v10388 = vlaneseq
      %v10389 = vshrl.u32 %v10388, 7
      %v10390 = vsub.s32 0, %v10389
      %v10391 = vrot.slane %v10386, %v10390
      %v10393 = vunpack.c.l.b16 %v10042
      %v10394 = vunpack.c.l.b16 %v10051
      %v10395 = vunpack.c.l.b16 %v10064
      %v10396 = vunpack.c.l.b16 %v10073
      %v10397 = vunpack.c.l.b16 %v10086
      %v10398 = vunpack.c.l.b16 %v10095
      %v10399 = vunpack.c.l.b16 %v10108
      %v10400 = vunpack.c.l.b16 %v10117
      %v10401 = vunpack.c.l.b16 %v10130
      %v10402 = vunpack.c.l.b16 %v10139
      %v10403 = vunpack.c.l.b16 %v10152
      %v10404 = vunpack.c.l.b16 %v10161
      %v10405 = vunpack.c.l.b16 %v10174
      %v10406 = vunpack.c.l.b16 %v10183
      %v10407 = vunpack.c.l.b16 %v10196
      %v10408 = vunpack.c.l.b16 %v10205
      %v10409 = vunpack.c.l.b16 %v10218
      %v10410 = vunpack.c.l.b16 %v10227
      %v10411 = vunpack.c.l.b16 %v10240
      %v10412 = vunpack.c.l.b16 %v10249
      %v10413 = vunpack.c.l.b16 %v10262
      %v10414 = vunpack.c.l.b16 %v10271
      %v10415 = vunpack.c.l.b16 %v10284
      %v10416 = vunpack.c.l.b16 %v10293
      %v10417 = vunpack.c.l.b16 %v10306
      %v10418 = vunpack.c.l.b16 %v10315
      %v10419 = vunpack.c.l.b16 %v10328
      %v10420 = vunpack.c.l.b16 %v10337
      %v10421 = vunpack.c.l.b16 %v10350
      %v10422 = vunpack.c.l.b16 %v10359
      %v10423 = vunpack.c.l.b16 %v10372
      %v10424 = vunpack.c.l.b16 %v10381
      %v10425 = vpack.c.b16 %v10394, %v10393
      %v10426 = vpack.c.b16 %v10396, %v10395
      %v10427 = vpack.c.b16 %v10398, %v10397
      %v10428 = vpack.c.b16 %v10400, %v10399
      %v10429 = vpack.c.b16 %v10402, %v10401
      %v10430 = vpack.c.b16 %v10404, %v10403
      %v10431 = vpack.c.b16 %v10406, %v10405
      %v10432 = vpack.c.b16 %v10408, %v10407
      %v10433 = vpack.c.b16 %v10410, %v10409
      %v10434 = vpack.c.b16 %v10412, %v10411
      %v10435 = vpack.c.b16 %v10414, %v10413
      %v10436 = vpack.c.b16 %v10416, %v10415
      %v10437 = vpack.c.b16 %v10418, %v10417
      %v10438 = vpack.c.b16 %v10420, %v10419
      %v10439 = vpack.c.b16 %v10422, %v10421
      %v10440 = vpack.c.b16 %v10424, %v10423
      %v10445 = vunpack.c.l.b16 %v10382
      %v10446 = vunpack.c.l.b16 %v10383
      %v10447 = vunpack.c.l.b16 %v10384
      %v10448 = vunpack.c.l.b16 %v10385
      %v10449 = vpack.c.b16 %v10446, %v10445
      %v10450 = vpack.c.b16 %v10448, %v10447
      %v10454 = vsel %vm524, %v10425, 0
      %v10457 = vsel %vm524, %v10426, 0
      %v10460 = vsel %vm524, %v10427, 0
      %v10463 = vsel %vm524, %v10428, 0
      %v10466 = vsel %vm524, %v10429, 0
      %v10469 = vsel %vm524, %v10430, 0
      %v10472 = vsel %vm524, %v10431, 0
      %v10475 = vsel %vm524, %v10432, 0
      %v10478 = vsel %vm524, %v10433, 0
      %v10481 = vsel %vm524, %v10434, 0
      %v10484 = vsel %vm524, %v10435, 0
      %v10487 = vsel %vm524, %v10436, 0
      %v10490 = vsel %vm524, %v10437, 0
      %v10493 = vsel %vm524, %v10438, 0
      %v10496 = vsel %vm524, %v10439, 0
      %v10499 = vsel %vm524, %v10440, 0
      %10501 = vmatprep.subr.bf16.mxu0 0
      %10502 = vmatpush1.bf16.msra.mxu0 %v10449
      %10503 = vmatprep.subr.bf16.mxu0 0
      %10504 = vmatpush1.bf16.msra.mxu0 %v10450
      %10505 = vmatprep.subr.bf16.mxu0 0
      %10506 = vmatpush1.bf16.msra.mxu0 0
      %10507 = vmatprep.subr.bf16.mxu0 0
      %10508 = vmatpush1.bf16.msra.mxu0 0
      %10509 = vmatprep.subr.bf16.mxu0 0
      %10510 = vmatpush1.bf16.msra.mxu0 0
      %10511 = vmatprep.subr.bf16.mxu0 0
      %10512 = vmatpush1.bf16.msra.mxu0 0
      %10513 = vmatprep.subr.bf16.mxu0 0
      %10514 = vmatpush1.bf16.msra.mxu0 0
      %10515 = vmatprep.subr.bf16.mxu0 0
      %10516 = vmatpush1.bf16.msra.mxu0 0
      %10517 = vmatprep.subr.bf16.mxu0 0
      %10518 = vmatpush1.bf16.msra.mxu0 0
      %10519 = vmatprep.subr.bf16.mxu0 0
      %10520 = vmatpush1.bf16.msra.mxu0 0
      %10521 = vmatprep.subr.bf16.mxu0 0
      %10522 = vmatpush1.bf16.msra.mxu0 0
      %10523 = vmatprep.subr.bf16.mxu0 0
      %10524 = vmatpush1.bf16.msra.mxu0 0
      %10525 = vmatprep.subr.bf16.mxu0 0
      %10526 = vmatpush1.bf16.msra.mxu0 0
      %10527 = vmatprep.subr.bf16.mxu0 0
      %10528 = vmatpush1.bf16.msra.mxu0 0
      %10529 = vmatprep.subr.bf16.mxu0 0
      %10530 = vmatpush1.bf16.msra.mxu0 0
      %10531 = vmatprep.subr.bf16.mxu0 0
      %10532 = vmatpush1.bf16.msra.mxu0 0
      %10533 = vmatprep.mubr.bf16.mxu0 0
      %10534 = vmatmul.mubr.bf16.gmra.mrb[0].mxu0 %v10454
      %v10535 = vpop.f32.mrb[0].mxu0
      %v10536 = vadd.f32 %v10391, %v10535
      %v10537 = vpop.f32.mrb[0].mxu0
      %v10538 = vpop.f32.mrb[0].mxu0
      %v10539 = vadd.f32 %v10391, %v10538
      %v10540 = vpop.f32.mrb[0].mxu0
      %10541 = vmatprep.mubr.bf16.mxu0 0
      %10542 = vmatmul.mubr.bf16.gmra.mrb[0].mxu0 %v10457
      %v10543 = vpop.f32.mrb[0].mxu0
      %v10544 = vadd.f32 %v10391, %v10543
      %v10545 = vpop.f32.mrb[0].mxu0
      %v10546 = vpop.f32.mrb[0].mxu0
      %v10547 = vadd.f32 %v10391, %v10546
      %v10548 = vpop.f32.mrb[0].mxu0
      %10549 = vmatprep.mubr.bf16.mxu0 0
      %10550 = vmatmul.mubr.bf16.gmra.mrb[0].mxu0 %v10460
      %v10551 = vpop.f32.mrb[0].mxu0
      %v10552 = vadd.f32 %v10391, %v10551
      %v10553 = vpop.f32.mrb[0].mxu0
      %v10554 = vpop.f32.mrb[0].mxu0
      %v10555 = vadd.f32 %v10391, %v10554
      %v10556 = vpop.f32.mrb[0].mxu0
      %10557 = vmatprep.mubr.bf16.mxu0 0
      %10558 = vmatmul.mubr.bf16.gmra.mrb[0].mxu0 %v10463
      %v10559 = vpop.f32.mrb[0].mxu0
      %v10560 = vadd.f32 %v10391, %v10559
      %v10561 = vpop.f32.mrb[0].mxu0
      %v10562 = vpop.f32.mrb[0].mxu0
      %v10563 = vadd.f32 %v10391, %v10562
      %v10564 = vpop.f32.mrb[0].mxu0
      %10565 = vmatprep.mubr.bf16.mxu0 0
      %10566 = vmatmul.mubr.bf16.gmra.mrb[0].mxu0 %v10466
      %v10567 = vpop.f32.mrb[0].mxu0
      %v10568 = vadd.f32 %v10391, %v10567
      %v10569 = vpop.f32.mrb[0].mxu0
      %v10570 = vpop.f32.mrb[0].mxu0
      %v10571 = vadd.f32 %v10391, %v10570
      %v10572 = vpop.f32.mrb[0].mxu0
      %10573 = vmatprep.mubr.bf16.mxu0 0
      %10574 = vmatmul.mubr.bf16.gmra.mrb[0].mxu0 %v10469
      %v10575 = vpop.f32.mrb[0].mxu0
      %v10576 = vadd.f32 %v10391, %v10575
      %v10577 = vpop.f32.mrb[0].mxu0
      %v10578 = vpop.f32.mrb[0].mxu0
      %v10579 = vadd.f32 %v10391, %v10578
      %v10580 = vpop.f32.mrb[0].mxu0
      %10581 = vmatprep.mubr.bf16.mxu0 0
      %10582 = vmatmul.mubr.bf16.gmra.mrb[0].mxu0 %v10472
      %v10583 = vpop.f32.mrb[0].mxu0
      %v10584 = vadd.f32 %v10391, %v10583
      %v10585 = vpop.f32.mrb[0].mxu0
      %v10586 = vpop.f32.mrb[0].mxu0
      %v10587 = vadd.f32 %v10391, %v10586
      %v10588 = vpop.f32.mrb[0].mxu0
      %10589 = vmatprep.mubr.bf16.mxu0 0
      %10590 = vmatmul.mubr.bf16.gmra.mrb[0].mxu0 %v10475
      %v10591 = vpop.f32.mrb[0].mxu0
      %v10592 = vadd.f32 %v10391, %v10591
      %v10593 = vpop.f32.mrb[0].mxu0
      %v10594 = vpop.f32.mrb[0].mxu0
      %v10595 = vadd.f32 %v10391, %v10594
      %v10596 = vpop.f32.mrb[0].mxu0
      %10597 = vmatprep.mubr.bf16.mxu0 0
      %10598 = vmatmul.mubr.bf16.gmra.mrb[0].mxu0 %v10478
      %v10599 = vpop.f32.mrb[0].mxu0
      %v10600 = vadd.f32 %v10391, %v10599
      %v10601 = vpop.f32.mrb[0].mxu0
      %v10602 = vpop.f32.mrb[0].mxu0
      %v10603 = vadd.f32 %v10391, %v10602
      %v10604 = vpop.f32.mrb[0].mxu0
      %10605 = vmatprep.mubr.bf16.mxu0 0
      %10606 = vmatmul.mubr.bf16.gmra.mrb[0].mxu0 %v10481
      %v10607 = vpop.f32.mrb[0].mxu0
      %v10608 = vadd.f32 %v10391, %v10607
      %v10609 = vpop.f32.mrb[0].mxu0
      %v10610 = vpop.f32.mrb[0].mxu0
      %v10611 = vadd.f32 %v10391, %v10610
      %v10612 = vpop.f32.mrb[0].mxu0
      %10613 = vmatprep.mubr.bf16.mxu0 0
      %10614 = vmatmul.mubr.bf16.gmra.mrb[0].mxu0 %v10484
      %v10615 = vpop.f32.mrb[0].mxu0
      %v10616 = vadd.f32 %v10391, %v10615
      %v10617 = vpop.f32.mrb[0].mxu0
      %v10618 = vpop.f32.mrb[0].mxu0
      %v10619 = vadd.f32 %v10391, %v10618
      %v10620 = vpop.f32.mrb[0].mxu0
      %10621 = vmatprep.mubr.bf16.mxu0 0
      %10622 = vmatmul.mubr.bf16.gmra.mrb[0].mxu0 %v10487
      %v10623 = vpop.f32.mrb[0].mxu0
      %v10624 = vadd.f32 %v10391, %v10623
      %v10625 = vpop.f32.mrb[0].mxu0
      %v10626 = vpop.f32.mrb[0].mxu0
      %v10627 = vadd.f32 %v10391, %v10626
      %v10628 = vpop.f32.mrb[0].mxu0
      %10629 = vmatprep.mubr.bf16.mxu0 0
      %10630 = vmatmul.mubr.bf16.gmra.mrb[0].mxu0 %v10490
      %v10631 = vpop.f32.mrb[0].mxu0
      %v10632 = vadd.f32 %v10391, %v10631
      %v10633 = vpop.f32.mrb[0].mxu0
      %v10634 = vpop.f32.mrb[0].mxu0
      %v10635 = vadd.f32 %v10391, %v10634
      %v10636 = vpop.f32.mrb[0].mxu0
      %10637 = vmatprep.mubr.bf16.mxu0 0
      %10638 = vmatmul.mubr.bf16.gmra.mrb[0].mxu0 %v10493
      %v10639 = vpop.f32.mrb[0].mxu0
      %v10640 = vadd.f32 %v10391, %v10639
      %v10641 = vpop.f32.mrb[0].mxu0
      %v10642 = vpop.f32.mrb[0].mxu0
      %v10643 = vadd.f32 %v10391, %v10642
      %v10644 = vpop.f32.mrb[0].mxu0
      %10645 = vmatprep.mubr.bf16.mxu0 0
      %10646 = vmatmul.mubr.bf16.gmra.mrb[0].mxu0 %v10496
      %v10647 = vpop.f32.mrb[0].mxu0
      %v10648 = vadd.f32 %v10391, %v10647
      %v10649 = vpop.f32.mrb[0].mxu0
      %v10650 = vpop.f32.mrb[0].mxu0
      %v10651 = vadd.f32 %v10391, %v10650
      %v10652 = vpop.f32.mrb[0].mxu0
      %10653 = vmatprep.mubr.bf16.mxu0 0
      %10654 = vmatmul.mubr.bf16.gmra.mrb[0].mxu0 %v10499
      %v10655 = vpop.f32.mrb[0].mxu0
      %v10656 = vadd.f32 %v10391, %v10655
      %v10657 = vpop.f32.mrb[0].mxu0
      %v10658 = vpop.f32.mrb[0].mxu0
      %v10659 = vadd.f32 %v10391, %v10658
      %v10660 = vpop.f32.mrb[0].mxu0
      %10661 = vdwg.mxu0
      %v10662 = vmax.f32 %v10536, 0.0
      %v10663 = vmax.f32 %v10539, 0.0
      %v10664 = vmax.f32 %v10544, 0.0
      %v10665 = vmax.f32 %v10547, 0.0
      %v10666 = vmax.f32 %v10552, 0.0
      %v10667 = vmax.f32 %v10555, 0.0
      %v10668 = vmax.f32 %v10560, 0.0
      %v10669 = vmax.f32 %v10563, 0.0
      %v10670 = vmax.f32 %v10568, 0.0
      %v10671 = vmax.f32 %v10571, 0.0
      %v10672 = vmax.f32 %v10576, 0.0
      %v10673 = vmax.f32 %v10579, 0.0
      %v10674 = vmax.f32 %v10584, 0.0
      %v10675 = vmax.f32 %v10587, 0.0
      %v10676 = vmax.f32 %v10592, 0.0
      %v10677 = vmax.f32 %v10595, 0.0
      %v10678 = vmax.f32 %v10600, 0.0
      %v10679 = vmax.f32 %v10603, 0.0
      %v10680 = vmax.f32 %v10608, 0.0
      %v10681 = vmax.f32 %v10611, 0.0
      %v10682 = vmax.f32 %v10616, 0.0
      %v10683 = vmax.f32 %v10619, 0.0
      %v10684 = vmax.f32 %v10624, 0.0
      %v10685 = vmax.f32 %v10627, 0.0
      %v10686 = vmax.f32 %v10632, 0.0
      %v10687 = vmax.f32 %v10635, 0.0
      %v10688 = vmax.f32 %v10640, 0.0
      %v10689 = vmax.f32 %v10643, 0.0
      %v10690 = vmax.f32 %v10648, 0.0
      %v10691 = vmax.f32 %v10651, 0.0
      %v10692 = vmax.f32 %v10656, 0.0
      %v10693 = vmax.f32 %v10659, 0.0
      %v10694 = vpack.c.bf16 %v10663, %v10662
      %v10695 = vpack.c.bf16 %v10665, %v10664
      %v10696 = vpack.c.bf16 %v10667, %v10666
      %v10697 = vpack.c.bf16 %v10669, %v10668
      %v10698 = vpack.c.bf16 %v10671, %v10670
      %v10699 = vpack.c.bf16 %v10673, %v10672
      %v10700 = vpack.c.bf16 %v10675, %v10674
      %v10701 = vpack.c.bf16 %v10677, %v10676
      %v10702 = vpack.c.bf16 %v10679, %v10678
      %v10703 = vpack.c.bf16 %v10681, %v10680
      %v10704 = vpack.c.bf16 %v10683, %v10682
      %v10705 = vpack.c.bf16 %v10685, %v10684
      %v10706 = vpack.c.bf16 %v10687, %v10686
      %v10707 = vpack.c.bf16 %v10689, %v10688
      %v10708 = vpack.c.bf16 %v10691, %v10690
      %v10709 = vpack.c.bf16 %v10693, %v10692
      %v10726 = vunpack.c.l.b16 %v10694
      %v10727 = vunpack.c.h.b16 %v10694
      %v10728 = vunpack.c.l.b16 %v10695
      %v10729 = vunpack.c.h.b16 %v10695
      %v10730 = vunpack.c.l.b16 %v10696
      %v10731 = vunpack.c.h.b16 %v10696
      %v10732 = vunpack.c.l.b16 %v10697
      %v10733 = vunpack.c.h.b16 %v10697
      %v10734 = vunpack.c.l.b16 %v10698
      %v10735 = vunpack.c.h.b16 %v10698
      %v10736 = vunpack.c.l.b16 %v10699
      %v10737 = vunpack.c.h.b16 %v10699
      %v10738 = vunpack.c.l.b16 %v10700
      %v10739 = vunpack.c.h.b16 %v10700
      %v10740 = vunpack.c.l.b16 %v10701
      %v10741 = vunpack.c.h.b16 %v10701
      %v10742 = vunpack.c.l.b16 %v10702
      %v10743 = vunpack.c.h.b16 %v10702
      %v10744 = vunpack.c.l.b16 %v10703
      %v10745 = vunpack.c.h.b16 %v10703
      %v10746 = vunpack.c.l.b16 %v10704
      %v10747 = vunpack.c.h.b16 %v10704
      %v10748 = vunpack.c.l.b16 %v10705
      %v10749 = vunpack.c.h.b16 %v10705
      %v10750 = vunpack.c.l.b16 %v10706
      %v10751 = vunpack.c.h.b16 %v10706
      %v10752 = vunpack.c.l.b16 %v10707
      %v10753 = vunpack.c.h.b16 %v10707
      %v10754 = vunpack.c.l.b16 %v10708
      %v10755 = vunpack.c.h.b16 %v10708
      %v10756 = vunpack.c.l.b16 %v10709
      %v10757 = vunpack.c.h.b16 %v10709
      %v10758 = vpack.c.b16 %v10726, %v10726
      %v10759 = vpack.c.b16 %v10727, %v10727
      %v10760 = vpack.c.b16 %v10728, %v10728
      %v10761 = vpack.c.b16 %v10729, %v10729
      %v10762 = vpack.c.b16 %v10730, %v10730
      %v10763 = vpack.c.b16 %v10731, %v10731
      %v10764 = vpack.c.b16 %v10732, %v10732
      %v10765 = vpack.c.b16 %v10733, %v10733
      %v10766 = vpack.c.b16 %v10734, %v10734
      %v10767 = vpack.c.b16 %v10735, %v10735
      %v10768 = vpack.c.b16 %v10736, %v10736
      %v10769 = vpack.c.b16 %v10737, %v10737
      %v10770 = vpack.c.b16 %v10738, %v10738
      %v10771 = vpack.c.b16 %v10739, %v10739
      %v10772 = vpack.c.b16 %v10740, %v10740
      %v10773 = vpack.c.b16 %v10741, %v10741
      %v10774 = vpack.c.b16 %v10742, %v10742
      %v10775 = vpack.c.b16 %v10743, %v10743
      %v10776 = vpack.c.b16 %v10744, %v10744
      %v10777 = vpack.c.b16 %v10745, %v10745
      %v10778 = vpack.c.b16 %v10746, %v10746
      %v10779 = vpack.c.b16 %v10747, %v10747
      %v10780 = vpack.c.b16 %v10748, %v10748
      %v10781 = vpack.c.b16 %v10749, %v10749
      %v10782 = vpack.c.b16 %v10750, %v10750
      %v10783 = vpack.c.b16 %v10751, %v10751
      %v10784 = vpack.c.b16 %v10752, %v10752
      %v10785 = vpack.c.b16 %v10753, %v10753
      %v10786 = vpack.c.b16 %v10754, %v10754
      %v10787 = vpack.c.b16 %v10755, %v10755
      %v10788 = vpack.c.b16 %v10756, %v10756
      %v10789 = vpack.c.b16 %v10757, %v10757
      %10790 = vrot.lane.b32.xlu0 %v10758, 32
      %v10791 = vpop.permute.xlu0 %10790
      %10792 = vrot.lane.b32.xlu0 %v10759, 32
      %v10793 = vpop.permute.xlu0 %10792
      %10794 = vrot.lane.b32.xlu0 %v10760, 32
      %v10795 = vpop.permute.xlu0 %10794
      %10796 = vrot.lane.b32.xlu0 %v10761, 32
      %v10797 = vpop.permute.xlu0 %10796
      %10798 = vrot.lane.b32.xlu0 %v10762, 32
      %v10799 = vpop.permute.xlu0 %10798
      %10800 = vrot.lane.b32.xlu0 %v10763, 32
      %v10801 = vpop.permute.xlu0 %10800
      %10802 = vrot.lane.b32.xlu0 %v10764, 32
      %v10803 = vpop.permute.xlu0 %10802
      %10804 = vrot.lane.b32.xlu0 %v10765, 32
      %v10805 = vpop.permute.xlu0 %10804
      %10806 = vrot.lane.b32.xlu0 %v10766, 32
      %v10807 = vpop.permute.xlu0 %10806
      %10808 = vrot.lane.b32.xlu0 %v10767, 32
      %v10809 = vpop.permute.xlu0 %10808
      %10810 = vrot.lane.b32.xlu0 %v10768, 32
      %v10811 = vpop.permute.xlu0 %10810
      %10812 = vrot.lane.b32.xlu0 %v10769, 32
      %v10813 = vpop.permute.xlu0 %10812
      %10814 = vrot.lane.b32.xlu0 %v10770, 32
      %v10815 = vpop.permute.xlu0 %10814
      %10816 = vrot.lane.b32.xlu0 %v10771, 32
      %v10817 = vpop.permute.xlu0 %10816
      %10818 = vrot.lane.b32.xlu0 %v10772, 32
      %v10819 = vpop.permute.xlu0 %10818
      %10820 = vrot.lane.b32.xlu0 %v10773, 32
      %v10821 = vpop.permute.xlu0 %10820
      %10822 = vrot.lane.b32.xlu0 %v10774, 32
      %v10823 = vpop.permute.xlu0 %10822
      %10824 = vrot.lane.b32.xlu0 %v10775, 32
      %v10825 = vpop.permute.xlu0 %10824
      %10826 = vrot.lane.b32.xlu0 %v10776, 32
      %v10827 = vpop.permute.xlu0 %10826
      %10828 = vrot.lane.b32.xlu0 %v10777, 32
      %v10829 = vpop.permute.xlu0 %10828
      %10830 = vrot.lane.b32.xlu0 %v10778, 32
      %v10831 = vpop.permute.xlu0 %10830
      %10832 = vrot.lane.b32.xlu0 %v10779, 32
      %v10833 = vpop.permute.xlu0 %10832
      %10834 = vrot.lane.b32.xlu0 %v10780, 32
      %v10835 = vpop.permute.xlu0 %10834
      %10836 = vrot.lane.b32.xlu0 %v10781, 32
      %v10837 = vpop.permute.xlu0 %10836
      %10838 = vrot.lane.b32.xlu0 %v10782, 32
      %v10839 = vpop.permute.xlu0 %10838
      %10840 = vrot.lane.b32.xlu0 %v10783, 32
      %v10841 = vpop.permute.xlu0 %10840
      %10842 = vrot.lane.b32.xlu0 %v10784, 32
      %v10843 = vpop.permute.xlu0 %10842
      %10844 = vrot.lane.b32.xlu0 %v10785, 32
      %v10845 = vpop.permute.xlu0 %10844
      %10846 = vrot.lane.b32.xlu0 %v10786, 32
      %v10847 = vpop.permute.xlu0 %10846
      %10848 = vrot.lane.b32.xlu0 %v10787, 32
      %v10849 = vpop.permute.xlu0 %10848
      %10850 = vrot.lane.b32.xlu0 %v10788, 32
      %v10851 = vpop.permute.xlu0 %10850
      %10852 = vrot.lane.b32.xlu0 %v10789, 32
      %v10853 = vpop.permute.xlu0 %10852
      %vm10886 = vcmask 519424
      %10887 = vst.msk [vmem:[%s386 + $0x4] sm:$0xf] %vm10886, %v10791
      %10888 = vst.msk [vmem:[%s386 + $0xc] sm:$0xf] %vm10886, %v10793
      %10889 = vst.msk [vmem:[%s386 + $0x14] sm:$0xf] %vm10886, %v10795
      %10890 = vst.msk [vmem:[%s386 + $0x1c] sm:$0xf] %vm10886, %v10797
      %10891 = vst.msk [vmem:[%s386 + $0x24] sm:$0xf] %vm10886, %v10799
      %10892 = vst.msk [vmem:[%s386 + $0x2c] sm:$0xf] %vm10886, %v10801
      %10893 = vst.msk [vmem:[%s386 + $0x34] sm:$0xf] %vm10886, %v10803
      %10894 = vst.msk [vmem:[%s386 + $0x3c] sm:$0xf] %vm10886, %v10805
      %10895 = vst.msk [vmem:[%s386 + $0x44] sm:$0xf] %vm10886, %v10807
      %10896 = vst.msk [vmem:[%s386 + $0x4c] sm:$0xf] %vm10886, %v10809
      %10897 = vst.msk [vmem:[%s386 + $0x54] sm:$0xf] %vm10886, %v10811
      %10898 = vst.msk [vmem:[%s386 + $0x5c] sm:$0xf] %vm10886, %v10813
      %10899 = vst.msk [vmem:[%s386 + $0x64] sm:$0xf] %vm10886, %v10815
      %10900 = vst.msk [vmem:[%s386 + $0x6c] sm:$0xf] %vm10886, %v10817
      %10901 = vst.msk [vmem:[%s386 + $0x74] sm:$0xf] %vm10886, %v10819
      %10902 = vst.msk [vmem:[%s386 + $0x7c] sm:$0xf] %vm10886, %v10821
      %10903 = vst.msk [vmem:[%s386 + $0x84] sm:$0xf] %vm10886, %v10823
      %10904 = vst.msk [vmem:[%s386 + $0x8c] sm:$0xf] %vm10886, %v10825
      %10905 = vst.msk [vmem:[%s386 + $0x94] sm:$0xf] %vm10886, %v10827
      %10906 = vst.msk [vmem:[%s386 + $0x9c] sm:$0xf] %vm10886, %v10829
      %10907 = vst.msk [vmem:[%s386 + $0xa4] sm:$0xf] %vm10886, %v10831
      %10908 = vst.msk [vmem:[%s386 + $0xac] sm:$0xf] %vm10886, %v10833
      %10909 = vst.msk [vmem:[%s386 + $0xb4] sm:$0xf] %vm10886, %v10835
      %10910 = vst.msk [vmem:[%s386 + $0xbc] sm:$0xf] %vm10886, %v10837
      %10911 = vst.msk [vmem:[%s386 + $0xc4] sm:$0xf] %vm10886, %v10839
      %10912 = vst.msk [vmem:[%s386 + $0xcc] sm:$0xf] %vm10886, %v10841
      %10913 = vst.msk [vmem:[%s386 + $0xd4] sm:$0xf] %vm10886, %v10843
      %10914 = vst.msk [vmem:[%s386 + $0xdc] sm:$0xf] %vm10886, %v10845
      %10915 = vst.msk [vmem:[%s386 + $0xe4] sm:$0xf] %vm10886, %v10847
      %10916 = vst.msk [vmem:[%s386 + $0xec] sm:$0xf] %vm10886, %v10849
      %10917 = vst.msk [vmem:[%s386 + $0xf4] sm:$0xf] %vm10886, %v10851
      %10918 = vst.msk [vmem:[%s386 + $0xfc] sm:$0xf] %vm10886, %v10853
      %p10919 = scmp.lt.s32.totalorder %s22, 1
      %s10920 = scalar_select %p10919, %s22, 1
      %s10921 = smul.addr %s10920, 64
      %s10922 = smul.addr %s10921, 4
      %s10923 = scalar_lea.vmem %s11, %s10922
      // Predicated region
      $region65: #{inception_forward.1} parent=63 // pred_check
        %p10924 = pneg %p276
      $region66: #{inception_forward.1} parent=63 // pred_check_branch
        %10926 = sbr.rel (%p10924) target = $region68
      $region67: #{inception_forward.1} parent=63 // pred_region
        _
      $region68: #{inception_forward.1} parent=63 // pred_fallthru
        _
    $region64: #{inception_forward.1} parent=5 // pred_fallthru
      _
    %p10927 = scmp.le.s32.totalorder 2, %s17
    // Predicated region
    $region69: #{inception_forward.1} parent=5 // pred_check
      %p10928 = pneg %p10927
    $region70: #{inception_forward.1} parent=5 // pred_check_branch
      %10930 = sbr.rel (%p10928) target = $region72
    $region71: #{inception_forward.1} parent=5 // pred_region
      %s10931 = ssub.s32 %s17, 2
      // Predicated region
      $region73: #{inception_forward.1} parent=71 // pred_check
        %p10932 = pneg %p282
      $region74: #{inception_forward.1} parent=71 // pred_check_branch
        %10934 = sbr.rel (%p10932) target = $region76
      $region75: #{inception_forward.1} parent=71 // pred_region
        %p10935 = scmp.lt.s32.totalorder %s23, 1
        %s10936 = scalar_select %p10935, %s23, 1
        %s10937 = smul.addr %s10936, 64
        %s10938 = smul.addr %s10937, 4
        %s10939 = scalar_lea.vmem %s11, %s10938
      $region76: #{inception_forward.1} parent=71 // pred_fallthru
        _
    $region72: #{inception_forward.1} parent=5 // pred_fallthru
      _
  $region6: #{inception_forward.1} parent=0 // loop_footer
    %s21 = sadd.s32 1, %s17
  $region7: #{inception_forward.1} parent=0 // loop_footer_branch
    %16 = sbr.rel target = $region3
  $region8: #{inception_forward.1} parent=0 // loop_exit
    _

</llo_original>
